<compile_context>
chip_gen: v6e
topology: v6e:2x2x1
jax: 0.10.0
libtpu: 0.0.40
codegen_flags: <defaults>
</compile_context>

<pallas_src>
import functools

import jax
import jax.numpy as jnp
from jax.experimental import pallas as pl
from jax.experimental.pallas import tpu as pltpu

H = 100            # logical LSTM hidden size
HP = 128           # lane-padded hidden size
GP = 4 * HP        # padded gate dimension for one direction (4 gate slots)
VOCAB = 1000
VP = 1024          # vocab padded for the one-hot gather matmul
EMB = 100          # embedding dim actually used by forward
EP = 128           # lane-padded embedding dim
NUM_CLASSES = 3
CP = 128           # lane-padded class dim


# --------------------------- fused model kernel ------------------------------
def _fused_model_kernel(
    tok_ref,                                 # (S*BE, 1) int32, time-major flattened token ids
    emb_ref,                                 # (VP, EP) bf16 embedding table (row 0 = padding_idx = 0)
    w1_ih, w1_hh, b1,                        # layer 1: (EP,2GP) bf16, (2HP,2GP) bf16 blockdiag, (1,2GP) f32
    w2_ih, w2_hh, b2,                        # layer 2: (2HP,2GP) bf16, (2HP,2GP) bf16 blockdiag, (1,2GP) f32
    wc1, bc1, wc2, bc2, wc3, bc3,            # classifier head (padded)
    out_ref,                                 # (B, CP) f32 log-softmax output (padded classes)
    xproj_sc,                                # (S*BE, 2GP) f32 scratch: hoisted input projections (reused per layer)
    *, S, BE, B,
):
    SB = S * BE

    # ---- in-kernel embedding gather: one-hot matmul on the MXU ---------------
    tok = tok_ref[...]                                               # (SB, 1) int32
    vocab_iota = jax.lax.broadcasted_iota(jnp.int32, (SB, VP), 1)
    onehot = jnp.where(vocab_iota == tok, 1.0, 0.0).astype(jnp.bfloat16)
    x = jnp.dot(onehot, emb_ref[...],
                preferred_element_type=jnp.float32).astype(jnp.bfloat16)   # (SB, EP) time-major

    def gate_update(gates, c):
        # PyTorch gate order (i, f, g, o); each gate is a lane-aligned 128-wide slot.
        i_g = jax.nn.sigmoid(gates[:, 0 * HP:1 * HP])
        f_g = jax.nn.sigmoid(gates[:, 1 * HP:2 * HP])
        g_g = jnp.tanh(gates[:, 2 * HP:3 * HP])
        o_g = jax.nn.sigmoid(gates[:, 3 * HP:4 * HP])
        c_new = f_g * c + i_g * g_g
        h_new = o_g * jnp.tanh(c_new)
        return h_new, c_new

    def bilstm(x_in, w_ih_ref, w_hh_ref, b_ref):
        # Hoisted input projection for BOTH directions, bias folded in once.
        # Stored to VMEM scratch; per-step reads are 8-sublane-aligned slices.
        xproj_sc[...] = (jnp.dot(x_in, w_ih_ref[...],
                                 preferred_element_type=jnp.float32) + b_ref[...])
        h_f = jnp.zeros((BE, HP), jnp.float32)
        c_f = jnp.zeros((BE, HP), jnp.float32)
        h_b = jnp.zeros((BE, HP), jnp.float32)
        c_b = jnp.zeros((BE, HP), jnp.float32)
        seq_f = [None] * S
        seq_b = [None] * S
        # S is small & static -> fully unrolled straight-line time loop.
        for step in range(S):
            t_f = step
            t_b = S - 1 - step
            # Both directions in ONE K=2*HP=256 recurrent matmul (block-diagonal W_hh).
            hcat = jnp.concatenate([h_f, h_b], axis=1).astype(jnp.bfloat16)      # (BE, 2HP)
            rec = jnp.dot(hcat, w_hh_ref[...],
                          preferred_element_type=jnp.float32)                    # (BE, 2GP)
            gates_f = rec[:, 0:GP] + xproj_sc[t_f * BE:(t_f + 1) * BE, 0:GP]
            gates_b = rec[:, GP:2 * GP] + xproj_sc[t_b * BE:(t_b + 1) * BE, GP:2 * GP]
            h_f, c_f = gate_update(gates_f, c_f)
            h_b, c_b = gate_update(gates_b, c_b)
            seq_f[t_f] = h_f
            seq_b[t_b] = h_b
        return h_f, h_b, seq_f, seq_b

    # ---- layer 1 (bidirectional) ---------------------------------------------
    _, _, s1f, s1b = bilstm(x, w1_ih, w1_hh, b1)

    # Layer-2 input: [h1_fwd(t) | h1_bwd(t)] per timestep, built once from values.
    x2 = jnp.concatenate(
        [jnp.concatenate(s1f, axis=0), jnp.concatenate(s1b, axis=0)],
        axis=1).astype(jnp.bfloat16)                                 # (SB, 2HP)

    # ---- layer 2 (bidirectional); only final hidden states are needed --------
    h2f, h2b, _, _ = bilstm(x2, w2_ih, w2_hh, b2)

    # ---- classifier head, fused as the kernel epilogue -----------------------
    # feature layout: [pre_fwd | pre_bwd | hyp_fwd | hyp_bwd], each a 128-wide slot
    feat = jnp.concatenate(
        [h2f[0:B], h2b[0:B], h2f[B:2 * B], h2b[B:2 * B]],
        axis=1).astype(jnp.bfloat16)                                 # (B, 4*HP)
    a1 = jnp.maximum(
        jnp.dot(feat, wc1[...], preferred_element_type=jnp.float32) + bc1[...], 0.0)
    a2 = jnp.maximum(
        jnp.dot(a1.astype(jnp.bfloat16), wc2[...],
                preferred_element_type=jnp.float32) + bc2[...], 0.0)
    logits = (jnp.dot(a2.astype(jnp.bfloat16), wc3[...],
                      preferred_element_type=jnp.float32) + bc3[...])   # (B, CP)
    lane = jax.lax.broadcasted_iota(jnp.int32, logits.shape, 1)
    logits = jnp.where(lane < NUM_CLASSES, logits, -1e30)           # mask padded class lanes
    m = jnp.max(logits, axis=-1, keepdims=True)
    z = logits - m
    lse = jnp.log(jnp.sum(jnp.exp(z), axis=-1, keepdims=True))
    out_ref[...] = z - lse                                          # log_softmax(dim=1)


# ------------------------------- forward -------------------------------------
def model_forward(params, x_hyp, x_pre):
    B, S = x_pre.shape
    BE = 2 * B
    BE_P = ((BE + 7) // 8) * 8        # pad stacked batch to a sublane multiple

    # Stack premise & hypothesis along batch (LSTM weights shared) -> one encoder pass.
    tokens = jnp.concatenate([x_pre, x_hyp], axis=0).astype(jnp.int32)   # (2B, S)
    if BE_P > BE:
        tokens = jnp.concatenate(
            [tokens, jnp.zeros((BE_P - BE, S), jnp.int32)], axis=0)      # pad rows use token 0
    # time-major flat ordering: row r = t * BE_P + b  (tiny int32 reshape = glue)
    tok_tm = jnp.transpose(tokens, (1, 0)).reshape(S * BE_P, 1)

    SB = S * BE_P
    flops = int(
        2 * SB * VP * EP                              # one-hot embedding gather
        + 2 * SB * EP * (2 * GP)                      # layer-1 input projection (both dirs)
        + 2 * SB * (2 * HP) * (2 * GP)                # layer-2 input projection (both dirs)
        + 2 * 2 * S * BE_P * (2 * HP) * (2 * GP)      # recurrent matmuls, 2 layers
        + 2 * B * (4 * HP * HP + HP * HP + HP * CP))  # classifier head
    transcendentals = int(2 * S * 2 * 5 * BE_P * HP + B * CP)
    operands = (tok_tm, params["emb"],
                params["w1_ih"], params["w1_hh"], params["b1"],
                params["w2_ih"], params["w2_hh"], params["b2"],
                params["wc1"], params["bc1"], params["wc2"], params["bc2"],
                params["wc3"], params["bc3"])
    bytes_accessed = int(sum(a.size * a.dtype.itemsize for a in operands) + B * CP * 4)

    kernel = functools.partial(_fused_model_kernel, S=S, BE=BE_P, B=B)
    out_padded = pl.pallas_call(
        kernel,
        out_shape=jax.ShapeDtypeStruct((B, CP), jnp.float32),
        in_specs=[pl.BlockSpec(memory_space=pltpu.MemorySpace.VMEM)
                  for _ in range(len(operands))],
        out_specs=pl.BlockSpec(memory_space=pltpu.MemorySpace.VMEM),
        scratch_shapes=[pltpu.VMEM((SB, 2 * GP), jnp.float32)],
        cost_estimate=pl.CostEstimate(flops=flops,
                                      transcendentals=transcendentals,
                                      bytes_accessed=bytes_accessed),
    )(*operands)
    return out_padded[:, :NUM_CLASSES]                               # (B, 3)


# ---------------------------- parameter init ----------------------------------
def init_params(key):
    ks = iter(jax.random.split(key, 20))

    def n(k, shape, scale=0.1):
        return (scale * jax.random.normal(k, shape)).astype(jnp.float32)

    # Embedding table, lane-padded EMB->EP, vocab-padded VOCAB->VP for the MXU
    # one-hot gather; padding_idx=0 row is zero; pre-cast to bf16.
    emb = jnp.zeros((VP, EP), jnp.float32)
    emb = emb.at[:VOCAB, :EMB].set(n(next(ks), (VOCAB, EMB)))
    emb = emb.at[0].set(0.0)
    emb = emb.astype(jnp.bfloat16)

    def put_gates(dst, w_raw, row_segs, col_base):
        # scatter raw (in_raw, 4H) weights into gate-slot layout starting at col_base
        for (src, dst_row, ln) in row_segs:
            for g in range(4):
                dst = dst.at[dst_row:dst_row + ln,
                             col_base + g * HP: col_base + g * HP + H].set(
                    w_raw[src:src + ln, g * H:(g + 1) * H])
        return dst

    def bidir_ih(in_raw, in_pad, row_segs):
        # [W_ih_fwd | W_ih_bwd] concatenated along N -> one hoisted projection matmul
        w = jnp.zeros((in_pad, 2 * GP), jnp.float32)
        w = put_gates(w, n(next(ks), (in_raw, 4 * H)), row_segs, 0)      # fwd
        w = put_gates(w, n(next(ks), (in_raw, 4 * H)), row_segs, GP)     # bwd
        return w.astype(jnp.bfloat16)

    def bidir_hh():
        # block-diagonal: h_fwd rows -> fwd gate cols, h_bwd rows -> bwd gate cols
        w = jnp.zeros((2 * HP, 2 * GP), jnp.float32)
        w = put_gates(w, n(next(ks), (H, 4 * H)), [(0, 0, H)], 0)
        w = put_gates(w, n(next(ks), (H, 4 * H)), [(0, HP, H)], GP)
        return w.astype(jnp.bfloat16)

    def bidir_bias():
        # combined b_ih + b_hh per direction, packed into the same 2GP gate layout
        b = jnp.zeros((1, 2 * GP), jnp.float32)
        for base, braw in ((0, n(next(ks), (4 * H,))), (GP, n(next(ks), (4 * H,)))):
            for g in range(4):
                b = b.at[0, base + g * HP: base + g * HP + H].set(braw[g * H:(g + 1) * H])
        return b

    l1_rows = [(0, 0, EMB)]                       # layer-1 input = padded embedding
    l2_rows = [(0, 0, H), (H, HP, H)]             # layer-2 input = [fwd slot | bwd slot]

    w1_ih = bidir_ih(EMB, EP, l1_rows)
    w1_hh = bidir_hh()
    b1 = bidir_bias()
    w2_ih = bidir_ih(2 * H, 2 * HP, l2_rows)
    w2_hh = bidir_hh()
    b2 = bidir_bias()

    def pad_dense(w_raw, row_segs, col_segs, shape):
        w = jnp.zeros(shape, jnp.float32)
        for (rs, rd, rl) in row_segs:
            for (cs, cd, cl) in col_segs:
                w = w.at[rd:rd + rl, cd:cd + cl].set(w_raw[rs:rs + rl, cs:cs + cl])
        return w

    wc1 = pad_dense(n(next(ks), (4 * H, H)),
                    [(g * H, g * HP, H) for g in range(4)], [(0, 0, H)],
                    (4 * HP, HP)).astype(jnp.bfloat16)
    bc1 = jnp.zeros((1, HP), jnp.float32).at[0, :H].set(n(next(ks), (H,)))
    wc2 = pad_dense(n(next(ks), (H, H)), [(0, 0, H)], [(0, 0, H)],
                    (HP, HP)).astype(jnp.bfloat16)
    bc2 = jnp.zeros((1, HP), jnp.float32).at[0, :H].set(n(next(ks), (H,)))
    wc3 = pad_dense(n(next(ks), (H, NUM_CLASSES)), [(0, 0, H)], [(0, 0, NUM_CLASSES)],
                    (HP, CP)).astype(jnp.bfloat16)
    bc3 = jnp.zeros((1, CP), jnp.float32).at[0, :NUM_CLASSES].set(
        n(next(ks), (NUM_CLASSES,)))

    return dict(emb=emb,
                w1_ih=w1_ih, w1_hh=w1_hh, b1=b1,
                w2_ih=w2_ih, w2_hh=w2_hh, b2=b2,
                wc1=wc1, bc1=bc1, wc2=wc2, bc2=bc2, wc3=wc3, bc3=bc3)


if __name__ == "__main__":
    key = jax.random.PRNGKey(0)
    pkey, k1, k2 = jax.random.split(key, 3)
    params = init_params(pkey)

    B, S = 2, 8
    x_hyp = jax.random.randint(k1, (B, S), 0, VOCAB, dtype=jnp.int32)
    x_pre = jax.random.randint(k2, (B, S), 0, VOCAB, dtype=jnp.int32)

    out = jax.jit(model_forward)(params, x_hyp, x_pre)
    out = jax.block_until_ready(out)
    assert out.shape == (B, NUM_CLASSES)
    assert out.dtype == jnp.float32
    print("KERNEL_OK")
</pallas_src>

<mosaic_0001>
module attributes {stable_mosaic.version = 11 : i64} {
  func.func @_fused_model_kernel(%arg0: memref<64x1xi32, #tpu.memory_space<vmem>>, %arg1: memref<1024x128xbf16, #tpu.memory_space<vmem>>, %arg2: memref<128x1024xbf16, #tpu.memory_space<vmem>>, %arg3: memref<256x1024xbf16, #tpu.memory_space<vmem>>, %arg4: memref<1x1024xf32, #tpu.memory_space<vmem>>, %arg5: memref<256x1024xbf16, #tpu.memory_space<vmem>>, %arg6: memref<256x1024xbf16, #tpu.memory_space<vmem>>, %arg7: memref<1x1024xf32, #tpu.memory_space<vmem>>, %arg8: memref<512x128xbf16, #tpu.memory_space<vmem>>, %arg9: memref<1x128xf32, #tpu.memory_space<vmem>>, %arg10: memref<128x128xbf16, #tpu.memory_space<vmem>>, %arg11: memref<1x128xf32, #tpu.memory_space<vmem>>, %arg12: memref<128x128xbf16, #tpu.memory_space<vmem>>, %arg13: memref<1x128xf32, #tpu.memory_space<vmem>>, %arg14: memref<2x128xf32, #tpu.memory_space<vmem>>, %arg15: memref<64x1024xf32, #tpu.memory_space<vmem>>) attributes {dimension_semantics = [], scalar_prefetch = 0 : i64, scratch_operands = 1 : i64, tpu.core_type = #tpu.core_type<tc>} {
    %c0 = arith.constant 0 : index
    %c0_0 = arith.constant 0 : index
    %0 = vector.load %arg0[%c0, %c0_0] : memref<64x1xi32, #tpu.memory_space<vmem>>, vector<64x1xi32>
    %1 = tpu.iota {dimensions = array<i32: 1>} : vector<64x1024xi32>
    %2 = vector.broadcast %0 : vector<64x1xi32> to vector<64x1024xi32>
    %3 = arith.cmpi eq, %1, %2 : vector<64x1024xi32>
    %cst = arith.constant 1.000000e+00 : f32
    %cst_1 = arith.constant 0.000000e+00 : f32
    %4 = vector.broadcast %cst : f32 to vector<64x1024xf32>
    %5 = vector.broadcast %cst_1 : f32 to vector<64x1024xf32>
    %6 = arith.select %3, %4, %5 : vector<64x1024xi1>, vector<64x1024xf32>
    %7 = arith.truncf %6 : vector<64x1024xf32> to vector<64x1024xbf16>
    %c0_2 = arith.constant 0 : index
    %c0_3 = arith.constant 0 : index
    %8 = vector.load %arg1[%c0_2, %c0_3] : memref<1024x128xbf16, #tpu.memory_space<vmem>>, vector<1024x128xbf16>
    %cst_4 = arith.constant dense<0.000000e+00> : vector<64x128xf32>
    %9 = tpu.matmul %7, %8, %cst_4 {dimension_numbers = #tpu.dot_dimension_numbers<[1], [0], [0], [1], [0, 0, 1, 1], [], []>} : vector<64x1024xbf16>, vector<1024x128xbf16>, vector<64x128xf32> -> vector<64x128xf32>
    %10 = arith.truncf %9 : vector<64x128xf32> to vector<64x128xbf16>
    %c0_5 = arith.constant 0 : index
    %c0_6 = arith.constant 0 : index
    %11 = vector.load %arg2[%c0_5, %c0_6] : memref<128x1024xbf16, #tpu.memory_space<vmem>>, vector<128x1024xbf16>
    %cst_7 = arith.constant dense<0.000000e+00> : vector<64x1024xf32>
    %12 = tpu.matmul %10, %11, %cst_7 {dimension_numbers = #tpu.dot_dimension_numbers<[1], [0], [0], [1], [0, 0, 1, 1], [], []>} : vector<64x128xbf16>, vector<128x1024xbf16>, vector<64x1024xf32> -> vector<64x1024xf32>
    %c0_8 = arith.constant 0 : index
    %c0_9 = arith.constant 0 : index
    %13 = vector.load %arg4[%c0_8, %c0_9] : memref<1x1024xf32, #tpu.memory_space<vmem>>, vector<1x1024xf32>
    %14 = vector.broadcast %13 : vector<1x1024xf32> to vector<64x1024xf32>
    %15 = arith.addf %12, %14 : vector<64x1024xf32>
    %c0_10 = arith.constant 0 : index
    %c0_11 = arith.constant 0 : index
    %16 = vector.load %arg15[%c0_10, %c0_11] : memref<64x1024xf32, #tpu.memory_space<vmem>>, vector<64x1024xf32>
    tpu.vector_store %arg15[%c0_10, %c0_11], %15 {strides = array<i32>} : memref<64x1024xf32, #tpu.memory_space<vmem>>, vector<64x1024xf32>,
    %cst_12 = arith.constant 0.000000e+00 : f32
    %17 = vector.broadcast %cst_12 : f32 to vector<8x128xf32>
    %cst_13 = arith.constant 0.000000e+00 : f32
    %18 = vector.broadcast %cst_13 : f32 to vector<8x128xf32>
    %cst_14 = arith.constant 0.000000e+00 : f32
    %19 = vector.broadcast %cst_14 : f32 to vector<8x128xf32>
    %cst_15 = arith.constant 0.000000e+00 : f32
    %20 = vector.broadcast %cst_15 : f32 to vector<8x128xf32>
    %21 = tpu.concatenate %17, %19 in 1 : vector<8x128xf32>, vector<8x128xf32> -> vector<8x256xf32>
    %22 = arith.truncf %21 : vector<8x256xf32> to vector<8x256xbf16>
    %c0_16 = arith.constant 0 : index
    %c0_17 = arith.constant 0 : index
    %23 = vector.load %arg3[%c0_16, %c0_17] : memref<256x1024xbf16, #tpu.memory_space<vmem>>, vector<256x1024xbf16>
    %cst_18 = arith.constant dense<0.000000e+00> : vector<8x1024xf32>
    %24 = tpu.matmul %22, %23, %cst_18 {dimension_numbers = #tpu.dot_dimension_numbers<[1], [0], [0], [1], [0, 0, 1, 1], [], []>} : vector<8x256xbf16>, vector<256x1024xbf16>, vector<8x1024xf32> -> vector<8x1024xf32>
    %25 = vector.extract_strided_slice %24 {offsets = [0, 0], sizes = [8, 512], strides = [1, 1]} : vector<8x1024xf32> to vector<8x512xf32>
    %c0_19 = arith.constant 0 : index
    %c0_20 = arith.constant 0 : index
    %26 = vector.load %arg15[%c0_19, %c0_20] : memref<64x1024xf32, #tpu.memory_space<vmem>>, vector<8x512xf32>
    %27 = arith.addf %25, %26 : vector<8x512xf32>
    %28 = vector.extract_strided_slice %24 {offsets = [0, 512], sizes = [8, 512], strides = [1, 1]} : vector<8x1024xf32> to vector<8x512xf32>
    %c56 = arith.constant 56 : index
    %c512 = arith.constant 512 : index
    %29 = vector.load %arg15[%c56, %c512] : memref<64x1024xf32, #tpu.memory_space<vmem>>, vector<8x512xf32>
    %30 = arith.addf %28, %29 : vector<8x512xf32>
    %31 = vector.extract_strided_slice %27 {offsets = [0, 0], sizes = [8, 128], strides = [1, 1]} : vector<8x512xf32> to vector<8x128xf32>
    %32 = arith.negf %31 : vector<8x128xf32>
    %33 = math.exp %32 : vector<8x128xf32>
    %cst_21 = arith.constant 1.000000e+00 : f32
    %34 = vector.broadcast %cst_21 : f32 to vector<8x128xf32>
    %35 = arith.addf %34, %33 : vector<8x128xf32>
    %36 = arith.divf %34, %35 : vector<8x128xf32>
    %37 = vector.extract_strided_slice %27 {offsets = [0, 128], sizes = [8, 128], strides = [1, 1]} : vector<8x512xf32> to vector<8x128xf32>
    %38 = arith.negf %37 : vector<8x128xf32>
    %39 = math.exp %38 : vector<8x128xf32>
    %cst_22 = arith.constant 1.000000e+00 : f32
    %40 = vector.broadcast %cst_22 : f32 to vector<8x128xf32>
    %41 = arith.addf %40, %39 : vector<8x128xf32>
    %42 = arith.divf %40, %41 : vector<8x128xf32>
    %43 = vector.extract_strided_slice %27 {offsets = [0, 256], sizes = [8, 128], strides = [1, 1]} : vector<8x512xf32> to vector<8x128xf32>
    %44 = math.tanh %43 : vector<8x128xf32>
    %45 = vector.extract_strided_slice %27 {offsets = [0, 384], sizes = [8, 128], strides = [1, 1]} : vector<8x512xf32> to vector<8x128xf32>
    %46 = arith.negf %45 : vector<8x128xf32>
    %47 = math.exp %46 : vector<8x128xf32>
    %cst_23 = arith.constant 1.000000e+00 : f32
    %48 = vector.broadcast %cst_23 : f32 to vector<8x128xf32>
    %49 = arith.addf %48, %47 : vector<8x128xf32>
    %50 = arith.divf %48, %49 : vector<8x128xf32>
    %51 = arith.mulf %42, %18 : vector<8x128xf32>
    %52 = arith.mulf %36, %44 : vector<8x128xf32>
    %53 = arith.addf %51, %52 : vector<8x128xf32>
    %54 = math.tanh %53 : vector<8x128xf32>
    %55 = arith.mulf %50, %54 : vector<8x128xf32>
    %56 = vector.extract_strided_slice %30 {offsets = [0, 0], sizes = [8, 128], strides = [1, 1]} : vector<8x512xf32> to vector<8x128xf32>
    %57 = arith.negf %56 : vector<8x128xf32>
    %58 = math.exp %57 : vector<8x128xf32>
    %cst_24 = arith.constant 1.000000e+00 : f32
    %59 = vector.broadcast %cst_24 : f32 to vector<8x128xf32>
    %60 = arith.addf %59, %58 : vector<8x128xf32>
    %61 = arith.divf %59, %60 : vector<8x128xf32>
    %62 = vector.extract_strided_slice %30 {offsets = [0, 128], sizes = [8, 128], strides = [1, 1]} : vector<8x512xf32> to vector<8x128xf32>
    %63 = arith.negf %62 : vector<8x128xf32>
    %64 = math.exp %63 : vector<8x128xf32>
    %cst_25 = arith.constant 1.000000e+00 : f32
    %65 = vector.broadcast %cst_25 : f32 to vector<8x128xf32>
    %66 = arith.addf %65, %64 : vector<8x128xf32>
    %67 = arith.divf %65, %66 : vector<8x128xf32>
    %68 = vector.extract_strided_slice %30 {offsets = [0, 256], sizes = [8, 128], strides = [1, 1]} : vector<8x512xf32> to vector<8x128xf32>
    %69 = math.tanh %68 : vector<8x128xf32>
    %70 = vector.extract_strided_slice %30 {offsets = [0, 384], sizes = [8, 128], strides = [1, 1]} : vector<8x512xf32> to vector<8x128xf32>
    %71 = arith.negf %70 : vector<8x128xf32>
    %72 = math.exp %71 : vector<8x128xf32>
    %cst_26 = arith.constant 1.000000e+00 : f32
    %73 = vector.broadcast %cst_26 : f32 to vector<8x128xf32>
    %74 = arith.addf %73, %72 : vector<8x128xf32>
    %75 = arith.divf %73, %74 : vector<8x128xf32>
    %76 = arith.mulf %67, %20 : vector<8x128xf32>
    %77 = arith.mulf %61, %69 : vector<8x128xf32>
    %78 = arith.addf %76, %77 : vector<8x128xf32>
    %79 = math.tanh %78 : vector<8x128xf32>
    %80 = arith.mulf %75, %79 : vector<8x128xf32>
    %81 = tpu.concatenate %55, %80 in 1 : vector<8x128xf32>, vector<8x128xf32> -> vector<8x256xf32>
    %82 = arith.truncf %81 : vector<8x256xf32> to vector<8x256xbf16>
    %c0_27 = arith.constant 0 : index
    %c0_28 = arith.constant 0 : index
    %83 = vector.load %arg3[%c0_27, %c0_28] : memref<256x1024xbf16, #tpu.memory_space<vmem>>, vector<256x1024xbf16>
    %cst_29 = arith.constant dense<0.000000e+00> : vector<8x1024xf32>
    %84 = tpu.matmul %82, %83, %cst_29 {dimension_numbers = #tpu.dot_dimension_numbers<[1], [0], [0], [1], [0, 0, 1, 1], [], []>} : vector<8x256xbf16>, vector<256x1024xbf16>, vector<8x1024xf32> -> vector<8x1024xf32>
    %85 = vector.extract_strided_slice %84 {offsets = [0, 0], sizes = [8, 512], strides = [1, 1]} : vector<8x1024xf32> to vector<8x512xf32>
    %c8 = arith.constant 8 : index
    %c0_30 = arith.constant 0 : index
    %86 = vector.load %arg15[%c8, %c0_30] : memref<64x1024xf32, #tpu.memory_space<vmem>>, vector<8x512xf32>
    %87 = arith.addf %85, %86 : vector<8x512xf32>
    %88 = vector.extract_strided_slice %84 {offsets = [0, 512], sizes = [8, 512], strides = [1, 1]} : vector<8x1024xf32> to vector<8x512xf32>
    %c48 = arith.constant 48 : index
    %c512_31 = arith.constant 512 : index
    %89 = vector.load %arg15[%c48, %c512_31] : memref<64x1024xf32, #tpu.memory_space<vmem>>, vector<8x512xf32>
    %90 = arith.addf %88, %89 : vector<8x512xf32>
    %91 = vector.extract_strided_slice %87 {offsets = [0, 0], sizes = [8, 128], strides = [1, 1]} : vector<8x512xf32> to vector<8x128xf32>
    %92 = arith.negf %91 : vector<8x128xf32>
    %93 = math.exp %92 : vector<8x128xf32>
    %cst_32 = arith.constant 1.000000e+00 : f32
    %94 = vector.broadcast %cst_32 : f32 to vector<8x128xf32>
    %95 = arith.addf %94, %93 : vector<8x128xf32>
    %96 = arith.divf %94, %95 : vector<8x128xf32>
    %97 = vector.extract_strided_slice %87 {offsets = [0, 128], sizes = [8, 128], strides = [1, 1]} : vector<8x512xf32> to vector<8x128xf32>
    %98 = arith.negf %97 : vector<8x128xf32>
    %99 = math.exp %98 : vector<8x128xf32>
    %cst_33 = arith.constant 1.000000e+00 : f32
    %100 = vector.broadcast %cst_33 : f32 to vector<8x128xf32>
    %101 = arith.addf %100, %99 : vector<8x128xf32>
    %102 = arith.divf %100, %101 : vector<8x128xf32>
    %103 = vector.extract_strided_slice %87 {offsets = [0, 256], sizes = [8, 128], strides = [1, 1]} : vector<8x512xf32> to vector<8x128xf32>
    %104 = math.tanh %103 : vector<8x128xf32>
    %105 = vector.extract_strided_slice %87 {offsets = [0, 384], sizes = [8, 128], strides = [1, 1]} : vector<8x512xf32> to vector<8x128xf32>
    %106 = arith.negf %105 : vector<8x128xf32>
    %107 = math.exp %106 : vector<8x128xf32>
    %cst_34 = arith.constant 1.000000e+00 : f32
    %108 = vector.broadcast %cst_34 : f32 to vector<8x128xf32>
    %109 = arith.addf %108, %107 : vector<8x128xf32>
    %110 = arith.divf %108, %109 : vector<8x128xf32>
    %111 = arith.mulf %102, %53 : vector<8x128xf32>
    %112 = arith.mulf %96, %104 : vector<8x128xf32>
    %113 = arith.addf %111, %112 : vector<8x128xf32>
    %114 = math.tanh %113 : vector<8x128xf32>
    %115 = arith.mulf %110, %114 : vector<8x128xf32>
    %116 = vector.extract_strided_slice %90 {offsets = [0, 0], sizes = [8, 128], strides = [1, 1]} : vector<8x512xf32> to vector<8x128xf32>
    %117 = arith.negf %116 : vector<8x128xf32>
    %118 = math.exp %117 : vector<8x128xf32>
    %cst_35 = arith.constant 1.000000e+00 : f32
    %119 = vector.broadcast %cst_35 : f32 to vector<8x128xf32>
    %120 = arith.addf %119, %118 : vector<8x128xf32>
    %121 = arith.divf %119, %120 : vector<8x128xf32>
    %122 = vector.extract_strided_slice %90 {offsets = [0, 128], sizes = [8, 128], strides = [1, 1]} : vector<8x512xf32> to vector<8x128xf32>
    %123 = arith.negf %122 : vector<8x128xf32>
    %124 = math.exp %123 : vector<8x128xf32>
    %cst_36 = arith.constant 1.000000e+00 : f32
    %125 = vector.broadcast %cst_36 : f32 to vector<8x128xf32>
    %126 = arith.addf %125, %124 : vector<8x128xf32>
    %127 = arith.divf %125, %126 : vector<8x128xf32>
    %128 = vector.extract_strided_slice %90 {offsets = [0, 256], sizes = [8, 128], strides = [1, 1]} : vector<8x512xf32> to vector<8x128xf32>
    %129 = math.tanh %128 : vector<8x128xf32>
    %130 = vector.extract_strided_slice %90 {offsets = [0, 384], sizes = [8, 128], strides = [1, 1]} : vector<8x512xf32> to vector<8x128xf32>
    %131 = arith.negf %130 : vector<8x128xf32>
    %132 = math.exp %131 : vector<8x128xf32>
    %cst_37 = arith.constant 1.000000e+00 : f32
    %133 = vector.broadcast %cst_37 : f32 to vector<8x128xf32>
    %134 = arith.addf %133, %132 : vector<8x128xf32>
    %135 = arith.divf %133, %134 : vector<8x128xf32>
    %136 = arith.mulf %127, %78 : vector<8x128xf32>
    %137 = arith.mulf %121, %129 : vector<8x128xf32>
    %138 = arith.addf %136, %137 : vector<8x128xf32>
    %139 = math.tanh %138 : vector<8x128xf32>
    %140 = arith.mulf %135, %139 : vector<8x128xf32>
    %141 = tpu.concatenate %115, %140 in 1 : vector<8x128xf32>, vector<8x128xf32> -> vector<8x256xf32>
    %142 = arith.truncf %141 : vector<8x256xf32> to vector<8x256xbf16>
    %c0_38 = arith.constant 0 : index
    %c0_39 = arith.constant 0 : index
    %143 = vector.load %arg3[%c0_38, %c0_39] : memref<256x1024xbf16, #tpu.memory_space<vmem>>, vector<256x1024xbf16>
    %cst_40 = arith.constant dense<0.000000e+00> : vector<8x1024xf32>
    %144 = tpu.matmul %142, %143, %cst_40 {dimension_numbers = #tpu.dot_dimension_numbers<[1], [0], [0], [1], [0, 0, 1, 1], [], []>} : vector<8x256xbf16>, vector<256x1024xbf16>, vector<8x1024xf32> -> vector<8x1024xf32>
    %145 = vector.extract_strided_slice %144 {offsets = [0, 0], sizes = [8, 512], strides = [1, 1]} : vector<8x1024xf32> to vector<8x512xf32>
    %c16 = arith.constant 16 : index
    %c0_41 = arith.constant 0 : index
    %146 = vector.load %arg15[%c16, %c0_41] : memref<64x1024xf32, #tpu.memory_space<vmem>>, vector<8x512xf32>
    %147 = arith.addf %145, %146 : vector<8x512xf32>
    %148 = vector.extract_strided_slice %144 {offsets = [0, 512], sizes = [8, 512], strides = [1, 1]} : vector<8x1024xf32> to vector<8x512xf32>
    %c40 = arith.constant 40 : index
    %c512_42 = arith.constant 512 : index
    %149 = vector.load %arg15[%c40, %c512_42] : memref<64x1024xf32, #tpu.memory_space<vmem>>, vector<8x512xf32>
    %150 = arith.addf %148, %149 : vector<8x512xf32>
    %151 = vector.extract_strided_slice %147 {offsets = [0, 0], sizes = [8, 128], strides = [1, 1]} : vector<8x512xf32> to vector<8x128xf32>
    %152 = arith.negf %151 : vector<8x128xf32>
    %153 = math.exp %152 : vector<8x128xf32>
    %cst_43 = arith.constant 1.000000e+00 : f32
    %154 = vector.broadcast %cst_43 : f32 to vector<8x128xf32>
    %155 = arith.addf %154, %153 : vector<8x128xf32>
    %156 = arith.divf %154, %155 : vector<8x128xf32>
    %157 = vector.extract_strided_slice %147 {offsets = [0, 128], sizes = [8, 128], strides = [1, 1]} : vector<8x512xf32> to vector<8x128xf32>
    %158 = arith.negf %157 : vector<8x128xf32>
    %159 = math.exp %158 : vector<8x128xf32>
    %cst_44 = arith.constant 1.000000e+00 : f32
    %160 = vector.broadcast %cst_44 : f32 to vector<8x128xf32>
    %161 = arith.addf %160, %159 : vector<8x128xf32>
    %162 = arith.divf %160, %161 : vector<8x128xf32>
    %163 = vector.extract_strided_slice %147 {offsets = [0, 256], sizes = [8, 128], strides = [1, 1]} : vector<8x512xf32> to vector<8x128xf32>
    %164 = math.tanh %163 : vector<8x128xf32>
    %165 = vector.extract_strided_slice %147 {offsets = [0, 384], sizes = [8, 128], strides = [1, 1]} : vector<8x512xf32> to vector<8x128xf32>
    %166 = arith.negf %165 : vector<8x128xf32>
    %167 = math.exp %166 : vector<8x128xf32>
    %cst_45 = arith.constant 1.000000e+00 : f32
    %168 = vector.broadcast %cst_45 : f32 to vector<8x128xf32>
    %169 = arith.addf %168, %167 : vector<8x128xf32>
    %170 = arith.divf %168, %169 : vector<8x128xf32>
    %171 = arith.mulf %162, %113 : vector<8x128xf32>
    %172 = arith.mulf %156, %164 : vector<8x128xf32>
    %173 = arith.addf %171, %172 : vector<8x128xf32>
    %174 = math.tanh %173 : vector<8x128xf32>
    %175 = arith.mulf %170, %174 : vector<8x128xf32>
    %176 = vector.extract_strided_slice %150 {offsets = [0, 0], sizes = [8, 128], strides = [1, 1]} : vector<8x512xf32> to vector<8x128xf32>
    %177 = arith.negf %176 : vector<8x128xf32>
    %178 = math.exp %177 : vector<8x128xf32>
    %cst_46 = arith.constant 1.000000e+00 : f32
    %179 = vector.broadcast %cst_46 : f32 to vector<8x128xf32>
    %180 = arith.addf %179, %178 : vector<8x128xf32>
    %181 = arith.divf %179, %180 : vector<8x128xf32>
    %182 = vector.extract_strided_slice %150 {offsets = [0, 128], sizes = [8, 128], strides = [1, 1]} : vector<8x512xf32> to vector<8x128xf32>
    %183 = arith.negf %182 : vector<8x128xf32>
    %184 = math.exp %183 : vector<8x128xf32>
    %cst_47 = arith.constant 1.000000e+00 : f32
    %185 = vector.broadcast %cst_47 : f32 to vector<8x128xf32>
    %186 = arith.addf %185, %184 : vector<8x128xf32>
    %187 = arith.divf %185, %186 : vector<8x128xf32>
    %188 = vector.extract_strided_slice %150 {offsets = [0, 256], sizes = [8, 128], strides = [1, 1]} : vector<8x512xf32> to vector<8x128xf32>
    %189 = math.tanh %188 : vector<8x128xf32>
    %190 = vector.extract_strided_slice %150 {offsets = [0, 384], sizes = [8, 128], strides = [1, 1]} : vector<8x512xf32> to vector<8x128xf32>
    %191 = arith.negf %190 : vector<8x128xf32>
    %192 = math.exp %191 : vector<8x128xf32>
    %cst_48 = arith.constant 1.000000e+00 : f32
    %193 = vector.broadcast %cst_48 : f32 to vector<8x128xf32>
    %194 = arith.addf %193, %192 : vector<8x128xf32>
    %195 = arith.divf %193, %194 : vector<8x128xf32>
    %196 = arith.mulf %187, %138 : vector<8x128xf32>
    %197 = arith.mulf %181, %189 : vector<8x128xf32>
    %198 = arith.addf %196, %197 : vector<8x128xf32>
    %199 = math.tanh %198 : vector<8x128xf32>
    %200 = arith.mulf %195, %199 : vector<8x128xf32>
    %201 = tpu.concatenate %175, %200 in 1 : vector<8x128xf32>, vector<8x128xf32> -> vector<8x256xf32>
    %202 = arith.truncf %201 : vector<8x256xf32> to vector<8x256xbf16>
    %c0_49 = arith.constant 0 : index
    %c0_50 = arith.constant 0 : index
    %203 = vector.load %arg3[%c0_49, %c0_50] : memref<256x1024xbf16, #tpu.memory_space<vmem>>, vector<256x1024xbf16>
    %cst_51 = arith.constant dense<0.000000e+00> : vector<8x1024xf32>
    %204 = tpu.matmul %202, %203, %cst_51 {dimension_numbers = #tpu.dot_dimension_numbers<[1], [0], [0], [1], [0, 0, 1, 1], [], []>} : vector<8x256xbf16>, vector<256x1024xbf16>, vector<8x1024xf32> -> vector<8x1024xf32>
    %205 = vector.extract_strided_slice %204 {offsets = [0, 0], sizes = [8, 512], strides = [1, 1]} : vector<8x1024xf32> to vector<8x512xf32>
    %c24 = arith.constant 24 : index
    %c0_52 = arith.constant 0 : index
    %206 = vector.load %arg15[%c24, %c0_52] : memref<64x1024xf32, #tpu.memory_space<vmem>>, vector<8x512xf32>
    %207 = arith.addf %205, %206 : vector<8x512xf32>
    %208 = vector.extract_strided_slice %204 {offsets = [0, 512], sizes = [8, 512], strides = [1, 1]} : vector<8x1024xf32> to vector<8x512xf32>
    %c32 = arith.constant 32 : index
    %c512_53 = arith.constant 512 : index
    %209 = vector.load %arg15[%c32, %c512_53] : memref<64x1024xf32, #tpu.memory_space<vmem>>, vector<8x512xf32>
    %210 = arith.addf %208, %209 : vector<8x512xf32>
    %211 = vector.extract_strided_slice %207 {offsets = [0, 0], sizes = [8, 128], strides = [1, 1]} : vector<8x512xf32> to vector<8x128xf32>
    %212 = arith.negf %211 : vector<8x128xf32>
    %213 = math.exp %212 : vector<8x128xf32>
    %cst_54 = arith.constant 1.000000e+00 : f32
    %214 = vector.broadcast %cst_54 : f32 to vector<8x128xf32>
    %215 = arith.addf %214, %213 : vector<8x128xf32>
    %216 = arith.divf %214, %215 : vector<8x128xf32>
    %217 = vector.extract_strided_slice %207 {offsets = [0, 128], sizes = [8, 128], strides = [1, 1]} : vector<8x512xf32> to vector<8x128xf32>
    %218 = arith.negf %217 : vector<8x128xf32>
    %219 = math.exp %218 : vector<8x128xf32>
    %cst_55 = arith.constant 1.000000e+00 : f32
    %220 = vector.broadcast %cst_55 : f32 to vector<8x128xf32>
    %221 = arith.addf %220, %219 : vector<8x128xf32>
    %222 = arith.divf %220, %221 : vector<8x128xf32>
    %223 = vector.extract_strided_slice %207 {offsets = [0, 256], sizes = [8, 128], strides = [1, 1]} : vector<8x512xf32> to vector<8x128xf32>
    %224 = math.tanh %223 : vector<8x128xf32>
    %225 = vector.extract_strided_slice %207 {offsets = [0, 384], sizes = [8, 128], strides = [1, 1]} : vector<8x512xf32> to vector<8x128xf32>
    %226 = arith.negf %225 : vector<8x128xf32>
    %227 = math.exp %226 : vector<8x128xf32>
    %cst_56 = arith.constant 1.000000e+00 : f32
    %228 = vector.broadcast %cst_56 : f32 to vector<8x128xf32>
    %229 = arith.addf %228, %227 : vector<8x128xf32>
    %230 = arith.divf %228, %229 : vector<8x128xf32>
    %231 = arith.mulf %222, %173 : vector<8x128xf32>
    %232 = arith.mulf %216, %224 : vector<8x128xf32>
    %233 = arith.addf %231, %232 : vector<8x128xf32>
    %234 = math.tanh %233 : vector<8x128xf32>
    %235 = arith.mulf %230, %234 : vector<8x128xf32>
    %236 = vector.extract_strided_slice %210 {offsets = [0, 0], sizes = [8, 128], strides = [1, 1]} : vector<8x512xf32> to vector<8x128xf32>
    %237 = arith.negf %236 : vector<8x128xf32>
    %238 = math.exp %237 : vector<8x128xf32>
    %cst_57 = arith.constant 1.000000e+00 : f32
    %239 = vector.broadcast %cst_57 : f32 to vector<8x128xf32>
    %240 = arith.addf %239, %238 : vector<8x128xf32>
    %241 = arith.divf %239, %240 : vector<8x128xf32>
    %242 = vector.extract_strided_slice %210 {offsets = [0, 128], sizes = [8, 128], strides = [1, 1]} : vector<8x512xf32> to vector<8x128xf32>
    %243 = arith.negf %242 : vector<8x128xf32>
    %244 = math.exp %243 : vector<8x128xf32>
    %cst_58 = arith.constant 1.000000e+00 : f32
    %245 = vector.broadcast %cst_58 : f32 to vector<8x128xf32>
    %246 = arith.addf %245, %244 : vector<8x128xf32>
    %247 = arith.divf %245, %246 : vector<8x128xf32>
    %248 = vector.extract_strided_slice %210 {offsets = [0, 256], sizes = [8, 128], strides = [1, 1]} : vector<8x512xf32> to vector<8x128xf32>
    %249 = math.tanh %248 : vector<8x128xf32>
    %250 = vector.extract_strided_slice %210 {offsets = [0, 384], sizes = [8, 128], strides = [1, 1]} : vector<8x512xf32> to vector<8x128xf32>
    %251 = arith.negf %250 : vector<8x128xf32>
    %252 = math.exp %251 : vector<8x128xf32>
    %cst_59 = arith.constant 1.000000e+00 : f32
    %253 = vector.broadcast %cst_59 : f32 to vector<8x128xf32>
    %254 = arith.addf %253, %252 : vector<8x128xf32>
    %255 = arith.divf %253, %254 : vector<8x128xf32>
    %256 = arith.mulf %247, %198 : vector<8x128xf32>
    %257 = arith.mulf %241, %249 : vector<8x128xf32>
    %258 = arith.addf %256, %257 : vector<8x128xf32>
    %259 = math.tanh %258 : vector<8x128xf32>
    %260 = arith.mulf %255, %259 : vector<8x128xf32>
    %261 = tpu.concatenate %235, %260 in 1 : vector<8x128xf32>, vector<8x128xf32> -> vector<8x256xf32>
    %262 = arith.truncf %261 : vector<8x256xf32> to vector<8x256xbf16>
    %c0_60 = arith.constant 0 : index
    %c0_61 = arith.constant 0 : index
    %263 = vector.load %arg3[%c0_60, %c0_61] : memref<256x1024xbf16, #tpu.memory_space<vmem>>, vector<256x1024xbf16>
    %cst_62 = arith.constant dense<0.000000e+00> : vector<8x1024xf32>
    %264 = tpu.matmul %262, %263, %cst_62 {dimension_numbers = #tpu.dot_dimension_numbers<[1], [0], [0], [1], [0, 0, 1, 1], [], []>} : vector<8x256xbf16>, vector<256x1024xbf16>, vector<8x1024xf32> -> vector<8x1024xf32>
    %265 = vector.extract_strided_slice %264 {offsets = [0, 0], sizes = [8, 512], strides = [1, 1]} : vector<8x1024xf32> to vector<8x512xf32>
    %c32_63 = arith.constant 32 : index
    %c0_64 = arith.constant 0 : index
    %266 = vector.load %arg15[%c32_63, %c0_64] : memref<64x1024xf32, #tpu.memory_space<vmem>>, vector<8x512xf32>
    %267 = arith.addf %265, %266 : vector<8x512xf32>
    %268 = vector.extract_strided_slice %264 {offsets = [0, 512], sizes = [8, 512], strides = [1, 1]} : vector<8x1024xf32> to vector<8x512xf32>
    %c24_65 = arith.constant 24 : index
    %c512_66 = arith.constant 512 : index
    %269 = vector.load %arg15[%c24_65, %c512_66] : memref<64x1024xf32, #tpu.memory_space<vmem>>, vector<8x512xf32>
    %270 = arith.addf %268, %269 : vector<8x512xf32>
    %271 = vector.extract_strided_slice %267 {offsets = [0, 0], sizes = [8, 128], strides = [1, 1]} : vector<8x512xf32> to vector<8x128xf32>
    %272 = arith.negf %271 : vector<8x128xf32>
    %273 = math.exp %272 : vector<8x128xf32>
    %cst_67 = arith.constant 1.000000e+00 : f32
    %274 = vector.broadcast %cst_67 : f32 to vector<8x128xf32>
    %275 = arith.addf %274, %273 : vector<8x128xf32>
    %276 = arith.divf %274, %275 : vector<8x128xf32>
    %277 = vector.extract_strided_slice %267 {offsets = [0, 128], sizes = [8, 128], strides = [1, 1]} : vector<8x512xf32> to vector<8x128xf32>
    %278 = arith.negf %277 : vector<8x128xf32>
    %279 = math.exp %278 : vector<8x128xf32>
    %cst_68 = arith.constant 1.000000e+00 : f32
    %280 = vector.broadcast %cst_68 : f32 to vector<8x128xf32>
    %281 = arith.addf %280, %279 : vector<8x128xf32>
    %282 = arith.divf %280, %281 : vector<8x128xf32>
    %283 = vector.extract_strided_slice %267 {offsets = [0, 256], sizes = [8, 128], strides = [1, 1]} : vector<8x512xf32> to vector<8x128xf32>
    %284 = math.tanh %283 : vector<8x128xf32>
    %285 = vector.extract_strided_slice %267 {offsets = [0, 384], sizes = [8, 128], strides = [1, 1]} : vector<8x512xf32> to vector<8x128xf32>
    %286 = arith.negf %285 : vector<8x128xf32>
    %287 = math.exp %286 : vector<8x128xf32>
    %cst_69 = arith.constant 1.000000e+00 : f32
    %288 = vector.broadcast %cst_69 : f32 to vector<8x128xf32>
    %289 = arith.addf %288, %287 : vector<8x128xf32>
    %290 = arith.divf %288, %289 : vector<8x128xf32>
    %291 = arith.mulf %282, %233 : vector<8x128xf32>
    %292 = arith.mulf %276, %284 : vector<8x128xf32>
    %293 = arith.addf %291, %292 : vector<8x128xf32>
    %294 = math.tanh %293 : vector<8x128xf32>
    %295 = arith.mulf %290, %294 : vector<8x128xf32>
    %296 = vector.extract_strided_slice %270 {offsets = [0, 0], sizes = [8, 128], strides = [1, 1]} : vector<8x512xf32> to vector<8x128xf32>
    %297 = arith.negf %296 : vector<8x128xf32>
    %298 = math.exp %297 : vector<8x128xf32>
    %cst_70 = arith.constant 1.000000e+00 : f32
    %299 = vector.broadcast %cst_70 : f32 to vector<8x128xf32>
    %300 = arith.addf %299, %298 : vector<8x128xf32>
    %301 = arith.divf %299, %300 : vector<8x128xf32>
    %302 = vector.extract_strided_slice %270 {offsets = [0, 128], sizes = [8, 128], strides = [1, 1]} : vector<8x512xf32> to vector<8x128xf32>
    %303 = arith.negf %302 : vector<8x128xf32>
    %304 = math.exp %303 : vector<8x128xf32>
    %cst_71 = arith.constant 1.000000e+00 : f32
    %305 = vector.broadcast %cst_71 : f32 to vector<8x128xf32>
    %306 = arith.addf %305, %304 : vector<8x128xf32>
    %307 = arith.divf %305, %306 : vector<8x128xf32>
    %308 = vector.extract_strided_slice %270 {offsets = [0, 256], sizes = [8, 128], strides = [1, 1]} : vector<8x512xf32> to vector<8x128xf32>
    %309 = math.tanh %308 : vector<8x128xf32>
    %310 = vector.extract_strided_slice %270 {offsets = [0, 384], sizes = [8, 128], strides = [1, 1]} : vector<8x512xf32> to vector<8x128xf32>
    %311 = arith.negf %310 : vector<8x128xf32>
    %312 = math.exp %311 : vector<8x128xf32>
    %cst_72 = arith.constant 1.000000e+00 : f32
    %313 = vector.broadcast %cst_72 : f32 to vector<8x128xf32>
    %314 = arith.addf %313, %312 : vector<8x128xf32>
    %315 = arith.divf %313, %314 : vector<8x128xf32>
    %316 = arith.mulf %307, %258 : vector<8x128xf32>
    %317 = arith.mulf %301, %309 : vector<8x128xf32>
    %318 = arith.addf %316, %317 : vector<8x128xf32>
    %319 = math.tanh %318 : vector<8x128xf32>
    %320 = arith.mulf %315, %319 : vector<8x128xf32>
    %321 = tpu.concatenate %295, %320 in 1 : vector<8x128xf32>, vector<8x128xf32> -> vector<8x256xf32>
    %322 = arith.truncf %321 : vector<8x256xf32> to vector<8x256xbf16>
    %c0_73 = arith.constant 0 : index
    %c0_74 = arith.constant 0 : index
    %323 = vector.load %arg3[%c0_73, %c0_74] : memref<256x1024xbf16, #tpu.memory_space<vmem>>, vector<256x1024xbf16>
    %cst_75 = arith.constant dense<0.000000e+00> : vector<8x1024xf32>
    %324 = tpu.matmul %322, %323, %cst_75 {dimension_numbers = #tpu.dot_dimension_numbers<[1], [0], [0], [1], [0, 0, 1, 1], [], []>} : vector<8x256xbf16>, vector<256x1024xbf16>, vector<8x1024xf32> -> vector<8x1024xf32>
    %325 = vector.extract_strided_slice %324 {offsets = [0, 0], sizes = [8, 512], strides = [1, 1]} : vector<8x1024xf32> to vector<8x512xf32>
    %c40_76 = arith.constant 40 : index
    %c0_77 = arith.constant 0 : index
    %326 = vector.load %arg15[%c40_76, %c0_77] : memref<64x1024xf32, #tpu.memory_space<vmem>>, vector<8x512xf32>
    %327 = arith.addf %325, %326 : vector<8x512xf32>
    %328 = vector.extract_strided_slice %324 {offsets = [0, 512], sizes = [8, 512], strides = [1, 1]} : vector<8x1024xf32> to vector<8x512xf32>
    %c16_78 = arith.constant 16 : index
    %c512_79 = arith.constant 512 : index
    %329 = vector.load %arg15[%c16_78, %c512_79] : memref<64x1024xf32, #tpu.memory_space<vmem>>, vector<8x512xf32>
    %330 = arith.addf %328, %329 : vector<8x512xf32>
    %331 = vector.extract_strided_slice %327 {offsets = [0, 0], sizes = [8, 128], strides = [1, 1]} : vector<8x512xf32> to vector<8x128xf32>
    %332 = arith.negf %331 : vector<8x128xf32>
    %333 = math.exp %332 : vector<8x128xf32>
    %cst_80 = arith.constant 1.000000e+00 : f32
    %334 = vector.broadcast %cst_80 : f32 to vector<8x128xf32>
    %335 = arith.addf %334, %333 : vector<8x128xf32>
    %336 = arith.divf %334, %335 : vector<8x128xf32>
    %337 = vector.extract_strided_slice %327 {offsets = [0, 128], sizes = [8, 128], strides = [1, 1]} : vector<8x512xf32> to vector<8x128xf32>
    %338 = arith.negf %337 : vector<8x128xf32>
    %339 = math.exp %338 : vector<8x128xf32>
    %cst_81 = arith.constant 1.000000e+00 : f32
    %340 = vector.broadcast %cst_81 : f32 to vector<8x128xf32>
    %341 = arith.addf %340, %339 : vector<8x128xf32>
    %342 = arith.divf %340, %341 : vector<8x128xf32>
    %343 = vector.extract_strided_slice %327 {offsets = [0, 256], sizes = [8, 128], strides = [1, 1]} : vector<8x512xf32> to vector<8x128xf32>
    %344 = math.tanh %343 : vector<8x128xf32>
    %345 = vector.extract_strided_slice %327 {offsets = [0, 384], sizes = [8, 128], strides = [1, 1]} : vector<8x512xf32> to vector<8x128xf32>
    %346 = arith.negf %345 : vector<8x128xf32>
    %347 = math.exp %346 : vector<8x128xf32>
    %cst_82 = arith.constant 1.000000e+00 : f32
    %348 = vector.broadcast %cst_82 : f32 to vector<8x128xf32>
    %349 = arith.addf %348, %347 : vector<8x128xf32>
    %350 = arith.divf %348, %349 : vector<8x128xf32>
    %351 = arith.mulf %342, %293 : vector<8x128xf32>
    %352 = arith.mulf %336, %344 : vector<8x128xf32>
    %353 = arith.addf %351, %352 : vector<8x128xf32>
    %354 = math.tanh %353 : vector<8x128xf32>
    %355 = arith.mulf %350, %354 : vector<8x128xf32>
    %356 = vector.extract_strided_slice %330 {offsets = [0, 0], sizes = [8, 128], strides = [1, 1]} : vector<8x512xf32> to vector<8x128xf32>
    %357 = arith.negf %356 : vector<8x128xf32>
    %358 = math.exp %357 : vector<8x128xf32>
    %cst_83 = arith.constant 1.000000e+00 : f32
    %359 = vector.broadcast %cst_83 : f32 to vector<8x128xf32>
    %360 = arith.addf %359, %358 : vector<8x128xf32>
    %361 = arith.divf %359, %360 : vector<8x128xf32>
    %362 = vector.extract_strided_slice %330 {offsets = [0, 128], sizes = [8, 128], strides = [1, 1]} : vector<8x512xf32> to vector<8x128xf32>
    %363 = arith.negf %362 : vector<8x128xf32>
    %364 = math.exp %363 : vector<8x128xf32>
    %cst_84 = arith.constant 1.000000e+00 : f32
    %365 = vector.broadcast %cst_84 : f32 to vector<8x128xf32>
    %366 = arith.addf %365, %364 : vector<8x128xf32>
    %367 = arith.divf %365, %366 : vector<8x128xf32>
    %368 = vector.extract_strided_slice %330 {offsets = [0, 256], sizes = [8, 128], strides = [1, 1]} : vector<8x512xf32> to vector<8x128xf32>
    %369 = math.tanh %368 : vector<8x128xf32>
    %370 = vector.extract_strided_slice %330 {offsets = [0, 384], sizes = [8, 128], strides = [1, 1]} : vector<8x512xf32> to vector<8x128xf32>
    %371 = arith.negf %370 : vector<8x128xf32>
    %372 = math.exp %371 : vector<8x128xf32>
    %cst_85 = arith.constant 1.000000e+00 : f32
    %373 = vector.broadcast %cst_85 : f32 to vector<8x128xf32>
    %374 = arith.addf %373, %372 : vector<8x128xf32>
    %375 = arith.divf %373, %374 : vector<8x128xf32>
    %376 = arith.mulf %367, %318 : vector<8x128xf32>
    %377 = arith.mulf %361, %369 : vector<8x128xf32>
    %378 = arith.addf %376, %377 : vector<8x128xf32>
    %379 = math.tanh %378 : vector<8x128xf32>
    %380 = arith.mulf %375, %379 : vector<8x128xf32>
    %381 = tpu.concatenate %355, %380 in 1 : vector<8x128xf32>, vector<8x128xf32> -> vector<8x256xf32>
    %382 = arith.truncf %381 : vector<8x256xf32> to vector<8x256xbf16>
    %c0_86 = arith.constant 0 : index
    %c0_87 = arith.constant 0 : index
    %383 = vector.load %arg3[%c0_86, %c0_87] : memref<256x1024xbf16, #tpu.memory_space<vmem>>, vector<256x1024xbf16>
    %cst_88 = arith.constant dense<0.000000e+00> : vector<8x1024xf32>
    %384 = tpu.matmul %382, %383, %cst_88 {dimension_numbers = #tpu.dot_dimension_numbers<[1], [0], [0], [1], [0, 0, 1, 1], [], []>} : vector<8x256xbf16>, vector<256x1024xbf16>, vector<8x1024xf32> -> vector<8x1024xf32>
    %385 = vector.extract_strided_slice %384 {offsets = [0, 0], sizes = [8, 512], strides = [1, 1]} : vector<8x1024xf32> to vector<8x512xf32>
    %c48_89 = arith.constant 48 : index
    %c0_90 = arith.constant 0 : index
    %386 = vector.load %arg15[%c48_89, %c0_90] : memref<64x1024xf32, #tpu.memory_space<vmem>>, vector<8x512xf32>
    %387 = arith.addf %385, %386 : vector<8x512xf32>
    %388 = vector.extract_strided_slice %384 {offsets = [0, 512], sizes = [8, 512], strides = [1, 1]} : vector<8x1024xf32> to vector<8x512xf32>
    %c8_91 = arith.constant 8 : index
    %c512_92 = arith.constant 512 : index
    %389 = vector.load %arg15[%c8_91, %c512_92] : memref<64x1024xf32, #tpu.memory_space<vmem>>, vector<8x512xf32>
    %390 = arith.addf %388, %389 : vector<8x512xf32>
    %391 = vector.extract_strided_slice %387 {offsets = [0, 0], sizes = [8, 128], strides = [1, 1]} : vector<8x512xf32> to vector<8x128xf32>
    %392 = arith.negf %391 : vector<8x128xf32>
    %393 = math.exp %392 : vector<8x128xf32>
    %cst_93 = arith.constant 1.000000e+00 : f32
    %394 = vector.broadcast %cst_93 : f32 to vector<8x128xf32>
    %395 = arith.addf %394, %393 : vector<8x128xf32>
    %396 = arith.divf %394, %395 : vector<8x128xf32>
    %397 = vector.extract_strided_slice %387 {offsets = [0, 128], sizes = [8, 128], strides = [1, 1]} : vector<8x512xf32> to vector<8x128xf32>
    %398 = arith.negf %397 : vector<8x128xf32>
    %399 = math.exp %398 : vector<8x128xf32>
    %cst_94 = arith.constant 1.000000e+00 : f32
    %400 = vector.broadcast %cst_94 : f32 to vector<8x128xf32>
    %401 = arith.addf %400, %399 : vector<8x128xf32>
    %402 = arith.divf %400, %401 : vector<8x128xf32>
    %403 = vector.extract_strided_slice %387 {offsets = [0, 256], sizes = [8, 128], strides = [1, 1]} : vector<8x512xf32> to vector<8x128xf32>
    %404 = math.tanh %403 : vector<8x128xf32>
    %405 = vector.extract_strided_slice %387 {offsets = [0, 384], sizes = [8, 128], strides = [1, 1]} : vector<8x512xf32> to vector<8x128xf32>
    %406 = arith.negf %405 : vector<8x128xf32>
    %407 = math.exp %406 : vector<8x128xf32>
    %cst_95 = arith.constant 1.000000e+00 : f32
    %408 = vector.broadcast %cst_95 : f32 to vector<8x128xf32>
    %409 = arith.addf %408, %407 : vector<8x128xf32>
    %410 = arith.divf %408, %409 : vector<8x128xf32>
    %411 = arith.mulf %402, %353 : vector<8x128xf32>
    %412 = arith.mulf %396, %404 : vector<8x128xf32>
    %413 = arith.addf %411, %412 : vector<8x128xf32>
    %414 = math.tanh %413 : vector<8x128xf32>
    %415 = arith.mulf %410, %414 : vector<8x128xf32>
    %416 = vector.extract_strided_slice %390 {offsets = [0, 0], sizes = [8, 128], strides = [1, 1]} : vector<8x512xf32> to vector<8x128xf32>
    %417 = arith.negf %416 : vector<8x128xf32>
    %418 = math.exp %417 : vector<8x128xf32>
    %cst_96 = arith.constant 1.000000e+00 : f32
    %419 = vector.broadcast %cst_96 : f32 to vector<8x128xf32>
    %420 = arith.addf %419, %418 : vector<8x128xf32>
    %421 = arith.divf %419, %420 : vector<8x128xf32>
    %422 = vector.extract_strided_slice %390 {offsets = [0, 128], sizes = [8, 128], strides = [1, 1]} : vector<8x512xf32> to vector<8x128xf32>
    %423 = arith.negf %422 : vector<8x128xf32>
    %424 = math.exp %423 : vector<8x128xf32>
    %cst_97 = arith.constant 1.000000e+00 : f32
    %425 = vector.broadcast %cst_97 : f32 to vector<8x128xf32>
    %426 = arith.addf %425, %424 : vector<8x128xf32>
    %427 = arith.divf %425, %426 : vector<8x128xf32>
    %428 = vector.extract_strided_slice %390 {offsets = [0, 256], sizes = [8, 128], strides = [1, 1]} : vector<8x512xf32> to vector<8x128xf32>
    %429 = math.tanh %428 : vector<8x128xf32>
    %430 = vector.extract_strided_slice %390 {offsets = [0, 384], sizes = [8, 128], strides = [1, 1]} : vector<8x512xf32> to vector<8x128xf32>
    %431 = arith.negf %430 : vector<8x128xf32>
    %432 = math.exp %431 : vector<8x128xf32>
    %cst_98 = arith.constant 1.000000e+00 : f32
    %433 = vector.broadcast %cst_98 : f32 to vector<8x128xf32>
    %434 = arith.addf %433, %432 : vector<8x128xf32>
    %435 = arith.divf %433, %434 : vector<8x128xf32>
    %436 = arith.mulf %427, %378 : vector<8x128xf32>
    %437 = arith.mulf %421, %429 : vector<8x128xf32>
    %438 = arith.addf %436, %437 : vector<8x128xf32>
    %439 = math.tanh %438 : vector<8x128xf32>
    %440 = arith.mulf %435, %439 : vector<8x128xf32>
    %441 = tpu.concatenate %415, %440 in 1 : vector<8x128xf32>, vector<8x128xf32> -> vector<8x256xf32>
    %442 = arith.truncf %441 : vector<8x256xf32> to vector<8x256xbf16>
    %c0_99 = arith.constant 0 : index
    %c0_100 = arith.constant 0 : index
    %443 = vector.load %arg3[%c0_99, %c0_100] : memref<256x1024xbf16, #tpu.memory_space<vmem>>, vector<256x1024xbf16>
    %cst_101 = arith.constant dense<0.000000e+00> : vector<8x1024xf32>
    %444 = tpu.matmul %442, %443, %cst_101 {dimension_numbers = #tpu.dot_dimension_numbers<[1], [0], [0], [1], [0, 0, 1, 1], [], []>} : vector<8x256xbf16>, vector<256x1024xbf16>, vector<8x1024xf32> -> vector<8x1024xf32>
    %445 = vector.extract_strided_slice %444 {offsets = [0, 0], sizes = [8, 512], strides = [1, 1]} : vector<8x1024xf32> to vector<8x512xf32>
    %c56_102 = arith.constant 56 : index
    %c0_103 = arith.constant 0 : index
    %446 = vector.load %arg15[%c56_102, %c0_103] : memref<64x1024xf32, #tpu.memory_space<vmem>>, vector<8x512xf32>
    %447 = arith.addf %445, %446 : vector<8x512xf32>
    %448 = vector.extract_strided_slice %444 {offsets = [0, 512], sizes = [8, 512], strides = [1, 1]} : vector<8x1024xf32> to vector<8x512xf32>
    %c0_104 = arith.constant 0 : index
    %c512_105 = arith.constant 512 : index
    %449 = vector.load %arg15[%c0_104, %c512_105] : memref<64x1024xf32, #tpu.memory_space<vmem>>, vector<8x512xf32>
    %450 = arith.addf %448, %449 : vector<8x512xf32>
    %451 = vector.extract_strided_slice %447 {offsets = [0, 0], sizes = [8, 128], strides = [1, 1]} : vector<8x512xf32> to vector<8x128xf32>
    %452 = arith.negf %451 : vector<8x128xf32>
    %453 = math.exp %452 : vector<8x128xf32>
    %cst_106 = arith.constant 1.000000e+00 : f32
    %454 = vector.broadcast %cst_106 : f32 to vector<8x128xf32>
    %455 = arith.addf %454, %453 : vector<8x128xf32>
    %456 = arith.divf %454, %455 : vector<8x128xf32>
    %457 = vector.extract_strided_slice %447 {offsets = [0, 128], sizes = [8, 128], strides = [1, 1]} : vector<8x512xf32> to vector<8x128xf32>
    %458 = arith.negf %457 : vector<8x128xf32>
    %459 = math.exp %458 : vector<8x128xf32>
    %cst_107 = arith.constant 1.000000e+00 : f32
    %460 = vector.broadcast %cst_107 : f32 to vector<8x128xf32>
    %461 = arith.addf %460, %459 : vector<8x128xf32>
    %462 = arith.divf %460, %461 : vector<8x128xf32>
    %463 = vector.extract_strided_slice %447 {offsets = [0, 256], sizes = [8, 128], strides = [1, 1]} : vector<8x512xf32> to vector<8x128xf32>
    %464 = math.tanh %463 : vector<8x128xf32>
    %465 = vector.extract_strided_slice %447 {offsets = [0, 384], sizes = [8, 128], strides = [1, 1]} : vector<8x512xf32> to vector<8x128xf32>
    %466 = arith.negf %465 : vector<8x128xf32>
    %467 = math.exp %466 : vector<8x128xf32>
    %cst_108 = arith.constant 1.000000e+00 : f32
    %468 = vector.broadcast %cst_108 : f32 to vector<8x128xf32>
    %469 = arith.addf %468, %467 : vector<8x128xf32>
    %470 = arith.divf %468, %469 : vector<8x128xf32>
    %471 = arith.mulf %462, %413 : vector<8x128xf32>
    %472 = arith.mulf %456, %464 : vector<8x128xf32>
    %473 = arith.addf %471, %472 : vector<8x128xf32>
    %474 = math.tanh %473 : vector<8x128xf32>
    %475 = arith.mulf %470, %474 : vector<8x128xf32>
    %476 = vector.extract_strided_slice %450 {offsets = [0, 0], sizes = [8, 128], strides = [1, 1]} : vector<8x512xf32> to vector<8x128xf32>
    %477 = arith.negf %476 : vector<8x128xf32>
    %478 = math.exp %477 : vector<8x128xf32>
    %cst_109 = arith.constant 1.000000e+00 : f32
    %479 = vector.broadcast %cst_109 : f32 to vector<8x128xf32>
    %480 = arith.addf %479, %478 : vector<8x128xf32>
    %481 = arith.divf %479, %480 : vector<8x128xf32>
    %482 = vector.extract_strided_slice %450 {offsets = [0, 128], sizes = [8, 128], strides = [1, 1]} : vector<8x512xf32> to vector<8x128xf32>
    %483 = arith.negf %482 : vector<8x128xf32>
    %484 = math.exp %483 : vector<8x128xf32>
    %cst_110 = arith.constant 1.000000e+00 : f32
    %485 = vector.broadcast %cst_110 : f32 to vector<8x128xf32>
    %486 = arith.addf %485, %484 : vector<8x128xf32>
    %487 = arith.divf %485, %486 : vector<8x128xf32>
    %488 = vector.extract_strided_slice %450 {offsets = [0, 256], sizes = [8, 128], strides = [1, 1]} : vector<8x512xf32> to vector<8x128xf32>
    %489 = math.tanh %488 : vector<8x128xf32>
    %490 = vector.extract_strided_slice %450 {offsets = [0, 384], sizes = [8, 128], strides = [1, 1]} : vector<8x512xf32> to vector<8x128xf32>
    %491 = arith.negf %490 : vector<8x128xf32>
    %492 = math.exp %491 : vector<8x128xf32>
    %cst_111 = arith.constant 1.000000e+00 : f32
    %493 = vector.broadcast %cst_111 : f32 to vector<8x128xf32>
    %494 = arith.addf %493, %492 : vector<8x128xf32>
    %495 = arith.divf %493, %494 : vector<8x128xf32>
    %496 = arith.mulf %487, %438 : vector<8x128xf32>
    %497 = arith.mulf %481, %489 : vector<8x128xf32>
    %498 = arith.addf %496, %497 : vector<8x128xf32>
    %499 = math.tanh %498 : vector<8x128xf32>
    %500 = arith.mulf %495, %499 : vector<8x128xf32>
    %501 = tpu.concatenate %55, %115, %175, %235, %295, %355, %415, %475 in 0 : vector<8x128xf32>, vector<8x128xf32>, vector<8x128xf32>, vector<8x128xf32>, vector<8x128xf32>, vector<8x128xf32>, vector<8x128xf32>, vector<8x128xf32> -> vector<64x128xf32>
    %502 = tpu.concatenate %500, %440, %380, %320, %260, %200, %140, %80 in 0 : vector<8x128xf32>, vector<8x128xf32>, vector<8x128xf32>, vector<8x128xf32>, vector<8x128xf32>, vector<8x128xf32>, vector<8x128xf32>, vector<8x128xf32> -> vector<64x128xf32>
    %503 = tpu.concatenate %501, %502 in 1 : vector<64x128xf32>, vector<64x128xf32> -> vector<64x256xf32>
    %504 = arith.truncf %503 : vector<64x256xf32> to vector<64x256xbf16>
    %c0_112 = arith.constant 0 : index
    %c0_113 = arith.constant 0 : index
    %505 = vector.load %arg5[%c0_112, %c0_113] : memref<256x1024xbf16, #tpu.memory_space<vmem>>, vector<256x1024xbf16>
    %cst_114 = arith.constant dense<0.000000e+00> : vector<64x1024xf32>
    %506 = tpu.matmul %504, %505, %cst_114 {dimension_numbers = #tpu.dot_dimension_numbers<[1], [0], [0], [1], [0, 0, 1, 1], [], []>} : vector<64x256xbf16>, vector<256x1024xbf16>, vector<64x1024xf32> -> vector<64x1024xf32>
    %c0_115 = arith.constant 0 : index
    %c0_116 = arith.constant 0 : index
    %507 = vector.load %arg7[%c0_115, %c0_116] : memref<1x1024xf32, #tpu.memory_space<vmem>>, vector<1x1024xf32>
    %508 = vector.broadcast %507 : vector<1x1024xf32> to vector<64x1024xf32>
    %509 = arith.addf %506, %508 : vector<64x1024xf32>
    %c0_117 = arith.constant 0 : index
    %c0_118 = arith.constant 0 : index
    %510 = vector.load %arg15[%c0_117, %c0_118] : memref<64x1024xf32, #tpu.memory_space<vmem>>, vector<64x1024xf32>
    tpu.vector_store %arg15[%c0_117, %c0_118], %509 {strides = array<i32>} : memref<64x1024xf32, #tpu.memory_space<vmem>>, vector<64x1024xf32>,
    %cst_119 = arith.constant 0.000000e+00 : f32
    %511 = vector.broadcast %cst_119 : f32 to vector<8x128xf32>
    %cst_120 = arith.constant 0.000000e+00 : f32
    %512 = vector.broadcast %cst_120 : f32 to vector<8x128xf32>
    %cst_121 = arith.constant 0.000000e+00 : f32
    %513 = vector.broadcast %cst_121 : f32 to vector<8x128xf32>
    %cst_122 = arith.constant 0.000000e+00 : f32
    %514 = vector.broadcast %cst_122 : f32 to vector<8x128xf32>
    %515 = tpu.concatenate %511, %513 in 1 : vector<8x128xf32>, vector<8x128xf32> -> vector<8x256xf32>
    %516 = arith.truncf %515 : vector<8x256xf32> to vector<8x256xbf16>
    %c0_123 = arith.constant 0 : index
    %c0_124 = arith.constant 0 : index
    %517 = vector.load %arg6[%c0_123, %c0_124] : memref<256x1024xbf16, #tpu.memory_space<vmem>>, vector<256x1024xbf16>
    %cst_125 = arith.constant dense<0.000000e+00> : vector<8x1024xf32>
    %518 = tpu.matmul %516, %517, %cst_125 {dimension_numbers = #tpu.dot_dimension_numbers<[1], [0], [0], [1], [0, 0, 1, 1], [], []>} : vector<8x256xbf16>, vector<256x1024xbf16>, vector<8x1024xf32> -> vector<8x1024xf32>
    %519 = vector.extract_strided_slice %518 {offsets = [0, 0], sizes = [8, 512], strides = [1, 1]} : vector<8x1024xf32> to vector<8x512xf32>
    %c0_126 = arith.constant 0 : index
    %c0_127 = arith.constant 0 : index
    %520 = vector.load %arg15[%c0_126, %c0_127] : memref<64x1024xf32, #tpu.memory_space<vmem>>, vector<8x512xf32>
    %521 = arith.addf %519, %520 : vector<8x512xf32>
    %522 = vector.extract_strided_slice %518 {offsets = [0, 512], sizes = [8, 512], strides = [1, 1]} : vector<8x1024xf32> to vector<8x512xf32>
    %c56_128 = arith.constant 56 : index
    %c512_129 = arith.constant 512 : index
    %523 = vector.load %arg15[%c56_128, %c512_129] : memref<64x1024xf32, #tpu.memory_space<vmem>>, vector<8x512xf32>
    %524 = arith.addf %522, %523 : vector<8x512xf32>
    %525 = vector.extract_strided_slice %521 {offsets = [0, 0], sizes = [8, 128], strides = [1, 1]} : vector<8x512xf32> to vector<8x128xf32>
    %526 = arith.negf %525 : vector<8x128xf32>
    %527 = math.exp %526 : vector<8x128xf32>
    %cst_130 = arith.constant 1.000000e+00 : f32
    %528 = vector.broadcast %cst_130 : f32 to vector<8x128xf32>
    %529 = arith.addf %528, %527 : vector<8x128xf32>
    %530 = arith.divf %528, %529 : vector<8x128xf32>
    %531 = vector.extract_strided_slice %521 {offsets = [0, 128], sizes = [8, 128], strides = [1, 1]} : vector<8x512xf32> to vector<8x128xf32>
    %532 = arith.negf %531 : vector<8x128xf32>
    %533 = math.exp %532 : vector<8x128xf32>
    %cst_131 = arith.constant 1.000000e+00 : f32
    %534 = vector.broadcast %cst_131 : f32 to vector<8x128xf32>
    %535 = arith.addf %534, %533 : vector<8x128xf32>
    %536 = arith.divf %534, %535 : vector<8x128xf32>
    %537 = vector.extract_strided_slice %521 {offsets = [0, 256], sizes = [8, 128], strides = [1, 1]} : vector<8x512xf32> to vector<8x128xf32>
    %538 = math.tanh %537 : vector<8x128xf32>
    %539 = vector.extract_strided_slice %521 {offsets = [0, 384], sizes = [8, 128], strides = [1, 1]} : vector<8x512xf32> to vector<8x128xf32>
    %540 = arith.negf %539 : vector<8x128xf32>
    %541 = math.exp %540 : vector<8x128xf32>
    %cst_132 = arith.constant 1.000000e+00 : f32
    %542 = vector.broadcast %cst_132 : f32 to vector<8x128xf32>
    %543 = arith.addf %542, %541 : vector<8x128xf32>
    %544 = arith.divf %542, %543 : vector<8x128xf32>
    %545 = arith.mulf %536, %512 : vector<8x128xf32>
    %546 = arith.mulf %530, %538 : vector<8x128xf32>
    %547 = arith.addf %545, %546 : vector<8x128xf32>
    %548 = math.tanh %547 : vector<8x128xf32>
    %549 = arith.mulf %544, %548 : vector<8x128xf32>
    %550 = vector.extract_strided_slice %524 {offsets = [0, 0], sizes = [8, 128], strides = [1, 1]} : vector<8x512xf32> to vector<8x128xf32>
    %551 = arith.negf %550 : vector<8x128xf32>
    %552 = math.exp %551 : vector<8x128xf32>
    %cst_133 = arith.constant 1.000000e+00 : f32
    %553 = vector.broadcast %cst_133 : f32 to vector<8x128xf32>
    %554 = arith.addf %553, %552 : vector<8x128xf32>
    %555 = arith.divf %553, %554 : vector<8x128xf32>
    %556 = vector.extract_strided_slice %524 {offsets = [0, 128], sizes = [8, 128], strides = [1, 1]} : vector<8x512xf32> to vector<8x128xf32>
    %557 = arith.negf %556 : vector<8x128xf32>
    %558 = math.exp %557 : vector<8x128xf32>
    %cst_134 = arith.constant 1.000000e+00 : f32
    %559 = vector.broadcast %cst_134 : f32 to vector<8x128xf32>
    %560 = arith.addf %559, %558 : vector<8x128xf32>
    %561 = arith.divf %559, %560 : vector<8x128xf32>
    %562 = vector.extract_strided_slice %524 {offsets = [0, 256], sizes = [8, 128], strides = [1, 1]} : vector<8x512xf32> to vector<8x128xf32>
    %563 = math.tanh %562 : vector<8x128xf32>
    %564 = vector.extract_strided_slice %524 {offsets = [0, 384], sizes = [8, 128], strides = [1, 1]} : vector<8x512xf32> to vector<8x128xf32>
    %565 = arith.negf %564 : vector<8x128xf32>
    %566 = math.exp %565 : vector<8x128xf32>
    %cst_135 = arith.constant 1.000000e+00 : f32
    %567 = vector.broadcast %cst_135 : f32 to vector<8x128xf32>
    %568 = arith.addf %567, %566 : vector<8x128xf32>
    %569 = arith.divf %567, %568 : vector<8x128xf32>
    %570 = arith.mulf %561, %514 : vector<8x128xf32>
    %571 = arith.mulf %555, %563 : vector<8x128xf32>
    %572 = arith.addf %570, %571 : vector<8x128xf32>
    %573 = math.tanh %572 : vector<8x128xf32>
    %574 = arith.mulf %569, %573 : vector<8x128xf32>
    %575 = tpu.concatenate %549, %574 in 1 : vector<8x128xf32>, vector<8x128xf32> -> vector<8x256xf32>
    %576 = arith.truncf %575 : vector<8x256xf32> to vector<8x256xbf16>
    %c0_136 = arith.constant 0 : index
    %c0_137 = arith.constant 0 : index
    %577 = vector.load %arg6[%c0_136, %c0_137] : memref<256x1024xbf16, #tpu.memory_space<vmem>>, vector<256x1024xbf16>
    %cst_138 = arith.constant dense<0.000000e+00> : vector<8x1024xf32>
    %578 = tpu.matmul %576, %577, %cst_138 {dimension_numbers = #tpu.dot_dimension_numbers<[1], [0], [0], [1], [0, 0, 1, 1], [], []>} : vector<8x256xbf16>, vector<256x1024xbf16>, vector<8x1024xf32> -> vector<8x1024xf32>
    %579 = vector.extract_strided_slice %578 {offsets = [0, 0], sizes = [8, 512], strides = [1, 1]} : vector<8x1024xf32> to vector<8x512xf32>
    %c8_139 = arith.constant 8 : index
    %c0_140 = arith.constant 0 : index
    %580 = vector.load %arg15[%c8_139, %c0_140] : memref<64x1024xf32, #tpu.memory_space<vmem>>, vector<8x512xf32>
    %581 = arith.addf %579, %580 : vector<8x512xf32>
    %582 = vector.extract_strided_slice %578 {offsets = [0, 512], sizes = [8, 512], strides = [1, 1]} : vector<8x1024xf32> to vector<8x512xf32>
    %c48_141 = arith.constant 48 : index
    %c512_142 = arith.constant 512 : index
    %583 = vector.load %arg15[%c48_141, %c512_142] : memref<64x1024xf32, #tpu.memory_space<vmem>>, vector<8x512xf32>
    %584 = arith.addf %582, %583 : vector<8x512xf32>
    %585 = vector.extract_strided_slice %581 {offsets = [0, 0], sizes = [8, 128], strides = [1, 1]} : vector<8x512xf32> to vector<8x128xf32>
    %586 = arith.negf %585 : vector<8x128xf32>
    %587 = math.exp %586 : vector<8x128xf32>
    %cst_143 = arith.constant 1.000000e+00 : f32
    %588 = vector.broadcast %cst_143 : f32 to vector<8x128xf32>
    %589 = arith.addf %588, %587 : vector<8x128xf32>
    %590 = arith.divf %588, %589 : vector<8x128xf32>
    %591 = vector.extract_strided_slice %581 {offsets = [0, 128], sizes = [8, 128], strides = [1, 1]} : vector<8x512xf32> to vector<8x128xf32>
    %592 = arith.negf %591 : vector<8x128xf32>
    %593 = math.exp %592 : vector<8x128xf32>
    %cst_144 = arith.constant 1.000000e+00 : f32
    %594 = vector.broadcast %cst_144 : f32 to vector<8x128xf32>
    %595 = arith.addf %594, %593 : vector<8x128xf32>
    %596 = arith.divf %594, %595 : vector<8x128xf32>
    %597 = vector.extract_strided_slice %581 {offsets = [0, 256], sizes = [8, 128], strides = [1, 1]} : vector<8x512xf32> to vector<8x128xf32>
    %598 = math.tanh %597 : vector<8x128xf32>
    %599 = vector.extract_strided_slice %581 {offsets = [0, 384], sizes = [8, 128], strides = [1, 1]} : vector<8x512xf32> to vector<8x128xf32>
    %600 = arith.negf %599 : vector<8x128xf32>
    %601 = math.exp %600 : vector<8x128xf32>
    %cst_145 = arith.constant 1.000000e+00 : f32
    %602 = vector.broadcast %cst_145 : f32 to vector<8x128xf32>
    %603 = arith.addf %602, %601 : vector<8x128xf32>
    %604 = arith.divf %602, %603 : vector<8x128xf32>
    %605 = arith.mulf %596, %547 : vector<8x128xf32>
    %606 = arith.mulf %590, %598 : vector<8x128xf32>
    %607 = arith.addf %605, %606 : vector<8x128xf32>
    %608 = math.tanh %607 : vector<8x128xf32>
    %609 = arith.mulf %604, %608 : vector<8x128xf32>
    %610 = vector.extract_strided_slice %584 {offsets = [0, 0], sizes = [8, 128], strides = [1, 1]} : vector<8x512xf32> to vector<8x128xf32>
    %611 = arith.negf %610 : vector<8x128xf32>
    %612 = math.exp %611 : vector<8x128xf32>
    %cst_146 = arith.constant 1.000000e+00 : f32
    %613 = vector.broadcast %cst_146 : f32 to vector<8x128xf32>
    %614 = arith.addf %613, %612 : vector<8x128xf32>
    %615 = arith.divf %613, %614 : vector<8x128xf32>
    %616 = vector.extract_strided_slice %584 {offsets = [0, 128], sizes = [8, 128], strides = [1, 1]} : vector<8x512xf32> to vector<8x128xf32>
    %617 = arith.negf %616 : vector<8x128xf32>
    %618 = math.exp %617 : vector<8x128xf32>
    %cst_147 = arith.constant 1.000000e+00 : f32
    %619 = vector.broadcast %cst_147 : f32 to vector<8x128xf32>
    %620 = arith.addf %619, %618 : vector<8x128xf32>
    %621 = arith.divf %619, %620 : vector<8x128xf32>
    %622 = vector.extract_strided_slice %584 {offsets = [0, 256], sizes = [8, 128], strides = [1, 1]} : vector<8x512xf32> to vector<8x128xf32>
    %623 = math.tanh %622 : vector<8x128xf32>
    %624 = vector.extract_strided_slice %584 {offsets = [0, 384], sizes = [8, 128], strides = [1, 1]} : vector<8x512xf32> to vector<8x128xf32>
    %625 = arith.negf %624 : vector<8x128xf32>
    %626 = math.exp %625 : vector<8x128xf32>
    %cst_148 = arith.constant 1.000000e+00 : f32
    %627 = vector.broadcast %cst_148 : f32 to vector<8x128xf32>
    %628 = arith.addf %627, %626 : vector<8x128xf32>
    %629 = arith.divf %627, %628 : vector<8x128xf32>
    %630 = arith.mulf %621, %572 : vector<8x128xf32>
    %631 = arith.mulf %615, %623 : vector<8x128xf32>
    %632 = arith.addf %630, %631 : vector<8x128xf32>
    %633 = math.tanh %632 : vector<8x128xf32>
    %634 = arith.mulf %629, %633 : vector<8x128xf32>
    %635 = tpu.concatenate %609, %634 in 1 : vector<8x128xf32>, vector<8x128xf32> -> vector<8x256xf32>
    %636 = arith.truncf %635 : vector<8x256xf32> to vector<8x256xbf16>
    %c0_149 = arith.constant 0 : index
    %c0_150 = arith.constant 0 : index
    %637 = vector.load %arg6[%c0_149, %c0_150] : memref<256x1024xbf16, #tpu.memory_space<vmem>>, vector<256x1024xbf16>
    %cst_151 = arith.constant dense<0.000000e+00> : vector<8x1024xf32>
    %638 = tpu.matmul %636, %637, %cst_151 {dimension_numbers = #tpu.dot_dimension_numbers<[1], [0], [0], [1], [0, 0, 1, 1], [], []>} : vector<8x256xbf16>, vector<256x1024xbf16>, vector<8x1024xf32> -> vector<8x1024xf32>
    %639 = vector.extract_strided_slice %638 {offsets = [0, 0], sizes = [8, 512], strides = [1, 1]} : vector<8x1024xf32> to vector<8x512xf32>
    %c16_152 = arith.constant 16 : index
    %c0_153 = arith.constant 0 : index
    %640 = vector.load %arg15[%c16_152, %c0_153] : memref<64x1024xf32, #tpu.memory_space<vmem>>, vector<8x512xf32>
    %641 = arith.addf %639, %640 : vector<8x512xf32>
    %642 = vector.extract_strided_slice %638 {offsets = [0, 512], sizes = [8, 512], strides = [1, 1]} : vector<8x1024xf32> to vector<8x512xf32>
    %c40_154 = arith.constant 40 : index
    %c512_155 = arith.constant 512 : index
    %643 = vector.load %arg15[%c40_154, %c512_155] : memref<64x1024xf32, #tpu.memory_space<vmem>>, vector<8x512xf32>
    %644 = arith.addf %642, %643 : vector<8x512xf32>
    %645 = vector.extract_strided_slice %641 {offsets = [0, 0], sizes = [8, 128], strides = [1, 1]} : vector<8x512xf32> to vector<8x128xf32>
    %646 = arith.negf %645 : vector<8x128xf32>
    %647 = math.exp %646 : vector<8x128xf32>
    %cst_156 = arith.constant 1.000000e+00 : f32
    %648 = vector.broadcast %cst_156 : f32 to vector<8x128xf32>
    %649 = arith.addf %648, %647 : vector<8x128xf32>
    %650 = arith.divf %648, %649 : vector<8x128xf32>
    %651 = vector.extract_strided_slice %641 {offsets = [0, 128], sizes = [8, 128], strides = [1, 1]} : vector<8x512xf32> to vector<8x128xf32>
    %652 = arith.negf %651 : vector<8x128xf32>
    %653 = math.exp %652 : vector<8x128xf32>
    %cst_157 = arith.constant 1.000000e+00 : f32
    %654 = vector.broadcast %cst_157 : f32 to vector<8x128xf32>
    %655 = arith.addf %654, %653 : vector<8x128xf32>
    %656 = arith.divf %654, %655 : vector<8x128xf32>
    %657 = vector.extract_strided_slice %641 {offsets = [0, 256], sizes = [8, 128], strides = [1, 1]} : vector<8x512xf32> to vector<8x128xf32>
    %658 = math.tanh %657 : vector<8x128xf32>
    %659 = vector.extract_strided_slice %641 {offsets = [0, 384], sizes = [8, 128], strides = [1, 1]} : vector<8x512xf32> to vector<8x128xf32>
    %660 = arith.negf %659 : vector<8x128xf32>
    %661 = math.exp %660 : vector<8x128xf32>
    %cst_158 = arith.constant 1.000000e+00 : f32
    %662 = vector.broadcast %cst_158 : f32 to vector<8x128xf32>
    %663 = arith.addf %662, %661 : vector<8x128xf32>
    %664 = arith.divf %662, %663 : vector<8x128xf32>
    %665 = arith.mulf %656, %607 : vector<8x128xf32>
    %666 = arith.mulf %650, %658 : vector<8x128xf32>
    %667 = arith.addf %665, %666 : vector<8x128xf32>
    %668 = math.tanh %667 : vector<8x128xf32>
    %669 = arith.mulf %664, %668 : vector<8x128xf32>
    %670 = vector.extract_strided_slice %644 {offsets = [0, 0], sizes = [8, 128], strides = [1, 1]} : vector<8x512xf32> to vector<8x128xf32>
    %671 = arith.negf %670 : vector<8x128xf32>
    %672 = math.exp %671 : vector<8x128xf32>
    %cst_159 = arith.constant 1.000000e+00 : f32
    %673 = vector.broadcast %cst_159 : f32 to vector<8x128xf32>
    %674 = arith.addf %673, %672 : vector<8x128xf32>
    %675 = arith.divf %673, %674 : vector<8x128xf32>
    %676 = vector.extract_strided_slice %644 {offsets = [0, 128], sizes = [8, 128], strides = [1, 1]} : vector<8x512xf32> to vector<8x128xf32>
    %677 = arith.negf %676 : vector<8x128xf32>
    %678 = math.exp %677 : vector<8x128xf32>
    %cst_160 = arith.constant 1.000000e+00 : f32
    %679 = vector.broadcast %cst_160 : f32 to vector<8x128xf32>
    %680 = arith.addf %679, %678 : vector<8x128xf32>
    %681 = arith.divf %679, %680 : vector<8x128xf32>
    %682 = vector.extract_strided_slice %644 {offsets = [0, 256], sizes = [8, 128], strides = [1, 1]} : vector<8x512xf32> to vector<8x128xf32>
    %683 = math.tanh %682 : vector<8x128xf32>
    %684 = vector.extract_strided_slice %644 {offsets = [0, 384], sizes = [8, 128], strides = [1, 1]} : vector<8x512xf32> to vector<8x128xf32>
    %685 = arith.negf %684 : vector<8x128xf32>
    %686 = math.exp %685 : vector<8x128xf32>
    %cst_161 = arith.constant 1.000000e+00 : f32
    %687 = vector.broadcast %cst_161 : f32 to vector<8x128xf32>
    %688 = arith.addf %687, %686 : vector<8x128xf32>
    %689 = arith.divf %687, %688 : vector<8x128xf32>
    %690 = arith.mulf %681, %632 : vector<8x128xf32>
    %691 = arith.mulf %675, %683 : vector<8x128xf32>
    %692 = arith.addf %690, %691 : vector<8x128xf32>
    %693 = math.tanh %692 : vector<8x128xf32>
    %694 = arith.mulf %689, %693 : vector<8x128xf32>
    %695 = tpu.concatenate %669, %694 in 1 : vector<8x128xf32>, vector<8x128xf32> -> vector<8x256xf32>
    %696 = arith.truncf %695 : vector<8x256xf32> to vector<8x256xbf16>
    %c0_162 = arith.constant 0 : index
    %c0_163 = arith.constant 0 : index
    %697 = vector.load %arg6[%c0_162, %c0_163] : memref<256x1024xbf16, #tpu.memory_space<vmem>>, vector<256x1024xbf16>
    %cst_164 = arith.constant dense<0.000000e+00> : vector<8x1024xf32>
    %698 = tpu.matmul %696, %697, %cst_164 {dimension_numbers = #tpu.dot_dimension_numbers<[1], [0], [0], [1], [0, 0, 1, 1], [], []>} : vector<8x256xbf16>, vector<256x1024xbf16>, vector<8x1024xf32> -> vector<8x1024xf32>
    %699 = vector.extract_strided_slice %698 {offsets = [0, 0], sizes = [8, 512], strides = [1, 1]} : vector<8x1024xf32> to vector<8x512xf32>
    %c24_165 = arith.constant 24 : index
    %c0_166 = arith.constant 0 : index
    %700 = vector.load %arg15[%c24_165, %c0_166] : memref<64x1024xf32, #tpu.memory_space<vmem>>, vector<8x512xf32>
    %701 = arith.addf %699, %700 : vector<8x512xf32>
    %702 = vector.extract_strided_slice %698 {offsets = [0, 512], sizes = [8, 512], strides = [1, 1]} : vector<8x1024xf32> to vector<8x512xf32>
    %c32_167 = arith.constant 32 : index
    %c512_168 = arith.constant 512 : index
    %703 = vector.load %arg15[%c32_167, %c512_168] : memref<64x1024xf32, #tpu.memory_space<vmem>>, vector<8x512xf32>
    %704 = arith.addf %702, %703 : vector<8x512xf32>
    %705 = vector.extract_strided_slice %701 {offsets = [0, 0], sizes = [8, 128], strides = [1, 1]} : vector<8x512xf32> to vector<8x128xf32>
    %706 = arith.negf %705 : vector<8x128xf32>
    %707 = math.exp %706 : vector<8x128xf32>
    %cst_169 = arith.constant 1.000000e+00 : f32
    %708 = vector.broadcast %cst_169 : f32 to vector<8x128xf32>
    %709 = arith.addf %708, %707 : vector<8x128xf32>
    %710 = arith.divf %708, %709 : vector<8x128xf32>
    %711 = vector.extract_strided_slice %701 {offsets = [0, 128], sizes = [8, 128], strides = [1, 1]} : vector<8x512xf32> to vector<8x128xf32>
    %712 = arith.negf %711 : vector<8x128xf32>
    %713 = math.exp %712 : vector<8x128xf32>
    %cst_170 = arith.constant 1.000000e+00 : f32
    %714 = vector.broadcast %cst_170 : f32 to vector<8x128xf32>
    %715 = arith.addf %714, %713 : vector<8x128xf32>
    %716 = arith.divf %714, %715 : vector<8x128xf32>
    %717 = vector.extract_strided_slice %701 {offsets = [0, 256], sizes = [8, 128], strides = [1, 1]} : vector<8x512xf32> to vector<8x128xf32>
    %718 = math.tanh %717 : vector<8x128xf32>
    %719 = vector.extract_strided_slice %701 {offsets = [0, 384], sizes = [8, 128], strides = [1, 1]} : vector<8x512xf32> to vector<8x128xf32>
    %720 = arith.negf %719 : vector<8x128xf32>
    %721 = math.exp %720 : vector<8x128xf32>
    %cst_171 = arith.constant 1.000000e+00 : f32
    %722 = vector.broadcast %cst_171 : f32 to vector<8x128xf32>
    %723 = arith.addf %722, %721 : vector<8x128xf32>
    %724 = arith.divf %722, %723 : vector<8x128xf32>
    %725 = arith.mulf %716, %667 : vector<8x128xf32>
    %726 = arith.mulf %710, %718 : vector<8x128xf32>
    %727 = arith.addf %725, %726 : vector<8x128xf32>
    %728 = math.tanh %727 : vector<8x128xf32>
    %729 = arith.mulf %724, %728 : vector<8x128xf32>
    %730 = vector.extract_strided_slice %704 {offsets = [0, 0], sizes = [8, 128], strides = [1, 1]} : vector<8x512xf32> to vector<8x128xf32>
    %731 = arith.negf %730 : vector<8x128xf32>
    %732 = math.exp %731 : vector<8x128xf32>
    %cst_172 = arith.constant 1.000000e+00 : f32
    %733 = vector.broadcast %cst_172 : f32 to vector<8x128xf32>
    %734 = arith.addf %733, %732 : vector<8x128xf32>
    %735 = arith.divf %733, %734 : vector<8x128xf32>
    %736 = vector.extract_strided_slice %704 {offsets = [0, 128], sizes = [8, 128], strides = [1, 1]} : vector<8x512xf32> to vector<8x128xf32>
    %737 = arith.negf %736 : vector<8x128xf32>
    %738 = math.exp %737 : vector<8x128xf32>
    %cst_173 = arith.constant 1.000000e+00 : f32
    %739 = vector.broadcast %cst_173 : f32 to vector<8x128xf32>
    %740 = arith.addf %739, %738 : vector<8x128xf32>
    %741 = arith.divf %739, %740 : vector<8x128xf32>
    %742 = vector.extract_strided_slice %704 {offsets = [0, 256], sizes = [8, 128], strides = [1, 1]} : vector<8x512xf32> to vector<8x128xf32>
    %743 = math.tanh %742 : vector<8x128xf32>
    %744 = vector.extract_strided_slice %704 {offsets = [0, 384], sizes = [8, 128], strides = [1, 1]} : vector<8x512xf32> to vector<8x128xf32>
    %745 = arith.negf %744 : vector<8x128xf32>
    %746 = math.exp %745 : vector<8x128xf32>
    %cst_174 = arith.constant 1.000000e+00 : f32
    %747 = vector.broadcast %cst_174 : f32 to vector<8x128xf32>
    %748 = arith.addf %747, %746 : vector<8x128xf32>
    %749 = arith.divf %747, %748 : vector<8x128xf32>
    %750 = arith.mulf %741, %692 : vector<8x128xf32>
    %751 = arith.mulf %735, %743 : vector<8x128xf32>
    %752 = arith.addf %750, %751 : vector<8x128xf32>
    %753 = math.tanh %752 : vector<8x128xf32>
    %754 = arith.mulf %749, %753 : vector<8x128xf32>
    %755 = tpu.concatenate %729, %754 in 1 : vector<8x128xf32>, vector<8x128xf32> -> vector<8x256xf32>
    %756 = arith.truncf %755 : vector<8x256xf32> to vector<8x256xbf16>
    %c0_175 = arith.constant 0 : index
    %c0_176 = arith.constant 0 : index
    %757 = vector.load %arg6[%c0_175, %c0_176] : memref<256x1024xbf16, #tpu.memory_space<vmem>>, vector<256x1024xbf16>
    %cst_177 = arith.constant dense<0.000000e+00> : vector<8x1024xf32>
    %758 = tpu.matmul %756, %757, %cst_177 {dimension_numbers = #tpu.dot_dimension_numbers<[1], [0], [0], [1], [0, 0, 1, 1], [], []>} : vector<8x256xbf16>, vector<256x1024xbf16>, vector<8x1024xf32> -> vector<8x1024xf32>
    %759 = vector.extract_strided_slice %758 {offsets = [0, 0], sizes = [8, 512], strides = [1, 1]} : vector<8x1024xf32> to vector<8x512xf32>
    %c32_178 = arith.constant 32 : index
    %c0_179 = arith.constant 0 : index
    %760 = vector.load %arg15[%c32_178, %c0_179] : memref<64x1024xf32, #tpu.memory_space<vmem>>, vector<8x512xf32>
    %761 = arith.addf %759, %760 : vector<8x512xf32>
    %762 = vector.extract_strided_slice %758 {offsets = [0, 512], sizes = [8, 512], strides = [1, 1]} : vector<8x1024xf32> to vector<8x512xf32>
    %c24_180 = arith.constant 24 : index
    %c512_181 = arith.constant 512 : index
    %763 = vector.load %arg15[%c24_180, %c512_181] : memref<64x1024xf32, #tpu.memory_space<vmem>>, vector<8x512xf32>
    %764 = arith.addf %762, %763 : vector<8x512xf32>
    %765 = vector.extract_strided_slice %761 {offsets = [0, 0], sizes = [8, 128], strides = [1, 1]} : vector<8x512xf32> to vector<8x128xf32>
    %766 = arith.negf %765 : vector<8x128xf32>
    %767 = math.exp %766 : vector<8x128xf32>
    %cst_182 = arith.constant 1.000000e+00 : f32
    %768 = vector.broadcast %cst_182 : f32 to vector<8x128xf32>
    %769 = arith.addf %768, %767 : vector<8x128xf32>
    %770 = arith.divf %768, %769 : vector<8x128xf32>
    %771 = vector.extract_strided_slice %761 {offsets = [0, 128], sizes = [8, 128], strides = [1, 1]} : vector<8x512xf32> to vector<8x128xf32>
    %772 = arith.negf %771 : vector<8x128xf32>
    %773 = math.exp %772 : vector<8x128xf32>
    %cst_183 = arith.constant 1.000000e+00 : f32
    %774 = vector.broadcast %cst_183 : f32 to vector<8x128xf32>
    %775 = arith.addf %774, %773 : vector<8x128xf32>
    %776 = arith.divf %774, %775 : vector<8x128xf32>
    %777 = vector.extract_strided_slice %761 {offsets = [0, 256], sizes = [8, 128], strides = [1, 1]} : vector<8x512xf32> to vector<8x128xf32>
    %778 = math.tanh %777 : vector<8x128xf32>
    %779 = vector.extract_strided_slice %761 {offsets = [0, 384], sizes = [8, 128], strides = [1, 1]} : vector<8x512xf32> to vector<8x128xf32>
    %780 = arith.negf %779 : vector<8x128xf32>
    %781 = math.exp %780 : vector<8x128xf32>
    %cst_184 = arith.constant 1.000000e+00 : f32
    %782 = vector.broadcast %cst_184 : f32 to vector<8x128xf32>
    %783 = arith.addf %782, %781 : vector<8x128xf32>
    %784 = arith.divf %782, %783 : vector<8x128xf32>
    %785 = arith.mulf %776, %727 : vector<8x128xf32>
    %786 = arith.mulf %770, %778 : vector<8x128xf32>
    %787 = arith.addf %785, %786 : vector<8x128xf32>
    %788 = math.tanh %787 : vector<8x128xf32>
    %789 = arith.mulf %784, %788 : vector<8x128xf32>
    %790 = vector.extract_strided_slice %764 {offsets = [0, 0], sizes = [8, 128], strides = [1, 1]} : vector<8x512xf32> to vector<8x128xf32>
    %791 = arith.negf %790 : vector<8x128xf32>
    %792 = math.exp %791 : vector<8x128xf32>
    %cst_185 = arith.constant 1.000000e+00 : f32
    %793 = vector.broadcast %cst_185 : f32 to vector<8x128xf32>
    %794 = arith.addf %793, %792 : vector<8x128xf32>
    %795 = arith.divf %793, %794 : vector<8x128xf32>
    %796 = vector.extract_strided_slice %764 {offsets = [0, 128], sizes = [8, 128], strides = [1, 1]} : vector<8x512xf32> to vector<8x128xf32>
    %797 = arith.negf %796 : vector<8x128xf32>
    %798 = math.exp %797 : vector<8x128xf32>
    %cst_186 = arith.constant 1.000000e+00 : f32
    %799 = vector.broadcast %cst_186 : f32 to vector<8x128xf32>
    %800 = arith.addf %799, %798 : vector<8x128xf32>
    %801 = arith.divf %799, %800 : vector<8x128xf32>
    %802 = vector.extract_strided_slice %764 {offsets = [0, 256], sizes = [8, 128], strides = [1, 1]} : vector<8x512xf32> to vector<8x128xf32>
    %803 = math.tanh %802 : vector<8x128xf32>
    %804 = vector.extract_strided_slice %764 {offsets = [0, 384], sizes = [8, 128], strides = [1, 1]} : vector<8x512xf32> to vector<8x128xf32>
    %805 = arith.negf %804 : vector<8x128xf32>
    %806 = math.exp %805 : vector<8x128xf32>
    %cst_187 = arith.constant 1.000000e+00 : f32
    %807 = vector.broadcast %cst_187 : f32 to vector<8x128xf32>
    %808 = arith.addf %807, %806 : vector<8x128xf32>
    %809 = arith.divf %807, %808 : vector<8x128xf32>
    %810 = arith.mulf %801, %752 : vector<8x128xf32>
    %811 = arith.mulf %795, %803 : vector<8x128xf32>
    %812 = arith.addf %810, %811 : vector<8x128xf32>
    %813 = math.tanh %812 : vector<8x128xf32>
    %814 = arith.mulf %809, %813 : vector<8x128xf32>
    %815 = tpu.concatenate %789, %814 in 1 : vector<8x128xf32>, vector<8x128xf32> -> vector<8x256xf32>
    %816 = arith.truncf %815 : vector<8x256xf32> to vector<8x256xbf16>
    %c0_188 = arith.constant 0 : index
    %c0_189 = arith.constant 0 : index
    %817 = vector.load %arg6[%c0_188, %c0_189] : memref<256x1024xbf16, #tpu.memory_space<vmem>>, vector<256x1024xbf16>
    %cst_190 = arith.constant dense<0.000000e+00> : vector<8x1024xf32>
    %818 = tpu.matmul %816, %817, %cst_190 {dimension_numbers = #tpu.dot_dimension_numbers<[1], [0], [0], [1], [0, 0, 1, 1], [], []>} : vector<8x256xbf16>, vector<256x1024xbf16>, vector<8x1024xf32> -> vector<8x1024xf32>
    %819 = vector.extract_strided_slice %818 {offsets = [0, 0], sizes = [8, 512], strides = [1, 1]} : vector<8x1024xf32> to vector<8x512xf32>
    %c40_191 = arith.constant 40 : index
    %c0_192 = arith.constant 0 : index
    %820 = vector.load %arg15[%c40_191, %c0_192] : memref<64x1024xf32, #tpu.memory_space<vmem>>, vector<8x512xf32>
    %821 = arith.addf %819, %820 : vector<8x512xf32>
    %822 = vector.extract_strided_slice %818 {offsets = [0, 512], sizes = [8, 512], strides = [1, 1]} : vector<8x1024xf32> to vector<8x512xf32>
    %c16_193 = arith.constant 16 : index
    %c512_194 = arith.constant 512 : index
    %823 = vector.load %arg15[%c16_193, %c512_194] : memref<64x1024xf32, #tpu.memory_space<vmem>>, vector<8x512xf32>
    %824 = arith.addf %822, %823 : vector<8x512xf32>
    %825 = vector.extract_strided_slice %821 {offsets = [0, 0], sizes = [8, 128], strides = [1, 1]} : vector<8x512xf32> to vector<8x128xf32>
    %826 = arith.negf %825 : vector<8x128xf32>
    %827 = math.exp %826 : vector<8x128xf32>
    %cst_195 = arith.constant 1.000000e+00 : f32
    %828 = vector.broadcast %cst_195 : f32 to vector<8x128xf32>
    %829 = arith.addf %828, %827 : vector<8x128xf32>
    %830 = arith.divf %828, %829 : vector<8x128xf32>
    %831 = vector.extract_strided_slice %821 {offsets = [0, 128], sizes = [8, 128], strides = [1, 1]} : vector<8x512xf32> to vector<8x128xf32>
    %832 = arith.negf %831 : vector<8x128xf32>
    %833 = math.exp %832 : vector<8x128xf32>
    %cst_196 = arith.constant 1.000000e+00 : f32
    %834 = vector.broadcast %cst_196 : f32 to vector<8x128xf32>
    %835 = arith.addf %834, %833 : vector<8x128xf32>
    %836 = arith.divf %834, %835 : vector<8x128xf32>
    %837 = vector.extract_strided_slice %821 {offsets = [0, 256], sizes = [8, 128], strides = [1, 1]} : vector<8x512xf32> to vector<8x128xf32>
    %838 = math.tanh %837 : vector<8x128xf32>
    %839 = vector.extract_strided_slice %821 {offsets = [0, 384], sizes = [8, 128], strides = [1, 1]} : vector<8x512xf32> to vector<8x128xf32>
    %840 = arith.negf %839 : vector<8x128xf32>
    %841 = math.exp %840 : vector<8x128xf32>
    %cst_197 = arith.constant 1.000000e+00 : f32
    %842 = vector.broadcast %cst_197 : f32 to vector<8x128xf32>
    %843 = arith.addf %842, %841 : vector<8x128xf32>
    %844 = arith.divf %842, %843 : vector<8x128xf32>
    %845 = arith.mulf %836, %787 : vector<8x128xf32>
    %846 = arith.mulf %830, %838 : vector<8x128xf32>
    %847 = arith.addf %845, %846 : vector<8x128xf32>
    %848 = math.tanh %847 : vector<8x128xf32>
    %849 = arith.mulf %844, %848 : vector<8x128xf32>
    %850 = vector.extract_strided_slice %824 {offsets = [0, 0], sizes = [8, 128], strides = [1, 1]} : vector<8x512xf32> to vector<8x128xf32>
    %851 = arith.negf %850 : vector<8x128xf32>
    %852 = math.exp %851 : vector<8x128xf32>
    %cst_198 = arith.constant 1.000000e+00 : f32
    %853 = vector.broadcast %cst_198 : f32 to vector<8x128xf32>
    %854 = arith.addf %853, %852 : vector<8x128xf32>
    %855 = arith.divf %853, %854 : vector<8x128xf32>
    %856 = vector.extract_strided_slice %824 {offsets = [0, 128], sizes = [8, 128], strides = [1, 1]} : vector<8x512xf32> to vector<8x128xf32>
    %857 = arith.negf %856 : vector<8x128xf32>
    %858 = math.exp %857 : vector<8x128xf32>
    %cst_199 = arith.constant 1.000000e+00 : f32
    %859 = vector.broadcast %cst_199 : f32 to vector<8x128xf32>
    %860 = arith.addf %859, %858 : vector<8x128xf32>
    %861 = arith.divf %859, %860 : vector<8x128xf32>
    %862 = vector.extract_strided_slice %824 {offsets = [0, 256], sizes = [8, 128], strides = [1, 1]} : vector<8x512xf32> to vector<8x128xf32>
    %863 = math.tanh %862 : vector<8x128xf32>
    %864 = vector.extract_strided_slice %824 {offsets = [0, 384], sizes = [8, 128], strides = [1, 1]} : vector<8x512xf32> to vector<8x128xf32>
    %865 = arith.negf %864 : vector<8x128xf32>
    %866 = math.exp %865 : vector<8x128xf32>
    %cst_200 = arith.constant 1.000000e+00 : f32
    %867 = vector.broadcast %cst_200 : f32 to vector<8x128xf32>
    %868 = arith.addf %867, %866 : vector<8x128xf32>
    %869 = arith.divf %867, %868 : vector<8x128xf32>
    %870 = arith.mulf %861, %812 : vector<8x128xf32>
    %871 = arith.mulf %855, %863 : vector<8x128xf32>
    %872 = arith.addf %870, %871 : vector<8x128xf32>
    %873 = math.tanh %872 : vector<8x128xf32>
    %874 = arith.mulf %869, %873 : vector<8x128xf32>
    %875 = tpu.concatenate %849, %874 in 1 : vector<8x128xf32>, vector<8x128xf32> -> vector<8x256xf32>
    %876 = arith.truncf %875 : vector<8x256xf32> to vector<8x256xbf16>
    %c0_201 = arith.constant 0 : index
    %c0_202 = arith.constant 0 : index
    %877 = vector.load %arg6[%c0_201, %c0_202] : memref<256x1024xbf16, #tpu.memory_space<vmem>>, vector<256x1024xbf16>
    %cst_203 = arith.constant dense<0.000000e+00> : vector<8x1024xf32>
    %878 = tpu.matmul %876, %877, %cst_203 {dimension_numbers = #tpu.dot_dimension_numbers<[1], [0], [0], [1], [0, 0, 1, 1], [], []>} : vector<8x256xbf16>, vector<256x1024xbf16>, vector<8x1024xf32> -> vector<8x1024xf32>
    %879 = vector.extract_strided_slice %878 {offsets = [0, 0], sizes = [8, 512], strides = [1, 1]} : vector<8x1024xf32> to vector<8x512xf32>
    %c48_204 = arith.constant 48 : index
    %c0_205 = arith.constant 0 : index
    %880 = vector.load %arg15[%c48_204, %c0_205] : memref<64x1024xf32, #tpu.memory_space<vmem>>, vector<8x512xf32>
    %881 = arith.addf %879, %880 : vector<8x512xf32>
    %882 = vector.extract_strided_slice %878 {offsets = [0, 512], sizes = [8, 512], strides = [1, 1]} : vector<8x1024xf32> to vector<8x512xf32>
    %c8_206 = arith.constant 8 : index
    %c512_207 = arith.constant 512 : index
    %883 = vector.load %arg15[%c8_206, %c512_207] : memref<64x1024xf32, #tpu.memory_space<vmem>>, vector<8x512xf32>
    %884 = arith.addf %882, %883 : vector<8x512xf32>
    %885 = vector.extract_strided_slice %881 {offsets = [0, 0], sizes = [8, 128], strides = [1, 1]} : vector<8x512xf32> to vector<8x128xf32>
    %886 = arith.negf %885 : vector<8x128xf32>
    %887 = math.exp %886 : vector<8x128xf32>
    %cst_208 = arith.constant 1.000000e+00 : f32
    %888 = vector.broadcast %cst_208 : f32 to vector<8x128xf32>
    %889 = arith.addf %888, %887 : vector<8x128xf32>
    %890 = arith.divf %888, %889 : vector<8x128xf32>
    %891 = vector.extract_strided_slice %881 {offsets = [0, 128], sizes = [8, 128], strides = [1, 1]} : vector<8x512xf32> to vector<8x128xf32>
    %892 = arith.negf %891 : vector<8x128xf32>
    %893 = math.exp %892 : vector<8x128xf32>
    %cst_209 = arith.constant 1.000000e+00 : f32
    %894 = vector.broadcast %cst_209 : f32 to vector<8x128xf32>
    %895 = arith.addf %894, %893 : vector<8x128xf32>
    %896 = arith.divf %894, %895 : vector<8x128xf32>
    %897 = vector.extract_strided_slice %881 {offsets = [0, 256], sizes = [8, 128], strides = [1, 1]} : vector<8x512xf32> to vector<8x128xf32>
    %898 = math.tanh %897 : vector<8x128xf32>
    %899 = vector.extract_strided_slice %881 {offsets = [0, 384], sizes = [8, 128], strides = [1, 1]} : vector<8x512xf32> to vector<8x128xf32>
    %900 = arith.negf %899 : vector<8x128xf32>
    %901 = math.exp %900 : vector<8x128xf32>
    %cst_210 = arith.constant 1.000000e+00 : f32
    %902 = vector.broadcast %cst_210 : f32 to vector<8x128xf32>
    %903 = arith.addf %902, %901 : vector<8x128xf32>
    %904 = arith.divf %902, %903 : vector<8x128xf32>
    %905 = arith.mulf %896, %847 : vector<8x128xf32>
    %906 = arith.mulf %890, %898 : vector<8x128xf32>
    %907 = arith.addf %905, %906 : vector<8x128xf32>
    %908 = math.tanh %907 : vector<8x128xf32>
    %909 = arith.mulf %904, %908 : vector<8x128xf32>
    %910 = vector.extract_strided_slice %884 {offsets = [0, 0], sizes = [8, 128], strides = [1, 1]} : vector<8x512xf32> to vector<8x128xf32>
    %911 = arith.negf %910 : vector<8x128xf32>
    %912 = math.exp %911 : vector<8x128xf32>
    %cst_211 = arith.constant 1.000000e+00 : f32
    %913 = vector.broadcast %cst_211 : f32 to vector<8x128xf32>
    %914 = arith.addf %913, %912 : vector<8x128xf32>
    %915 = arith.divf %913, %914 : vector<8x128xf32>
    %916 = vector.extract_strided_slice %884 {offsets = [0, 128], sizes = [8, 128], strides = [1, 1]} : vector<8x512xf32> to vector<8x128xf32>
    %917 = arith.negf %916 : vector<8x128xf32>
    %918 = math.exp %917 : vector<8x128xf32>
    %cst_212 = arith.constant 1.000000e+00 : f32
    %919 = vector.broadcast %cst_212 : f32 to vector<8x128xf32>
    %920 = arith.addf %919, %918 : vector<8x128xf32>
    %921 = arith.divf %919, %920 : vector<8x128xf32>
    %922 = vector.extract_strided_slice %884 {offsets = [0, 256], sizes = [8, 128], strides = [1, 1]} : vector<8x512xf32> to vector<8x128xf32>
    %923 = math.tanh %922 : vector<8x128xf32>
    %924 = vector.extract_strided_slice %884 {offsets = [0, 384], sizes = [8, 128], strides = [1, 1]} : vector<8x512xf32> to vector<8x128xf32>
    %925 = arith.negf %924 : vector<8x128xf32>
    %926 = math.exp %925 : vector<8x128xf32>
    %cst_213 = arith.constant 1.000000e+00 : f32
    %927 = vector.broadcast %cst_213 : f32 to vector<8x128xf32>
    %928 = arith.addf %927, %926 : vector<8x128xf32>
    %929 = arith.divf %927, %928 : vector<8x128xf32>
    %930 = arith.mulf %921, %872 : vector<8x128xf32>
    %931 = arith.mulf %915, %923 : vector<8x128xf32>
    %932 = arith.addf %930, %931 : vector<8x128xf32>
    %933 = math.tanh %932 : vector<8x128xf32>
    %934 = arith.mulf %929, %933 : vector<8x128xf32>
    %935 = tpu.concatenate %909, %934 in 1 : vector<8x128xf32>, vector<8x128xf32> -> vector<8x256xf32>
    %936 = arith.truncf %935 : vector<8x256xf32> to vector<8x256xbf16>
    %c0_214 = arith.constant 0 : index
    %c0_215 = arith.constant 0 : index
    %937 = vector.load %arg6[%c0_214, %c0_215] : memref<256x1024xbf16, #tpu.memory_space<vmem>>, vector<256x1024xbf16>
    %cst_216 = arith.constant dense<0.000000e+00> : vector<8x1024xf32>
    %938 = tpu.matmul %936, %937, %cst_216 {dimension_numbers = #tpu.dot_dimension_numbers<[1], [0], [0], [1], [0, 0, 1, 1], [], []>} : vector<8x256xbf16>, vector<256x1024xbf16>, vector<8x1024xf32> -> vector<8x1024xf32>
    %939 = vector.extract_strided_slice %938 {offsets = [0, 0], sizes = [8, 512], strides = [1, 1]} : vector<8x1024xf32> to vector<8x512xf32>
    %c56_217 = arith.constant 56 : index
    %c0_218 = arith.constant 0 : index
    %940 = vector.load %arg15[%c56_217, %c0_218] : memref<64x1024xf32, #tpu.memory_space<vmem>>, vector<8x512xf32>
    %941 = arith.addf %939, %940 : vector<8x512xf32>
    %942 = vector.extract_strided_slice %938 {offsets = [0, 512], sizes = [8, 512], strides = [1, 1]} : vector<8x1024xf32> to vector<8x512xf32>
    %c0_219 = arith.constant 0 : index
    %c512_220 = arith.constant 512 : index
    %943 = vector.load %arg15[%c0_219, %c512_220] : memref<64x1024xf32, #tpu.memory_space<vmem>>, vector<8x512xf32>
    %944 = arith.addf %942, %943 : vector<8x512xf32>
    %945 = vector.extract_strided_slice %941 {offsets = [0, 0], sizes = [8, 128], strides = [1, 1]} : vector<8x512xf32> to vector<8x128xf32>
    %946 = arith.negf %945 : vector<8x128xf32>
    %947 = math.exp %946 : vector<8x128xf32>
    %cst_221 = arith.constant 1.000000e+00 : f32
    %948 = vector.broadcast %cst_221 : f32 to vector<8x128xf32>
    %949 = arith.addf %948, %947 : vector<8x128xf32>
    %950 = arith.divf %948, %949 : vector<8x128xf32>
    %951 = vector.extract_strided_slice %941 {offsets = [0, 128], sizes = [8, 128], strides = [1, 1]} : vector<8x512xf32> to vector<8x128xf32>
    %952 = arith.negf %951 : vector<8x128xf32>
    %953 = math.exp %952 : vector<8x128xf32>
    %cst_222 = arith.constant 1.000000e+00 : f32
    %954 = vector.broadcast %cst_222 : f32 to vector<8x128xf32>
    %955 = arith.addf %954, %953 : vector<8x128xf32>
    %956 = arith.divf %954, %955 : vector<8x128xf32>
    %957 = vector.extract_strided_slice %941 {offsets = [0, 256], sizes = [8, 128], strides = [1, 1]} : vector<8x512xf32> to vector<8x128xf32>
    %958 = math.tanh %957 : vector<8x128xf32>
    %959 = vector.extract_strided_slice %941 {offsets = [0, 384], sizes = [8, 128], strides = [1, 1]} : vector<8x512xf32> to vector<8x128xf32>
    %960 = arith.negf %959 : vector<8x128xf32>
    %961 = math.exp %960 : vector<8x128xf32>
    %cst_223 = arith.constant 1.000000e+00 : f32
    %962 = vector.broadcast %cst_223 : f32 to vector<8x128xf32>
    %963 = arith.addf %962, %961 : vector<8x128xf32>
    %964 = arith.divf %962, %963 : vector<8x128xf32>
    %965 = arith.mulf %956, %907 : vector<8x128xf32>
    %966 = arith.mulf %950, %958 : vector<8x128xf32>
    %967 = arith.addf %965, %966 : vector<8x128xf32>
    %968 = math.tanh %967 : vector<8x128xf32>
    %969 = arith.mulf %964, %968 : vector<8x128xf32>
    %970 = vector.extract_strided_slice %944 {offsets = [0, 0], sizes = [8, 128], strides = [1, 1]} : vector<8x512xf32> to vector<8x128xf32>
    %971 = arith.negf %970 : vector<8x128xf32>
    %972 = math.exp %971 : vector<8x128xf32>
    %cst_224 = arith.constant 1.000000e+00 : f32
    %973 = vector.broadcast %cst_224 : f32 to vector<8x128xf32>
    %974 = arith.addf %973, %972 : vector<8x128xf32>
    %975 = arith.divf %973, %974 : vector<8x128xf32>
    %976 = vector.extract_strided_slice %944 {offsets = [0, 128], sizes = [8, 128], strides = [1, 1]} : vector<8x512xf32> to vector<8x128xf32>
    %977 = arith.negf %976 : vector<8x128xf32>
    %978 = math.exp %977 : vector<8x128xf32>
    %cst_225 = arith.constant 1.000000e+00 : f32
    %979 = vector.broadcast %cst_225 : f32 to vector<8x128xf32>
    %980 = arith.addf %979, %978 : vector<8x128xf32>
    %981 = arith.divf %979, %980 : vector<8x128xf32>
    %982 = vector.extract_strided_slice %944 {offsets = [0, 256], sizes = [8, 128], strides = [1, 1]} : vector<8x512xf32> to vector<8x128xf32>
    %983 = math.tanh %982 : vector<8x128xf32>
    %984 = vector.extract_strided_slice %944 {offsets = [0, 384], sizes = [8, 128], strides = [1, 1]} : vector<8x512xf32> to vector<8x128xf32>
    %985 = arith.negf %984 : vector<8x128xf32>
    %986 = math.exp %985 : vector<8x128xf32>
    %cst_226 = arith.constant 1.000000e+00 : f32
    %987 = vector.broadcast %cst_226 : f32 to vector<8x128xf32>
    %988 = arith.addf %987, %986 : vector<8x128xf32>
    %989 = arith.divf %987, %988 : vector<8x128xf32>
    %990 = arith.mulf %981, %932 : vector<8x128xf32>
    %991 = arith.mulf %975, %983 : vector<8x128xf32>
    %992 = arith.addf %990, %991 : vector<8x128xf32>
    %993 = math.tanh %992 : vector<8x128xf32>
    %994 = arith.mulf %989, %993 : vector<8x128xf32>
    %995 = vector.extract_strided_slice %969 {offsets = [0, 0], sizes = [2, 128], strides = [1, 1]} : vector<8x128xf32> to vector<2x128xf32>
    %996 = vector.extract_strided_slice %994 {offsets = [0, 0], sizes = [2, 128], strides = [1, 1]} : vector<8x128xf32> to vector<2x128xf32>
    %997 = vector.extract_strided_slice %969 {offsets = [2, 0], sizes = [2, 128], strides = [1, 1]} : vector<8x128xf32> to vector<2x128xf32>
    %998 = vector.extract_strided_slice %994 {offsets = [2, 0], sizes = [2, 128], strides = [1, 1]} : vector<8x128xf32> to vector<2x128xf32>
    %999 = tpu.concatenate %995, %996, %997, %998 in 1 : vector<2x128xf32>, vector<2x128xf32>, vector<2x128xf32>, vector<2x128xf32> -> vector<2x512xf32>
    %1000 = arith.truncf %999 : vector<2x512xf32> to vector<2x512xbf16>
    %c0_227 = arith.constant 0 : index
    %c0_228 = arith.constant 0 : index
    %1001 = vector.load %arg8[%c0_227, %c0_228] : memref<512x128xbf16, #tpu.memory_space<vmem>>, vector<512x128xbf16>
    %cst_229 = arith.constant dense<0.000000e+00> : vector<2x128xf32>
    %1002 = tpu.matmul %1000, %1001, %cst_229 {dimension_numbers = #tpu.dot_dimension_numbers<[1], [0], [0], [1], [0, 0, 1, 1], [], []>} : vector<2x512xbf16>, vector<512x128xbf16>, vector<2x128xf32> -> vector<2x128xf32>
    %c0_230 = arith.constant 0 : index
    %c0_231 = arith.constant 0 : index
    %1003 = vector.load %arg9[%c0_230, %c0_231] : memref<1x128xf32, #tpu.memory_space<vmem>>, vector<1x128xf32>
    %1004 = vector.broadcast %1003 : vector<1x128xf32> to vector<2x128xf32>
    %1005 = arith.addf %1002, %1004 : vector<2x128xf32>
    %cst_232 = arith.constant 0.000000e+00 : f32
    %1006 = vector.broadcast %cst_232 : f32 to vector<2x128xf32>
    %1007 = arith.maximumf %1005, %1006 : vector<2x128xf32>
    %1008 = arith.truncf %1007 : vector<2x128xf32> to vector<2x128xbf16>
    %c0_233 = arith.constant 0 : index
    %c0_234 = arith.constant 0 : index
    %1009 = vector.load %arg10[%c0_233, %c0_234] : memref<128x128xbf16, #tpu.memory_space<vmem>>, vector<128x128xbf16>
    %cst_235 = arith.constant dense<0.000000e+00> : vector<2x128xf32>
    %1010 = tpu.matmul %1008, %1009, %cst_235 {dimension_numbers = #tpu.dot_dimension_numbers<[1], [0], [0], [1], [0, 0, 1, 1], [], []>} : vector<2x128xbf16>, vector<128x128xbf16>, vector<2x128xf32> -> vector<2x128xf32>
    %c0_236 = arith.constant 0 : index
    %c0_237 = arith.constant 0 : index
    %1011 = vector.load %arg11[%c0_236, %c0_237] : memref<1x128xf32, #tpu.memory_space<vmem>>, vector<1x128xf32>
    %1012 = vector.broadcast %1011 : vector<1x128xf32> to vector<2x128xf32>
    %1013 = arith.addf %1010, %1012 : vector<2x128xf32>
    %cst_238 = arith.constant 0.000000e+00 : f32
    %1014 = vector.broadcast %cst_238 : f32 to vector<2x128xf32>
    %1015 = arith.maximumf %1013, %1014 : vector<2x128xf32>
    %1016 = arith.truncf %1015 : vector<2x128xf32> to vector<2x128xbf16>
    %c0_239 = arith.constant 0 : index
    %c0_240 = arith.constant 0 : index
    %1017 = vector.load %arg12[%c0_239, %c0_240] : memref<128x128xbf16, #tpu.memory_space<vmem>>, vector<128x128xbf16>
    %cst_241 = arith.constant dense<0.000000e+00> : vector<2x128xf32>
    %1018 = tpu.matmul %1016, %1017, %cst_241 {dimension_numbers = #tpu.dot_dimension_numbers<[1], [0], [0], [1], [0, 0, 1, 1], [], []>} : vector<2x128xbf16>, vector<128x128xbf16>, vector<2x128xf32> -> vector<2x128xf32>
    %c0_242 = arith.constant 0 : index
    %c0_243 = arith.constant 0 : index
    %1019 = vector.load %arg13[%c0_242, %c0_243] : memref<1x128xf32, #tpu.memory_space<vmem>>, vector<1x128xf32>
    %1020 = vector.broadcast %1019 : vector<1x128xf32> to vector<2x128xf32>
    %1021 = arith.addf %1018, %1020 : vector<2x128xf32>
    %1022 = tpu.iota {dimensions = array<i32: 1>} : vector<2x128xi32>
    %c3_i32 = arith.constant 3 : i32
    %1023 = vector.broadcast %c3_i32 : i32 to vector<2x128xi32>
    %1024 = arith.cmpi slt, %1022, %1023 : vector<2x128xi32>
    %cst_244 = arith.constant -1.000000e+30 : f32
    %1025 = vector.broadcast %cst_244 : f32 to vector<2x128xf32>
    %1026 = arith.select %1024, %1021, %1025 : vector<2x128xi1>, vector<2x128xf32>
    %cst_245 = arith.constant dense<0xFF800000> : vector<2xf32>
    %1027 = vector.multi_reduction <maximumf>, %1026, %cst_245 [1] : vector<2x128xf32> to vector<2xf32>
    %1028 = vector.shape_cast %1027 : vector<2xf32> to vector<2x1xf32>
    %1029 = vector.broadcast %1028 : vector<2x1xf32> to vector<2x128xf32>
    %1030 = arith.subf %1026, %1029 : vector<2x128xf32>
    %1031 = math.exp %1030 : vector<2x128xf32>
    %cst_246 = arith.constant dense<0.000000e+00> : vector<2xf32>
    %1032 = vector.multi_reduction <add>, %1031, %cst_246 [1] : vector<2x128xf32> to vector<2xf32>
    %1033 = vector.shape_cast %1032 : vector<2xf32> to vector<2x1xf32>
    %1034 = math.log %1033 : vector<2x1xf32>
    %1035 = vector.broadcast %1034 : vector<2x1xf32> to vector<2x128xf32>
    %1036 = arith.subf %1030, %1035 : vector<2x128xf32>
    %c0_247 = arith.constant 0 : index
    %c0_248 = arith.constant 0 : index
    %1037 = vector.load %arg14[%c0_247, %c0_248] : memref<2x128xf32, #tpu.memory_space<vmem>>, vector<2x128xf32>
    tpu.vector_store %arg14[%c0_247, %c0_248], %1036 {strides = array<i32>} : memref<2x128xf32, #tpu.memory_space<vmem>>, vector<2x128xf32>,
    return
  }
}

</mosaic_0001>

<llo_original>
// kernel: model_forward.1
$region0: #{model_forward.1}
  #allocation0 [shape = 'u32[]', space=smem, size = 0x4, offset = 0x4, fixed_abs, tag = 'smem constant byte address 0x4 - core index']
  #allocation1 [shape = 'u32[144,128]{1,0:T(1,128)}', space=vmem, size = 0x12000, scoped, tag = 'internal scratch']
  #allocation2 [shape = 'f32[64,1024]{1,0:T(8,128)}', space=vmem, size = 0x40000, scoped, tag = 'scratch operand']
  %s0 = inlined_call_operand.vmem [shape: s32[64,1], index: 0, kind: input, shape index: {}]
  %s1 = inlined_call_operand.hbm [shape: bf16[1024,128], index: 1, kind: input, shape index: {}]
  %s2 = inlined_call_operand.hbm [shape: bf16[128,1024], index: 2, kind: input, shape index: {}]
  %s3 = inlined_call_operand.hbm [shape: bf16[256,1024], index: 3, kind: input, shape index: {}]
  %s4 = inlined_call_operand.hbm [shape: f32[1,1024], index: 4, kind: input, shape index: {}]
  %s5 = inlined_call_operand.hbm [shape: bf16[256,1024], index: 5, kind: input, shape index: {}]
  %s6 = inlined_call_operand.hbm [shape: bf16[256,1024], index: 6, kind: input, shape index: {}]
  %s7 = inlined_call_operand.hbm [shape: f32[1,1024], index: 7, kind: input, shape index: {}]
  %s8 = inlined_call_operand.hbm [shape: bf16[512,128], index: 8, kind: input, shape index: {}]
  %s9 = inlined_call_operand.hbm [shape: f32[1,128], index: 9, kind: input, shape index: {}]
  %s10 = inlined_call_operand.vmem [shape: bf16[128,128], index: 10, kind: input, shape index: {}]
  %s11 = inlined_call_operand.hbm [shape: f32[1,128], index: 11, kind: input, shape index: {}]
  %s12 = inlined_call_operand.vmem [shape: bf16[128,128], index: 12, kind: input, shape index: {}]
  %s13 = inlined_call_operand.hbm [shape: f32[1,128], index: 13, kind: input, shape index: {}]
  %s14 = inlined_call_operand.hbm [shape: f32[2,128], index: 14, kind: output, shape index: {}]
  %s15 = sld [smem:[#allocation0]]
  $region110: #{model_forward.1} parent=0
    _
  %s17 = ssub.s32 1, %s15
  %s18 = scalar_select 0, %s17, %s15
  $region1: #{model_forward.1} parent=0
    #allocation3 [shape = 'u8[262144]{0}', space=vmem, size = 0x40000, scoped, tag = 'input window, operand 1, single buffered']
    #allocation4 [shape = 's32[1]{0}', space=sflag, size = 0x4, scoped, tag = 'scoped memory for model_forward.1']
    #allocation5 [shape = 's32[1]{0}', space=sflag, size = 0x4, scoped, tag = 'scoped memory for model_forward.1']
    #allocation6 [shape = 'u8[262144]{0}', space=vmem, size = 0x40000, scoped, tag = 'input window, operand 2, single buffered']
    #allocation7 [shape = 's32[1]{0}', space=sflag, size = 0x4, scoped, tag = 'scoped memory for model_forward.1']
    #allocation8 [shape = 'u8[524288]{0}', space=vmem, size = 0x80000, scoped, tag = 'input window, operand 3, single buffered']
    #allocation9 [shape = 'u8[4096]{0}', space=vmem, size = 0x1000, scoped, tag = 'input window, operand 4, single buffered']
    #allocation10 [shape = 's32[1]{0}', space=sflag, size = 0x4, scoped, tag = 'scoped memory for model_forward.1']
    #allocation11 [shape = 'u8[524288]{0}', space=vmem, size = 0x80000, scoped, tag = 'input window, operand 5, single buffered']
    #allocation12 [shape = 'u8[524288]{0}', space=vmem, size = 0x80000, scoped, tag = 'input window, operand 6, single buffered']
    #allocation13 [shape = 's32[1]{0}', space=sflag, size = 0x4, scoped, tag = 'scoped memory for model_forward.1']
    #allocation14 [shape = 'u8[4096]{0}', space=vmem, size = 0x1000, scoped, tag = 'input window, operand 7, single buffered']
    #allocation15 [shape = 'u8[131072]{0}', space=vmem, size = 0x20000, scoped, tag = 'input window, operand 8, single buffered']
    #allocation16 [shape = 's32[1]{0}', space=sflag, size = 0x4, scoped, tag = 'scoped memory for model_forward.1']
    #allocation17 [shape = 'u8[512]{0}', space=vmem, size = 0x400, scoped, tag = 'input window, operand 9, single buffered']
    #allocation18 [shape = 'u8[512]{0}', space=vmem, size = 0x400, scoped, tag = 'input window, operand 11, single buffered']
    #allocation19 [shape = 's32[1]{0}', space=sflag, size = 0x4, scoped, tag = 'scoped memory for model_forward.1']
    #allocation20 [shape = 'u8[512]{0}', space=vmem, size = 0x400, scoped, tag = 'input window, operand 13, single buffered']
    #allocation21 [shape = 'u8[1024]{0}', space=vmem, size = 0x400, scoped, tag = 'output window, operand 0, single buffered']
    %19 = vsyncpa [#allocation4], 0
    %20 = vsyncpa [#allocation7], 0
    %21 = vsyncpa [#allocation10], 0
    %22 = vsyncpa [#allocation13], 0
    %23 = vsyncpa [#allocation16], 0
    %24 = vsyncpa [#allocation19], 0
    %25 = vsyncpa [#allocation5], 0
    // Predicated region
    $region2: #{model_forward.1} parent=1 // pred_check
      _
    $region3: #{model_forward.1} parent=1 // pred_check_branch
      %27 = sbr.rel (0) target = $region5
    $region4: #{model_forward.1} parent=1 // pred_region
      _
    $region5: #{model_forward.1} parent=1 // pred_fallthru
      _
    // Predicated region
    $region6: #{model_forward.1} parent=1 // pred_check
      _
    $region7: #{model_forward.1} parent=1 // pred_check_branch
      %29 = sbr.rel (0) target = $region9
    $region8: #{model_forward.1} parent=1 // pred_region
      %s31 = ssub.s32 8192, 8192
      %32 = vsyncadd [#allocation4], %s31
      %s33 = sshll.u32 [#allocation3], 4
      %s34 = int_to_ptr.vmem [resolvable:$true] %s33
      %39 = dma.hbm_to_vmem [thread:$0]  %s1, 8192, %s34, [#allocation4], 64, 64, 4
    $region9: #{model_forward.1} parent=1 // pred_fallthru
      _
    // Predicated region
    $region10: #{model_forward.1} parent=1 // pred_check
      _
    $region11: #{model_forward.1} parent=1 // pred_check_branch
      %41 = sbr.rel (0) target = $region13
    $region12: #{model_forward.1} parent=1 // pred_region
      %s43 = ssub.s32 8192, 8192
      %44 = vsyncadd [#allocation7], %s43
      %s45 = sshll.u32 [#allocation6], 4
      %s46 = int_to_ptr.vmem [resolvable:$true] %s45
      %51 = dma.hbm_to_vmem [thread:$0]  %s2, 8192, %s46, [#allocation7], 512, 512, 32
    $region13: #{model_forward.1} parent=1 // pred_fallthru
      _
    // Predicated region
    $region14: #{model_forward.1} parent=1 // pred_check
      _
    $region15: #{model_forward.1} parent=1 // pred_check_branch
      %53 = sbr.rel (0) target = $region17
    $region16: #{model_forward.1} parent=1 // pred_region
      %s55 = ssub.s32 16384, 16384
      %56 = vsyncadd [#allocation7], %s55
      %s57 = sshll.u32 [#allocation8], 4
      %s58 = int_to_ptr.vmem [resolvable:$true] %s57
      %63 = dma.hbm_to_vmem [thread:$0]  %s3, 16384, %s58, [#allocation7], 512, 512, 32
    $region17: #{model_forward.1} parent=1 // pred_fallthru
      _
    // Predicated region
    $region18: #{model_forward.1} parent=1 // pred_check
      _
    $region19: #{model_forward.1} parent=1 // pred_check_branch
      %65 = sbr.rel (0) target = $region21
    $region20: #{model_forward.1} parent=1 // pred_region
      %s67 = ssub.s32 128, 128
      %68 = vsyncadd [#allocation10], %s67
      %s70 = sshll.u32 [#allocation9], 4
      %s71 = int_to_ptr.vmem [resolvable:$true] %s70
      %73 = dma.hbm_to_vmem [thread:$0]  %s4, 128, %s71, [#allocation10]
    $region21: #{model_forward.1} parent=1 // pred_fallthru
      _
    // Predicated region
    $region22: #{model_forward.1} parent=1 // pred_check
      _
    $region23: #{model_forward.1} parent=1 // pred_check_branch
      %75 = sbr.rel (0) target = $region25
    $region24: #{model_forward.1} parent=1 // pred_region
      %s77 = ssub.s32 16384, 16384
      %78 = vsyncadd [#allocation10], %s77
      %s79 = sshll.u32 [#allocation11], 4
      %s80 = int_to_ptr.vmem [resolvable:$true] %s79
      %85 = dma.hbm_to_vmem [thread:$0]  %s5, 16384, %s80, [#allocation10], 512, 512, 32
    $region25: #{model_forward.1} parent=1 // pred_fallthru
      _
    // Predicated region
    $region26: #{model_forward.1} parent=1 // pred_check
      _
    $region27: #{model_forward.1} parent=1 // pred_check_branch
      %87 = sbr.rel (0) target = $region29
    $region28: #{model_forward.1} parent=1 // pred_region
      %s89 = ssub.s32 16384, 16384
      %90 = vsyncadd [#allocation13], %s89
      %s91 = sshll.u32 [#allocation12], 4
      %s92 = int_to_ptr.vmem [resolvable:$true] %s91
      %97 = dma.hbm_to_vmem [thread:$0]  %s6, 16384, %s92, [#allocation13], 512, 512, 32
    $region29: #{model_forward.1} parent=1 // pred_fallthru
      _
    // Predicated region
    $region30: #{model_forward.1} parent=1 // pred_check
      _
    $region31: #{model_forward.1} parent=1 // pred_check_branch
      %99 = sbr.rel (0) target = $region33
    $region32: #{model_forward.1} parent=1 // pred_region
      %s101 = ssub.s32 128, 128
      %102 = vsyncadd [#allocation13], %s101
      %s104 = sshll.u32 [#allocation14], 4
      %s105 = int_to_ptr.vmem [resolvable:$true] %s104
      %107 = dma.hbm_to_vmem [thread:$0]  %s7, 128, %s105, [#allocation13]
    $region33: #{model_forward.1} parent=1 // pred_fallthru
      _
    // Predicated region
    $region34: #{model_forward.1} parent=1 // pred_check
      _
    $region35: #{model_forward.1} parent=1 // pred_check_branch
      %109 = sbr.rel (0) target = $region37
    $region36: #{model_forward.1} parent=1 // pred_region
      %s111 = ssub.s32 4096, 4096
      %112 = vsyncadd [#allocation16], %s111
      %s113 = sshll.u32 [#allocation15], 4
      %s114 = int_to_ptr.vmem [resolvable:$true] %s113
      %119 = dma.hbm_to_vmem [thread:$0]  %s8, 4096, %s114, [#allocation16], 64, 64, 4
    $region37: #{model_forward.1} parent=1 // pred_fallthru
      _
    // Predicated region
    $region38: #{model_forward.1} parent=1 // pred_check
      _
    $region39: #{model_forward.1} parent=1 // pred_check_branch
      %121 = sbr.rel (0) target = $region41
    $region40: #{model_forward.1} parent=1 // pred_region
      %s123 = ssub.s32 16, 16
      %124 = vsyncadd [#allocation16], %s123
      %s126 = sshll.u32 [#allocation17], 4
      %s127 = int_to_ptr.vmem [resolvable:$true] %s126
      %129 = dma.hbm_to_vmem [thread:$0]  %s9, 16, %s127, [#allocation16]
    $region41: #{model_forward.1} parent=1 // pred_fallthru
      _
    // Predicated region
    $region42: #{model_forward.1} parent=1 // pred_check
      _
    $region43: #{model_forward.1} parent=1 // pred_check_branch
      %131 = sbr.rel (0) target = $region45
    $region44: #{model_forward.1} parent=1 // pred_region
      _
    $region45: #{model_forward.1} parent=1 // pred_fallthru
      _
    // Predicated region
    $region46: #{model_forward.1} parent=1 // pred_check
      _
    $region47: #{model_forward.1} parent=1 // pred_check_branch
      %133 = sbr.rel (0) target = $region49
    $region48: #{model_forward.1} parent=1 // pred_region
      %s135 = ssub.s32 16, 16
      %136 = vsyncadd [#allocation19], %s135
      %s138 = sshll.u32 [#allocation18], 4
      %s139 = int_to_ptr.vmem [resolvable:$true] %s138
      %141 = dma.hbm_to_vmem [thread:$0]  %s11, 16, %s139, [#allocation19]
    $region49: #{model_forward.1} parent=1 // pred_fallthru
      _
    // Predicated region
    $region50: #{model_forward.1} parent=1 // pred_check
      _
    $region51: #{model_forward.1} parent=1 // pred_check_branch
      %143 = sbr.rel (0) target = $region53
    $region52: #{model_forward.1} parent=1 // pred_region
      _
    $region53: #{model_forward.1} parent=1 // pred_fallthru
      _
    // Predicated region
    $region54: #{model_forward.1} parent=1 // pred_check
      _
    $region55: #{model_forward.1} parent=1 // pred_check_branch
      %145 = sbr.rel (0) target = $region57
    $region56: #{model_forward.1} parent=1 // pred_region
      %s147 = ssub.s32 16, 16
      %148 = vsyncadd [#allocation19], %s147
      %s150 = sshll.u32 [#allocation20], 4
      %s151 = int_to_ptr.vmem [resolvable:$true] %s150
      %153 = dma.hbm_to_vmem [thread:$0]  %s13, 16, %s151, [#allocation19]
    $region57: #{model_forward.1} parent=1 // pred_fallthru
      _
    // Predicated region
    $region58: #{model_forward.1} parent=1 // pred_check
      _
    $region59: #{model_forward.1} parent=1 // pred_check_branch
      %155 = sbr.rel (0) target = $region61
    $region60: #{model_forward.1} parent=1 // pred_region
      %156 = dma.done [#allocation4], 8192
    $region61: #{model_forward.1} parent=1 // pred_fallthru
      _
    // Predicated region
    $region62: #{model_forward.1} parent=1 // pred_check
      _
    $region63: #{model_forward.1} parent=1 // pred_check_branch
      %158 = sbr.rel (0) target = $region65
    $region64: #{model_forward.1} parent=1 // pred_region
      %159 = dma.done [#allocation7], 8192
    $region65: #{model_forward.1} parent=1 // pred_fallthru
      _
    // Predicated region
    $region66: #{model_forward.1} parent=1 // pred_check
      _
    $region67: #{model_forward.1} parent=1 // pred_check_branch
      %161 = sbr.rel (0) target = $region69
    $region68: #{model_forward.1} parent=1 // pred_region
      %162 = dma.done [#allocation7], 16384
    $region69: #{model_forward.1} parent=1 // pred_fallthru
      _
    // Predicated region
    $region70: #{model_forward.1} parent=1 // pred_check
      _
    $region71: #{model_forward.1} parent=1 // pred_check_branch
      %164 = sbr.rel (0) target = $region73
    $region72: #{model_forward.1} parent=1 // pred_region
      %165 = dma.done [#allocation10], 128
    $region73: #{model_forward.1} parent=1 // pred_fallthru
      _
    // Predicated region
    $region74: #{model_forward.1} parent=1 // pred_check
      _
    $region75: #{model_forward.1} parent=1 // pred_check_branch
      %167 = sbr.rel (0) target = $region77
    $region76: #{model_forward.1} parent=1 // pred_region
      %168 = dma.done [#allocation10], 16384
    $region77: #{model_forward.1} parent=1 // pred_fallthru
      _
    // Predicated region
    $region78: #{model_forward.1} parent=1 // pred_check
      _
    $region79: #{model_forward.1} parent=1 // pred_check_branch
      %170 = sbr.rel (0) target = $region81
    $region80: #{model_forward.1} parent=1 // pred_region
      %171 = dma.done [#allocation13], 16384
    $region81: #{model_forward.1} parent=1 // pred_fallthru
      _
    // Predicated region
    $region82: #{model_forward.1} parent=1 // pred_check
      _
    $region83: #{model_forward.1} parent=1 // pred_check_branch
      %173 = sbr.rel (0) target = $region85
    $region84: #{model_forward.1} parent=1 // pred_region
      %174 = dma.done [#allocation13], 128
    $region85: #{model_forward.1} parent=1 // pred_fallthru
      _
    // Predicated region
    $region86: #{model_forward.1} parent=1 // pred_check
      _
    $region87: #{model_forward.1} parent=1 // pred_check_branch
      %176 = sbr.rel (0) target = $region89
    $region88: #{model_forward.1} parent=1 // pred_region
      %177 = dma.done [#allocation16], 4096
    $region89: #{model_forward.1} parent=1 // pred_fallthru
      _
    // Predicated region
    $region90: #{model_forward.1} parent=1 // pred_check
      _
    $region91: #{model_forward.1} parent=1 // pred_check_branch
      %179 = sbr.rel (0) target = $region93
    $region92: #{model_forward.1} parent=1 // pred_region
      %180 = dma.done [#allocation16], 16
    $region93: #{model_forward.1} parent=1 // pred_fallthru
      _
    // Predicated region
    $region94: #{model_forward.1} parent=1 // pred_check
      _
    $region95: #{model_forward.1} parent=1 // pred_check_branch
      %182 = sbr.rel (0) target = $region97
    $region96: #{model_forward.1} parent=1 // pred_region
      %183 = dma.done [#allocation19], 16
    $region97: #{model_forward.1} parent=1 // pred_fallthru
      _
    // Predicated region
    $region98: #{model_forward.1} parent=1 // pred_check
      _
    $region99: #{model_forward.1} parent=1 // pred_check_branch
      %185 = sbr.rel (0) target = $region101
    $region100: #{model_forward.1} parent=1 // pred_region
      %186 = dma.done [#allocation19], 16
    $region101: #{model_forward.1} parent=1 // pred_fallthru
      _
    %v188 = vld [vmem:[%s0] sm:$0xff]
    %v189 = vld [vmem:[%s0 + $0x8] sm:$0xff]
    %v190 = vld [vmem:[%s0 + $0x10] sm:$0xff]
    %v191 = vld [vmem:[%s0 + $0x18] sm:$0xff]
    %v192 = vld [vmem:[%s0 + $0x20] sm:$0xff]
    %v193 = vld [vmem:[%s0 + $0x28] sm:$0xff]
    %v194 = vld [vmem:[%s0 + $0x30] sm:$0xff]
    %v195 = vld [vmem:[%s0 + $0x38] sm:$0xff]
    %v196 = vlaneseq
    %v197 = vand.u32 %v196, 127
    %v198 = vadd.s32 %v197, 128
    %v199 = vadd.s32 %v197, 256
    %v200 = vadd.s32 %v197, 384
    %v201 = vadd.s32 %v197, 512
    %v202 = vadd.s32 %v197, 640
    %v203 = vadd.s32 %v197, 768
    %v204 = vadd.s32 %v197, 896
    %205 = vset.pattern.permute.xlu0 0
    %206 = vperm.xlu0 %205, %v188
    %v207 = vpop.permute.xlu0 %206
    %208 = vset.pattern.permute.xlu0 0
    %209 = vperm.xlu0 %208, %v189
    %v210 = vpop.permute.xlu0 %209
    %211 = vset.pattern.permute.xlu0 0
    %212 = vperm.xlu0 %211, %v190
    %v213 = vpop.permute.xlu0 %212
    %214 = vset.pattern.permute.xlu0 0
    %215 = vperm.xlu0 %214, %v191
    %v216 = vpop.permute.xlu0 %215
    %217 = vset.pattern.permute.xlu0 0
    %218 = vperm.xlu0 %217, %v192
    %v219 = vpop.permute.xlu0 %218
    %220 = vset.pattern.permute.xlu0 0
    %221 = vperm.xlu0 %220, %v193
    %v222 = vpop.permute.xlu0 %221
    %223 = vset.pattern.permute.xlu0 0
    %224 = vperm.xlu0 %223, %v194
    %v225 = vpop.permute.xlu0 %224
    %226 = vset.pattern.permute.xlu0 0
    %227 = vperm.xlu0 %226, %v195
    %v228 = vpop.permute.xlu0 %227
    %vm229 = vcmp.eq.s32.totalorder %v197, %v207
    %vm230 = vcmp.eq.s32.totalorder %v198, %v207
    %vm231 = vcmp.eq.s32.totalorder %v199, %v207
    %vm232 = vcmp.eq.s32.totalorder %v200, %v207
    %vm233 = vcmp.eq.s32.totalorder %v201, %v207
    %vm234 = vcmp.eq.s32.totalorder %v202, %v207
    %vm235 = vcmp.eq.s32.totalorder %v203, %v207
    %vm236 = vcmp.eq.s32.totalorder %v204, %v207
    %vm237 = vcmp.eq.s32.totalorder %v197, %v210
    %vm238 = vcmp.eq.s32.totalorder %v198, %v210
    %vm239 = vcmp.eq.s32.totalorder %v199, %v210
    %vm240 = vcmp.eq.s32.totalorder %v200, %v210
    %vm241 = vcmp.eq.s32.totalorder %v201, %v210
    %vm242 = vcmp.eq.s32.totalorder %v202, %v210
    %vm243 = vcmp.eq.s32.totalorder %v203, %v210
    %vm244 = vcmp.eq.s32.totalorder %v204, %v210
    %vm245 = vcmp.eq.s32.totalorder %v197, %v213
    %vm246 = vcmp.eq.s32.totalorder %v198, %v213
    %vm247 = vcmp.eq.s32.totalorder %v199, %v213
    %vm248 = vcmp.eq.s32.totalorder %v200, %v213
    %vm249 = vcmp.eq.s32.totalorder %v201, %v213
    %vm250 = vcmp.eq.s32.totalorder %v202, %v213
    %vm251 = vcmp.eq.s32.totalorder %v203, %v213
    %vm252 = vcmp.eq.s32.totalorder %v204, %v213
    %vm253 = vcmp.eq.s32.totalorder %v197, %v216
    %vm254 = vcmp.eq.s32.totalorder %v198, %v216
    %vm255 = vcmp.eq.s32.totalorder %v199, %v216
    %vm256 = vcmp.eq.s32.totalorder %v200, %v216
    %vm257 = vcmp.eq.s32.totalorder %v201, %v216
    %vm258 = vcmp.eq.s32.totalorder %v202, %v216
    %vm259 = vcmp.eq.s32.totalorder %v203, %v216
    %vm260 = vcmp.eq.s32.totalorder %v204, %v216
    %vm261 = vcmp.eq.s32.totalorder %v197, %v219
    %vm262 = vcmp.eq.s32.totalorder %v198, %v219
    %vm263 = vcmp.eq.s32.totalorder %v199, %v219
    %vm264 = vcmp.eq.s32.totalorder %v200, %v219
    %vm265 = vcmp.eq.s32.totalorder %v201, %v219
    %vm266 = vcmp.eq.s32.totalorder %v202, %v219
    %vm267 = vcmp.eq.s32.totalorder %v203, %v219
    %vm268 = vcmp.eq.s32.totalorder %v204, %v219
    %vm269 = vcmp.eq.s32.totalorder %v197, %v222
    %vm270 = vcmp.eq.s32.totalorder %v198, %v222
    %vm271 = vcmp.eq.s32.totalorder %v199, %v222
    %vm272 = vcmp.eq.s32.totalorder %v200, %v222
    %vm273 = vcmp.eq.s32.totalorder %v201, %v222
    %vm274 = vcmp.eq.s32.totalorder %v202, %v222
    %vm275 = vcmp.eq.s32.totalorder %v203, %v222
    %vm276 = vcmp.eq.s32.totalorder %v204, %v222
    %vm277 = vcmp.eq.s32.totalorder %v197, %v225
    %vm278 = vcmp.eq.s32.totalorder %v198, %v225
    %vm279 = vcmp.eq.s32.totalorder %v199, %v225
    %vm280 = vcmp.eq.s32.totalorder %v200, %v225
    %vm281 = vcmp.eq.s32.totalorder %v201, %v225
    %vm282 = vcmp.eq.s32.totalorder %v202, %v225
    %vm283 = vcmp.eq.s32.totalorder %v203, %v225
    %vm284 = vcmp.eq.s32.totalorder %v204, %v225
    %vm285 = vcmp.eq.s32.totalorder %v197, %v228
    %vm286 = vcmp.eq.s32.totalorder %v198, %v228
    %vm287 = vcmp.eq.s32.totalorder %v199, %v228
    %vm288 = vcmp.eq.s32.totalorder %v200, %v228
    %vm289 = vcmp.eq.s32.totalorder %v201, %v228
    %vm290 = vcmp.eq.s32.totalorder %v202, %v228
    %vm291 = vcmp.eq.s32.totalorder %v203, %v228
    %vm292 = vcmp.eq.s32.totalorder %v204, %v228
    %v293 = vsel %vm229, 1.0, 0.0
    %v294 = vsel %vm230, 1.0, 0.0
    %v295 = vsel %vm231, 1.0, 0.0
    %v296 = vsel %vm232, 1.0, 0.0
    %v297 = vsel %vm233, 1.0, 0.0
    %v298 = vsel %vm234, 1.0, 0.0
    %v299 = vsel %vm235, 1.0, 0.0
    %v300 = vsel %vm236, 1.0, 0.0
    %v301 = vsel %vm237, 1.0, 0.0
    %v302 = vsel %vm238, 1.0, 0.0
    %v303 = vsel %vm239, 1.0, 0.0
    %v304 = vsel %vm240, 1.0, 0.0
    %v305 = vsel %vm241, 1.0, 0.0
    %v306 = vsel %vm242, 1.0, 0.0
    %v307 = vsel %vm243, 1.0, 0.0
    %v308 = vsel %vm244, 1.0, 0.0
    %v309 = vsel %vm245, 1.0, 0.0
    %v310 = vsel %vm246, 1.0, 0.0
    %v311 = vsel %vm247, 1.0, 0.0
    %v312 = vsel %vm248, 1.0, 0.0
    %v313 = vsel %vm249, 1.0, 0.0
    %v314 = vsel %vm250, 1.0, 0.0
    %v315 = vsel %vm251, 1.0, 0.0
    %v316 = vsel %vm252, 1.0, 0.0
    %v317 = vsel %vm253, 1.0, 0.0
    %v318 = vsel %vm254, 1.0, 0.0
    %v319 = vsel %vm255, 1.0, 0.0
    %v320 = vsel %vm256, 1.0, 0.0
    %v321 = vsel %vm257, 1.0, 0.0
    %v322 = vsel %vm258, 1.0, 0.0
    %v323 = vsel %vm259, 1.0, 0.0
    %v324 = vsel %vm260, 1.0, 0.0
    %v325 = vsel %vm261, 1.0, 0.0
    %v326 = vsel %vm262, 1.0, 0.0
    %v327 = vsel %vm263, 1.0, 0.0
    %v328 = vsel %vm264, 1.0, 0.0
    %v329 = vsel %vm265, 1.0, 0.0
    %v330 = vsel %vm266, 1.0, 0.0
    %v331 = vsel %vm267, 1.0, 0.0
    %v332 = vsel %vm268, 1.0, 0.0
    %v333 = vsel %vm269, 1.0, 0.0
    %v334 = vsel %vm270, 1.0, 0.0
    %v335 = vsel %vm271, 1.0, 0.0
    %v336 = vsel %vm272, 1.0, 0.0
    %v337 = vsel %vm273, 1.0, 0.0
    %v338 = vsel %vm274, 1.0, 0.0
    %v339 = vsel %vm275, 1.0, 0.0
    %v340 = vsel %vm276, 1.0, 0.0
    %v341 = vsel %vm277, 1.0, 0.0
    %v342 = vsel %vm278, 1.0, 0.0
    %v343 = vsel %vm279, 1.0, 0.0
    %v344 = vsel %vm280, 1.0, 0.0
    %v345 = vsel %vm281, 1.0, 0.0
    %v346 = vsel %vm282, 1.0, 0.0
    %v347 = vsel %vm283, 1.0, 0.0
    %v348 = vsel %vm284, 1.0, 0.0
    %v349 = vsel %vm285, 1.0, 0.0
    %v350 = vsel %vm286, 1.0, 0.0
    %v351 = vsel %vm287, 1.0, 0.0
    %v352 = vsel %vm288, 1.0, 0.0
    %v353 = vsel %vm289, 1.0, 0.0
    %v354 = vsel %vm290, 1.0, 0.0
    %v355 = vsel %vm291, 1.0, 0.0
    %v356 = vsel %vm292, 1.0, 0.0
    %v357 = vpack.c.bf16 %v301, %v293
    %v358 = vpack.c.bf16 %v302, %v294
    %v359 = vpack.c.bf16 %v303, %v295
    %v360 = vpack.c.bf16 %v304, %v296
    %v361 = vpack.c.bf16 %v305, %v297
    %v362 = vpack.c.bf16 %v306, %v298
    %v363 = vpack.c.bf16 %v307, %v299
    %v364 = vpack.c.bf16 %v308, %v300
    %v365 = vpack.c.bf16 %v317, %v309
    %v366 = vpack.c.bf16 %v318, %v310
    %v367 = vpack.c.bf16 %v319, %v311
    %v368 = vpack.c.bf16 %v320, %v312
    %v369 = vpack.c.bf16 %v321, %v313
    %v370 = vpack.c.bf16 %v322, %v314
    %v371 = vpack.c.bf16 %v323, %v315
    %v372 = vpack.c.bf16 %v324, %v316
    %v373 = vpack.c.bf16 %v333, %v325
    %v374 = vpack.c.bf16 %v334, %v326
    %v375 = vpack.c.bf16 %v335, %v327
    %v376 = vpack.c.bf16 %v336, %v328
    %v377 = vpack.c.bf16 %v337, %v329
    %v378 = vpack.c.bf16 %v338, %v330
    %v379 = vpack.c.bf16 %v339, %v331
    %v380 = vpack.c.bf16 %v340, %v332
    %v381 = vpack.c.bf16 %v349, %v341
    %v382 = vpack.c.bf16 %v350, %v342
    %v383 = vpack.c.bf16 %v351, %v343
    %v384 = vpack.c.bf16 %v352, %v344
    %v385 = vpack.c.bf16 %v353, %v345
    %v386 = vpack.c.bf16 %v354, %v346
    %v387 = vpack.c.bf16 %v355, %v347
    %v388 = vpack.c.bf16 %v356, %v348
    %v389 = vld [vmem:[#allocation3] sm:$0xf]
    %v390 = vld [vmem:[#allocation3 + $0x4] sm:$0xf]
    %v391 = vld [vmem:[#allocation3 + $0x8] sm:$0xf]
    %v392 = vld [vmem:[#allocation3 + $0xc] sm:$0xf]
    %v393 = vld [vmem:[#allocation3 + $0x10] sm:$0xf]
    %v394 = vld [vmem:[#allocation3 + $0x14] sm:$0xf]
    %v395 = vld [vmem:[#allocation3 + $0x18] sm:$0xf]
    %v396 = vld [vmem:[#allocation3 + $0x1c] sm:$0xf]
    %v397 = vld [vmem:[#allocation3 + $0x20] sm:$0xf]
    %v398 = vld [vmem:[#allocation3 + $0x24] sm:$0xf]
    %v399 = vld [vmem:[#allocation3 + $0x28] sm:$0xf]
    %v400 = vld [vmem:[#allocation3 + $0x2c] sm:$0xf]
    %v401 = vld [vmem:[#allocation3 + $0x30] sm:$0xf]
    %v402 = vld [vmem:[#allocation3 + $0x34] sm:$0xf]
    %v403 = vld [vmem:[#allocation3 + $0x38] sm:$0xf]
    %v404 = vld [vmem:[#allocation3 + $0x3c] sm:$0xf]
    %v405 = vld [vmem:[#allocation3 + $0x40] sm:$0xf]
    %v406 = vld [vmem:[#allocation3 + $0x44] sm:$0xf]
    %v407 = vld [vmem:[#allocation3 + $0x48] sm:$0xf]
    %v408 = vld [vmem:[#allocation3 + $0x4c] sm:$0xf]
    %v409 = vld [vmem:[#allocation3 + $0x50] sm:$0xf]
    %v410 = vld [vmem:[#allocation3 + $0x54] sm:$0xf]
    %v411 = vld [vmem:[#allocation3 + $0x58] sm:$0xf]
    %v412 = vld [vmem:[#allocation3 + $0x5c] sm:$0xf]
    %v413 = vld [vmem:[#allocation3 + $0x60] sm:$0xf]
    %v414 = vld [vmem:[#allocation3 + $0x64] sm:$0xf]
    %v415 = vld [vmem:[#allocation3 + $0x68] sm:$0xf]
    %v416 = vld [vmem:[#allocation3 + $0x6c] sm:$0xf]
    %v417 = vld [vmem:[#allocation3 + $0x70] sm:$0xf]
    %v418 = vld [vmem:[#allocation3 + $0x74] sm:$0xf]
    %v419 = vld [vmem:[#allocation3 + $0x78] sm:$0xf]
    %v420 = vld [vmem:[#allocation3 + $0x7c] sm:$0xf]
    %v421 = vld [vmem:[#allocation3 + $0x80] sm:$0xf]
    %v422 = vld [vmem:[#allocation3 + $0x84] sm:$0xf]
    %v423 = vld [vmem:[#allocation3 + $0x88] sm:$0xf]
    %v424 = vld [vmem:[#allocation3 + $0x8c] sm:$0xf]
    %v425 = vld [vmem:[#allocation3 + $0x90] sm:$0xf]
    %v426 = vld [vmem:[#allocation3 + $0x94] sm:$0xf]
    %v427 = vld [vmem:[#allocation3 + $0x98] sm:$0xf]
    %v428 = vld [vmem:[#allocation3 + $0x9c] sm:$0xf]
    %v429 = vld [vmem:[#allocation3 + $0xa0] sm:$0xf]
    %v430 = vld [vmem:[#allocation3 + $0xa4] sm:$0xf]
    %v431 = vld [vmem:[#allocation3 + $0xa8] sm:$0xf]
    %v432 = vld [vmem:[#allocation3 + $0xac] sm:$0xf]
    %v433 = vld [vmem:[#allocation3 + $0xb0] sm:$0xf]
    %v434 = vld [vmem:[#allocation3 + $0xb4] sm:$0xf]
    %v435 = vld [vmem:[#allocation3 + $0xb8] sm:$0xf]
    %v436 = vld [vmem:[#allocation3 + $0xbc] sm:$0xf]
    %v437 = vld [vmem:[#allocation3 + $0xc0] sm:$0xf]
    %v438 = vld [vmem:[#allocation3 + $0xc4] sm:$0xf]
    %v439 = vld [vmem:[#allocation3 + $0xc8] sm:$0xf]
    %v440 = vld [vmem:[#allocation3 + $0xcc] sm:$0xf]
    %v441 = vld [vmem:[#allocation3 + $0xd0] sm:$0xf]
    %v442 = vld [vmem:[#allocation3 + $0xd4] sm:$0xf]
    %v443 = vld [vmem:[#allocation3 + $0xd8] sm:$0xf]
    %v444 = vld [vmem:[#allocation3 + $0xdc] sm:$0xf]
    %v445 = vld [vmem:[#allocation3 + $0xe0] sm:$0xf]
    %v446 = vld [vmem:[#allocation3 + $0xe4] sm:$0xf]
    %v447 = vld [vmem:[#allocation3 + $0xe8] sm:$0xf]
    %v448 = vld [vmem:[#allocation3 + $0xec] sm:$0xf]
    %v449 = vld [vmem:[#allocation3 + $0xf0] sm:$0xf]
    %v450 = vld [vmem:[#allocation3 + $0xf4] sm:$0xf]
    %v451 = vld [vmem:[#allocation3 + $0xf8] sm:$0xf]
    %v452 = vld [vmem:[#allocation3 + $0xfc] sm:$0xf]
    %v453 = vld [vmem:[#allocation3 + $0x100] sm:$0xf]
    %v454 = vld [vmem:[#allocation3 + $0x104] sm:$0xf]
    %v455 = vld [vmem:[#allocation3 + $0x108] sm:$0xf]
    %v456 = vld [vmem:[#allocation3 + $0x10c] sm:$0xf]
    %v457 = vld [vmem:[#allocation3 + $0x110] sm:$0xf]
    %v458 = vld [vmem:[#allocation3 + $0x114] sm:$0xf]
    %v459 = vld [vmem:[#allocation3 + $0x118] sm:$0xf]
    %v460 = vld [vmem:[#allocation3 + $0x11c] sm:$0xf]
    %v461 = vld [vmem:[#allocation3 + $0x120] sm:$0xf]
    %v462 = vld [vmem:[#allocation3 + $0x124] sm:$0xf]
    %v463 = vld [vmem:[#allocation3 + $0x128] sm:$0xf]
    %v464 = vld [vmem:[#allocation3 + $0x12c] sm:$0xf]
    %v465 = vld [vmem:[#allocation3 + $0x130] sm:$0xf]
    %v466 = vld [vmem:[#allocation3 + $0x134] sm:$0xf]
    %v467 = vld [vmem:[#allocation3 + $0x138] sm:$0xf]
    %v468 = vld [vmem:[#allocation3 + $0x13c] sm:$0xf]
    %v469 = vld [vmem:[#allocation3 + $0x140] sm:$0xf]
    %v470 = vld [vmem:[#allocation3 + $0x144] sm:$0xf]
    %v471 = vld [vmem:[#allocation3 + $0x148] sm:$0xf]
    %v472 = vld [vmem:[#allocation3 + $0x14c] sm:$0xf]
    %v473 = vld [vmem:[#allocation3 + $0x150] sm:$0xf]
    %v474 = vld [vmem:[#allocation3 + $0x154] sm:$0xf]
    %v475 = vld [vmem:[#allocation3 + $0x158] sm:$0xf]
    %v476 = vld [vmem:[#allocation3 + $0x15c] sm:$0xf]
    %v477 = vld [vmem:[#allocation3 + $0x160] sm:$0xf]
    %v478 = vld [vmem:[#allocation3 + $0x164] sm:$0xf]
    %v479 = vld [vmem:[#allocation3 + $0x168] sm:$0xf]
    %v480 = vld [vmem:[#allocation3 + $0x16c] sm:$0xf]
    %v481 = vld [vmem:[#allocation3 + $0x170] sm:$0xf]
    %v482 = vld [vmem:[#allocation3 + $0x174] sm:$0xf]
    %v483 = vld [vmem:[#allocation3 + $0x178] sm:$0xf]
    %v484 = vld [vmem:[#allocation3 + $0x17c] sm:$0xf]
    %v485 = vld [vmem:[#allocation3 + $0x180] sm:$0xf]
    %v486 = vld [vmem:[#allocation3 + $0x184] sm:$0xf]
    %v487 = vld [vmem:[#allocation3 + $0x188] sm:$0xf]
    %v488 = vld [vmem:[#allocation3 + $0x18c] sm:$0xf]
    %v489 = vld [vmem:[#allocation3 + $0x190] sm:$0xf]
    %v490 = vld [vmem:[#allocation3 + $0x194] sm:$0xf]
    %v491 = vld [vmem:[#allocation3 + $0x198] sm:$0xf]
    %v492 = vld [vmem:[#allocation3 + $0x19c] sm:$0xf]
    %v493 = vld [vmem:[#allocation3 + $0x1a0] sm:$0xf]
    %v494 = vld [vmem:[#allocation3 + $0x1a4] sm:$0xf]
    %v495 = vld [vmem:[#allocation3 + $0x1a8] sm:$0xf]
    %v496 = vld [vmem:[#allocation3 + $0x1ac] sm:$0xf]
    %v497 = vld [vmem:[#allocation3 + $0x1b0] sm:$0xf]
    %v498 = vld [vmem:[#allocation3 + $0x1b4] sm:$0xf]
    %v499 = vld [vmem:[#allocation3 + $0x1b8] sm:$0xf]
    %v500 = vld [vmem:[#allocation3 + $0x1bc] sm:$0xf]
    %v501 = vld [vmem:[#allocation3 + $0x1c0] sm:$0xf]
    %v502 = vld [vmem:[#allocation3 + $0x1c4] sm:$0xf]
    %v503 = vld [vmem:[#allocation3 + $0x1c8] sm:$0xf]
    %v504 = vld [vmem:[#allocation3 + $0x1cc] sm:$0xf]
    %v505 = vld [vmem:[#allocation3 + $0x1d0] sm:$0xf]
    %v506 = vld [vmem:[#allocation3 + $0x1d4] sm:$0xf]
    %v507 = vld [vmem:[#allocation3 + $0x1d8] sm:$0xf]
    %v508 = vld [vmem:[#allocation3 + $0x1dc] sm:$0xf]
    %v509 = vld [vmem:[#allocation3 + $0x1e0] sm:$0xf]
    %v510 = vld [vmem:[#allocation3 + $0x1e4] sm:$0xf]
    %v511 = vld [vmem:[#allocation3 + $0x1e8] sm:$0xf]
    %v512 = vld [vmem:[#allocation3 + $0x1ec] sm:$0xf]
    %v513 = vld [vmem:[#allocation3 + $0x1f0] sm:$0xf]
    %v514 = vld [vmem:[#allocation3 + $0x1f4] sm:$0xf]
    %v515 = vld [vmem:[#allocation3 + $0x1f8] sm:$0xf]
    %v516 = vld [vmem:[#allocation3 + $0x1fc] sm:$0xf]
    %v645 = vunpack.c.l.b16 %v389
    %v646 = vunpack.c.l.b16 %v390
    %v647 = vunpack.c.l.b16 %v391
    %v648 = vunpack.c.l.b16 %v392
    %v649 = vunpack.c.l.b16 %v393
    %v650 = vunpack.c.l.b16 %v394
    %v651 = vunpack.c.l.b16 %v395
    %v652 = vunpack.c.l.b16 %v396
    %v653 = vunpack.c.l.b16 %v397
    %v654 = vunpack.c.l.b16 %v398
    %v655 = vunpack.c.l.b16 %v399
    %v656 = vunpack.c.l.b16 %v400
    %v657 = vunpack.c.l.b16 %v401
    %v658 = vunpack.c.l.b16 %v402
    %v659 = vunpack.c.l.b16 %v403
    %v660 = vunpack.c.l.b16 %v404
    %v661 = vunpack.c.l.b16 %v405
    %v662 = vunpack.c.l.b16 %v406
    %v663 = vunpack.c.l.b16 %v407
    %v664 = vunpack.c.l.b16 %v408
    %v665 = vunpack.c.l.b16 %v409
    %v666 = vunpack.c.l.b16 %v410
    %v667 = vunpack.c.l.b16 %v411
    %v668 = vunpack.c.l.b16 %v412
    %v669 = vunpack.c.l.b16 %v413
    %v670 = vunpack.c.l.b16 %v414
    %v671 = vunpack.c.l.b16 %v415
    %v672 = vunpack.c.l.b16 %v416
    %v673 = vunpack.c.l.b16 %v417
    %v674 = vunpack.c.l.b16 %v418
    %v675 = vunpack.c.l.b16 %v419
    %v676 = vunpack.c.l.b16 %v420
    %v677 = vunpack.c.l.b16 %v421
    %v678 = vunpack.c.l.b16 %v422
    %v679 = vunpack.c.l.b16 %v423
    %v680 = vunpack.c.l.b16 %v424
    %v681 = vunpack.c.l.b16 %v425
    %v682 = vunpack.c.l.b16 %v426
    %v683 = vunpack.c.l.b16 %v427
    %v684 = vunpack.c.l.b16 %v428
    %v685 = vunpack.c.l.b16 %v429
    %v686 = vunpack.c.l.b16 %v430
    %v687 = vunpack.c.l.b16 %v431
    %v688 = vunpack.c.l.b16 %v432
    %v689 = vunpack.c.l.b16 %v433
    %v690 = vunpack.c.l.b16 %v434
    %v691 = vunpack.c.l.b16 %v435
    %v692 = vunpack.c.l.b16 %v436
    %v693 = vunpack.c.l.b16 %v437
    %v694 = vunpack.c.l.b16 %v438
    %v695 = vunpack.c.l.b16 %v439
    %v696 = vunpack.c.l.b16 %v440
    %v697 = vunpack.c.l.b16 %v441
    %v698 = vunpack.c.l.b16 %v442
    %v699 = vunpack.c.l.b16 %v443
    %v700 = vunpack.c.l.b16 %v444
    %v701 = vunpack.c.l.b16 %v445
    %v702 = vunpack.c.l.b16 %v446
    %v703 = vunpack.c.l.b16 %v447
    %v704 = vunpack.c.l.b16 %v448
    %v705 = vunpack.c.l.b16 %v449
    %v706 = vunpack.c.l.b16 %v450
    %v707 = vunpack.c.l.b16 %v451
    %v708 = vunpack.c.l.b16 %v452
    %v709 = vunpack.c.l.b16 %v453
    %v710 = vunpack.c.l.b16 %v454
    %v711 = vunpack.c.l.b16 %v455
    %v712 = vunpack.c.l.b16 %v456
    %v713 = vunpack.c.l.b16 %v457
    %v714 = vunpack.c.l.b16 %v458
    %v715 = vunpack.c.l.b16 %v459
    %v716 = vunpack.c.l.b16 %v460
    %v717 = vunpack.c.l.b16 %v461
    %v718 = vunpack.c.l.b16 %v462
    %v719 = vunpack.c.l.b16 %v463
    %v720 = vunpack.c.l.b16 %v464
    %v721 = vunpack.c.l.b16 %v465
    %v722 = vunpack.c.l.b16 %v466
    %v723 = vunpack.c.l.b16 %v467
    %v724 = vunpack.c.l.b16 %v468
    %v725 = vunpack.c.l.b16 %v469
    %v726 = vunpack.c.l.b16 %v470
    %v727 = vunpack.c.l.b16 %v471
    %v728 = vunpack.c.l.b16 %v472
    %v729 = vunpack.c.l.b16 %v473
    %v730 = vunpack.c.l.b16 %v474
    %v731 = vunpack.c.l.b16 %v475
    %v732 = vunpack.c.l.b16 %v476
    %v733 = vunpack.c.l.b16 %v477
    %v734 = vunpack.c.l.b16 %v478
    %v735 = vunpack.c.l.b16 %v479
    %v736 = vunpack.c.l.b16 %v480
    %v737 = vunpack.c.l.b16 %v481
    %v738 = vunpack.c.l.b16 %v482
    %v739 = vunpack.c.l.b16 %v483
    %v740 = vunpack.c.l.b16 %v484
    %v741 = vunpack.c.l.b16 %v485
    %v742 = vunpack.c.l.b16 %v486
    %v743 = vunpack.c.l.b16 %v487
    %v744 = vunpack.c.l.b16 %v488
    %v745 = vunpack.c.l.b16 %v489
    %v746 = vunpack.c.l.b16 %v490
    %v747 = vunpack.c.l.b16 %v491
    %v748 = vunpack.c.l.b16 %v492
    %v749 = vunpack.c.l.b16 %v493
    %v750 = vunpack.c.l.b16 %v494
    %v751 = vunpack.c.l.b16 %v495
    %v752 = vunpack.c.l.b16 %v496
    %v753 = vunpack.c.l.b16 %v497
    %v754 = vunpack.c.l.b16 %v498
    %v755 = vunpack.c.l.b16 %v499
    %v756 = vunpack.c.l.b16 %v500
    %v757 = vunpack.c.l.b16 %v501
    %v758 = vunpack.c.l.b16 %v502
    %v759 = vunpack.c.l.b16 %v503
    %v760 = vunpack.c.l.b16 %v504
    %v761 = vunpack.c.l.b16 %v505
    %v762 = vunpack.c.l.b16 %v506
    %v763 = vunpack.c.l.b16 %v507
    %v764 = vunpack.c.l.b16 %v508
    %v765 = vunpack.c.l.b16 %v509
    %v766 = vunpack.c.l.b16 %v510
    %v767 = vunpack.c.l.b16 %v511
    %v768 = vunpack.c.l.b16 %v512
    %v769 = vunpack.c.l.b16 %v513
    %v770 = vunpack.c.l.b16 %v514
    %v771 = vunpack.c.l.b16 %v515
    %v772 = vunpack.c.l.b16 %v516
    %v773 = vpack.c.b16 %v646, %v645
    %v774 = vpack.c.b16 %v648, %v647
    %v775 = vpack.c.b16 %v650, %v649
    %v776 = vpack.c.b16 %v652, %v651
    %v777 = vpack.c.b16 %v654, %v653
    %v778 = vpack.c.b16 %v656, %v655
    %v779 = vpack.c.b16 %v658, %v657
    %v780 = vpack.c.b16 %v660, %v659
    %v781 = vpack.c.b16 %v662, %v661
    %v782 = vpack.c.b16 %v664, %v663
    %v783 = vpack.c.b16 %v666, %v665
    %v784 = vpack.c.b16 %v668, %v667
    %v785 = vpack.c.b16 %v670, %v669
    %v786 = vpack.c.b16 %v672, %v671
    %v787 = vpack.c.b16 %v674, %v673
    %v788 = vpack.c.b16 %v676, %v675
    %v789 = vpack.c.b16 %v678, %v677
    %v790 = vpack.c.b16 %v680, %v679
    %v791 = vpack.c.b16 %v682, %v681
    %v792 = vpack.c.b16 %v684, %v683
    %v793 = vpack.c.b16 %v686, %v685
    %v794 = vpack.c.b16 %v688, %v687
    %v795 = vpack.c.b16 %v690, %v689
    %v796 = vpack.c.b16 %v692, %v691
    %v797 = vpack.c.b16 %v694, %v693
    %v798 = vpack.c.b16 %v696, %v695
    %v799 = vpack.c.b16 %v698, %v697
    %v800 = vpack.c.b16 %v700, %v699
    %v801 = vpack.c.b16 %v702, %v701
    %v802 = vpack.c.b16 %v704, %v703
    %v803 = vpack.c.b16 %v706, %v705
    %v804 = vpack.c.b16 %v708, %v707
    %v805 = vpack.c.b16 %v710, %v709
    %v806 = vpack.c.b16 %v712, %v711
    %v807 = vpack.c.b16 %v714, %v713
    %v808 = vpack.c.b16 %v716, %v715
    %v809 = vpack.c.b16 %v718, %v717
    %v810 = vpack.c.b16 %v720, %v719
    %v811 = vpack.c.b16 %v722, %v721
    %v812 = vpack.c.b16 %v724, %v723
    %v813 = vpack.c.b16 %v726, %v725
    %v814 = vpack.c.b16 %v728, %v727
    %v815 = vpack.c.b16 %v730, %v729
    %v816 = vpack.c.b16 %v732, %v731
    %v817 = vpack.c.b16 %v734, %v733
    %v818 = vpack.c.b16 %v736, %v735
    %v819 = vpack.c.b16 %v738, %v737
    %v820 = vpack.c.b16 %v740, %v739
    %v821 = vpack.c.b16 %v742, %v741
    %v822 = vpack.c.b16 %v744, %v743
    %v823 = vpack.c.b16 %v746, %v745
    %v824 = vpack.c.b16 %v748, %v747
    %v825 = vpack.c.b16 %v750, %v749
    %v826 = vpack.c.b16 %v752, %v751
    %v827 = vpack.c.b16 %v754, %v753
    %v828 = vpack.c.b16 %v756, %v755
    %v829 = vpack.c.b16 %v758, %v757
    %v830 = vpack.c.b16 %v760, %v759
    %v831 = vpack.c.b16 %v762, %v761
    %v832 = vpack.c.b16 %v764, %v763
    %v833 = vpack.c.b16 %v766, %v765
    %v834 = vpack.c.b16 %v768, %v767
    %v835 = vpack.c.b16 %v770, %v769
    %v836 = vpack.c.b16 %v772, %v771
    %901 = vmatprep.subr.bf16.mxu0 0
    %902 = vmatpush1.bf16.msra.mxu0 %v780
    %903 = vmatprep.subr.bf16.mxu0 0
    %904 = vmatpush1.bf16.msra.mxu0 %v779
    %905 = vmatprep.subr.bf16.mxu0 0
    %906 = vmatpush1.bf16.msra.mxu0 %v778
    %907 = vmatprep.subr.bf16.mxu0 0
    %908 = vmatpush1.bf16.msra.mxu0 %v777
    %909 = vmatprep.subr.bf16.mxu0 0
    %910 = vmatpush1.bf16.msra.mxu0 %v776
    %911 = vmatprep.subr.bf16.mxu0 0
    %912 = vmatpush1.bf16.msra.mxu0 %v775
    %913 = vmatprep.subr.bf16.mxu0 0
    %914 = vmatpush1.bf16.msra.mxu0 %v774
    %915 = vmatprep.subr.bf16.mxu0 0
    %916 = vmatpush1.bf16.msra.mxu0 %v773
    %917 = vmatprep.subr.bf16.mxu0 0
    %918 = vmatpush2.bf16.msra.mxu0 %v788
    %919 = vmatprep.subr.bf16.mxu0 0
    %920 = vmatpush2.bf16.msra.mxu0 %v787
    %921 = vmatprep.subr.bf16.mxu0 0
    %922 = vmatpush2.bf16.msra.mxu0 %v786
    %923 = vmatprep.subr.bf16.mxu0 0
    %924 = vmatpush2.bf16.msra.mxu0 %v785
    %925 = vmatprep.subr.bf16.mxu0 0
    %926 = vmatpush2.bf16.msra.mxu0 %v784
    %927 = vmatprep.subr.bf16.mxu0 0
    %928 = vmatpush2.bf16.msra.mxu0 %v783
    %929 = vmatprep.subr.bf16.mxu0 0
    %930 = vmatpush2.bf16.msra.mxu0 %v782
    %931 = vmatprep.subr.bf16.mxu0 0
    %932 = vmatpush2.bf16.msra.mxu0 %v781
    %933 = vmatprep.mubr.bf16.mxu0 %v358
    %934 = vmatmul.mubr.bf16.gmra.mxu0 %v357
    %v935 = vpop.f32.mrf.mxu0
    %v936 = vadd.f32 0.0, %v935
    %v937 = vpop.f32.mrf.mxu0
    %v938 = vpop.f32.mrf.mxu0
    %v939 = vadd.f32 0.0, %v938
    %v940 = vpop.f32.mrf.mxu0
    %941 = vmatprep.mubr.bf16.mxu0 %v366
    %942 = vmatmul.mubr.bf16.gmra.mxu0 %v365
    %v943 = vpop.f32.mrf.mxu0
    %v944 = vadd.f32 0.0, %v943
    %v945 = vpop.f32.mrf.mxu0
    %v946 = vpop.f32.mrf.mxu0
    %v947 = vadd.f32 0.0, %v946
    %v948 = vpop.f32.mrf.mxu0
    %949 = vmatprep.mubr.bf16.mxu0 %v374
    %950 = vmatmul.mubr.bf16.gmra.mxu0 %v373
    %v951 = vpop.f32.mrf.mxu0
    %v952 = vadd.f32 0.0, %v951
    %v953 = vpop.f32.mrf.mxu0
    %v954 = vpop.f32.mrf.mxu0
    %v955 = vadd.f32 0.0, %v954
    %v956 = vpop.f32.mrf.mxu0
    %957 = vmatprep.mubr.bf16.mxu0 %v382
    %958 = vmatmul.mubr.bf16.gmra.mxu0 %v381
    %v959 = vpop.f32.mrf.mxu0
    %v960 = vadd.f32 0.0, %v959
    %v961 = vpop.f32.mrf.mxu0
    %v962 = vpop.f32.mrf.mxu0
    %v963 = vadd.f32 0.0, %v962
    %v964 = vpop.f32.mrf.mxu0
    %965 = vdwg.mxu0
    %966 = vmatprep.subr.bf16.mxu0 0
    %967 = vmatpush1.bf16.msra.mxu0 %v796
    %968 = vmatprep.subr.bf16.mxu0 0
    %969 = vmatpush1.bf16.msra.mxu0 %v795
    %970 = vmatprep.subr.bf16.mxu0 0
    %971 = vmatpush1.bf16.msra.mxu0 %v794
    %972 = vmatprep.subr.bf16.mxu0 0
    %973 = vmatpush1.bf16.msra.mxu0 %v793
    %974 = vmatprep.subr.bf16.mxu0 0
    %975 = vmatpush1.bf16.msra.mxu0 %v792
    %976 = vmatprep.subr.bf16.mxu0 0
    %977 = vmatpush1.bf16.msra.mxu0 %v791
    %978 = vmatprep.subr.bf16.mxu0 0
    %979 = vmatpush1.bf16.msra.mxu0 %v790
    %980 = vmatprep.subr.bf16.mxu0 0
    %981 = vmatpush1.bf16.msra.mxu0 %v789
    %982 = vmatprep.subr.bf16.mxu0 0
    %983 = vmatpush2.bf16.msra.mxu0 %v804
    %984 = vmatprep.subr.bf16.mxu0 0
    %985 = vmatpush2.bf16.msra.mxu0 %v803
    %986 = vmatprep.subr.bf16.mxu0 0
    %987 = vmatpush2.bf16.msra.mxu0 %v802
    %988 = vmatprep.subr.bf16.mxu0 0
    %989 = vmatpush2.bf16.msra.mxu0 %v801
    %990 = vmatprep.subr.bf16.mxu0 0
    %991 = vmatpush2.bf16.msra.mxu0 %v800
    %992 = vmatprep.subr.bf16.mxu0 0
    %993 = vmatpush2.bf16.msra.mxu0 %v799
    %994 = vmatprep.subr.bf16.mxu0 0
    %995 = vmatpush2.bf16.msra.mxu0 %v798
    %996 = vmatprep.subr.bf16.mxu0 0
    %997 = vmatpush2.bf16.msra.mxu0 %v797
    %998 = vmatprep.mubr.bf16.mxu0 %v360
    %999 = vmatmul.mubr.bf16.gmra.mxu0 %v359
    %v1000 = vpop.f32.mrf.mxu0
    %v1001 = vadd.f32 %v936, %v1000
    %v1002 = vpop.f32.mrf.mxu0
    %v1003 = vpop.f32.mrf.mxu0
    %v1004 = vadd.f32 %v939, %v1003
    %v1005 = vpop.f32.mrf.mxu0
    %1006 = vmatprep.mubr.bf16.mxu0 %v368
    %1007 = vmatmul.mubr.bf16.gmra.mxu0 %v367
    %v1008 = vpop.f32.mrf.mxu0
    %v1009 = vadd.f32 %v944, %v1008
    %v1010 = vpop.f32.mrf.mxu0
    %v1011 = vpop.f32.mrf.mxu0
    %v1012 = vadd.f32 %v947, %v1011
    %v1013 = vpop.f32.mrf.mxu0
    %1014 = vmatprep.mubr.bf16.mxu0 %v376
    %1015 = vmatmul.mubr.bf16.gmra.mxu0 %v375
    %v1016 = vpop.f32.mrf.mxu0
    %v1017 = vadd.f32 %v952, %v1016
    %v1018 = vpop.f32.mrf.mxu0
    %v1019 = vpop.f32.mrf.mxu0
    %v1020 = vadd.f32 %v955, %v1019
    %v1021 = vpop.f32.mrf.mxu0
    %1022 = vmatprep.mubr.bf16.mxu0 %v384
    %1023 = vmatmul.mubr.bf16.gmra.mxu0 %v383
    %v1024 = vpop.f32.mrf.mxu0
    %v1025 = vadd.f32 %v960, %v1024
    %v1026 = vpop.f32.mrf.mxu0
    %v1027 = vpop.f32.mrf.mxu0
    %v1028 = vadd.f32 %v963, %v1027
    %v1029 = vpop.f32.mrf.mxu0
    %1030 = vdwg.mxu0
    %1031 = vmatprep.subr.bf16.mxu0 0
    %1032 = vmatpush1.bf16.msra.mxu0 %v812
    %1033 = vmatprep.subr.bf16.mxu0 0
    %1034 = vmatpush1.bf16.msra.mxu0 %v811
    %1035 = vmatprep.subr.bf16.mxu0 0
    %1036 = vmatpush1.bf16.msra.mxu0 %v810
    %1037 = vmatprep.subr.bf16.mxu0 0
    %1038 = vmatpush1.bf16.msra.mxu0 %v809
    %1039 = vmatprep.subr.bf16.mxu0 0
    %1040 = vmatpush1.bf16.msra.mxu0 %v808
    %1041 = vmatprep.subr.bf16.mxu0 0
    %1042 = vmatpush1.bf16.msra.mxu0 %v807
    %1043 = vmatprep.subr.bf16.mxu0 0
    %1044 = vmatpush1.bf16.msra.mxu0 %v806
    %1045 = vmatprep.subr.bf16.mxu0 0
    %1046 = vmatpush1.bf16.msra.mxu0 %v805
    %1047 = vmatprep.subr.bf16.mxu0 0
    %1048 = vmatpush2.bf16.msra.mxu0 %v820
    %1049 = vmatprep.subr.bf16.mxu0 0
    %1050 = vmatpush2.bf16.msra.mxu0 %v819
    %1051 = vmatprep.subr.bf16.mxu0 0
    %1052 = vmatpush2.bf16.msra.mxu0 %v818
    %1053 = vmatprep.subr.bf16.mxu0 0
    %1054 = vmatpush2.bf16.msra.mxu0 %v817
    %1055 = vmatprep.subr.bf16.mxu0 0
    %1056 = vmatpush2.bf16.msra.mxu0 %v816
    %1057 = vmatprep.subr.bf16.mxu0 0
    %1058 = vmatpush2.bf16.msra.mxu0 %v815
    %1059 = vmatprep.subr.bf16.mxu0 0
    %1060 = vmatpush2.bf16.msra.mxu0 %v814
    %1061 = vmatprep.subr.bf16.mxu0 0
    %1062 = vmatpush2.bf16.msra.mxu0 %v813
    %1063 = vmatprep.mubr.bf16.mxu0 %v362
    %1064 = vmatmul.mubr.bf16.gmra.mxu0 %v361
    %v1065 = vpop.f32.mrf.mxu0
    %v1066 = vadd.f32 %v1001, %v1065
    %v1067 = vpop.f32.mrf.mxu0
    %v1068 = vpop.f32.mrf.mxu0
    %v1069 = vadd.f32 %v1004, %v1068
    %v1070 = vpop.f32.mrf.mxu0
    %1071 = vmatprep.mubr.bf16.mxu0 %v370
    %1072 = vmatmul.mubr.bf16.gmra.mxu0 %v369
    %v1073 = vpop.f32.mrf.mxu0
    %v1074 = vadd.f32 %v1009, %v1073
    %v1075 = vpop.f32.mrf.mxu0
    %v1076 = vpop.f32.mrf.mxu0
    %v1077 = vadd.f32 %v1012, %v1076
    %v1078 = vpop.f32.mrf.mxu0
    %1079 = vmatprep.mubr.bf16.mxu0 %v378
    %1080 = vmatmul.mubr.bf16.gmra.mxu0 %v377
    %v1081 = vpop.f32.mrf.mxu0
    %v1082 = vadd.f32 %v1017, %v1081
    %v1083 = vpop.f32.mrf.mxu0
    %v1084 = vpop.f32.mrf.mxu0
    %v1085 = vadd.f32 %v1020, %v1084
    %v1086 = vpop.f32.mrf.mxu0
    %1087 = vmatprep.mubr.bf16.mxu0 %v386
    %1088 = vmatmul.mubr.bf16.gmra.mxu0 %v385
    %v1089 = vpop.f32.mrf.mxu0
    %v1090 = vadd.f32 %v1025, %v1089
    %v1091 = vpop.f32.mrf.mxu0
    %v1092 = vpop.f32.mrf.mxu0
    %v1093 = vadd.f32 %v1028, %v1092
    %v1094 = vpop.f32.mrf.mxu0
    %1095 = vdwg.mxu0
    %1096 = vmatprep.subr.bf16.mxu0 0
    %1097 = vmatpush1.bf16.msra.mxu0 %v828
    %1098 = vmatprep.subr.bf16.mxu0 0
    %1099 = vmatpush1.bf16.msra.mxu0 %v827
    %1100 = vmatprep.subr.bf16.mxu0 0
    %1101 = vmatpush1.bf16.msra.mxu0 %v826
    %1102 = vmatprep.subr.bf16.mxu0 0
    %1103 = vmatpush1.bf16.msra.mxu0 %v825
    %1104 = vmatprep.subr.bf16.mxu0 0
    %1105 = vmatpush1.bf16.msra.mxu0 %v824
    %1106 = vmatprep.subr.bf16.mxu0 0
    %1107 = vmatpush1.bf16.msra.mxu0 %v823
    %1108 = vmatprep.subr.bf16.mxu0 0
    %1109 = vmatpush1.bf16.msra.mxu0 %v822
    %1110 = vmatprep.subr.bf16.mxu0 0
    %1111 = vmatpush1.bf16.msra.mxu0 %v821
    %1112 = vmatprep.subr.bf16.mxu0 0
    %1113 = vmatpush2.bf16.msra.mxu0 %v836
    %1114 = vmatprep.subr.bf16.mxu0 0
    %1115 = vmatpush2.bf16.msra.mxu0 %v835
    %1116 = vmatprep.subr.bf16.mxu0 0
    %1117 = vmatpush2.bf16.msra.mxu0 %v834
    %1118 = vmatprep.subr.bf16.mxu0 0
    %1119 = vmatpush2.bf16.msra.mxu0 %v833
    %1120 = vmatprep.subr.bf16.mxu0 0
    %1121 = vmatpush2.bf16.msra.mxu0 %v832
    %1122 = vmatprep.subr.bf16.mxu0 0
    %1123 = vmatpush2.bf16.msra.mxu0 %v831
    %1124 = vmatprep.subr.bf16.mxu0 0
    %1125 = vmatpush2.bf16.msra.mxu0 %v830
    %1126 = vmatprep.subr.bf16.mxu0 0
    %1127 = vmatpush2.bf16.msra.mxu0 %v829
    %1128 = vmatprep.mubr.bf16.mxu0 %v364
    %1129 = vmatmul.mubr.bf16.gmra.mxu0 %v363
    %v1130 = vpop.f32.mrf.mxu0
    %v1131 = vadd.f32 %v1066, %v1130
    %v1132 = vpop.f32.mrf.mxu0
    %v1133 = vpop.f32.mrf.mxu0
    %v1134 = vadd.f32 %v1069, %v1133
    %v1135 = vpop.f32.mrf.mxu0
    %1136 = vmatprep.mubr.bf16.mxu0 %v372
    %1137 = vmatmul.mubr.bf16.gmra.mxu0 %v371
    %v1138 = vpop.f32.mrf.mxu0
    %v1139 = vadd.f32 %v1074, %v1138
    %v1140 = vpop.f32.mrf.mxu0
    %v1141 = vpop.f32.mrf.mxu0
    %v1142 = vadd.f32 %v1077, %v1141
    %v1143 = vpop.f32.mrf.mxu0
    %1144 = vmatprep.mubr.bf16.mxu0 %v380
    %1145 = vmatmul.mubr.bf16.gmra.mxu0 %v379
    %v1146 = vpop.f32.mrf.mxu0
    %v1147 = vadd.f32 %v1082, %v1146
    %v1148 = vpop.f32.mrf.mxu0
    %v1149 = vpop.f32.mrf.mxu0
    %v1150 = vadd.f32 %v1085, %v1149
    %v1151 = vpop.f32.mrf.mxu0
    %1152 = vmatprep.mubr.bf16.mxu0 %v388
    %1153 = vmatmul.mubr.bf16.gmra.mxu0 %v387
    %v1154 = vpop.f32.mrf.mxu0
    %v1155 = vadd.f32 %v1090, %v1154
    %v1156 = vpop.f32.mrf.mxu0
    %v1157 = vpop.f32.mrf.mxu0
    %v1158 = vadd.f32 %v1093, %v1157
    %v1159 = vpop.f32.mrf.mxu0
    %1160 = vdwg.mxu0
    %v1161 = vpack.c.bf16 %v1134, %v1131
    %v1162 = vpack.c.bf16 %v1142, %v1139
    %v1163 = vpack.c.bf16 %v1150, %v1147
    %v1164 = vpack.c.bf16 %v1158, %v1155
    %v1165 = vld [vmem:[#allocation6] sm:$0xff]
    %v1166 = vld [vmem:[#allocation6 + $0x8] sm:$0xff]
    %v1167 = vld [vmem:[#allocation6 + $0x10] sm:$0xff]
    %v1168 = vld [vmem:[#allocation6 + $0x18] sm:$0xff]
    %v1169 = vld [vmem:[#allocation6 + $0x20] sm:$0xff]
    %v1170 = vld [vmem:[#allocation6 + $0x28] sm:$0xff]
    %v1171 = vld [vmem:[#allocation6 + $0x30] sm:$0xff]
    %v1172 = vld [vmem:[#allocation6 + $0x38] sm:$0xff]
    %v1173 = vld [vmem:[#allocation6 + $0x40] sm:$0xff]
    %v1174 = vld [vmem:[#allocation6 + $0x48] sm:$0xff]
    %v1175 = vld [vmem:[#allocation6 + $0x50] sm:$0xff]
    %v1176 = vld [vmem:[#allocation6 + $0x58] sm:$0xff]
    %v1177 = vld [vmem:[#allocation6 + $0x60] sm:$0xff]
    %v1178 = vld [vmem:[#allocation6 + $0x68] sm:$0xff]
    %v1179 = vld [vmem:[#allocation6 + $0x70] sm:$0xff]
    %v1180 = vld [vmem:[#allocation6 + $0x78] sm:$0xff]
    %v1181 = vld [vmem:[#allocation6 + $0x80] sm:$0xff]
    %v1182 = vld [vmem:[#allocation6 + $0x88] sm:$0xff]
    %v1183 = vld [vmem:[#allocation6 + $0x90] sm:$0xff]
    %v1184 = vld [vmem:[#allocation6 + $0x98] sm:$0xff]
    %v1185 = vld [vmem:[#allocation6 + $0xa0] sm:$0xff]
    %v1186 = vld [vmem:[#allocation6 + $0xa8] sm:$0xff]
    %v1187 = vld [vmem:[#allocation6 + $0xb0] sm:$0xff]
    %v1188 = vld [vmem:[#allocation6 + $0xb8] sm:$0xff]
    %v1189 = vld [vmem:[#allocation6 + $0xc0] sm:$0xff]
    %v1190 = vld [vmem:[#allocation6 + $0xc8] sm:$0xff]
    %v1191 = vld [vmem:[#allocation6 + $0xd0] sm:$0xff]
    %v1192 = vld [vmem:[#allocation6 + $0xd8] sm:$0xff]
    %v1193 = vld [vmem:[#allocation6 + $0xe0] sm:$0xff]
    %v1194 = vld [vmem:[#allocation6 + $0xe8] sm:$0xff]
    %v1195 = vld [vmem:[#allocation6 + $0xf0] sm:$0xff]
    %v1196 = vld [vmem:[#allocation6 + $0xf8] sm:$0xff]
    %v1197 = vld [vmem:[#allocation6 + $0x100] sm:$0xff]
    %v1198 = vld [vmem:[#allocation6 + $0x108] sm:$0xff]
    %v1199 = vld [vmem:[#allocation6 + $0x110] sm:$0xff]
    %v1200 = vld [vmem:[#allocation6 + $0x118] sm:$0xff]
    %v1201 = vld [vmem:[#allocation6 + $0x120] sm:$0xff]
    %v1202 = vld [vmem:[#allocation6 + $0x128] sm:$0xff]
    %v1203 = vld [vmem:[#allocation6 + $0x130] sm:$0xff]
    %v1204 = vld [vmem:[#allocation6 + $0x138] sm:$0xff]
    %v1205 = vld [vmem:[#allocation6 + $0x140] sm:$0xff]
    %v1206 = vld [vmem:[#allocation6 + $0x148] sm:$0xff]
    %v1207 = vld [vmem:[#allocation6 + $0x150] sm:$0xff]
    %v1208 = vld [vmem:[#allocation6 + $0x158] sm:$0xff]
    %v1209 = vld [vmem:[#allocation6 + $0x160] sm:$0xff]
    %v1210 = vld [vmem:[#allocation6 + $0x168] sm:$0xff]
    %v1211 = vld [vmem:[#allocation6 + $0x170] sm:$0xff]
    %v1212 = vld [vmem:[#allocation6 + $0x178] sm:$0xff]
    %v1213 = vld [vmem:[#allocation6 + $0x180] sm:$0xff]
    %v1214 = vld [vmem:[#allocation6 + $0x188] sm:$0xff]
    %v1215 = vld [vmem:[#allocation6 + $0x190] sm:$0xff]
    %v1216 = vld [vmem:[#allocation6 + $0x198] sm:$0xff]
    %v1217 = vld [vmem:[#allocation6 + $0x1a0] sm:$0xff]
    %v1218 = vld [vmem:[#allocation6 + $0x1a8] sm:$0xff]
    %v1219 = vld [vmem:[#allocation6 + $0x1b0] sm:$0xff]
    %v1220 = vld [vmem:[#allocation6 + $0x1b8] sm:$0xff]
    %v1221 = vld [vmem:[#allocation6 + $0x1c0] sm:$0xff]
    %v1222 = vld [vmem:[#allocation6 + $0x1c8] sm:$0xff]
    %v1223 = vld [vmem:[#allocation6 + $0x1d0] sm:$0xff]
    %v1224 = vld [vmem:[#allocation6 + $0x1d8] sm:$0xff]
    %v1225 = vld [vmem:[#allocation6 + $0x1e0] sm:$0xff]
    %v1226 = vld [vmem:[#allocation6 + $0x1e8] sm:$0xff]
    %v1227 = vld [vmem:[#allocation6 + $0x1f0] sm:$0xff]
    %v1228 = vld [vmem:[#allocation6 + $0x1f8] sm:$0xff]
    %v1229 = vld [vmem:[#allocation9] sm:$0xff]
    %v1231 = vlaneseq
    %v1232 = vshrl.u32 %v1231, 7
    %v1233 = vsub.s32 0, %v1232
    %v1234 = vrot.slane %v1229, %v1233
    %v1235 = vlaneseq
    %v1236 = vshrl.u32 %v1235, 7
    %v1237 = vsub.s32 1, %v1236
    %v1238 = vrot.slane %v1229, %v1237
    %v1239 = vlaneseq
    %v1240 = vshrl.u32 %v1239, 7
    %v1241 = vsub.s32 2, %v1240
    %v1242 = vrot.slane %v1229, %v1241
    %v1243 = vlaneseq
    %v1244 = vshrl.u32 %v1243, 7
    %v1245 = vsub.s32 3, %v1244
    %v1246 = vrot.slane %v1229, %v1245
    %v1247 = vlaneseq
    %v1248 = vshrl.u32 %v1247, 7
    %v1249 = vsub.s32 4, %v1248
    %v1250 = vrot.slane %v1229, %v1249
    %v1251 = vlaneseq
    %v1252 = vshrl.u32 %v1251, 7
    %v1253 = vsub.s32 5, %v1252
    %v1254 = vrot.slane %v1229, %v1253
    %v1255 = vlaneseq
    %v1256 = vshrl.u32 %v1255, 7
    %v1257 = vsub.s32 6, %v1256
    %v1258 = vrot.slane %v1229, %v1257
    %v1259 = vlaneseq
    %v1260 = vshrl.u32 %v1259, 7
    %v1261 = vsub.s32 7, %v1260
    %v1262 = vrot.slane %v1229, %v1261
    %v1335 = vunpack.c.l.b16 %v1165
    %v1336 = vunpack.c.h.b16 %v1165
    %v1337 = vunpack.c.l.b16 %v1166
    %v1338 = vunpack.c.h.b16 %v1166
    %v1339 = vunpack.c.l.b16 %v1167
    %v1340 = vunpack.c.h.b16 %v1167
    %v1341 = vunpack.c.l.b16 %v1168
    %v1342 = vunpack.c.h.b16 %v1168
    %v1343 = vunpack.c.l.b16 %v1169
    %v1344 = vunpack.c.h.b16 %v1169
    %v1345 = vunpack.c.l.b16 %v1170
    %v1346 = vunpack.c.h.b16 %v1170
    %v1347 = vunpack.c.l.b16 %v1171
    %v1348 = vunpack.c.h.b16 %v1171
    %v1349 = vunpack.c.l.b16 %v1172
    %v1350 = vunpack.c.h.b16 %v1172
    %v1351 = vunpack.c.l.b16 %v1173
    %v1352 = vunpack.c.h.b16 %v1173
    %v1353 = vunpack.c.l.b16 %v1174
    %v1354 = vunpack.c.h.b16 %v1174
    %v1355 = vunpack.c.l.b16 %v1175
    %v1356 = vunpack.c.h.b16 %v1175
    %v1357 = vunpack.c.l.b16 %v1176
    %v1358 = vunpack.c.h.b16 %v1176
    %v1359 = vunpack.c.l.b16 %v1177
    %v1360 = vunpack.c.h.b16 %v1177
    %v1361 = vunpack.c.l.b16 %v1178
    %v1362 = vunpack.c.h.b16 %v1178
    %v1363 = vunpack.c.l.b16 %v1179
    %v1364 = vunpack.c.h.b16 %v1179
    %v1365 = vunpack.c.l.b16 %v1180
    %v1366 = vunpack.c.h.b16 %v1180
    %v1367 = vunpack.c.l.b16 %v1181
    %v1368 = vunpack.c.h.b16 %v1181
    %v1369 = vunpack.c.l.b16 %v1182
    %v1370 = vunpack.c.h.b16 %v1182
    %v1371 = vunpack.c.l.b16 %v1183
    %v1372 = vunpack.c.h.b16 %v1183
    %v1373 = vunpack.c.l.b16 %v1184
    %v1374 = vunpack.c.h.b16 %v1184
    %v1375 = vunpack.c.l.b16 %v1185
    %v1376 = vunpack.c.h.b16 %v1185
    %v1377 = vunpack.c.l.b16 %v1186
    %v1378 = vunpack.c.h.b16 %v1186
    %v1379 = vunpack.c.l.b16 %v1187
    %v1380 = vunpack.c.h.b16 %v1187
    %v1381 = vunpack.c.l.b16 %v1188
    %v1382 = vunpack.c.h.b16 %v1188
    %v1383 = vunpack.c.l.b16 %v1189
    %v1384 = vunpack.c.h.b16 %v1189
    %v1385 = vunpack.c.l.b16 %v1190
    %v1386 = vunpack.c.h.b16 %v1190
    %v1387 = vunpack.c.l.b16 %v1191
    %v1388 = vunpack.c.h.b16 %v1191
    %v1389 = vunpack.c.l.b16 %v1192
    %v1390 = vunpack.c.h.b16 %v1192
    %v1391 = vunpack.c.l.b16 %v1193
    %v1392 = vunpack.c.h.b16 %v1193
    %v1393 = vunpack.c.l.b16 %v1194
    %v1394 = vunpack.c.h.b16 %v1194
    %v1395 = vunpack.c.l.b16 %v1195
    %v1396 = vunpack.c.h.b16 %v1195
    %v1397 = vunpack.c.l.b16 %v1196
    %v1398 = vunpack.c.h.b16 %v1196
    %v1399 = vunpack.c.l.b16 %v1197
    %v1400 = vunpack.c.h.b16 %v1197
    %v1401 = vunpack.c.l.b16 %v1198
    %v1402 = vunpack.c.h.b16 %v1198
    %v1403 = vunpack.c.l.b16 %v1199
    %v1404 = vunpack.c.h.b16 %v1199
    %v1405 = vunpack.c.l.b16 %v1200
    %v1406 = vunpack.c.h.b16 %v1200
    %v1407 = vunpack.c.l.b16 %v1201
    %v1408 = vunpack.c.h.b16 %v1201
    %v1409 = vunpack.c.l.b16 %v1202
    %v1410 = vunpack.c.h.b16 %v1202
    %v1411 = vunpack.c.l.b16 %v1203
    %v1412 = vunpack.c.h.b16 %v1203
    %v1413 = vunpack.c.l.b16 %v1204
    %v1414 = vunpack.c.h.b16 %v1204
    %v1415 = vunpack.c.l.b16 %v1205
    %v1416 = vunpack.c.h.b16 %v1205
    %v1417 = vunpack.c.l.b16 %v1206
    %v1418 = vunpack.c.h.b16 %v1206
    %v1419 = vunpack.c.l.b16 %v1207
    %v1420 = vunpack.c.h.b16 %v1207
    %v1421 = vunpack.c.l.b16 %v1208
    %v1422 = vunpack.c.h.b16 %v1208
    %v1423 = vunpack.c.l.b16 %v1209
    %v1424 = vunpack.c.h.b16 %v1209
    %v1425 = vunpack.c.l.b16 %v1210
    %v1426 = vunpack.c.h.b16 %v1210
    %v1427 = vunpack.c.l.b16 %v1211
    %v1428 = vunpack.c.h.b16 %v1211
    %v1429 = vunpack.c.l.b16 %v1212
    %v1430 = vunpack.c.h.b16 %v1212
    %v1431 = vunpack.c.l.b16 %v1213
    %v1432 = vunpack.c.h.b16 %v1213
    %v1433 = vunpack.c.l.b16 %v1214
    %v1434 = vunpack.c.h.b16 %v1214
    %v1435 = vunpack.c.l.b16 %v1215
    %v1436 = vunpack.c.h.b16 %v1215
    %v1437 = vunpack.c.l.b16 %v1216
    %v1438 = vunpack.c.h.b16 %v1216
    %v1439 = vunpack.c.l.b16 %v1217
    %v1440 = vunpack.c.h.b16 %v1217
    %v1441 = vunpack.c.l.b16 %v1218
    %v1442 = vunpack.c.h.b16 %v1218
    %v1443 = vunpack.c.l.b16 %v1219
    %v1444 = vunpack.c.h.b16 %v1219
    %v1445 = vunpack.c.l.b16 %v1220
    %v1446 = vunpack.c.h.b16 %v1220
    %v1447 = vunpack.c.l.b16 %v1221
    %v1448 = vunpack.c.h.b16 %v1221
    %v1449 = vunpack.c.l.b16 %v1222
    %v1450 = vunpack.c.h.b16 %v1222
    %v1451 = vunpack.c.l.b16 %v1223
    %v1452 = vunpack.c.h.b16 %v1223
    %v1453 = vunpack.c.l.b16 %v1224
    %v1454 = vunpack.c.h.b16 %v1224
    %v1455 = vunpack.c.l.b16 %v1225
    %v1456 = vunpack.c.h.b16 %v1225
    %v1457 = vunpack.c.l.b16 %v1226
    %v1458 = vunpack.c.h.b16 %v1226
    %v1459 = vunpack.c.l.b16 %v1227
    %v1460 = vunpack.c.h.b16 %v1227
    %v1461 = vunpack.c.l.b16 %v1228
    %v1462 = vunpack.c.h.b16 %v1228
    %v1463 = vpack.c.b16 %v1343, %v1335
    %v1464 = vpack.c.b16 %v1344, %v1336
    %v1465 = vpack.c.b16 %v1345, %v1337
    %v1466 = vpack.c.b16 %v1346, %v1338
    %v1467 = vpack.c.b16 %v1347, %v1339
    %v1468 = vpack.c.b16 %v1348, %v1340
    %v1469 = vpack.c.b16 %v1349, %v1341
    %v1470 = vpack.c.b16 %v1350, %v1342
    %v1471 = vpack.c.b16 %v1359, %v1351
    %v1472 = vpack.c.b16 %v1360, %v1352
    %v1473 = vpack.c.b16 %v1361, %v1353
    %v1474 = vpack.c.b16 %v1362, %v1354
    %v1475 = vpack.c.b16 %v1363, %v1355
    %v1476 = vpack.c.b16 %v1364, %v1356
    %v1477 = vpack.c.b16 %v1365, %v1357
    %v1478 = vpack.c.b16 %v1366, %v1358
    %v1479 = vpack.c.b16 %v1375, %v1367
    %v1480 = vpack.c.b16 %v1376, %v1368
    %v1481 = vpack.c.b16 %v1377, %v1369
    %v1482 = vpack.c.b16 %v1378, %v1370
    %v1483 = vpack.c.b16 %v1379, %v1371
    %v1484 = vpack.c.b16 %v1380, %v1372
    %v1485 = vpack.c.b16 %v1381, %v1373
    %v1486 = vpack.c.b16 %v1382, %v1374
    %v1487 = vpack.c.b16 %v1391, %v1383
    %v1488 = vpack.c.b16 %v1392, %v1384
    %v1489 = vpack.c.b16 %v1393, %v1385
    %v1490 = vpack.c.b16 %v1394, %v1386
    %v1491 = vpack.c.b16 %v1395, %v1387
    %v1492 = vpack.c.b16 %v1396, %v1388
    %v1493 = vpack.c.b16 %v1397, %v1389
    %v1494 = vpack.c.b16 %v1398, %v1390
    %v1495 = vpack.c.b16 %v1407, %v1399
    %v1496 = vpack.c.b16 %v1408, %v1400
    %v1497 = vpack.c.b16 %v1409, %v1401
    %v1498 = vpack.c.b16 %v1410, %v1402
    %v1499 = vpack.c.b16 %v1411, %v1403
    %v1500 = vpack.c.b16 %v1412, %v1404
    %v1501 = vpack.c.b16 %v1413, %v1405
    %v1502 = vpack.c.b16 %v1414, %v1406
    %v1503 = vpack.c.b16 %v1423, %v1415
    %v1504 = vpack.c.b16 %v1424, %v1416
    %v1505 = vpack.c.b16 %v1425, %v1417
    %v1506 = vpack.c.b16 %v1426, %v1418
    %v1507 = vpack.c.b16 %v1427, %v1419
    %v1508 = vpack.c.b16 %v1428, %v1420
    %v1509 = vpack.c.b16 %v1429, %v1421
    %v1510 = vpack.c.b16 %v1430, %v1422
    %v1511 = vpack.c.b16 %v1439, %v1431
    %v1512 = vpack.c.b16 %v1440, %v1432
    %v1513 = vpack.c.b16 %v1441, %v1433
    %v1514 = vpack.c.b16 %v1442, %v1434
    %v1515 = vpack.c.b16 %v1443, %v1435
    %v1516 = vpack.c.b16 %v1444, %v1436
    %v1517 = vpack.c.b16 %v1445, %v1437
    %v1518 = vpack.c.b16 %v1446, %v1438
    %v1519 = vpack.c.b16 %v1455, %v1447
    %v1520 = vpack.c.b16 %v1456, %v1448
    %v1521 = vpack.c.b16 %v1457, %v1449
    %v1522 = vpack.c.b16 %v1458, %v1450
    %v1523 = vpack.c.b16 %v1459, %v1451
    %v1524 = vpack.c.b16 %v1460, %v1452
    %v1525 = vpack.c.b16 %v1461, %v1453
    %v1526 = vpack.c.b16 %v1462, %v1454
    %1591 = vmatprep.subr.bf16.mxu0 %v1520
    %1592 = vmatpush1.bf16.msra.mxu0 %v1519
    %1593 = vmatprep.subr.bf16.mxu0 %v1512
    %1594 = vmatpush1.bf16.msra.mxu0 %v1511
    %1595 = vmatprep.subr.bf16.mxu0 %v1504
    %1596 = vmatpush1.bf16.msra.mxu0 %v1503
    %1597 = vmatprep.subr.bf16.mxu0 %v1496
    %1598 = vmatpush1.bf16.msra.mxu0 %v1495
    %1599 = vmatprep.subr.bf16.mxu0 %v1488
    %1600 = vmatpush1.bf16.msra.mxu0 %v1487
    %1601 = vmatprep.subr.bf16.mxu0 %v1480
    %1602 = vmatpush1.bf16.msra.mxu0 %v1479
    %1603 = vmatprep.subr.bf16.mxu0 %v1472
    %1604 = vmatpush1.bf16.msra.mxu0 %v1471
    %1605 = vmatprep.subr.bf16.mxu0 %v1464
    %1606 = vmatpush1.bf16.msra.mxu0 %v1463
    %1607 = vmatprep.subr.bf16.mxu0 0
    %1608 = vmatpush2.bf16.msra.mxu0 0
    %1609 = vmatprep.subr.bf16.mxu0 0
    %1610 = vmatpush2.bf16.msra.mxu0 0
    %1611 = vmatprep.subr.bf16.mxu0 0
    %1612 = vmatpush2.bf16.msra.mxu0 0
    %1613 = vmatprep.subr.bf16.mxu0 0
    %1614 = vmatpush2.bf16.msra.mxu0 0
    %1615 = vmatprep.subr.bf16.mxu0 0
    %1616 = vmatpush2.bf16.msra.mxu0 0
    %1617 = vmatprep.subr.bf16.mxu0 0
    %1618 = vmatpush2.bf16.msra.mxu0 0
    %1619 = vmatprep.subr.bf16.mxu0 0
    %1620 = vmatpush2.bf16.msra.mxu0 0
    %1621 = vmatprep.subr.bf16.mxu0 0
    %1622 = vmatpush2.bf16.msra.mxu0 0
    %1623 = vmatprep.mubr.bf16.mxu0 0
    %1624 = vmatmul.mubr.bf16.gmra.mxu0 %v1161
    %v1625 = vpop.f32.mrf.mxu0
    %v1626 = vadd.f32 %v1234, %v1625
    %v1627 = vpop.f32.mrf.mxu0
    %v1628 = vadd.f32 %v1238, %v1627
    %v1629 = vpop.f32.mrf.mxu0
    %v1630 = vadd.f32 %v1234, %v1629
    %v1631 = vpop.f32.mrf.mxu0
    %v1632 = vadd.f32 %v1238, %v1631
    %1633 = vmatprep.mubr.bf16.mxu0 0
    %1634 = vmatmul.mubr.bf16.gmra.mxu0 %v1162
    %v1635 = vpop.f32.mrf.mxu0
    %v1636 = vadd.f32 %v1234, %v1635
    %v1637 = vpop.f32.mrf.mxu0
    %v1638 = vadd.f32 %v1238, %v1637
    %v1639 = vpop.f32.mrf.mxu0
    %v1640 = vadd.f32 %v1234, %v1639
    %v1641 = vpop.f32.mrf.mxu0
    %v1642 = vadd.f32 %v1238, %v1641
    %1643 = vmatprep.mubr.bf16.mxu0 0
    %1644 = vmatmul.mubr.bf16.gmra.mxu0 %v1163
    %v1645 = vpop.f32.mrf.mxu0
    %v1646 = vadd.f32 %v1234, %v1645
    %v1647 = vpop.f32.mrf.mxu0
    %v1648 = vadd.f32 %v1238, %v1647
    %v1649 = vpop.f32.mrf.mxu0
    %v1650 = vadd.f32 %v1234, %v1649
    %v1651 = vpop.f32.mrf.mxu0
    %v1652 = vadd.f32 %v1238, %v1651
    %1653 = vmatprep.mubr.bf16.mxu0 0
    %1654 = vmatmul.mubr.bf16.gmra.mxu0 %v1164
    %v1655 = vpop.f32.mrf.mxu0
    %v1656 = vadd.f32 %v1234, %v1655
    %v1657 = vpop.f32.mrf.mxu0
    %v1658 = vadd.f32 %v1238, %v1657
    %v1659 = vpop.f32.mrf.mxu0
    %v1660 = vadd.f32 %v1234, %v1659
    %v1661 = vpop.f32.mrf.mxu0
    %v1662 = vadd.f32 %v1238, %v1661
    %1663 = vdwg.mxu0
    %1664 = vmatprep.subr.bf16.mxu0 %v1522
    %1665 = vmatpush1.bf16.msra.mxu0 %v1521
    %1666 = vmatprep.subr.bf16.mxu0 %v1514
    %1667 = vmatpush1.bf16.msra.mxu0 %v1513
    %1668 = vmatprep.subr.bf16.mxu0 %v1506
    %1669 = vmatpush1.bf16.msra.mxu0 %v1505
    %1670 = vmatprep.subr.bf16.mxu0 %v1498
    %1671 = vmatpush1.bf16.msra.mxu0 %v1497
    %1672 = vmatprep.subr.bf16.mxu0 %v1490
    %1673 = vmatpush1.bf16.msra.mxu0 %v1489
    %1674 = vmatprep.subr.bf16.mxu0 %v1482
    %1675 = vmatpush1.bf16.msra.mxu0 %v1481
    %1676 = vmatprep.subr.bf16.mxu0 %v1474
    %1677 = vmatpush1.bf16.msra.mxu0 %v1473
    %1678 = vmatprep.subr.bf16.mxu0 %v1466
    %1679 = vmatpush1.bf16.msra.mxu0 %v1465
    %1680 = vmatprep.subr.bf16.mxu0 0
    %1681 = vmatpush2.bf16.msra.mxu0 0
    %1682 = vmatprep.subr.bf16.mxu0 0
    %1683 = vmatpush2.bf16.msra.mxu0 0
    %1684 = vmatprep.subr.bf16.mxu0 0
    %1685 = vmatpush2.bf16.msra.mxu0 0
    %1686 = vmatprep.subr.bf16.mxu0 0
    %1687 = vmatpush2.bf16.msra.mxu0 0
    %1688 = vmatprep.subr.bf16.mxu0 0
    %1689 = vmatpush2.bf16.msra.mxu0 0
    %1690 = vmatprep.subr.bf16.mxu0 0
    %1691 = vmatpush2.bf16.msra.mxu0 0
    %1692 = vmatprep.subr.bf16.mxu0 0
    %1693 = vmatpush2.bf16.msra.mxu0 0
    %1694 = vmatprep.subr.bf16.mxu0 0
    %1695 = vmatpush2.bf16.msra.mxu0 0
    %1696 = vmatprep.mubr.bf16.mxu0 0
    %1697 = vmatmul.mubr.bf16.gmra.mxu0 %v1161
    %v1698 = vpop.f32.mrf.mxu0
    %v1699 = vadd.f32 %v1242, %v1698
    %v1700 = vpop.f32.mrf.mxu0
    %v1701 = vadd.f32 %v1246, %v1700
    %v1702 = vpop.f32.mrf.mxu0
    %v1703 = vadd.f32 %v1242, %v1702
    %v1704 = vpop.f32.mrf.mxu0
    %v1705 = vadd.f32 %v1246, %v1704
    %1706 = vmatprep.mubr.bf16.mxu0 0
    %1707 = vmatmul.mubr.bf16.gmra.mxu0 %v1162
    %v1708 = vpop.f32.mrf.mxu0
    %v1709 = vadd.f32 %v1242, %v1708
    %v1710 = vpop.f32.mrf.mxu0
    %v1711 = vadd.f32 %v1246, %v1710
    %v1712 = vpop.f32.mrf.mxu0
    %v1713 = vadd.f32 %v1242, %v1712
    %v1714 = vpop.f32.mrf.mxu0
    %v1715 = vadd.f32 %v1246, %v1714
    %1716 = vmatprep.mubr.bf16.mxu0 0
    %1717 = vmatmul.mubr.bf16.gmra.mxu0 %v1163
    %v1718 = vpop.f32.mrf.mxu0
    %v1719 = vadd.f32 %v1242, %v1718
    %v1720 = vpop.f32.mrf.mxu0
    %v1721 = vadd.f32 %v1246, %v1720
    %v1722 = vpop.f32.mrf.mxu0
    %v1723 = vadd.f32 %v1242, %v1722
    %v1724 = vpop.f32.mrf.mxu0
    %v1725 = vadd.f32 %v1246, %v1724
    %1726 = vmatprep.mubr.bf16.mxu0 0
    %1727 = vmatmul.mubr.bf16.gmra.mxu0 %v1164
    %v1728 = vpop.f32.mrf.mxu0
    %v1729 = vadd.f32 %v1242, %v1728
    %v1730 = vpop.f32.mrf.mxu0
    %v1731 = vadd.f32 %v1246, %v1730
    %v1732 = vpop.f32.mrf.mxu0
    %v1733 = vadd.f32 %v1242, %v1732
    %v1734 = vpop.f32.mrf.mxu0
    %v1735 = vadd.f32 %v1246, %v1734
    %1736 = vdwg.mxu0
    %1737 = vmatprep.subr.bf16.mxu0 %v1524
    %1738 = vmatpush1.bf16.msra.mxu0 %v1523
    %1739 = vmatprep.subr.bf16.mxu0 %v1516
    %1740 = vmatpush1.bf16.msra.mxu0 %v1515
    %1741 = vmatprep.subr.bf16.mxu0 %v1508
    %1742 = vmatpush1.bf16.msra.mxu0 %v1507
    %1743 = vmatprep.subr.bf16.mxu0 %v1500
    %1744 = vmatpush1.bf16.msra.mxu0 %v1499
    %1745 = vmatprep.subr.bf16.mxu0 %v1492
    %1746 = vmatpush1.bf16.msra.mxu0 %v1491
    %1747 = vmatprep.subr.bf16.mxu0 %v1484
    %1748 = vmatpush1.bf16.msra.mxu0 %v1483
    %1749 = vmatprep.subr.bf16.mxu0 %v1476
    %1750 = vmatpush1.bf16.msra.mxu0 %v1475
    %1751 = vmatprep.subr.bf16.mxu0 %v1468
    %1752 = vmatpush1.bf16.msra.mxu0 %v1467
    %1753 = vmatprep.subr.bf16.mxu0 0
    %1754 = vmatpush2.bf16.msra.mxu0 0
    %1755 = vmatprep.subr.bf16.mxu0 0
    %1756 = vmatpush2.bf16.msra.mxu0 0
    %1757 = vmatprep.subr.bf16.mxu0 0
    %1758 = vmatpush2.bf16.msra.mxu0 0
    %1759 = vmatprep.subr.bf16.mxu0 0
    %1760 = vmatpush2.bf16.msra.mxu0 0
    %1761 = vmatprep.subr.bf16.mxu0 0
    %1762 = vmatpush2.bf16.msra.mxu0 0
    %1763 = vmatprep.subr.bf16.mxu0 0
    %1764 = vmatpush2.bf16.msra.mxu0 0
    %1765 = vmatprep.subr.bf16.mxu0 0
    %1766 = vmatpush2.bf16.msra.mxu0 0
    %1767 = vmatprep.subr.bf16.mxu0 0
    %1768 = vmatpush2.bf16.msra.mxu0 0
    %1769 = vmatprep.mubr.bf16.mxu0 0
    %1770 = vmatmul.mubr.bf16.gmra.mxu0 %v1161
    %v1771 = vpop.f32.mrf.mxu0
    %v1772 = vadd.f32 %v1250, %v1771
    %v1773 = vpop.f32.mrf.mxu0
    %v1774 = vadd.f32 %v1254, %v1773
    %v1775 = vpop.f32.mrf.mxu0
    %v1776 = vadd.f32 %v1250, %v1775
    %v1777 = vpop.f32.mrf.mxu0
    %v1778 = vadd.f32 %v1254, %v1777
    %1779 = vmatprep.mubr.bf16.mxu0 0
    %1780 = vmatmul.mubr.bf16.gmra.mxu0 %v1162
    %v1781 = vpop.f32.mrf.mxu0
    %v1782 = vadd.f32 %v1250, %v1781
    %v1783 = vpop.f32.mrf.mxu0
    %v1784 = vadd.f32 %v1254, %v1783
    %v1785 = vpop.f32.mrf.mxu0
    %v1786 = vadd.f32 %v1250, %v1785
    %v1787 = vpop.f32.mrf.mxu0
    %v1788 = vadd.f32 %v1254, %v1787
    %1789 = vmatprep.mubr.bf16.mxu0 0
    %1790 = vmatmul.mubr.bf16.gmra.mxu0 %v1163
    %v1791 = vpop.f32.mrf.mxu0
    %v1792 = vadd.f32 %v1250, %v1791
    %v1793 = vpop.f32.mrf.mxu0
    %v1794 = vadd.f32 %v1254, %v1793
    %v1795 = vpop.f32.mrf.mxu0
    %v1796 = vadd.f32 %v1250, %v1795
    %v1797 = vpop.f32.mrf.mxu0
    %v1798 = vadd.f32 %v1254, %v1797
    %1799 = vmatprep.mubr.bf16.mxu0 0
    %1800 = vmatmul.mubr.bf16.gmra.mxu0 %v1164
    %v1801 = vpop.f32.mrf.mxu0
    %v1802 = vadd.f32 %v1250, %v1801
    %v1803 = vpop.f32.mrf.mxu0
    %v1804 = vadd.f32 %v1254, %v1803
    %v1805 = vpop.f32.mrf.mxu0
    %v1806 = vadd.f32 %v1250, %v1805
    %v1807 = vpop.f32.mrf.mxu0
    %v1808 = vadd.f32 %v1254, %v1807
    %1809 = vdwg.mxu0
    %1810 = vmatprep.subr.bf16.mxu0 %v1526
    %1811 = vmatpush1.bf16.msra.mxu0 %v1525
    %1812 = vmatprep.subr.bf16.mxu0 %v1518
    %1813 = vmatpush1.bf16.msra.mxu0 %v1517
    %1814 = vmatprep.subr.bf16.mxu0 %v1510
    %1815 = vmatpush1.bf16.msra.mxu0 %v1509
    %1816 = vmatprep.subr.bf16.mxu0 %v1502
    %1817 = vmatpush1.bf16.msra.mxu0 %v1501
    %1818 = vmatprep.subr.bf16.mxu0 %v1494
    %1819 = vmatpush1.bf16.msra.mxu0 %v1493
    %1820 = vmatprep.subr.bf16.mxu0 %v1486
    %1821 = vmatpush1.bf16.msra.mxu0 %v1485
    %1822 = vmatprep.subr.bf16.mxu0 %v1478
    %1823 = vmatpush1.bf16.msra.mxu0 %v1477
    %1824 = vmatprep.subr.bf16.mxu0 %v1470
    %1825 = vmatpush1.bf16.msra.mxu0 %v1469
    %1826 = vmatprep.subr.bf16.mxu0 0
    %1827 = vmatpush2.bf16.msra.mxu0 0
    %1828 = vmatprep.subr.bf16.mxu0 0
    %1829 = vmatpush2.bf16.msra.mxu0 0
    %1830 = vmatprep.subr.bf16.mxu0 0
    %1831 = vmatpush2.bf16.msra.mxu0 0
    %1832 = vmatprep.subr.bf16.mxu0 0
    %1833 = vmatpush2.bf16.msra.mxu0 0
    %1834 = vmatprep.subr.bf16.mxu0 0
    %1835 = vmatpush2.bf16.msra.mxu0 0
    %1836 = vmatprep.subr.bf16.mxu0 0
    %1837 = vmatpush2.bf16.msra.mxu0 0
    %1838 = vmatprep.subr.bf16.mxu0 0
    %1839 = vmatpush2.bf16.msra.mxu0 0
    %1840 = vmatprep.subr.bf16.mxu0 0
    %1841 = vmatpush2.bf16.msra.mxu0 0
    %1842 = vmatprep.mubr.bf16.mxu0 0
    %1843 = vmatmul.mubr.bf16.gmra.mxu0 %v1161
    %v1844 = vpop.f32.mrf.mxu0
    %v1845 = vadd.f32 %v1258, %v1844
    %v1846 = vpop.f32.mrf.mxu0
    %v1847 = vadd.f32 %v1262, %v1846
    %v1848 = vpop.f32.mrf.mxu0
    %v1849 = vadd.f32 %v1258, %v1848
    %v1850 = vpop.f32.mrf.mxu0
    %v1851 = vadd.f32 %v1262, %v1850
    %1852 = vmatprep.mubr.bf16.mxu0 0
    %1853 = vmatmul.mubr.bf16.gmra.mxu0 %v1162
    %v1854 = vpop.f32.mrf.mxu0
    %v1855 = vadd.f32 %v1258, %v1854
    %v1856 = vpop.f32.mrf.mxu0
    %v1857 = vadd.f32 %v1262, %v1856
    %v1858 = vpop.f32.mrf.mxu0
    %v1859 = vadd.f32 %v1258, %v1858
    %v1860 = vpop.f32.mrf.mxu0
    %v1861 = vadd.f32 %v1262, %v1860
    %1862 = vmatprep.mubr.bf16.mxu0 0
    %1863 = vmatmul.mubr.bf16.gmra.mxu0 %v1163
    %v1864 = vpop.f32.mrf.mxu0
    %v1865 = vadd.f32 %v1258, %v1864
    %v1866 = vpop.f32.mrf.mxu0
    %v1867 = vadd.f32 %v1262, %v1866
    %v1868 = vpop.f32.mrf.mxu0
    %v1869 = vadd.f32 %v1258, %v1868
    %v1870 = vpop.f32.mrf.mxu0
    %v1871 = vadd.f32 %v1262, %v1870
    %1872 = vmatprep.mubr.bf16.mxu0 0
    %1873 = vmatmul.mubr.bf16.gmra.mxu0 %v1164
    %v1874 = vpop.f32.mrf.mxu0
    %v1875 = vadd.f32 %v1258, %v1874
    %v1876 = vpop.f32.mrf.mxu0
    %v1877 = vadd.f32 %v1262, %v1876
    %v1878 = vpop.f32.mrf.mxu0
    %v1879 = vadd.f32 %v1258, %v1878
    %v1880 = vpop.f32.mrf.mxu0
    %v1881 = vadd.f32 %v1262, %v1880
    %1882 = vdwg.mxu0
    %1883 = vst [vmem:[#allocation2] sm:$0xff] %v1626
    %1884 = vst [vmem:[#allocation2 + $0x8] sm:$0xff] %v1628
    %1885 = vst [vmem:[#allocation2 + $0x10] sm:$0xff] %v1699
    %1886 = vst [vmem:[#allocation2 + $0x18] sm:$0xff] %v1701
    %1887 = vst [vmem:[#allocation2 + $0x20] sm:$0xff] %v1772
    %1888 = vst [vmem:[#allocation2 + $0x28] sm:$0xff] %v1774
    %1889 = vst [vmem:[#allocation2 + $0x30] sm:$0xff] %v1845
    %1890 = vst [vmem:[#allocation2 + $0x38] sm:$0xff] %v1847
    %1891 = vst [vmem:[#allocation2 + $0x40] sm:$0xff] %v1630
    %1892 = vst [vmem:[#allocation2 + $0x48] sm:$0xff] %v1632
    %1893 = vst [vmem:[#allocation2 + $0x50] sm:$0xff] %v1703
    %1894 = vst [vmem:[#allocation2 + $0x58] sm:$0xff] %v1705
    %1895 = vst [vmem:[#allocation2 + $0x60] sm:$0xff] %v1776
    %1896 = vst [vmem:[#allocation2 + $0x68] sm:$0xff] %v1778
    %1897 = vst [vmem:[#allocation2 + $0x70] sm:$0xff] %v1849
    %1898 = vst [vmem:[#allocation2 + $0x78] sm:$0xff] %v1851
    %1899 = vst [vmem:[#allocation2 + $0x80] sm:$0xff] %v1636
    %1900 = vst [vmem:[#allocation2 + $0x88] sm:$0xff] %v1638
    %1901 = vst [vmem:[#allocation2 + $0x90] sm:$0xff] %v1709
    %1902 = vst [vmem:[#allocation2 + $0x98] sm:$0xff] %v1711
    %1903 = vst [vmem:[#allocation2 + $0xa0] sm:$0xff] %v1782
    %1904 = vst [vmem:[#allocation2 + $0xa8] sm:$0xff] %v1784
    %1905 = vst [vmem:[#allocation2 + $0xb0] sm:$0xff] %v1855
    %1906 = vst [vmem:[#allocation2 + $0xb8] sm:$0xff] %v1857
    %1907 = vst [vmem:[#allocation2 + $0xc0] sm:$0xff] %v1640
    %1908 = vst [vmem:[#allocation2 + $0xc8] sm:$0xff] %v1642
    %1909 = vst [vmem:[#allocation2 + $0xd0] sm:$0xff] %v1713
    %1910 = vst [vmem:[#allocation2 + $0xd8] sm:$0xff] %v1715
    %1911 = vst [vmem:[#allocation2 + $0xe0] sm:$0xff] %v1786
    %1912 = vst [vmem:[#allocation2 + $0xe8] sm:$0xff] %v1788
    %1913 = vst [vmem:[#allocation2 + $0xf0] sm:$0xff] %v1859
    %1914 = vst [vmem:[#allocation2 + $0xf8] sm:$0xff] %v1861
    %1915 = vst [vmem:[#allocation2 + $0x100] sm:$0xff] %v1646
    %1916 = vst [vmem:[#allocation2 + $0x108] sm:$0xff] %v1648
    %1917 = vst [vmem:[#allocation2 + $0x110] sm:$0xff] %v1719
    %1918 = vst [vmem:[#allocation2 + $0x118] sm:$0xff] %v1721
    %1919 = vst [vmem:[#allocation2 + $0x120] sm:$0xff] %v1792
    %1920 = vst [vmem:[#allocation2 + $0x128] sm:$0xff] %v1794
    %1921 = vst [vmem:[#allocation2 + $0x130] sm:$0xff] %v1865
    %1922 = vst [vmem:[#allocation2 + $0x138] sm:$0xff] %v1867
    %1923 = vst [vmem:[#allocation2 + $0x140] sm:$0xff] %v1650
    %1924 = vst [vmem:[#allocation2 + $0x148] sm:$0xff] %v1652
    %1925 = vst [vmem:[#allocation2 + $0x150] sm:$0xff] %v1723
    %1926 = vst [vmem:[#allocation2 + $0x158] sm:$0xff] %v1725
    %1927 = vst [vmem:[#allocation2 + $0x160] sm:$0xff] %v1796
    %1928 = vst [vmem:[#allocation2 + $0x168] sm:$0xff] %v1798
    %1929 = vst [vmem:[#allocation2 + $0x170] sm:$0xff] %v1869
    %1930 = vst [vmem:[#allocation2 + $0x178] sm:$0xff] %v1871
    %1931 = vst [vmem:[#allocation2 + $0x180] sm:$0xff] %v1656
    %1932 = vst [vmem:[#allocation2 + $0x188] sm:$0xff] %v1658
    %1933 = vst [vmem:[#allocation2 + $0x190] sm:$0xff] %v1729
    %1934 = vst [vmem:[#allocation2 + $0x198] sm:$0xff] %v1731
    %1935 = vst [vmem:[#allocation2 + $0x1a0] sm:$0xff] %v1802
    %1936 = vst [vmem:[#allocation2 + $0x1a8] sm:$0xff] %v1804
    %1937 = vst [vmem:[#allocation2 + $0x1b0] sm:$0xff] %v1875
    %1938 = vst [vmem:[#allocation2 + $0x1b8] sm:$0xff] %v1877
    %1939 = vst [vmem:[#allocation2 + $0x1c0] sm:$0xff] %v1660
    %1940 = vst [vmem:[#allocation2 + $0x1c8] sm:$0xff] %v1662
    %1941 = vst [vmem:[#allocation2 + $0x1d0] sm:$0xff] %v1733
    %1942 = vst [vmem:[#allocation2 + $0x1d8] sm:$0xff] %v1735
    %1943 = vst [vmem:[#allocation2 + $0x1e0] sm:$0xff] %v1806
    %1944 = vst [vmem:[#allocation2 + $0x1e8] sm:$0xff] %v1808
    %1945 = vst [vmem:[#allocation2 + $0x1f0] sm:$0xff] %v1879
    %1946 = vst [vmem:[#allocation2 + $0x1f8] sm:$0xff] %v1881
    %v1947 = vpack.c.bf16 0.0, 0.0
    %v1948 = vld [vmem:[#allocation8] sm:$0xff]
    %v1949 = vld [vmem:[#allocation8 + $0x8] sm:$0xff]
    %v1950 = vld [vmem:[#allocation8 + $0x10] sm:$0xff]
    %v1951 = vld [vmem:[#allocation8 + $0x18] sm:$0xff]
    %v1952 = vld [vmem:[#allocation8 + $0x20] sm:$0xff]
    %v1953 = vld [vmem:[#allocation8 + $0x28] sm:$0xff]
    %v1954 = vld [vmem:[#allocation8 + $0x30] sm:$0xff]
    %v1955 = vld [vmem:[#allocation8 + $0x38] sm:$0xff]
    %v1956 = vld [vmem:[#allocation8 + $0x40] sm:$0xff]
    %v1957 = vld [vmem:[#allocation8 + $0x48] sm:$0xff]
    %v1958 = vld [vmem:[#allocation8 + $0x50] sm:$0xff]
    %v1959 = vld [vmem:[#allocation8 + $0x58] sm:$0xff]
    %v1960 = vld [vmem:[#allocation8 + $0x60] sm:$0xff]
    %v1961 = vld [vmem:[#allocation8 + $0x68] sm:$0xff]
    %v1962 = vld [vmem:[#allocation8 + $0x70] sm:$0xff]
    %v1963 = vld [vmem:[#allocation8 + $0x78] sm:$0xff]
    %v1964 = vld [vmem:[#allocation8 + $0x80] sm:$0xff]
    %v1965 = vld [vmem:[#allocation8 + $0x88] sm:$0xff]
    %v1966 = vld [vmem:[#allocation8 + $0x90] sm:$0xff]
    %v1967 = vld [vmem:[#allocation8 + $0x98] sm:$0xff]
    %v1968 = vld [vmem:[#allocation8 + $0xa0] sm:$0xff]
    %v1969 = vld [vmem:[#allocation8 + $0xa8] sm:$0xff]
    %v1970 = vld [vmem:[#allocation8 + $0xb0] sm:$0xff]
    %v1971 = vld [vmem:[#allocation8 + $0xb8] sm:$0xff]
    %v1972 = vld [vmem:[#allocation8 + $0xc0] sm:$0xff]
    %v1973 = vld [vmem:[#allocation8 + $0xc8] sm:$0xff]
    %v1974 = vld [vmem:[#allocation8 + $0xd0] sm:$0xff]
    %v1975 = vld [vmem:[#allocation8 + $0xd8] sm:$0xff]
    %v1976 = vld [vmem:[#allocation8 + $0xe0] sm:$0xff]
    %v1977 = vld [vmem:[#allocation8 + $0xe8] sm:$0xff]
    %v1978 = vld [vmem:[#allocation8 + $0xf0] sm:$0xff]
    %v1979 = vld [vmem:[#allocation8 + $0xf8] sm:$0xff]
    %v1980 = vld [vmem:[#allocation8 + $0x100] sm:$0xff]
    %v1981 = vld [vmem:[#allocation8 + $0x108] sm:$0xff]
    %v1982 = vld [vmem:[#allocation8 + $0x110] sm:$0xff]
    %v1983 = vld [vmem:[#allocation8 + $0x118] sm:$0xff]
    %v1984 = vld [vmem:[#allocation8 + $0x120] sm:$0xff]
    %v1985 = vld [vmem:[#allocation8 + $0x128] sm:$0xff]
    %v1986 = vld [vmem:[#allocation8 + $0x130] sm:$0xff]
    %v1987 = vld [vmem:[#allocation8 + $0x138] sm:$0xff]
    %v1988 = vld [vmem:[#allocation8 + $0x140] sm:$0xff]
    %v1989 = vld [vmem:[#allocation8 + $0x148] sm:$0xff]
    %v1990 = vld [vmem:[#allocation8 + $0x150] sm:$0xff]
    %v1991 = vld [vmem:[#allocation8 + $0x158] sm:$0xff]
    %v1992 = vld [vmem:[#allocation8 + $0x160] sm:$0xff]
    %v1993 = vld [vmem:[#allocation8 + $0x168] sm:$0xff]
    %v1994 = vld [vmem:[#allocation8 + $0x170] sm:$0xff]
    %v1995 = vld [vmem:[#allocation8 + $0x178] sm:$0xff]
    %v1996 = vld [vmem:[#allocation8 + $0x180] sm:$0xff]
    %v1997 = vld [vmem:[#allocation8 + $0x188] sm:$0xff]
    %v1998 = vld [vmem:[#allocation8 + $0x190] sm:$0xff]
    %v1999 = vld [vmem:[#allocation8 + $0x198] sm:$0xff]
    %v2000 = vld [vmem:[#allocation8 + $0x1a0] sm:$0xff]
    %v2001 = vld [vmem:[#allocation8 + $0x1a8] sm:$0xff]
    %v2002 = vld [vmem:[#allocation8 + $0x1b0] sm:$0xff]
    %v2003 = vld [vmem:[#allocation8 + $0x1b8] sm:$0xff]
    %v2004 = vld [vmem:[#allocation8 + $0x1c0] sm:$0xff]
    %v2005 = vld [vmem:[#allocation8 + $0x1c8] sm:$0xff]
    %v2006 = vld [vmem:[#allocation8 + $0x1d0] sm:$0xff]
    %v2007 = vld [vmem:[#allocation8 + $0x1d8] sm:$0xff]
    %v2008 = vld [vmem:[#allocation8 + $0x1e0] sm:$0xff]
    %v2009 = vld [vmem:[#allocation8 + $0x1e8] sm:$0xff]
    %v2010 = vld [vmem:[#allocation8 + $0x1f0] sm:$0xff]
    %v2011 = vld [vmem:[#allocation8 + $0x1f8] sm:$0xff]
    %v2012 = vld [vmem:[#allocation8 + $0x200] sm:$0xff]
    %v2013 = vld [vmem:[#allocation8 + $0x208] sm:$0xff]
    %v2014 = vld [vmem:[#allocation8 + $0x210] sm:$0xff]
    %v2015 = vld [vmem:[#allocation8 + $0x218] sm:$0xff]
    %v2016 = vld [vmem:[#allocation8 + $0x220] sm:$0xff]
    %v2017 = vld [vmem:[#allocation8 + $0x228] sm:$0xff]
    %v2018 = vld [vmem:[#allocation8 + $0x230] sm:$0xff]
    %v2019 = vld [vmem:[#allocation8 + $0x238] sm:$0xff]
    %v2020 = vld [vmem:[#allocation8 + $0x240] sm:$0xff]
    %v2021 = vld [vmem:[#allocation8 + $0x248] sm:$0xff]
    %v2022 = vld [vmem:[#allocation8 + $0x250] sm:$0xff]
    %v2023 = vld [vmem:[#allocation8 + $0x258] sm:$0xff]
    %v2024 = vld [vmem:[#allocation8 + $0x260] sm:$0xff]
    %v2025 = vld [vmem:[#allocation8 + $0x268] sm:$0xff]
    %v2026 = vld [vmem:[#allocation8 + $0x270] sm:$0xff]
    %v2027 = vld [vmem:[#allocation8 + $0x278] sm:$0xff]
    %v2028 = vld [vmem:[#allocation8 + $0x280] sm:$0xff]
    %v2029 = vld [vmem:[#allocation8 + $0x288] sm:$0xff]
    %v2030 = vld [vmem:[#allocation8 + $0x290] sm:$0xff]
    %v2031 = vld [vmem:[#allocation8 + $0x298] sm:$0xff]
    %v2032 = vld [vmem:[#allocation8 + $0x2a0] sm:$0xff]
    %v2033 = vld [vmem:[#allocation8 + $0x2a8] sm:$0xff]
    %v2034 = vld [vmem:[#allocation8 + $0x2b0] sm:$0xff]
    %v2035 = vld [vmem:[#allocation8 + $0x2b8] sm:$0xff]
    %v2036 = vld [vmem:[#allocation8 + $0x2c0] sm:$0xff]
    %v2037 = vld [vmem:[#allocation8 + $0x2c8] sm:$0xff]
    %v2038 = vld [vmem:[#allocation8 + $0x2d0] sm:$0xff]
    %v2039 = vld [vmem:[#allocation8 + $0x2d8] sm:$0xff]
    %v2040 = vld [vmem:[#allocation8 + $0x2e0] sm:$0xff]
    %v2041 = vld [vmem:[#allocation8 + $0x2e8] sm:$0xff]
    %v2042 = vld [vmem:[#allocation8 + $0x2f0] sm:$0xff]
    %v2043 = vld [vmem:[#allocation8 + $0x2f8] sm:$0xff]
    %v2044 = vld [vmem:[#allocation8 + $0x300] sm:$0xff]
    %v2045 = vld [vmem:[#allocation8 + $0x308] sm:$0xff]
    %v2046 = vld [vmem:[#allocation8 + $0x310] sm:$0xff]
    %v2047 = vld [vmem:[#allocation8 + $0x318] sm:$0xff]
    %v2048 = vld [vmem:[#allocation8 + $0x320] sm:$0xff]
    %v2049 = vld [vmem:[#allocation8 + $0x328] sm:$0xff]
    %v2050 = vld [vmem:[#allocation8 + $0x330] sm:$0xff]
    %v2051 = vld [vmem:[#allocation8 + $0x338] sm:$0xff]
    %v2052 = vld [vmem:[#allocation8 + $0x340] sm:$0xff]
    %v2053 = vld [vmem:[#allocation8 + $0x348] sm:$0xff]
    %v2054 = vld [vmem:[#allocation8 + $0x350] sm:$0xff]
    %v2055 = vld [vmem:[#allocation8 + $0x358] sm:$0xff]
    %v2056 = vld [vmem:[#allocation8 + $0x360] sm:$0xff]
    %v2057 = vld [vmem:[#allocation8 + $0x368] sm:$0xff]
    %v2058 = vld [vmem:[#allocation8 + $0x370] sm:$0xff]
    %v2059 = vld [vmem:[#allocation8 + $0x378] sm:$0xff]
    %v2060 = vld [vmem:[#allocation8 + $0x380] sm:$0xff]
    %v2061 = vld [vmem:[#allocation8 + $0x388] sm:$0xff]
    %v2062 = vld [vmem:[#allocation8 + $0x390] sm:$0xff]
    %v2063 = vld [vmem:[#allocation8 + $0x398] sm:$0xff]
    %v2064 = vld [vmem:[#allocation8 + $0x3a0] sm:$0xff]
    %v2065 = vld [vmem:[#allocation8 + $0x3a8] sm:$0xff]
    %v2066 = vld [vmem:[#allocation8 + $0x3b0] sm:$0xff]
    %v2067 = vld [vmem:[#allocation8 + $0x3b8] sm:$0xff]
    %v2068 = vld [vmem:[#allocation8 + $0x3c0] sm:$0xff]
    %v2069 = vld [vmem:[#allocation8 + $0x3c8] sm:$0xff]
    %v2070 = vld [vmem:[#allocation8 + $0x3d0] sm:$0xff]
    %v2071 = vld [vmem:[#allocation8 + $0x3d8] sm:$0xff]
    %v2072 = vld [vmem:[#allocation8 + $0x3e0] sm:$0xff]
    %v2073 = vld [vmem:[#allocation8 + $0x3e8] sm:$0xff]
    %v2074 = vld [vmem:[#allocation8 + $0x3f0] sm:$0xff]
    %v2075 = vld [vmem:[#allocation8 + $0x3f8] sm:$0xff]
    %v2204 = vunpack.c.l.b16 %v1948
    %v2205 = vunpack.c.h.b16 %v1948
    %v2206 = vunpack.c.l.b16 %v1949
    %v2207 = vunpack.c.h.b16 %v1949
    %v2208 = vunpack.c.l.b16 %v1950
    %v2209 = vunpack.c.h.b16 %v1950
    %v2210 = vunpack.c.l.b16 %v1951
    %v2211 = vunpack.c.h.b16 %v1951
    %v2212 = vunpack.c.l.b16 %v1952
    %v2213 = vunpack.c.h.b16 %v1952
    %v2214 = vunpack.c.l.b16 %v1953
    %v2215 = vunpack.c.h.b16 %v1953
    %v2216 = vunpack.c.l.b16 %v1954
    %v2217 = vunpack.c.h.b16 %v1954
    %v2218 = vunpack.c.l.b16 %v1955
    %v2219 = vunpack.c.h.b16 %v1955
    %v2220 = vunpack.c.l.b16 %v1956
    %v2221 = vunpack.c.h.b16 %v1956
    %v2222 = vunpack.c.l.b16 %v1957
    %v2223 = vunpack.c.h.b16 %v1957
    %v2224 = vunpack.c.l.b16 %v1958
    %v2225 = vunpack.c.h.b16 %v1958
    %v2226 = vunpack.c.l.b16 %v1959
    %v2227 = vunpack.c.h.b16 %v1959
    %v2228 = vunpack.c.l.b16 %v1960
    %v2229 = vunpack.c.h.b16 %v1960
    %v2230 = vunpack.c.l.b16 %v1961
    %v2231 = vunpack.c.h.b16 %v1961
    %v2232 = vunpack.c.l.b16 %v1962
    %v2233 = vunpack.c.h.b16 %v1962
    %v2234 = vunpack.c.l.b16 %v1963
    %v2235 = vunpack.c.h.b16 %v1963
    %v2236 = vunpack.c.l.b16 %v1964
    %v2237 = vunpack.c.h.b16 %v1964
    %v2238 = vunpack.c.l.b16 %v1965
    %v2239 = vunpack.c.h.b16 %v1965
    %v2240 = vunpack.c.l.b16 %v1966
    %v2241 = vunpack.c.h.b16 %v1966
    %v2242 = vunpack.c.l.b16 %v1967
    %v2243 = vunpack.c.h.b16 %v1967
    %v2244 = vunpack.c.l.b16 %v1968
    %v2245 = vunpack.c.h.b16 %v1968
    %v2246 = vunpack.c.l.b16 %v1969
    %v2247 = vunpack.c.h.b16 %v1969
    %v2248 = vunpack.c.l.b16 %v1970
    %v2249 = vunpack.c.h.b16 %v1970
    %v2250 = vunpack.c.l.b16 %v1971
    %v2251 = vunpack.c.h.b16 %v1971
    %v2252 = vunpack.c.l.b16 %v1972
    %v2253 = vunpack.c.h.b16 %v1972
    %v2254 = vunpack.c.l.b16 %v1973
    %v2255 = vunpack.c.h.b16 %v1973
    %v2256 = vunpack.c.l.b16 %v1974
    %v2257 = vunpack.c.h.b16 %v1974
    %v2258 = vunpack.c.l.b16 %v1975
    %v2259 = vunpack.c.h.b16 %v1975
    %v2260 = vunpack.c.l.b16 %v1976
    %v2261 = vunpack.c.h.b16 %v1976
    %v2262 = vunpack.c.l.b16 %v1977
    %v2263 = vunpack.c.h.b16 %v1977
    %v2264 = vunpack.c.l.b16 %v1978
    %v2265 = vunpack.c.h.b16 %v1978
    %v2266 = vunpack.c.l.b16 %v1979
    %v2267 = vunpack.c.h.b16 %v1979
    %v2268 = vunpack.c.l.b16 %v1980
    %v2269 = vunpack.c.h.b16 %v1980
    %v2270 = vunpack.c.l.b16 %v1981
    %v2271 = vunpack.c.h.b16 %v1981
    %v2272 = vunpack.c.l.b16 %v1982
    %v2273 = vunpack.c.h.b16 %v1982
    %v2274 = vunpack.c.l.b16 %v1983
    %v2275 = vunpack.c.h.b16 %v1983
    %v2276 = vunpack.c.l.b16 %v1984
    %v2277 = vunpack.c.h.b16 %v1984
    %v2278 = vunpack.c.l.b16 %v1985
    %v2279 = vunpack.c.h.b16 %v1985
    %v2280 = vunpack.c.l.b16 %v1986
    %v2281 = vunpack.c.h.b16 %v1986
    %v2282 = vunpack.c.l.b16 %v1987
    %v2283 = vunpack.c.h.b16 %v1987
    %v2284 = vunpack.c.l.b16 %v1988
    %v2285 = vunpack.c.h.b16 %v1988
    %v2286 = vunpack.c.l.b16 %v1989
    %v2287 = vunpack.c.h.b16 %v1989
    %v2288 = vunpack.c.l.b16 %v1990
    %v2289 = vunpack.c.h.b16 %v1990
    %v2290 = vunpack.c.l.b16 %v1991
    %v2291 = vunpack.c.h.b16 %v1991
    %v2292 = vunpack.c.l.b16 %v1992
    %v2293 = vunpack.c.h.b16 %v1992
    %v2294 = vunpack.c.l.b16 %v1993
    %v2295 = vunpack.c.h.b16 %v1993
    %v2296 = vunpack.c.l.b16 %v1994
    %v2297 = vunpack.c.h.b16 %v1994
    %v2298 = vunpack.c.l.b16 %v1995
    %v2299 = vunpack.c.h.b16 %v1995
    %v2300 = vunpack.c.l.b16 %v1996
    %v2301 = vunpack.c.h.b16 %v1996
    %v2302 = vunpack.c.l.b16 %v1997
    %v2303 = vunpack.c.h.b16 %v1997
    %v2304 = vunpack.c.l.b16 %v1998
    %v2305 = vunpack.c.h.b16 %v1998
    %v2306 = vunpack.c.l.b16 %v1999
    %v2307 = vunpack.c.h.b16 %v1999
    %v2308 = vunpack.c.l.b16 %v2000
    %v2309 = vunpack.c.h.b16 %v2000
    %v2310 = vunpack.c.l.b16 %v2001
    %v2311 = vunpack.c.h.b16 %v2001
    %v2312 = vunpack.c.l.b16 %v2002
    %v2313 = vunpack.c.h.b16 %v2002
    %v2314 = vunpack.c.l.b16 %v2003
    %v2315 = vunpack.c.h.b16 %v2003
    %v2316 = vunpack.c.l.b16 %v2004
    %v2317 = vunpack.c.h.b16 %v2004
    %v2318 = vunpack.c.l.b16 %v2005
    %v2319 = vunpack.c.h.b16 %v2005
    %v2320 = vunpack.c.l.b16 %v2006
    %v2321 = vunpack.c.h.b16 %v2006
    %v2322 = vunpack.c.l.b16 %v2007
    %v2323 = vunpack.c.h.b16 %v2007
    %v2324 = vunpack.c.l.b16 %v2008
    %v2325 = vunpack.c.h.b16 %v2008
    %v2326 = vunpack.c.l.b16 %v2009
    %v2327 = vunpack.c.h.b16 %v2009
    %v2328 = vunpack.c.l.b16 %v2010
    %v2329 = vunpack.c.h.b16 %v2010
    %v2330 = vunpack.c.l.b16 %v2011
    %v2331 = vunpack.c.h.b16 %v2011
    %v2332 = vunpack.c.l.b16 %v2012
    %v2333 = vunpack.c.h.b16 %v2012
    %v2334 = vunpack.c.l.b16 %v2013
    %v2335 = vunpack.c.h.b16 %v2013
    %v2336 = vunpack.c.l.b16 %v2014
    %v2337 = vunpack.c.h.b16 %v2014
    %v2338 = vunpack.c.l.b16 %v2015
    %v2339 = vunpack.c.h.b16 %v2015
    %v2340 = vunpack.c.l.b16 %v2016
    %v2341 = vunpack.c.h.b16 %v2016
    %v2342 = vunpack.c.l.b16 %v2017
    %v2343 = vunpack.c.h.b16 %v2017
    %v2344 = vunpack.c.l.b16 %v2018
    %v2345 = vunpack.c.h.b16 %v2018
    %v2346 = vunpack.c.l.b16 %v2019
    %v2347 = vunpack.c.h.b16 %v2019
    %v2348 = vunpack.c.l.b16 %v2020
    %v2349 = vunpack.c.h.b16 %v2020
    %v2350 = vunpack.c.l.b16 %v2021
    %v2351 = vunpack.c.h.b16 %v2021
    %v2352 = vunpack.c.l.b16 %v2022
    %v2353 = vunpack.c.h.b16 %v2022
    %v2354 = vunpack.c.l.b16 %v2023
    %v2355 = vunpack.c.h.b16 %v2023
    %v2356 = vunpack.c.l.b16 %v2024
    %v2357 = vunpack.c.h.b16 %v2024
    %v2358 = vunpack.c.l.b16 %v2025
    %v2359 = vunpack.c.h.b16 %v2025
    %v2360 = vunpack.c.l.b16 %v2026
    %v2361 = vunpack.c.h.b16 %v2026
    %v2362 = vunpack.c.l.b16 %v2027
    %v2363 = vunpack.c.h.b16 %v2027
    %v2364 = vunpack.c.l.b16 %v2028
    %v2365 = vunpack.c.h.b16 %v2028
    %v2366 = vunpack.c.l.b16 %v2029
    %v2367 = vunpack.c.h.b16 %v2029
    %v2368 = vunpack.c.l.b16 %v2030
    %v2369 = vunpack.c.h.b16 %v2030
    %v2370 = vunpack.c.l.b16 %v2031
    %v2371 = vunpack.c.h.b16 %v2031
    %v2372 = vunpack.c.l.b16 %v2032
    %v2373 = vunpack.c.h.b16 %v2032
    %v2374 = vunpack.c.l.b16 %v2033
    %v2375 = vunpack.c.h.b16 %v2033
    %v2376 = vunpack.c.l.b16 %v2034
    %v2377 = vunpack.c.h.b16 %v2034
    %v2378 = vunpack.c.l.b16 %v2035
    %v2379 = vunpack.c.h.b16 %v2035
    %v2380 = vunpack.c.l.b16 %v2036
    %v2381 = vunpack.c.h.b16 %v2036
    %v2382 = vunpack.c.l.b16 %v2037
    %v2383 = vunpack.c.h.b16 %v2037
    %v2384 = vunpack.c.l.b16 %v2038
    %v2385 = vunpack.c.h.b16 %v2038
    %v2386 = vunpack.c.l.b16 %v2039
    %v2387 = vunpack.c.h.b16 %v2039
    %v2388 = vunpack.c.l.b16 %v2040
    %v2389 = vunpack.c.h.b16 %v2040
    %v2390 = vunpack.c.l.b16 %v2041
    %v2391 = vunpack.c.h.b16 %v2041
    %v2392 = vunpack.c.l.b16 %v2042
    %v2393 = vunpack.c.h.b16 %v2042
    %v2394 = vunpack.c.l.b16 %v2043
    %v2395 = vunpack.c.h.b16 %v2043
    %v2396 = vunpack.c.l.b16 %v2044
    %v2397 = vunpack.c.h.b16 %v2044
    %v2398 = vunpack.c.l.b16 %v2045
    %v2399 = vunpack.c.h.b16 %v2045
    %v2400 = vunpack.c.l.b16 %v2046
    %v2401 = vunpack.c.h.b16 %v2046
    %v2402 = vunpack.c.l.b16 %v2047
    %v2403 = vunpack.c.h.b16 %v2047
    %v2404 = vunpack.c.l.b16 %v2048
    %v2405 = vunpack.c.h.b16 %v2048
    %v2406 = vunpack.c.l.b16 %v2049
    %v2407 = vunpack.c.h.b16 %v2049
    %v2408 = vunpack.c.l.b16 %v2050
    %v2409 = vunpack.c.h.b16 %v2050
    %v2410 = vunpack.c.l.b16 %v2051
    %v2411 = vunpack.c.h.b16 %v2051
    %v2412 = vunpack.c.l.b16 %v2052
    %v2413 = vunpack.c.h.b16 %v2052
    %v2414 = vunpack.c.l.b16 %v2053
    %v2415 = vunpack.c.h.b16 %v2053
    %v2416 = vunpack.c.l.b16 %v2054
    %v2417 = vunpack.c.h.b16 %v2054
    %v2418 = vunpack.c.l.b16 %v2055
    %v2419 = vunpack.c.h.b16 %v2055
    %v2420 = vunpack.c.l.b16 %v2056
    %v2421 = vunpack.c.h.b16 %v2056
    %v2422 = vunpack.c.l.b16 %v2057
    %v2423 = vunpack.c.h.b16 %v2057
    %v2424 = vunpack.c.l.b16 %v2058
    %v2425 = vunpack.c.h.b16 %v2058
    %v2426 = vunpack.c.l.b16 %v2059
    %v2427 = vunpack.c.h.b16 %v2059
    %v2428 = vunpack.c.l.b16 %v2060
    %v2429 = vunpack.c.h.b16 %v2060
    %v2430 = vunpack.c.l.b16 %v2061
    %v2431 = vunpack.c.h.b16 %v2061
    %v2432 = vunpack.c.l.b16 %v2062
    %v2433 = vunpack.c.h.b16 %v2062
    %v2434 = vunpack.c.l.b16 %v2063
    %v2435 = vunpack.c.h.b16 %v2063
    %v2436 = vunpack.c.l.b16 %v2064
    %v2437 = vunpack.c.h.b16 %v2064
    %v2438 = vunpack.c.l.b16 %v2065
    %v2439 = vunpack.c.h.b16 %v2065
    %v2440 = vunpack.c.l.b16 %v2066
    %v2441 = vunpack.c.h.b16 %v2066
    %v2442 = vunpack.c.l.b16 %v2067
    %v2443 = vunpack.c.h.b16 %v2067
    %v2444 = vunpack.c.l.b16 %v2068
    %v2445 = vunpack.c.h.b16 %v2068
    %v2446 = vunpack.c.l.b16 %v2069
    %v2447 = vunpack.c.h.b16 %v2069
    %v2448 = vunpack.c.l.b16 %v2070
    %v2449 = vunpack.c.h.b16 %v2070
    %v2450 = vunpack.c.l.b16 %v2071
    %v2451 = vunpack.c.h.b16 %v2071
    %v2452 = vunpack.c.l.b16 %v2072
    %v2453 = vunpack.c.h.b16 %v2072
    %v2454 = vunpack.c.l.b16 %v2073
    %v2455 = vunpack.c.h.b16 %v2073
    %v2456 = vunpack.c.l.b16 %v2074
    %v2457 = vunpack.c.h.b16 %v2074
    %v2458 = vunpack.c.l.b16 %v2075
    %v2459 = vunpack.c.h.b16 %v2075
    %v2460 = vpack.c.b16 %v2212, %v2204
    %v2461 = vpack.c.b16 %v2213, %v2205
    %v2462 = vpack.c.b16 %v2214, %v2206
    %v2463 = vpack.c.b16 %v2215, %v2207
    %v2464 = vpack.c.b16 %v2216, %v2208
    %v2465 = vpack.c.b16 %v2217, %v2209
    %v2466 = vpack.c.b16 %v2218, %v2210
    %v2467 = vpack.c.b16 %v2219, %v2211
    %v2468 = vpack.c.b16 %v2228, %v2220
    %v2469 = vpack.c.b16 %v2229, %v2221
    %v2470 = vpack.c.b16 %v2230, %v2222
    %v2471 = vpack.c.b16 %v2231, %v2223
    %v2472 = vpack.c.b16 %v2232, %v2224
    %v2473 = vpack.c.b16 %v2233, %v2225
    %v2474 = vpack.c.b16 %v2234, %v2226
    %v2475 = vpack.c.b16 %v2235, %v2227
    %v2476 = vpack.c.b16 %v2244, %v2236
    %v2477 = vpack.c.b16 %v2245, %v2237
    %v2478 = vpack.c.b16 %v2246, %v2238
    %v2479 = vpack.c.b16 %v2247, %v2239
    %v2480 = vpack.c.b16 %v2248, %v2240
    %v2481 = vpack.c.b16 %v2249, %v2241
    %v2482 = vpack.c.b16 %v2250, %v2242
    %v2483 = vpack.c.b16 %v2251, %v2243
    %v2484 = vpack.c.b16 %v2260, %v2252
    %v2485 = vpack.c.b16 %v2261, %v2253
    %v2486 = vpack.c.b16 %v2262, %v2254
    %v2487 = vpack.c.b16 %v2263, %v2255
    %v2488 = vpack.c.b16 %v2264, %v2256
    %v2489 = vpack.c.b16 %v2265, %v2257
    %v2490 = vpack.c.b16 %v2266, %v2258
    %v2491 = vpack.c.b16 %v2267, %v2259
    %v2492 = vpack.c.b16 %v2276, %v2268
    %v2493 = vpack.c.b16 %v2277, %v2269
    %v2494 = vpack.c.b16 %v2278, %v2270
    %v2495 = vpack.c.b16 %v2279, %v2271
    %v2496 = vpack.c.b16 %v2280, %v2272
    %v2497 = vpack.c.b16 %v2281, %v2273
    %v2498 = vpack.c.b16 %v2282, %v2274
    %v2499 = vpack.c.b16 %v2283, %v2275
    %v2500 = vpack.c.b16 %v2292, %v2284
    %v2501 = vpack.c.b16 %v2293, %v2285
    %v2502 = vpack.c.b16 %v2294, %v2286
    %v2503 = vpack.c.b16 %v2295, %v2287
    %v2504 = vpack.c.b16 %v2296, %v2288
    %v2505 = vpack.c.b16 %v2297, %v2289
    %v2506 = vpack.c.b16 %v2298, %v2290
    %v2507 = vpack.c.b16 %v2299, %v2291
    %v2508 = vpack.c.b16 %v2308, %v2300
    %v2509 = vpack.c.b16 %v2309, %v2301
    %v2510 = vpack.c.b16 %v2310, %v2302
    %v2511 = vpack.c.b16 %v2311, %v2303
    %v2512 = vpack.c.b16 %v2312, %v2304
    %v2513 = vpack.c.b16 %v2313, %v2305
    %v2514 = vpack.c.b16 %v2314, %v2306
    %v2515 = vpack.c.b16 %v2315, %v2307
    %v2516 = vpack.c.b16 %v2324, %v2316
    %v2517 = vpack.c.b16 %v2325, %v2317
    %v2518 = vpack.c.b16 %v2326, %v2318
    %v2519 = vpack.c.b16 %v2327, %v2319
    %v2520 = vpack.c.b16 %v2328, %v2320
    %v2521 = vpack.c.b16 %v2329, %v2321
    %v2522 = vpack.c.b16 %v2330, %v2322
    %v2523 = vpack.c.b16 %v2331, %v2323
    %v2524 = vpack.c.b16 %v2340, %v2332
    %v2525 = vpack.c.b16 %v2341, %v2333
    %v2526 = vpack.c.b16 %v2342, %v2334
    %v2527 = vpack.c.b16 %v2343, %v2335
    %v2528 = vpack.c.b16 %v2344, %v2336
    %v2529 = vpack.c.b16 %v2345, %v2337
    %v2530 = vpack.c.b16 %v2346, %v2338
    %v2531 = vpack.c.b16 %v2347, %v2339
    %v2532 = vpack.c.b16 %v2356, %v2348
    %v2533 = vpack.c.b16 %v2357, %v2349
    %v2534 = vpack.c.b16 %v2358, %v2350
    %v2535 = vpack.c.b16 %v2359, %v2351
    %v2536 = vpack.c.b16 %v2360, %v2352
    %v2537 = vpack.c.b16 %v2361, %v2353
    %v2538 = vpack.c.b16 %v2362, %v2354
    %v2539 = vpack.c.b16 %v2363, %v2355
    %v2540 = vpack.c.b16 %v2372, %v2364
    %v2541 = vpack.c.b16 %v2373, %v2365
    %v2542 = vpack.c.b16 %v2374, %v2366
    %v2543 = vpack.c.b16 %v2375, %v2367
    %v2544 = vpack.c.b16 %v2376, %v2368
    %v2545 = vpack.c.b16 %v2377, %v2369
    %v2546 = vpack.c.b16 %v2378, %v2370
    %v2547 = vpack.c.b16 %v2379, %v2371
    %v2548 = vpack.c.b16 %v2388, %v2380
    %v2549 = vpack.c.b16 %v2389, %v2381
    %v2550 = vpack.c.b16 %v2390, %v2382
    %v2551 = vpack.c.b16 %v2391, %v2383
    %v2552 = vpack.c.b16 %v2392, %v2384
    %v2553 = vpack.c.b16 %v2393, %v2385
    %v2554 = vpack.c.b16 %v2394, %v2386
    %v2555 = vpack.c.b16 %v2395, %v2387
    %v2556 = vpack.c.b16 %v2404, %v2396
    %v2557 = vpack.c.b16 %v2405, %v2397
    %v2558 = vpack.c.b16 %v2406, %v2398
    %v2559 = vpack.c.b16 %v2407, %v2399
    %v2560 = vpack.c.b16 %v2408, %v2400
    %v2561 = vpack.c.b16 %v2409, %v2401
    %v2562 = vpack.c.b16 %v2410, %v2402
    %v2563 = vpack.c.b16 %v2411, %v2403
    %v2564 = vpack.c.b16 %v2420, %v2412
    %v2565 = vpack.c.b16 %v2421, %v2413
    %v2566 = vpack.c.b16 %v2422, %v2414
    %v2567 = vpack.c.b16 %v2423, %v2415
    %v2568 = vpack.c.b16 %v2424, %v2416
    %v2569 = vpack.c.b16 %v2425, %v2417
    %v2570 = vpack.c.b16 %v2426, %v2418
    %v2571 = vpack.c.b16 %v2427, %v2419
    %v2572 = vpack.c.b16 %v2436, %v2428
    %v2573 = vpack.c.b16 %v2437, %v2429
    %v2574 = vpack.c.b16 %v2438, %v2430
    %v2575 = vpack.c.b16 %v2439, %v2431
    %v2576 = vpack.c.b16 %v2440, %v2432
    %v2577 = vpack.c.b16 %v2441, %v2433
    %v2578 = vpack.c.b16 %v2442, %v2434
    %v2579 = vpack.c.b16 %v2443, %v2435
    %v2580 = vpack.c.b16 %v2452, %v2444
    %v2581 = vpack.c.b16 %v2453, %v2445
    %v2582 = vpack.c.b16 %v2454, %v2446
    %v2583 = vpack.c.b16 %v2455, %v2447
    %v2584 = vpack.c.b16 %v2456, %v2448
    %v2585 = vpack.c.b16 %v2457, %v2449
    %v2586 = vpack.c.b16 %v2458, %v2450
    %v2587 = vpack.c.b16 %v2459, %v2451
    %2716 = vmatprep.subr.bf16.mxu0 %v2517
    %2717 = vmatpush1.bf16.msra.mxu0 %v2516
    %2718 = vmatprep.subr.bf16.mxu0 %v2509
    %2719 = vmatpush1.bf16.msra.mxu0 %v2508
    %2720 = vmatprep.subr.bf16.mxu0 %v2501
    %2721 = vmatpush1.bf16.msra.mxu0 %v2500
    %2722 = vmatprep.subr.bf16.mxu0 %v2493
    %2723 = vmatpush1.bf16.msra.mxu0 %v2492
    %2724 = vmatprep.subr.bf16.mxu0 %v2485
    %2725 = vmatpush1.bf16.msra.mxu0 %v2484
    %2726 = vmatprep.subr.bf16.mxu0 %v2477
    %2727 = vmatpush1.bf16.msra.mxu0 %v2476
    %2728 = vmatprep.subr.bf16.mxu0 %v2469
    %2729 = vmatpush1.bf16.msra.mxu0 %v2468
    %2730 = vmatprep.subr.bf16.mxu0 %v2461
    %2731 = vmatpush1.bf16.msra.mxu0 %v2460
    %2732 = vmatprep.subr.bf16.mxu0 %v2581
    %2733 = vmatpush2.bf16.msra.mxu0 %v2580
    %2734 = vmatprep.subr.bf16.mxu0 %v2573
    %2735 = vmatpush2.bf16.msra.mxu0 %v2572
    %2736 = vmatprep.subr.bf16.mxu0 %v2565
    %2737 = vmatpush2.bf16.msra.mxu0 %v2564
    %2738 = vmatprep.subr.bf16.mxu0 %v2557
    %2739 = vmatpush2.bf16.msra.mxu0 %v2556
    %2740 = vmatprep.subr.bf16.mxu0 %v2549
    %2741 = vmatpush2.bf16.msra.mxu0 %v2548
    %2742 = vmatprep.subr.bf16.mxu0 %v2541
    %2743 = vmatpush2.bf16.msra.mxu0 %v2540
    %2744 = vmatprep.subr.bf16.mxu0 %v2533
    %2745 = vmatpush2.bf16.msra.mxu0 %v2532
    %2746 = vmatprep.subr.bf16.mxu0 %v2525
    %2747 = vmatpush2.bf16.msra.mxu0 %v2524
    %2748 = vmatprep.mubr.bf16.mxu0 %v1947
    %2749 = vmatmul.mubr.bf16.gmra.mxu0 %v1947
    %v2750 = vpop.f32.mrf.mxu0
    %v2751 = vadd.f32 0.0, %v2750
    %v2752 = vpop.f32.mrf.mxu0
    %v2753 = vadd.f32 0.0, %v2752
    %v2754 = vpop.f32.mrf.mxu0
    %v2755 = vpop.f32.mrf.mxu0
    %2756 = vdwg.mxu0
    %2757 = vmatprep.subr.bf16.mxu0 %v2519
    %2758 = vmatpush1.bf16.msra.mxu0 %v2518
    %2759 = vmatprep.subr.bf16.mxu0 %v2511
    %2760 = vmatpush1.bf16.msra.mxu0 %v2510
    %2761 = vmatprep.subr.bf16.mxu0 %v2503
    %2762 = vmatpush1.bf16.msra.mxu0 %v2502
    %2763 = vmatprep.subr.bf16.mxu0 %v2495
    %2764 = vmatpush1.bf16.msra.mxu0 %v2494
    %2765 = vmatprep.subr.bf16.mxu0 %v2487
    %2766 = vmatpush1.bf16.msra.mxu0 %v2486
    %2767 = vmatprep.subr.bf16.mxu0 %v2479
    %2768 = vmatpush1.bf16.msra.mxu0 %v2478
    %2769 = vmatprep.subr.bf16.mxu0 %v2471
    %2770 = vmatpush1.bf16.msra.mxu0 %v2470
    %2771 = vmatprep.subr.bf16.mxu0 %v2463
    %2772 = vmatpush1.bf16.msra.mxu0 %v2462
    %2773 = vmatprep.subr.bf16.mxu0 %v2583
    %2774 = vmatpush2.bf16.msra.mxu0 %v2582
    %2775 = vmatprep.subr.bf16.mxu0 %v2575
    %2776 = vmatpush2.bf16.msra.mxu0 %v2574
    %2777 = vmatprep.subr.bf16.mxu0 %v2567
    %2778 = vmatpush2.bf16.msra.mxu0 %v2566
    %2779 = vmatprep.subr.bf16.mxu0 %v2559
    %2780 = vmatpush2.bf16.msra.mxu0 %v2558
    %2781 = vmatprep.subr.bf16.mxu0 %v2551
    %2782 = vmatpush2.bf16.msra.mxu0 %v2550
    %2783 = vmatprep.subr.bf16.mxu0 %v2543
    %2784 = vmatpush2.bf16.msra.mxu0 %v2542
    %2785 = vmatprep.subr.bf16.mxu0 %v2535
    %2786 = vmatpush2.bf16.msra.mxu0 %v2534
    %2787 = vmatprep.subr.bf16.mxu0 %v2527
    %2788 = vmatpush2.bf16.msra.mxu0 %v2526
    %2789 = vmatprep.mubr.bf16.mxu0 %v1947
    %2790 = vmatmul.mubr.bf16.gmra.mxu0 %v1947
    %v2791 = vpop.f32.mrf.mxu0
    %v2792 = vadd.f32 0.0, %v2791
    %v2793 = vpop.f32.mrf.mxu0
    %v2794 = vadd.f32 0.0, %v2793
    %v2795 = vpop.f32.mrf.mxu0
    %v2796 = vpop.f32.mrf.mxu0
    %2797 = vdwg.mxu0
    %2798 = vmatprep.subr.bf16.mxu0 %v2521
    %2799 = vmatpush1.bf16.msra.mxu0 %v2520
    %2800 = vmatprep.subr.bf16.mxu0 %v2513
    %2801 = vmatpush1.bf16.msra.mxu0 %v2512
    %2802 = vmatprep.subr.bf16.mxu0 %v2505
    %2803 = vmatpush1.bf16.msra.mxu0 %v2504
    %2804 = vmatprep.subr.bf16.mxu0 %v2497
    %2805 = vmatpush1.bf16.msra.mxu0 %v2496
    %2806 = vmatprep.subr.bf16.mxu0 %v2489
    %2807 = vmatpush1.bf16.msra.mxu0 %v2488
    %2808 = vmatprep.subr.bf16.mxu0 %v2481
    %2809 = vmatpush1.bf16.msra.mxu0 %v2480
    %2810 = vmatprep.subr.bf16.mxu0 %v2473
    %2811 = vmatpush1.bf16.msra.mxu0 %v2472
    %2812 = vmatprep.subr.bf16.mxu0 %v2465
    %2813 = vmatpush1.bf16.msra.mxu0 %v2464
    %2814 = vmatprep.subr.bf16.mxu0 %v2585
    %2815 = vmatpush2.bf16.msra.mxu0 %v2584
    %2816 = vmatprep.subr.bf16.mxu0 %v2577
    %2817 = vmatpush2.bf16.msra.mxu0 %v2576
    %2818 = vmatprep.subr.bf16.mxu0 %v2569
    %2819 = vmatpush2.bf16.msra.mxu0 %v2568
    %2820 = vmatprep.subr.bf16.mxu0 %v2561
    %2821 = vmatpush2.bf16.msra.mxu0 %v2560
    %2822 = vmatprep.subr.bf16.mxu0 %v2553
    %2823 = vmatpush2.bf16.msra.mxu0 %v2552
    %2824 = vmatprep.subr.bf16.mxu0 %v2545
    %2825 = vmatpush2.bf16.msra.mxu0 %v2544
    %2826 = vmatprep.subr.bf16.mxu0 %v2537
    %2827 = vmatpush2.bf16.msra.mxu0 %v2536
    %2828 = vmatprep.subr.bf16.mxu0 %v2529
    %2829 = vmatpush2.bf16.msra.mxu0 %v2528
    %2830 = vmatprep.mubr.bf16.mxu0 %v1947
    %2831 = vmatmul.mubr.bf16.gmra.mxu0 %v1947
    %v2832 = vpop.f32.mrf.mxu0
    %v2833 = vadd.f32 0.0, %v2832
    %v2834 = vpop.f32.mrf.mxu0
    %v2835 = vadd.f32 0.0, %v2834
    %v2836 = vpop.f32.mrf.mxu0
    %v2837 = vpop.f32.mrf.mxu0
    %2838 = vdwg.mxu0
    %2839 = vmatprep.subr.bf16.mxu0 %v2523
    %2840 = vmatpush1.bf16.msra.mxu0 %v2522
    %2841 = vmatprep.subr.bf16.mxu0 %v2515
    %2842 = vmatpush1.bf16.msra.mxu0 %v2514
    %2843 = vmatprep.subr.bf16.mxu0 %v2507
    %2844 = vmatpush1.bf16.msra.mxu0 %v2506
    %2845 = vmatprep.subr.bf16.mxu0 %v2499
    %2846 = vmatpush1.bf16.msra.mxu0 %v2498
    %2847 = vmatprep.subr.bf16.mxu0 %v2491
    %2848 = vmatpush1.bf16.msra.mxu0 %v2490
    %2849 = vmatprep.subr.bf16.mxu0 %v2483
    %2850 = vmatpush1.bf16.msra.mxu0 %v2482
    %2851 = vmatprep.subr.bf16.mxu0 %v2475
    %2852 = vmatpush1.bf16.msra.mxu0 %v2474
    %2853 = vmatprep.subr.bf16.mxu0 %v2467
    %2854 = vmatpush1.bf16.msra.mxu0 %v2466
    %2855 = vmatprep.subr.bf16.mxu0 %v2587
    %2856 = vmatpush2.bf16.msra.mxu0 %v2586
    %2857 = vmatprep.subr.bf16.mxu0 %v2579
    %2858 = vmatpush2.bf16.msra.mxu0 %v2578
    %2859 = vmatprep.subr.bf16.mxu0 %v2571
    %2860 = vmatpush2.bf16.msra.mxu0 %v2570
    %2861 = vmatprep.subr.bf16.mxu0 %v2563
    %2862 = vmatpush2.bf16.msra.mxu0 %v2562
    %2863 = vmatprep.subr.bf16.mxu0 %v2555
    %2864 = vmatpush2.bf16.msra.mxu0 %v2554
    %2865 = vmatprep.subr.bf16.mxu0 %v2547
    %2866 = vmatpush2.bf16.msra.mxu0 %v2546
    %2867 = vmatprep.subr.bf16.mxu0 %v2539
    %2868 = vmatpush2.bf16.msra.mxu0 %v2538
    %2869 = vmatprep.subr.bf16.mxu0 %v2531
    %2870 = vmatpush2.bf16.msra.mxu0 %v2530
    %2871 = vmatprep.mubr.bf16.mxu0 %v1947
    %2872 = vmatmul.mubr.bf16.gmra.mxu0 %v1947
    %v2873 = vpop.f32.mrf.mxu0
    %v2874 = vadd.f32 0.0, %v2873
    %v2875 = vpop.f32.mrf.mxu0
    %v2876 = vadd.f32 0.0, %v2875
    %v2877 = vpop.f32.mrf.mxu0
    %v2878 = vpop.f32.mrf.mxu0
    %2879 = vdwg.mxu0
    %v2880 = vld [vmem:[#allocation2] sm:$0xff]
    %v2881 = vld [vmem:[#allocation2 + $0x8] sm:$0xff]
    %v2882 = vld [vmem:[#allocation2 + $0x10] sm:$0xff]
    %v2883 = vld [vmem:[#allocation2 + $0x18] sm:$0xff]
    %v2884 = vadd.f32 %v2751, %v2880
    %v2885 = vadd.f32 %v2753, %v2881
    %v2886 = vadd.f32 %v2792, %v2882
    %v2887 = vadd.f32 %v2794, %v2883
    %v2888 = vld [vmem:[#allocation2 + $0x1e0] sm:$0xff]
    %v2889 = vld [vmem:[#allocation2 + $0x1e8] sm:$0xff]
    %v2890 = vld [vmem:[#allocation2 + $0x1f0] sm:$0xff]
    %v2891 = vld [vmem:[#allocation2 + $0x1f8] sm:$0xff]
    %v2892 = vadd.f32 %v2833, %v2888
    %v2893 = vadd.f32 %v2835, %v2889
    %v2894 = vadd.f32 %v2874, %v2890
    %v2895 = vadd.f32 %v2876, %v2891
    %v2896 = vxor.u32 %v2884, 2147483648
    %v2897 = vmul.f32 %v2896, 1.442695
    %v2898 = vpow.pop %v2897
    %v2899 = vadd.f32 %v2898, 1.0
    %v2900 = vrcp.pop %v2899
    %v2901 = vmul.f32 1.0, %v2900
    %v2902 = vxor.u32 %v2885, 2147483648
    %v2903 = vmul.f32 %v2902, 1.442695
    %v2904 = vpow.pop %v2903
    %v2905 = vadd.f32 %v2904, 1.0
    %v2906 = vrcp.pop %v2905
    %v2907 = vmul.f32 1.0, %v2906
    %v2908 = vtanh.pop %v2886
    %v2909 = vxor.u32 %v2887, 2147483648
    %v2910 = vmul.f32 %v2909, 1.442695
    %v2911 = vpow.pop %v2910
    %v2912 = vadd.f32 %v2911, 1.0
    %v2913 = vrcp.pop %v2912
    %v2914 = vmul.f32 1.0, %v2913
    %v2915 = vmul.f32 %v2907, 0.0
    %v2916 = vmul.f32 %v2901, %v2908
    %v2917 = vadd.f32 %v2915, %v2916
    %v2918 = vtanh.pop %v2917
    %v2919 = vmul.f32 %v2914, %v2918
    %v2920 = vxor.u32 %v2892, 2147483648
    %v2921 = vmul.f32 %v2920, 1.442695
    %v2922 = vpow.pop %v2921
    %v2923 = vadd.f32 %v2922, 1.0
    %v2924 = vrcp.pop %v2923
    %v2925 = vmul.f32 1.0, %v2924
    %v2926 = vxor.u32 %v2893, 2147483648
    %v2927 = vmul.f32 %v2926, 1.442695
    %v2928 = vpow.pop %v2927
    %v2929 = vadd.f32 %v2928, 1.0
    %v2930 = vrcp.pop %v2929
    %v2931 = vmul.f32 1.0, %v2930
    %v2932 = vtanh.pop %v2894
    %v2933 = vxor.u32 %v2895, 2147483648
    %v2934 = vmul.f32 %v2933, 1.442695
    %v2935 = vpow.pop %v2934
    %v2936 = vadd.f32 %v2935, 1.0
    %v2937 = vrcp.pop %v2936
    %v2938 = vmul.f32 1.0, %v2937
    %v2939 = vmul.f32 %v2931, 0.0
    %v2940 = vmul.f32 %v2925, %v2932
    %v2941 = vadd.f32 %v2939, %v2940
    %v2942 = vtanh.pop %v2941
    %v2943 = vmul.f32 %v2938, %v2942
    %v2944 = vpack.c.bf16 %v2919, %v2919
    %v2945 = vpack.c.bf16 %v2943, %v2943
    %2946 = vmatprep.subr.bf16.mxu0 %v2517
    %2947 = vmatpush1.bf16.msra.mxu0 %v2516
    %2948 = vmatprep.subr.bf16.mxu0 %v2509
    %2949 = vmatpush1.bf16.msra.mxu0 %v2508
    %2950 = vmatprep.subr.bf16.mxu0 %v2501
    %2951 = vmatpush1.bf16.msra.mxu0 %v2500
    %2952 = vmatprep.subr.bf16.mxu0 %v2493
    %2953 = vmatpush1.bf16.msra.mxu0 %v2492
    %2954 = vmatprep.subr.bf16.mxu0 %v2485
    %2955 = vmatpush1.bf16.msra.mxu0 %v2484
    %2956 = vmatprep.subr.bf16.mxu0 %v2477
    %2957 = vmatpush1.bf16.msra.mxu0 %v2476
    %2958 = vmatprep.subr.bf16.mxu0 %v2469
    %2959 = vmatpush1.bf16.msra.mxu0 %v2468
    %2960 = vmatprep.subr.bf16.mxu0 %v2461
    %2961 = vmatpush1.bf16.msra.mxu0 %v2460
    %2962 = vmatprep.subr.bf16.mxu0 %v2581
    %2963 = vmatpush2.bf16.msra.mxu0 %v2580
    %2964 = vmatprep.subr.bf16.mxu0 %v2573
    %2965 = vmatpush2.bf16.msra.mxu0 %v2572
    %2966 = vmatprep.subr.bf16.mxu0 %v2565
    %2967 = vmatpush2.bf16.msra.mxu0 %v2564
    %2968 = vmatprep.subr.bf16.mxu0 %v2557
    %2969 = vmatpush2.bf16.msra.mxu0 %v2556
    %2970 = vmatprep.subr.bf16.mxu0 %v2549
    %2971 = vmatpush2.bf16.msra.mxu0 %v2548
    %2972 = vmatprep.subr.bf16.mxu0 %v2541
    %2973 = vmatpush2.bf16.msra.mxu0 %v2540
    %2974 = vmatprep.subr.bf16.mxu0 %v2533
    %2975 = vmatpush2.bf16.msra.mxu0 %v2532
    %2976 = vmatprep.subr.bf16.mxu0 %v2525
    %2977 = vmatpush2.bf16.msra.mxu0 %v2524
    %2978 = vmatprep.mubr.bf16.mxu0 %v2945
    %2979 = vmatmul.mubr.bf16.gmra.mxu0 %v2944
    %v2980 = vpop.f32.mrf.mxu0
    %v2981 = vadd.f32 0.0, %v2980
    %v2982 = vpop.f32.mrf.mxu0
    %v2983 = vadd.f32 0.0, %v2982
    %v2984 = vpop.f32.mrf.mxu0
    %v2985 = vpop.f32.mrf.mxu0
    %2986 = vdwg.mxu0
    %2987 = vmatprep.subr.bf16.mxu0 %v2519
    %2988 = vmatpush1.bf16.msra.mxu0 %v2518
    %2989 = vmatprep.subr.bf16.mxu0 %v2511
    %2990 = vmatpush1.bf16.msra.mxu0 %v2510
    %2991 = vmatprep.subr.bf16.mxu0 %v2503
    %2992 = vmatpush1.bf16.msra.mxu0 %v2502
    %2993 = vmatprep.subr.bf16.mxu0 %v2495
    %2994 = vmatpush1.bf16.msra.mxu0 %v2494
    %2995 = vmatprep.subr.bf16.mxu0 %v2487
    %2996 = vmatpush1.bf16.msra.mxu0 %v2486
    %2997 = vmatprep.subr.bf16.mxu0 %v2479
    %2998 = vmatpush1.bf16.msra.mxu0 %v2478
    %2999 = vmatprep.subr.bf16.mxu0 %v2471
    %3000 = vmatpush1.bf16.msra.mxu0 %v2470
    %3001 = vmatprep.subr.bf16.mxu0 %v2463
    %3002 = vmatpush1.bf16.msra.mxu0 %v2462
    %3003 = vmatprep.subr.bf16.mxu0 %v2583
    %3004 = vmatpush2.bf16.msra.mxu0 %v2582
    %3005 = vmatprep.subr.bf16.mxu0 %v2575
    %3006 = vmatpush2.bf16.msra.mxu0 %v2574
    %3007 = vmatprep.subr.bf16.mxu0 %v2567
    %3008 = vmatpush2.bf16.msra.mxu0 %v2566
    %3009 = vmatprep.subr.bf16.mxu0 %v2559
    %3010 = vmatpush2.bf16.msra.mxu0 %v2558
    %3011 = vmatprep.subr.bf16.mxu0 %v2551
    %3012 = vmatpush2.bf16.msra.mxu0 %v2550
    %3013 = vmatprep.subr.bf16.mxu0 %v2543
    %3014 = vmatpush2.bf16.msra.mxu0 %v2542
    %3015 = vmatprep.subr.bf16.mxu0 %v2535
    %3016 = vmatpush2.bf16.msra.mxu0 %v2534
    %3017 = vmatprep.subr.bf16.mxu0 %v2527
    %3018 = vmatpush2.bf16.msra.mxu0 %v2526
    %3019 = vmatprep.mubr.bf16.mxu0 %v2945
    %3020 = vmatmul.mubr.bf16.gmra.mxu0 %v2944
    %v3021 = vpop.f32.mrf.mxu0
    %v3022 = vadd.f32 0.0, %v3021
    %v3023 = vpop.f32.mrf.mxu0
    %v3024 = vadd.f32 0.0, %v3023
    %v3025 = vpop.f32.mrf.mxu0
    %v3026 = vpop.f32.mrf.mxu0
    %3027 = vdwg.mxu0
    %3028 = vmatprep.subr.bf16.mxu0 %v2521
    %3029 = vmatpush1.bf16.msra.mxu0 %v2520
    %3030 = vmatprep.subr.bf16.mxu0 %v2513
    %3031 = vmatpush1.bf16.msra.mxu0 %v2512
    %3032 = vmatprep.subr.bf16.mxu0 %v2505
    %3033 = vmatpush1.bf16.msra.mxu0 %v2504
    %3034 = vmatprep.subr.bf16.mxu0 %v2497
    %3035 = vmatpush1.bf16.msra.mxu0 %v2496
    %3036 = vmatprep.subr.bf16.mxu0 %v2489
    %3037 = vmatpush1.bf16.msra.mxu0 %v2488
    %3038 = vmatprep.subr.bf16.mxu0 %v2481
    %3039 = vmatpush1.bf16.msra.mxu0 %v2480
    %3040 = vmatprep.subr.bf16.mxu0 %v2473
    %3041 = vmatpush1.bf16.msra.mxu0 %v2472
    %3042 = vmatprep.subr.bf16.mxu0 %v2465
    %3043 = vmatpush1.bf16.msra.mxu0 %v2464
    %3044 = vmatprep.subr.bf16.mxu0 %v2585
    %3045 = vmatpush2.bf16.msra.mxu0 %v2584
    %3046 = vmatprep.subr.bf16.mxu0 %v2577
    %3047 = vmatpush2.bf16.msra.mxu0 %v2576
    %3048 = vmatprep.subr.bf16.mxu0 %v2569
    %3049 = vmatpush2.bf16.msra.mxu0 %v2568
    %3050 = vmatprep.subr.bf16.mxu0 %v2561
    %3051 = vmatpush2.bf16.msra.mxu0 %v2560
    %3052 = vmatprep.subr.bf16.mxu0 %v2553
    %3053 = vmatpush2.bf16.msra.mxu0 %v2552
    %3054 = vmatprep.subr.bf16.mxu0 %v2545
    %3055 = vmatpush2.bf16.msra.mxu0 %v2544
    %3056 = vmatprep.subr.bf16.mxu0 %v2537
    %3057 = vmatpush2.bf16.msra.mxu0 %v2536
    %3058 = vmatprep.subr.bf16.mxu0 %v2529
    %3059 = vmatpush2.bf16.msra.mxu0 %v2528
    %3060 = vmatprep.mubr.bf16.mxu0 %v2945
    %3061 = vmatmul.mubr.bf16.gmra.mxu0 %v2944
    %v3062 = vpop.f32.mrf.mxu0
    %v3063 = vadd.f32 0.0, %v3062
    %v3064 = vpop.f32.mrf.mxu0
    %v3065 = vadd.f32 0.0, %v3064
    %v3066 = vpop.f32.mrf.mxu0
    %v3067 = vpop.f32.mrf.mxu0
    %3068 = vdwg.mxu0
    %3069 = vmatprep.subr.bf16.mxu0 %v2523
    %3070 = vmatpush1.bf16.msra.mxu0 %v2522
    %3071 = vmatprep.subr.bf16.mxu0 %v2515
    %3072 = vmatpush1.bf16.msra.mxu0 %v2514
    %3073 = vmatprep.subr.bf16.mxu0 %v2507
    %3074 = vmatpush1.bf16.msra.mxu0 %v2506
    %3075 = vmatprep.subr.bf16.mxu0 %v2499
    %3076 = vmatpush1.bf16.msra.mxu0 %v2498
    %3077 = vmatprep.subr.bf16.mxu0 %v2491
    %3078 = vmatpush1.bf16.msra.mxu0 %v2490
    %3079 = vmatprep.subr.bf16.mxu0 %v2483
    %3080 = vmatpush1.bf16.msra.mxu0 %v2482
    %3081 = vmatprep.subr.bf16.mxu0 %v2475
    %3082 = vmatpush1.bf16.msra.mxu0 %v2474
    %3083 = vmatprep.subr.bf16.mxu0 %v2467
    %3084 = vmatpush1.bf16.msra.mxu0 %v2466
    %3085 = vmatprep.subr.bf16.mxu0 %v2587
    %3086 = vmatpush2.bf16.msra.mxu0 %v2586
    %3087 = vmatprep.subr.bf16.mxu0 %v2579
    %3088 = vmatpush2.bf16.msra.mxu0 %v2578
    %3089 = vmatprep.subr.bf16.mxu0 %v2571
    %3090 = vmatpush2.bf16.msra.mxu0 %v2570
    %3091 = vmatprep.subr.bf16.mxu0 %v2563
    %3092 = vmatpush2.bf16.msra.mxu0 %v2562
    %3093 = vmatprep.subr.bf16.mxu0 %v2555
    %3094 = vmatpush2.bf16.msra.mxu0 %v2554
    %3095 = vmatprep.subr.bf16.mxu0 %v2547
    %3096 = vmatpush2.bf16.msra.mxu0 %v2546
    %3097 = vmatprep.subr.bf16.mxu0 %v2539
    %3098 = vmatpush2.bf16.msra.mxu0 %v2538
    %3099 = vmatprep.subr.bf16.mxu0 %v2531
    %3100 = vmatpush2.bf16.msra.mxu0 %v2530
    %3101 = vmatprep.mubr.bf16.mxu0 %v2945
    %3102 = vmatmul.mubr.bf16.gmra.mxu0 %v2944
    %v3103 = vpop.f32.mrf.mxu0
    %v3104 = vadd.f32 0.0, %v3103
    %v3105 = vpop.f32.mrf.mxu0
    %v3106 = vadd.f32 0.0, %v3105
    %v3107 = vpop.f32.mrf.mxu0
    %v3108 = vpop.f32.mrf.mxu0
    %3109 = vdwg.mxu0
    %v3110 = vld [vmem:[#allocation2 + $0x40] sm:$0xff]
    %v3111 = vld [vmem:[#allocation2 + $0x48] sm:$0xff]
    %v3112 = vld [vmem:[#allocation2 + $0x50] sm:$0xff]
    %v3113 = vld [vmem:[#allocation2 + $0x58] sm:$0xff]
    %v3114 = vadd.f32 %v2981, %v3110
    %v3115 = vadd.f32 %v2983, %v3111
    %v3116 = vadd.f32 %v3022, %v3112
    %v3117 = vadd.f32 %v3024, %v3113
    %v3118 = vld [vmem:[#allocation2 + $0x1a0] sm:$0xff]
    %v3119 = vld [vmem:[#allocation2 + $0x1a8] sm:$0xff]
    %v3120 = vld [vmem:[#allocation2 + $0x1b0] sm:$0xff]
    %v3121 = vld [vmem:[#allocation2 + $0x1b8] sm:$0xff]
    %v3122 = vadd.f32 %v3063, %v3118
    %v3123 = vadd.f32 %v3065, %v3119
    %v3124 = vadd.f32 %v3104, %v3120
    %v3125 = vadd.f32 %v3106, %v3121
    %v3126 = vxor.u32 %v3114, 2147483648
    %v3127 = vmul.f32 %v3126, 1.442695
    %v3128 = vpow.pop %v3127
    %v3129 = vadd.f32 %v3128, 1.0
    %v3130 = vrcp.pop %v3129
    %v3131 = vmul.f32 1.0, %v3130
    %v3132 = vxor.u32 %v3115, 2147483648
    %v3133 = vmul.f32 %v3132, 1.442695
    %v3134 = vpow.pop %v3133
    %v3135 = vadd.f32 %v3134, 1.0
    %v3136 = vrcp.pop %v3135
    %v3137 = vmul.f32 1.0, %v3136
    %v3138 = vtanh.pop %v3116
    %v3139 = vxor.u32 %v3117, 2147483648
    %v3140 = vmul.f32 %v3139, 1.442695
    %v3141 = vpow.pop %v3140
    %v3142 = vadd.f32 %v3141, 1.0
    %v3143 = vrcp.pop %v3142
    %v3144 = vmul.f32 1.0, %v3143
    %v3145 = vmul.f32 %v3137, %v2917
    %v3146 = vmul.f32 %v3131, %v3138
    %v3147 = vadd.f32 %v3145, %v3146
    %v3148 = vtanh.pop %v3147
    %v3149 = vmul.f32 %v3144, %v3148
    %v3150 = vxor.u32 %v3122, 2147483648
    %v3151 = vmul.f32 %v3150, 1.442695
    %v3152 = vpow.pop %v3151
    %v3153 = vadd.f32 %v3152, 1.0
    %v3154 = vrcp.pop %v3153
    %v3155 = vmul.f32 1.0, %v3154
    %v3156 = vxor.u32 %v3123, 2147483648
    %v3157 = vmul.f32 %v3156, 1.442695
    %v3158 = vpow.pop %v3157
    %v3159 = vadd.f32 %v3158, 1.0
    %v3160 = vrcp.pop %v3159
    %v3161 = vmul.f32 1.0, %v3160
    %v3162 = vtanh.pop %v3124
    %v3163 = vxor.u32 %v3125, 2147483648
    %v3164 = vmul.f32 %v3163, 1.442695
    %v3165 = vpow.pop %v3164
    %v3166 = vadd.f32 %v3165, 1.0
    %v3167 = vrcp.pop %v3166
    %v3168 = vmul.f32 1.0, %v3167
    %v3169 = vmul.f32 %v3161, %v2941
    %v3170 = vmul.f32 %v3155, %v3162
    %v3171 = vadd.f32 %v3169, %v3170
    %v3172 = vtanh.pop %v3171
    %v3173 = vmul.f32 %v3168, %v3172
    %v3174 = vpack.c.bf16 %v3149, %v3149
    %v3175 = vpack.c.bf16 %v3173, %v3173
    %3176 = vmatprep.subr.bf16.mxu0 %v2517
    %3177 = vmatpush1.bf16.msra.mxu0 %v2516
    %3178 = vmatprep.subr.bf16.mxu0 %v2509
    %3179 = vmatpush1.bf16.msra.mxu0 %v2508
    %3180 = vmatprep.subr.bf16.mxu0 %v2501
    %3181 = vmatpush1.bf16.msra.mxu0 %v2500
    %3182 = vmatprep.subr.bf16.mxu0 %v2493
    %3183 = vmatpush1.bf16.msra.mxu0 %v2492
    %3184 = vmatprep.subr.bf16.mxu0 %v2485
    %3185 = vmatpush1.bf16.msra.mxu0 %v2484
    %3186 = vmatprep.subr.bf16.mxu0 %v2477
    %3187 = vmatpush1.bf16.msra.mxu0 %v2476
    %3188 = vmatprep.subr.bf16.mxu0 %v2469
    %3189 = vmatpush1.bf16.msra.mxu0 %v2468
    %3190 = vmatprep.subr.bf16.mxu0 %v2461
    %3191 = vmatpush1.bf16.msra.mxu0 %v2460
    %3192 = vmatprep.subr.bf16.mxu0 %v2581
    %3193 = vmatpush2.bf16.msra.mxu0 %v2580
    %3194 = vmatprep.subr.bf16.mxu0 %v2573
    %3195 = vmatpush2.bf16.msra.mxu0 %v2572
    %3196 = vmatprep.subr.bf16.mxu0 %v2565
    %3197 = vmatpush2.bf16.msra.mxu0 %v2564
    %3198 = vmatprep.subr.bf16.mxu0 %v2557
    %3199 = vmatpush2.bf16.msra.mxu0 %v2556
    %3200 = vmatprep.subr.bf16.mxu0 %v2549
    %3201 = vmatpush2.bf16.msra.mxu0 %v2548
    %3202 = vmatprep.subr.bf16.mxu0 %v2541
    %3203 = vmatpush2.bf16.msra.mxu0 %v2540
    %3204 = vmatprep.subr.bf16.mxu0 %v2533
    %3205 = vmatpush2.bf16.msra.mxu0 %v2532
    %3206 = vmatprep.subr.bf16.mxu0 %v2525
    %3207 = vmatpush2.bf16.msra.mxu0 %v2524
    %3208 = vmatprep.mubr.bf16.mxu0 %v3175
    %3209 = vmatmul.mubr.bf16.gmra.mxu0 %v3174
    %v3210 = vpop.f32.mrf.mxu0
    %v3211 = vadd.f32 0.0, %v3210
    %v3212 = vpop.f32.mrf.mxu0
    %v3213 = vadd.f32 0.0, %v3212
    %v3214 = vpop.f32.mrf.mxu0
    %v3215 = vpop.f32.mrf.mxu0
    %3216 = vdwg.mxu0
    %3217 = vmatprep.subr.bf16.mxu0 %v2519
    %3218 = vmatpush1.bf16.msra.mxu0 %v2518
    %3219 = vmatprep.subr.bf16.mxu0 %v2511
    %3220 = vmatpush1.bf16.msra.mxu0 %v2510
    %3221 = vmatprep.subr.bf16.mxu0 %v2503
    %3222 = vmatpush1.bf16.msra.mxu0 %v2502
    %3223 = vmatprep.subr.bf16.mxu0 %v2495
    %3224 = vmatpush1.bf16.msra.mxu0 %v2494
    %3225 = vmatprep.subr.bf16.mxu0 %v2487
    %3226 = vmatpush1.bf16.msra.mxu0 %v2486
    %3227 = vmatprep.subr.bf16.mxu0 %v2479
    %3228 = vmatpush1.bf16.msra.mxu0 %v2478
    %3229 = vmatprep.subr.bf16.mxu0 %v2471
    %3230 = vmatpush1.bf16.msra.mxu0 %v2470
    %3231 = vmatprep.subr.bf16.mxu0 %v2463
    %3232 = vmatpush1.bf16.msra.mxu0 %v2462
    %3233 = vmatprep.subr.bf16.mxu0 %v2583
    %3234 = vmatpush2.bf16.msra.mxu0 %v2582
    %3235 = vmatprep.subr.bf16.mxu0 %v2575
    %3236 = vmatpush2.bf16.msra.mxu0 %v2574
    %3237 = vmatprep.subr.bf16.mxu0 %v2567
    %3238 = vmatpush2.bf16.msra.mxu0 %v2566
    %3239 = vmatprep.subr.bf16.mxu0 %v2559
    %3240 = vmatpush2.bf16.msra.mxu0 %v2558
    %3241 = vmatprep.subr.bf16.mxu0 %v2551
    %3242 = vmatpush2.bf16.msra.mxu0 %v2550
    %3243 = vmatprep.subr.bf16.mxu0 %v2543
    %3244 = vmatpush2.bf16.msra.mxu0 %v2542
    %3245 = vmatprep.subr.bf16.mxu0 %v2535
    %3246 = vmatpush2.bf16.msra.mxu0 %v2534
    %3247 = vmatprep.subr.bf16.mxu0 %v2527
    %3248 = vmatpush2.bf16.msra.mxu0 %v2526
    %3249 = vmatprep.mubr.bf16.mxu0 %v3175
    %3250 = vmatmul.mubr.bf16.gmra.mxu0 %v3174
    %v3251 = vpop.f32.mrf.mxu0
    %v3252 = vadd.f32 0.0, %v3251
    %v3253 = vpop.f32.mrf.mxu0
    %v3254 = vadd.f32 0.0, %v3253
    %v3255 = vpop.f32.mrf.mxu0
    %v3256 = vpop.f32.mrf.mxu0
    %3257 = vdwg.mxu0
    %3258 = vmatprep.subr.bf16.mxu0 %v2521
    %3259 = vmatpush1.bf16.msra.mxu0 %v2520
    %3260 = vmatprep.subr.bf16.mxu0 %v2513
    %3261 = vmatpush1.bf16.msra.mxu0 %v2512
    %3262 = vmatprep.subr.bf16.mxu0 %v2505
    %3263 = vmatpush1.bf16.msra.mxu0 %v2504
    %3264 = vmatprep.subr.bf16.mxu0 %v2497
    %3265 = vmatpush1.bf16.msra.mxu0 %v2496
    %3266 = vmatprep.subr.bf16.mxu0 %v2489
    %3267 = vmatpush1.bf16.msra.mxu0 %v2488
    %3268 = vmatprep.subr.bf16.mxu0 %v2481
    %3269 = vmatpush1.bf16.msra.mxu0 %v2480
    %3270 = vmatprep.subr.bf16.mxu0 %v2473
    %3271 = vmatpush1.bf16.msra.mxu0 %v2472
    %3272 = vmatprep.subr.bf16.mxu0 %v2465
    %3273 = vmatpush1.bf16.msra.mxu0 %v2464
    %3274 = vmatprep.subr.bf16.mxu0 %v2585
    %3275 = vmatpush2.bf16.msra.mxu0 %v2584
    %3276 = vmatprep.subr.bf16.mxu0 %v2577
    %3277 = vmatpush2.bf16.msra.mxu0 %v2576
    %3278 = vmatprep.subr.bf16.mxu0 %v2569
    %3279 = vmatpush2.bf16.msra.mxu0 %v2568
    %3280 = vmatprep.subr.bf16.mxu0 %v2561
    %3281 = vmatpush2.bf16.msra.mxu0 %v2560
    %3282 = vmatprep.subr.bf16.mxu0 %v2553
    %3283 = vmatpush2.bf16.msra.mxu0 %v2552
    %3284 = vmatprep.subr.bf16.mxu0 %v2545
    %3285 = vmatpush2.bf16.msra.mxu0 %v2544
    %3286 = vmatprep.subr.bf16.mxu0 %v2537
    %3287 = vmatpush2.bf16.msra.mxu0 %v2536
    %3288 = vmatprep.subr.bf16.mxu0 %v2529
    %3289 = vmatpush2.bf16.msra.mxu0 %v2528
    %3290 = vmatprep.mubr.bf16.mxu0 %v3175
    %3291 = vmatmul.mubr.bf16.gmra.mxu0 %v3174
    %v3292 = vpop.f32.mrf.mxu0
    %v3293 = vadd.f32 0.0, %v3292
    %v3294 = vpop.f32.mrf.mxu0
    %v3295 = vadd.f32 0.0, %v3294
    %v3296 = vpop.f32.mrf.mxu0
    %v3297 = vpop.f32.mrf.mxu0
    %3298 = vdwg.mxu0
    %3299 = vmatprep.subr.bf16.mxu0 %v2523
    %3300 = vmatpush1.bf16.msra.mxu0 %v2522
    %3301 = vmatprep.subr.bf16.mxu0 %v2515
    %3302 = vmatpush1.bf16.msra.mxu0 %v2514
    %3303 = vmatprep.subr.bf16.mxu0 %v2507
    %3304 = vmatpush1.bf16.msra.mxu0 %v2506
    %3305 = vmatprep.subr.bf16.mxu0 %v2499
    %3306 = vmatpush1.bf16.msra.mxu0 %v2498
    %3307 = vmatprep.subr.bf16.mxu0 %v2491
    %3308 = vmatpush1.bf16.msra.mxu0 %v2490
    %3309 = vmatprep.subr.bf16.mxu0 %v2483
    %3310 = vmatpush1.bf16.msra.mxu0 %v2482
    %3311 = vmatprep.subr.bf16.mxu0 %v2475
    %3312 = vmatpush1.bf16.msra.mxu0 %v2474
    %3313 = vmatprep.subr.bf16.mxu0 %v2467
    %3314 = vmatpush1.bf16.msra.mxu0 %v2466
    %3315 = vmatprep.subr.bf16.mxu0 %v2587
    %3316 = vmatpush2.bf16.msra.mxu0 %v2586
    %3317 = vmatprep.subr.bf16.mxu0 %v2579
    %3318 = vmatpush2.bf16.msra.mxu0 %v2578
    %3319 = vmatprep.subr.bf16.mxu0 %v2571
    %3320 = vmatpush2.bf16.msra.mxu0 %v2570
    %3321 = vmatprep.subr.bf16.mxu0 %v2563
    %3322 = vmatpush2.bf16.msra.mxu0 %v2562
    %3323 = vmatprep.subr.bf16.mxu0 %v2555
    %3324 = vmatpush2.bf16.msra.mxu0 %v2554
    %3325 = vmatprep.subr.bf16.mxu0 %v2547
    %3326 = vmatpush2.bf16.msra.mxu0 %v2546
    %3327 = vmatprep.subr.bf16.mxu0 %v2539
    %3328 = vmatpush2.bf16.msra.mxu0 %v2538
    %3329 = vmatprep.subr.bf16.mxu0 %v2531
    %3330 = vmatpush2.bf16.msra.mxu0 %v2530
    %3331 = vmatprep.mubr.bf16.mxu0 %v3175
    %3332 = vmatmul.mubr.bf16.gmra.mxu0 %v3174
    %v3333 = vpop.f32.mrf.mxu0
    %v3334 = vadd.f32 0.0, %v3333
    %v3335 = vpop.f32.mrf.mxu0
    %v3336 = vadd.f32 0.0, %v3335
    %v3337 = vpop.f32.mrf.mxu0
    %v3338 = vpop.f32.mrf.mxu0
    %3339 = vdwg.mxu0
    %v3340 = vld [vmem:[#allocation2 + $0x80] sm:$0xff]
    %v3341 = vld [vmem:[#allocation2 + $0x88] sm:$0xff]
    %v3342 = vld [vmem:[#allocation2 + $0x90] sm:$0xff]
    %v3343 = vld [vmem:[#allocation2 + $0x98] sm:$0xff]
    %v3344 = vadd.f32 %v3211, %v3340
    %v3345 = vadd.f32 %v3213, %v3341
    %v3346 = vadd.f32 %v3252, %v3342
    %v3347 = vadd.f32 %v3254, %v3343
    %v3348 = vld [vmem:[#allocation2 + $0x160] sm:$0xff]
    %v3349 = vld [vmem:[#allocation2 + $0x168] sm:$0xff]
    %v3350 = vld [vmem:[#allocation2 + $0x170] sm:$0xff]
    %v3351 = vld [vmem:[#allocation2 + $0x178] sm:$0xff]
    %v3352 = vadd.f32 %v3293, %v3348
    %v3353 = vadd.f32 %v3295, %v3349
    %v3354 = vadd.f32 %v3334, %v3350
    %v3355 = vadd.f32 %v3336, %v3351
    %v3356 = vxor.u32 %v3344, 2147483648
    %v3357 = vmul.f32 %v3356, 1.442695
    %v3358 = vpow.pop %v3357
    %v3359 = vadd.f32 %v3358, 1.0
    %v3360 = vrcp.pop %v3359
    %v3361 = vmul.f32 1.0, %v3360
    %v3362 = vxor.u32 %v3345, 2147483648
    %v3363 = vmul.f32 %v3362, 1.442695
    %v3364 = vpow.pop %v3363
    %v3365 = vadd.f32 %v3364, 1.0
    %v3366 = vrcp.pop %v3365
    %v3367 = vmul.f32 1.0, %v3366
    %v3368 = vtanh.pop %v3346
    %v3369 = vxor.u32 %v3347, 2147483648
    %v3370 = vmul.f32 %v3369, 1.442695
    %v3371 = vpow.pop %v3370
    %v3372 = vadd.f32 %v3371, 1.0
    %v3373 = vrcp.pop %v3372
    %v3374 = vmul.f32 1.0, %v3373
    %v3375 = vmul.f32 %v3367, %v3147
    %v3376 = vmul.f32 %v3361, %v3368
    %v3377 = vadd.f32 %v3375, %v3376
    %v3378 = vtanh.pop %v3377
    %v3379 = vmul.f32 %v3374, %v3378
    %v3380 = vxor.u32 %v3352, 2147483648
    %v3381 = vmul.f32 %v3380, 1.442695
    %v3382 = vpow.pop %v3381
    %v3383 = vadd.f32 %v3382, 1.0
    %v3384 = vrcp.pop %v3383
    %v3385 = vmul.f32 1.0, %v3384
    %v3386 = vxor.u32 %v3353, 2147483648
    %v3387 = vmul.f32 %v3386, 1.442695
    %v3388 = vpow.pop %v3387
    %v3389 = vadd.f32 %v3388, 1.0
    %v3390 = vrcp.pop %v3389
    %v3391 = vmul.f32 1.0, %v3390
    %v3392 = vtanh.pop %v3354
    %v3393 = vxor.u32 %v3355, 2147483648
    %v3394 = vmul.f32 %v3393, 1.442695
    %v3395 = vpow.pop %v3394
    %v3396 = vadd.f32 %v3395, 1.0
    %v3397 = vrcp.pop %v3396
    %v3398 = vmul.f32 1.0, %v3397
    %v3399 = vmul.f32 %v3391, %v3171
    %v3400 = vmul.f32 %v3385, %v3392
    %v3401 = vadd.f32 %v3399, %v3400
    %v3402 = vtanh.pop %v3401
    %v3403 = vmul.f32 %v3398, %v3402
    %v3404 = vpack.c.bf16 %v3379, %v3379
    %v3405 = vpack.c.bf16 %v3403, %v3403
    %3406 = vmatprep.subr.bf16.mxu0 %v2517
    %3407 = vmatpush1.bf16.msra.mxu0 %v2516
    %3408 = vmatprep.subr.bf16.mxu0 %v2509
    %3409 = vmatpush1.bf16.msra.mxu0 %v2508
    %3410 = vmatprep.subr.bf16.mxu0 %v2501
    %3411 = vmatpush1.bf16.msra.mxu0 %v2500
    %3412 = vmatprep.subr.bf16.mxu0 %v2493
    %3413 = vmatpush1.bf16.msra.mxu0 %v2492
    %3414 = vmatprep.subr.bf16.mxu0 %v2485
    %3415 = vmatpush1.bf16.msra.mxu0 %v2484
    %3416 = vmatprep.subr.bf16.mxu0 %v2477
    %3417 = vmatpush1.bf16.msra.mxu0 %v2476
    %3418 = vmatprep.subr.bf16.mxu0 %v2469
    %3419 = vmatpush1.bf16.msra.mxu0 %v2468
    %3420 = vmatprep.subr.bf16.mxu0 %v2461
    %3421 = vmatpush1.bf16.msra.mxu0 %v2460
    %3422 = vmatprep.subr.bf16.mxu0 %v2581
    %3423 = vmatpush2.bf16.msra.mxu0 %v2580
    %3424 = vmatprep.subr.bf16.mxu0 %v2573
    %3425 = vmatpush2.bf16.msra.mxu0 %v2572
    %3426 = vmatprep.subr.bf16.mxu0 %v2565
    %3427 = vmatpush2.bf16.msra.mxu0 %v2564
    %3428 = vmatprep.subr.bf16.mxu0 %v2557
    %3429 = vmatpush2.bf16.msra.mxu0 %v2556
    %3430 = vmatprep.subr.bf16.mxu0 %v2549
    %3431 = vmatpush2.bf16.msra.mxu0 %v2548
    %3432 = vmatprep.subr.bf16.mxu0 %v2541
    %3433 = vmatpush2.bf16.msra.mxu0 %v2540
    %3434 = vmatprep.subr.bf16.mxu0 %v2533
    %3435 = vmatpush2.bf16.msra.mxu0 %v2532
    %3436 = vmatprep.subr.bf16.mxu0 %v2525
    %3437 = vmatpush2.bf16.msra.mxu0 %v2524
    %3438 = vmatprep.mubr.bf16.mxu0 %v3405
    %3439 = vmatmul.mubr.bf16.gmra.mxu0 %v3404
    %v3440 = vpop.f32.mrf.mxu0
    %v3441 = vadd.f32 0.0, %v3440
    %v3442 = vpop.f32.mrf.mxu0
    %v3443 = vadd.f32 0.0, %v3442
    %v3444 = vpop.f32.mrf.mxu0
    %v3445 = vpop.f32.mrf.mxu0
    %3446 = vdwg.mxu0
    %3447 = vmatprep.subr.bf16.mxu0 %v2519
    %3448 = vmatpush1.bf16.msra.mxu0 %v2518
    %3449 = vmatprep.subr.bf16.mxu0 %v2511
    %3450 = vmatpush1.bf16.msra.mxu0 %v2510
    %3451 = vmatprep.subr.bf16.mxu0 %v2503
    %3452 = vmatpush1.bf16.msra.mxu0 %v2502
    %3453 = vmatprep.subr.bf16.mxu0 %v2495
    %3454 = vmatpush1.bf16.msra.mxu0 %v2494
    %3455 = vmatprep.subr.bf16.mxu0 %v2487
    %3456 = vmatpush1.bf16.msra.mxu0 %v2486
    %3457 = vmatprep.subr.bf16.mxu0 %v2479
    %3458 = vmatpush1.bf16.msra.mxu0 %v2478
    %3459 = vmatprep.subr.bf16.mxu0 %v2471
    %3460 = vmatpush1.bf16.msra.mxu0 %v2470
    %3461 = vmatprep.subr.bf16.mxu0 %v2463
    %3462 = vmatpush1.bf16.msra.mxu0 %v2462
    %3463 = vmatprep.subr.bf16.mxu0 %v2583
    %3464 = vmatpush2.bf16.msra.mxu0 %v2582
    %3465 = vmatprep.subr.bf16.mxu0 %v2575
    %3466 = vmatpush2.bf16.msra.mxu0 %v2574
    %3467 = vmatprep.subr.bf16.mxu0 %v2567
    %3468 = vmatpush2.bf16.msra.mxu0 %v2566
    %3469 = vmatprep.subr.bf16.mxu0 %v2559
    %3470 = vmatpush2.bf16.msra.mxu0 %v2558
    %3471 = vmatprep.subr.bf16.mxu0 %v2551
    %3472 = vmatpush2.bf16.msra.mxu0 %v2550
    %3473 = vmatprep.subr.bf16.mxu0 %v2543
    %3474 = vmatpush2.bf16.msra.mxu0 %v2542
    %3475 = vmatprep.subr.bf16.mxu0 %v2535
    %3476 = vmatpush2.bf16.msra.mxu0 %v2534
    %3477 = vmatprep.subr.bf16.mxu0 %v2527
    %3478 = vmatpush2.bf16.msra.mxu0 %v2526
    %3479 = vmatprep.mubr.bf16.mxu0 %v3405
    %3480 = vmatmul.mubr.bf16.gmra.mxu0 %v3404
    %v3481 = vpop.f32.mrf.mxu0
    %v3482 = vadd.f32 0.0, %v3481
    %v3483 = vpop.f32.mrf.mxu0
    %v3484 = vadd.f32 0.0, %v3483
    %v3485 = vpop.f32.mrf.mxu0
    %v3486 = vpop.f32.mrf.mxu0
    %3487 = vdwg.mxu0
    %3488 = vmatprep.subr.bf16.mxu0 %v2521
    %3489 = vmatpush1.bf16.msra.mxu0 %v2520
    %3490 = vmatprep.subr.bf16.mxu0 %v2513
    %3491 = vmatpush1.bf16.msra.mxu0 %v2512
    %3492 = vmatprep.subr.bf16.mxu0 %v2505
    %3493 = vmatpush1.bf16.msra.mxu0 %v2504
    %3494 = vmatprep.subr.bf16.mxu0 %v2497
    %3495 = vmatpush1.bf16.msra.mxu0 %v2496
    %3496 = vmatprep.subr.bf16.mxu0 %v2489
    %3497 = vmatpush1.bf16.msra.mxu0 %v2488
    %3498 = vmatprep.subr.bf16.mxu0 %v2481
    %3499 = vmatpush1.bf16.msra.mxu0 %v2480
    %3500 = vmatprep.subr.bf16.mxu0 %v2473
    %3501 = vmatpush1.bf16.msra.mxu0 %v2472
    %3502 = vmatprep.subr.bf16.mxu0 %v2465
    %3503 = vmatpush1.bf16.msra.mxu0 %v2464
    %3504 = vmatprep.subr.bf16.mxu0 %v2585
    %3505 = vmatpush2.bf16.msra.mxu0 %v2584
    %3506 = vmatprep.subr.bf16.mxu0 %v2577
    %3507 = vmatpush2.bf16.msra.mxu0 %v2576
    %3508 = vmatprep.subr.bf16.mxu0 %v2569
    %3509 = vmatpush2.bf16.msra.mxu0 %v2568
    %3510 = vmatprep.subr.bf16.mxu0 %v2561
    %3511 = vmatpush2.bf16.msra.mxu0 %v2560
    %3512 = vmatprep.subr.bf16.mxu0 %v2553
    %3513 = vmatpush2.bf16.msra.mxu0 %v2552
    %3514 = vmatprep.subr.bf16.mxu0 %v2545
    %3515 = vmatpush2.bf16.msra.mxu0 %v2544
    %3516 = vmatprep.subr.bf16.mxu0 %v2537
    %3517 = vmatpush2.bf16.msra.mxu0 %v2536
    %3518 = vmatprep.subr.bf16.mxu0 %v2529
    %3519 = vmatpush2.bf16.msra.mxu0 %v2528
    %3520 = vmatprep.mubr.bf16.mxu0 %v3405
    %3521 = vmatmul.mubr.bf16.gmra.mxu0 %v3404
    %v3522 = vpop.f32.mrf.mxu0
    %v3523 = vadd.f32 0.0, %v3522
    %v3524 = vpop.f32.mrf.mxu0
    %v3525 = vadd.f32 0.0, %v3524
    %v3526 = vpop.f32.mrf.mxu0
    %v3527 = vpop.f32.mrf.mxu0
    %3528 = vdwg.mxu0
    %3529 = vmatprep.subr.bf16.mxu0 %v2523
    %3530 = vmatpush1.bf16.msra.mxu0 %v2522
    %3531 = vmatprep.subr.bf16.mxu0 %v2515
    %3532 = vmatpush1.bf16.msra.mxu0 %v2514
    %3533 = vmatprep.subr.bf16.mxu0 %v2507
    %3534 = vmatpush1.bf16.msra.mxu0 %v2506
    %3535 = vmatprep.subr.bf16.mxu0 %v2499
    %3536 = vmatpush1.bf16.msra.mxu0 %v2498
    %3537 = vmatprep.subr.bf16.mxu0 %v2491
    %3538 = vmatpush1.bf16.msra.mxu0 %v2490
    %3539 = vmatprep.subr.bf16.mxu0 %v2483
    %3540 = vmatpush1.bf16.msra.mxu0 %v2482
    %3541 = vmatprep.subr.bf16.mxu0 %v2475
    %3542 = vmatpush1.bf16.msra.mxu0 %v2474
    %3543 = vmatprep.subr.bf16.mxu0 %v2467
    %3544 = vmatpush1.bf16.msra.mxu0 %v2466
    %3545 = vmatprep.subr.bf16.mxu0 %v2587
    %3546 = vmatpush2.bf16.msra.mxu0 %v2586
    %3547 = vmatprep.subr.bf16.mxu0 %v2579
    %3548 = vmatpush2.bf16.msra.mxu0 %v2578
    %3549 = vmatprep.subr.bf16.mxu0 %v2571
    %3550 = vmatpush2.bf16.msra.mxu0 %v2570
    %3551 = vmatprep.subr.bf16.mxu0 %v2563
    %3552 = vmatpush2.bf16.msra.mxu0 %v2562
    %3553 = vmatprep.subr.bf16.mxu0 %v2555
    %3554 = vmatpush2.bf16.msra.mxu0 %v2554
    %3555 = vmatprep.subr.bf16.mxu0 %v2547
    %3556 = vmatpush2.bf16.msra.mxu0 %v2546
    %3557 = vmatprep.subr.bf16.mxu0 %v2539
    %3558 = vmatpush2.bf16.msra.mxu0 %v2538
    %3559 = vmatprep.subr.bf16.mxu0 %v2531
    %3560 = vmatpush2.bf16.msra.mxu0 %v2530
    %3561 = vmatprep.mubr.bf16.mxu0 %v3405
    %3562 = vmatmul.mubr.bf16.gmra.mxu0 %v3404
    %v3563 = vpop.f32.mrf.mxu0
    %v3564 = vadd.f32 0.0, %v3563
    %v3565 = vpop.f32.mrf.mxu0
    %v3566 = vadd.f32 0.0, %v3565
    %v3567 = vpop.f32.mrf.mxu0
    %v3568 = vpop.f32.mrf.mxu0
    %3569 = vdwg.mxu0
    %v3570 = vld [vmem:[#allocation2 + $0xc0] sm:$0xff]
    %v3571 = vld [vmem:[#allocation2 + $0xc8] sm:$0xff]
    %v3572 = vld [vmem:[#allocation2 + $0xd0] sm:$0xff]
    %v3573 = vld [vmem:[#allocation2 + $0xd8] sm:$0xff]
    %v3574 = vadd.f32 %v3441, %v3570
    %v3575 = vadd.f32 %v3443, %v3571
    %v3576 = vadd.f32 %v3482, %v3572
    %v3577 = vadd.f32 %v3484, %v3573
    %v3578 = vld [vmem:[#allocation2 + $0x120] sm:$0xff]
    %v3579 = vld [vmem:[#allocation2 + $0x128] sm:$0xff]
    %v3580 = vld [vmem:[#allocation2 + $0x130] sm:$0xff]
    %v3581 = vld [vmem:[#allocation2 + $0x138] sm:$0xff]
    %v3582 = vadd.f32 %v3523, %v3578
    %v3583 = vadd.f32 %v3525, %v3579
    %v3584 = vadd.f32 %v3564, %v3580
    %v3585 = vadd.f32 %v3566, %v3581
    %v3586 = vxor.u32 %v3574, 2147483648
    %v3587 = vmul.f32 %v3586, 1.442695
    %v3588 = vpow.pop %v3587
    %v3589 = vadd.f32 %v3588, 1.0
    %v3590 = vrcp.pop %v3589
    %v3591 = vmul.f32 1.0, %v3590
    %v3592 = vxor.u32 %v3575, 2147483648
    %v3593 = vmul.f32 %v3592, 1.442695
    %v3594 = vpow.pop %v3593
    %v3595 = vadd.f32 %v3594, 1.0
    %v3596 = vrcp.pop %v3595
    %v3597 = vmul.f32 1.0, %v3596
    %v3598 = vtanh.pop %v3576
    %v3599 = vxor.u32 %v3577, 2147483648
    %v3600 = vmul.f32 %v3599, 1.442695
    %v3601 = vpow.pop %v3600
    %v3602 = vadd.f32 %v3601, 1.0
    %v3603 = vrcp.pop %v3602
    %v3604 = vmul.f32 1.0, %v3603
    %v3605 = vmul.f32 %v3597, %v3377
    %v3606 = vmul.f32 %v3591, %v3598
    %v3607 = vadd.f32 %v3605, %v3606
    %v3608 = vtanh.pop %v3607
    %v3609 = vmul.f32 %v3604, %v3608
    %v3610 = vxor.u32 %v3582, 2147483648
    %v3611 = vmul.f32 %v3610, 1.442695
    %v3612 = vpow.pop %v3611
    %v3613 = vadd.f32 %v3612, 1.0
    %v3614 = vrcp.pop %v3613
    %v3615 = vmul.f32 1.0, %v3614
    %v3616 = vxor.u32 %v3583, 2147483648
    %v3617 = vmul.f32 %v3616, 1.442695
    %v3618 = vpow.pop %v3617
    %v3619 = vadd.f32 %v3618, 1.0
    %v3620 = vrcp.pop %v3619
    %v3621 = vmul.f32 1.0, %v3620
    %v3622 = vtanh.pop %v3584
    %v3623 = vxor.u32 %v3585, 2147483648
    %v3624 = vmul.f32 %v3623, 1.442695
    %v3625 = vpow.pop %v3624
    %v3626 = vadd.f32 %v3625, 1.0
    %v3627 = vrcp.pop %v3626
    %v3628 = vmul.f32 1.0, %v3627
    %v3629 = vmul.f32 %v3621, %v3401
    %v3630 = vmul.f32 %v3615, %v3622
    %v3631 = vadd.f32 %v3629, %v3630
    %v3632 = vtanh.pop %v3631
    %v3633 = vmul.f32 %v3628, %v3632
    %v3634 = vpack.c.bf16 %v3609, %v3609
    %v3635 = vpack.c.bf16 %v3633, %v3633
    %3636 = vmatprep.subr.bf16.mxu0 %v2517
    %3637 = vmatpush1.bf16.msra.mxu0 %v2516
    %3638 = vmatprep.subr.bf16.mxu0 %v2509
    %3639 = vmatpush1.bf16.msra.mxu0 %v2508
    %3640 = vmatprep.subr.bf16.mxu0 %v2501
    %3641 = vmatpush1.bf16.msra.mxu0 %v2500
    %3642 = vmatprep.subr.bf16.mxu0 %v2493
    %3643 = vmatpush1.bf16.msra.mxu0 %v2492
    %3644 = vmatprep.subr.bf16.mxu0 %v2485
    %3645 = vmatpush1.bf16.msra.mxu0 %v2484
    %3646 = vmatprep.subr.bf16.mxu0 %v2477
    %3647 = vmatpush1.bf16.msra.mxu0 %v2476
    %3648 = vmatprep.subr.bf16.mxu0 %v2469
    %3649 = vmatpush1.bf16.msra.mxu0 %v2468
    %3650 = vmatprep.subr.bf16.mxu0 %v2461
    %3651 = vmatpush1.bf16.msra.mxu0 %v2460
    %3652 = vmatprep.subr.bf16.mxu0 %v2581
    %3653 = vmatpush2.bf16.msra.mxu0 %v2580
    %3654 = vmatprep.subr.bf16.mxu0 %v2573
    %3655 = vmatpush2.bf16.msra.mxu0 %v2572
    %3656 = vmatprep.subr.bf16.mxu0 %v2565
    %3657 = vmatpush2.bf16.msra.mxu0 %v2564
    %3658 = vmatprep.subr.bf16.mxu0 %v2557
    %3659 = vmatpush2.bf16.msra.mxu0 %v2556
    %3660 = vmatprep.subr.bf16.mxu0 %v2549
    %3661 = vmatpush2.bf16.msra.mxu0 %v2548
    %3662 = vmatprep.subr.bf16.mxu0 %v2541
    %3663 = vmatpush2.bf16.msra.mxu0 %v2540
    %3664 = vmatprep.subr.bf16.mxu0 %v2533
    %3665 = vmatpush2.bf16.msra.mxu0 %v2532
    %3666 = vmatprep.subr.bf16.mxu0 %v2525
    %3667 = vmatpush2.bf16.msra.mxu0 %v2524
    %3668 = vmatprep.mubr.bf16.mxu0 %v3635
    %3669 = vmatmul.mubr.bf16.gmra.mxu0 %v3634
    %v3670 = vpop.f32.mrf.mxu0
    %v3671 = vadd.f32 0.0, %v3670
    %v3672 = vpop.f32.mrf.mxu0
    %v3673 = vadd.f32 0.0, %v3672
    %v3674 = vpop.f32.mrf.mxu0
    %v3675 = vpop.f32.mrf.mxu0
    %3676 = vdwg.mxu0
    %3677 = vmatprep.subr.bf16.mxu0 %v2519
    %3678 = vmatpush1.bf16.msra.mxu0 %v2518
    %3679 = vmatprep.subr.bf16.mxu0 %v2511
    %3680 = vmatpush1.bf16.msra.mxu0 %v2510
    %3681 = vmatprep.subr.bf16.mxu0 %v2503
    %3682 = vmatpush1.bf16.msra.mxu0 %v2502
    %3683 = vmatprep.subr.bf16.mxu0 %v2495
    %3684 = vmatpush1.bf16.msra.mxu0 %v2494
    %3685 = vmatprep.subr.bf16.mxu0 %v2487
    %3686 = vmatpush1.bf16.msra.mxu0 %v2486
    %3687 = vmatprep.subr.bf16.mxu0 %v2479
    %3688 = vmatpush1.bf16.msra.mxu0 %v2478
    %3689 = vmatprep.subr.bf16.mxu0 %v2471
    %3690 = vmatpush1.bf16.msra.mxu0 %v2470
    %3691 = vmatprep.subr.bf16.mxu0 %v2463
    %3692 = vmatpush1.bf16.msra.mxu0 %v2462
    %3693 = vmatprep.subr.bf16.mxu0 %v2583
    %3694 = vmatpush2.bf16.msra.mxu0 %v2582
    %3695 = vmatprep.subr.bf16.mxu0 %v2575
    %3696 = vmatpush2.bf16.msra.mxu0 %v2574
    %3697 = vmatprep.subr.bf16.mxu0 %v2567
    %3698 = vmatpush2.bf16.msra.mxu0 %v2566
    %3699 = vmatprep.subr.bf16.mxu0 %v2559
    %3700 = vmatpush2.bf16.msra.mxu0 %v2558
    %3701 = vmatprep.subr.bf16.mxu0 %v2551
    %3702 = vmatpush2.bf16.msra.mxu0 %v2550
    %3703 = vmatprep.subr.bf16.mxu0 %v2543
    %3704 = vmatpush2.bf16.msra.mxu0 %v2542
    %3705 = vmatprep.subr.bf16.mxu0 %v2535
    %3706 = vmatpush2.bf16.msra.mxu0 %v2534
    %3707 = vmatprep.subr.bf16.mxu0 %v2527
    %3708 = vmatpush2.bf16.msra.mxu0 %v2526
    %3709 = vmatprep.mubr.bf16.mxu0 %v3635
    %3710 = vmatmul.mubr.bf16.gmra.mxu0 %v3634
    %v3711 = vpop.f32.mrf.mxu0
    %v3712 = vadd.f32 0.0, %v3711
    %v3713 = vpop.f32.mrf.mxu0
    %v3714 = vadd.f32 0.0, %v3713
    %v3715 = vpop.f32.mrf.mxu0
    %v3716 = vpop.f32.mrf.mxu0
    %3717 = vdwg.mxu0
    %3718 = vmatprep.subr.bf16.mxu0 %v2521
    %3719 = vmatpush1.bf16.msra.mxu0 %v2520
    %3720 = vmatprep.subr.bf16.mxu0 %v2513
    %3721 = vmatpush1.bf16.msra.mxu0 %v2512
    %3722 = vmatprep.subr.bf16.mxu0 %v2505
    %3723 = vmatpush1.bf16.msra.mxu0 %v2504
    %3724 = vmatprep.subr.bf16.mxu0 %v2497
    %3725 = vmatpush1.bf16.msra.mxu0 %v2496
    %3726 = vmatprep.subr.bf16.mxu0 %v2489
    %3727 = vmatpush1.bf16.msra.mxu0 %v2488
    %3728 = vmatprep.subr.bf16.mxu0 %v2481
    %3729 = vmatpush1.bf16.msra.mxu0 %v2480
    %3730 = vmatprep.subr.bf16.mxu0 %v2473
    %3731 = vmatpush1.bf16.msra.mxu0 %v2472
    %3732 = vmatprep.subr.bf16.mxu0 %v2465
    %3733 = vmatpush1.bf16.msra.mxu0 %v2464
    %3734 = vmatprep.subr.bf16.mxu0 %v2585
    %3735 = vmatpush2.bf16.msra.mxu0 %v2584
    %3736 = vmatprep.subr.bf16.mxu0 %v2577
    %3737 = vmatpush2.bf16.msra.mxu0 %v2576
    %3738 = vmatprep.subr.bf16.mxu0 %v2569
    %3739 = vmatpush2.bf16.msra.mxu0 %v2568
    %3740 = vmatprep.subr.bf16.mxu0 %v2561
    %3741 = vmatpush2.bf16.msra.mxu0 %v2560
    %3742 = vmatprep.subr.bf16.mxu0 %v2553
    %3743 = vmatpush2.bf16.msra.mxu0 %v2552
    %3744 = vmatprep.subr.bf16.mxu0 %v2545
    %3745 = vmatpush2.bf16.msra.mxu0 %v2544
    %3746 = vmatprep.subr.bf16.mxu0 %v2537
    %3747 = vmatpush2.bf16.msra.mxu0 %v2536
    %3748 = vmatprep.subr.bf16.mxu0 %v2529
    %3749 = vmatpush2.bf16.msra.mxu0 %v2528
    %3750 = vmatprep.mubr.bf16.mxu0 %v3635
    %3751 = vmatmul.mubr.bf16.gmra.mxu0 %v3634
    %v3752 = vpop.f32.mrf.mxu0
    %v3753 = vadd.f32 0.0, %v3752
    %v3754 = vpop.f32.mrf.mxu0
    %v3755 = vadd.f32 0.0, %v3754
    %v3756 = vpop.f32.mrf.mxu0
    %v3757 = vpop.f32.mrf.mxu0
    %3758 = vdwg.mxu0
    %3759 = vmatprep.subr.bf16.mxu0 %v2523
    %3760 = vmatpush1.bf16.msra.mxu0 %v2522
    %3761 = vmatprep.subr.bf16.mxu0 %v2515
    %3762 = vmatpush1.bf16.msra.mxu0 %v2514
    %3763 = vmatprep.subr.bf16.mxu0 %v2507
    %3764 = vmatpush1.bf16.msra.mxu0 %v2506
    %3765 = vmatprep.subr.bf16.mxu0 %v2499
    %3766 = vmatpush1.bf16.msra.mxu0 %v2498
    %3767 = vmatprep.subr.bf16.mxu0 %v2491
    %3768 = vmatpush1.bf16.msra.mxu0 %v2490
    %3769 = vmatprep.subr.bf16.mxu0 %v2483
    %3770 = vmatpush1.bf16.msra.mxu0 %v2482
    %3771 = vmatprep.subr.bf16.mxu0 %v2475
    %3772 = vmatpush1.bf16.msra.mxu0 %v2474
    %3773 = vmatprep.subr.bf16.mxu0 %v2467
    %3774 = vmatpush1.bf16.msra.mxu0 %v2466
    %3775 = vmatprep.subr.bf16.mxu0 %v2587
    %3776 = vmatpush2.bf16.msra.mxu0 %v2586
    %3777 = vmatprep.subr.bf16.mxu0 %v2579
    %3778 = vmatpush2.bf16.msra.mxu0 %v2578
    %3779 = vmatprep.subr.bf16.mxu0 %v2571
    %3780 = vmatpush2.bf16.msra.mxu0 %v2570
    %3781 = vmatprep.subr.bf16.mxu0 %v2563
    %3782 = vmatpush2.bf16.msra.mxu0 %v2562
    %3783 = vmatprep.subr.bf16.mxu0 %v2555
    %3784 = vmatpush2.bf16.msra.mxu0 %v2554
    %3785 = vmatprep.subr.bf16.mxu0 %v2547
    %3786 = vmatpush2.bf16.msra.mxu0 %v2546
    %3787 = vmatprep.subr.bf16.mxu0 %v2539
    %3788 = vmatpush2.bf16.msra.mxu0 %v2538
    %3789 = vmatprep.subr.bf16.mxu0 %v2531
    %3790 = vmatpush2.bf16.msra.mxu0 %v2530
    %3791 = vmatprep.mubr.bf16.mxu0 %v3635
    %3792 = vmatmul.mubr.bf16.gmra.mxu0 %v3634
    %v3793 = vpop.f32.mrf.mxu0
    %v3794 = vadd.f32 0.0, %v3793
    %v3795 = vpop.f32.mrf.mxu0
    %v3796 = vadd.f32 0.0, %v3795
    %v3797 = vpop.f32.mrf.mxu0
    %v3798 = vpop.f32.mrf.mxu0
    %3799 = vdwg.mxu0
    %v3800 = vld [vmem:[#allocation2 + $0x100] sm:$0xff]
    %v3801 = vld [vmem:[#allocation2 + $0x108] sm:$0xff]
    %v3802 = vld [vmem:[#allocation2 + $0x110] sm:$0xff]
    %v3803 = vld [vmem:[#allocation2 + $0x118] sm:$0xff]
    %v3804 = vadd.f32 %v3671, %v3800
    %v3805 = vadd.f32 %v3673, %v3801
    %v3806 = vadd.f32 %v3712, %v3802
    %v3807 = vadd.f32 %v3714, %v3803
    %v3808 = vld [vmem:[#allocation2 + $0xe0] sm:$0xff]
    %v3809 = vld [vmem:[#allocation2 + $0xe8] sm:$0xff]
    %v3810 = vld [vmem:[#allocation2 + $0xf0] sm:$0xff]
    %v3811 = vld [vmem:[#allocation2 + $0xf8] sm:$0xff]
    %v3812 = vadd.f32 %v3753, %v3808
    %v3813 = vadd.f32 %v3755, %v3809
    %v3814 = vadd.f32 %v3794, %v3810
    %v3815 = vadd.f32 %v3796, %v3811
    %v3816 = vxor.u32 %v3804, 2147483648
    %v3817 = vmul.f32 %v3816, 1.442695
    %v3818 = vpow.pop %v3817
    %v3819 = vadd.f32 %v3818, 1.0
    %v3820 = vrcp.pop %v3819
    %v3821 = vmul.f32 1.0, %v3820
    %v3822 = vxor.u32 %v3805, 2147483648
    %v3823 = vmul.f32 %v3822, 1.442695
    %v3824 = vpow.pop %v3823
    %v3825 = vadd.f32 %v3824, 1.0
    %v3826 = vrcp.pop %v3825
    %v3827 = vmul.f32 1.0, %v3826
    %v3828 = vtanh.pop %v3806
    %v3829 = vxor.u32 %v3807, 2147483648
    %v3830 = vmul.f32 %v3829, 1.442695
    %v3831 = vpow.pop %v3830
    %v3832 = vadd.f32 %v3831, 1.0
    %v3833 = vrcp.pop %v3832
    %v3834 = vmul.f32 1.0, %v3833
    %v3835 = vmul.f32 %v3827, %v3607
    %v3836 = vmul.f32 %v3821, %v3828
    %v3837 = vadd.f32 %v3835, %v3836
    %v3838 = vtanh.pop %v3837
    %v3839 = vmul.f32 %v3834, %v3838
    %v3840 = vxor.u32 %v3812, 2147483648
    %v3841 = vmul.f32 %v3840, 1.442695
    %v3842 = vpow.pop %v3841
    %v3843 = vadd.f32 %v3842, 1.0
    %v3844 = vrcp.pop %v3843
    %v3845 = vmul.f32 1.0, %v3844
    %v3846 = vxor.u32 %v3813, 2147483648
    %v3847 = vmul.f32 %v3846, 1.442695
    %v3848 = vpow.pop %v3847
    %v3849 = vadd.f32 %v3848, 1.0
    %v3850 = vrcp.pop %v3849
    %v3851 = vmul.f32 1.0, %v3850
    %v3852 = vtanh.pop %v3814
    %v3853 = vxor.u32 %v3815, 2147483648
    %v3854 = vmul.f32 %v3853, 1.442695
    %v3855 = vpow.pop %v3854
    %v3856 = vadd.f32 %v3855, 1.0
    %v3857 = vrcp.pop %v3856
    %v3858 = vmul.f32 1.0, %v3857
    %v3859 = vmul.f32 %v3851, %v3631
    %v3860 = vmul.f32 %v3845, %v3852
    %v3861 = vadd.f32 %v3859, %v3860
    %v3862 = vtanh.pop %v3861
    %v3863 = vmul.f32 %v3858, %v3862
    %v3864 = vpack.c.bf16 %v3839, %v3839
    %v3865 = vpack.c.bf16 %v3863, %v3863
    %3866 = vmatprep.subr.bf16.mxu0 %v2517
    %3867 = vmatpush1.bf16.msra.mxu0 %v2516
    %3868 = vmatprep.subr.bf16.mxu0 %v2509
    %3869 = vmatpush1.bf16.msra.mxu0 %v2508
    %3870 = vmatprep.subr.bf16.mxu0 %v2501
    %3871 = vmatpush1.bf16.msra.mxu0 %v2500
    %3872 = vmatprep.subr.bf16.mxu0 %v2493
    %3873 = vmatpush1.bf16.msra.mxu0 %v2492
    %3874 = vmatprep.subr.bf16.mxu0 %v2485
    %3875 = vmatpush1.bf16.msra.mxu0 %v2484
    %3876 = vmatprep.subr.bf16.mxu0 %v2477
    %3877 = vmatpush1.bf16.msra.mxu0 %v2476
    %3878 = vmatprep.subr.bf16.mxu0 %v2469
    %3879 = vmatpush1.bf16.msra.mxu0 %v2468
    %3880 = vmatprep.subr.bf16.mxu0 %v2461
    %3881 = vmatpush1.bf16.msra.mxu0 %v2460
    %3882 = vmatprep.subr.bf16.mxu0 %v2581
    %3883 = vmatpush2.bf16.msra.mxu0 %v2580
    %3884 = vmatprep.subr.bf16.mxu0 %v2573
    %3885 = vmatpush2.bf16.msra.mxu0 %v2572
    %3886 = vmatprep.subr.bf16.mxu0 %v2565
    %3887 = vmatpush2.bf16.msra.mxu0 %v2564
    %3888 = vmatprep.subr.bf16.mxu0 %v2557
    %3889 = vmatpush2.bf16.msra.mxu0 %v2556
    %3890 = vmatprep.subr.bf16.mxu0 %v2549
    %3891 = vmatpush2.bf16.msra.mxu0 %v2548
    %3892 = vmatprep.subr.bf16.mxu0 %v2541
    %3893 = vmatpush2.bf16.msra.mxu0 %v2540
    %3894 = vmatprep.subr.bf16.mxu0 %v2533
    %3895 = vmatpush2.bf16.msra.mxu0 %v2532
    %3896 = vmatprep.subr.bf16.mxu0 %v2525
    %3897 = vmatpush2.bf16.msra.mxu0 %v2524
    %3898 = vmatprep.mubr.bf16.mxu0 %v3865
    %3899 = vmatmul.mubr.bf16.gmra.mxu0 %v3864
    %v3900 = vpop.f32.mrf.mxu0
    %v3901 = vadd.f32 0.0, %v3900
    %v3902 = vpop.f32.mrf.mxu0
    %v3903 = vadd.f32 0.0, %v3902
    %v3904 = vpop.f32.mrf.mxu0
    %v3905 = vpop.f32.mrf.mxu0
    %3906 = vdwg.mxu0
    %3907 = vmatprep.subr.bf16.mxu0 %v2519
    %3908 = vmatpush1.bf16.msra.mxu0 %v2518
    %3909 = vmatprep.subr.bf16.mxu0 %v2511
    %3910 = vmatpush1.bf16.msra.mxu0 %v2510
    %3911 = vmatprep.subr.bf16.mxu0 %v2503
    %3912 = vmatpush1.bf16.msra.mxu0 %v2502
    %3913 = vmatprep.subr.bf16.mxu0 %v2495
    %3914 = vmatpush1.bf16.msra.mxu0 %v2494
    %3915 = vmatprep.subr.bf16.mxu0 %v2487
    %3916 = vmatpush1.bf16.msra.mxu0 %v2486
    %3917 = vmatprep.subr.bf16.mxu0 %v2479
    %3918 = vmatpush1.bf16.msra.mxu0 %v2478
    %3919 = vmatprep.subr.bf16.mxu0 %v2471
    %3920 = vmatpush1.bf16.msra.mxu0 %v2470
    %3921 = vmatprep.subr.bf16.mxu0 %v2463
    %3922 = vmatpush1.bf16.msra.mxu0 %v2462
    %3923 = vmatprep.subr.bf16.mxu0 %v2583
    %3924 = vmatpush2.bf16.msra.mxu0 %v2582
    %3925 = vmatprep.subr.bf16.mxu0 %v2575
    %3926 = vmatpush2.bf16.msra.mxu0 %v2574
    %3927 = vmatprep.subr.bf16.mxu0 %v2567
    %3928 = vmatpush2.bf16.msra.mxu0 %v2566
    %3929 = vmatprep.subr.bf16.mxu0 %v2559
    %3930 = vmatpush2.bf16.msra.mxu0 %v2558
    %3931 = vmatprep.subr.bf16.mxu0 %v2551
    %3932 = vmatpush2.bf16.msra.mxu0 %v2550
    %3933 = vmatprep.subr.bf16.mxu0 %v2543
    %3934 = vmatpush2.bf16.msra.mxu0 %v2542
    %3935 = vmatprep.subr.bf16.mxu0 %v2535
    %3936 = vmatpush2.bf16.msra.mxu0 %v2534
    %3937 = vmatprep.subr.bf16.mxu0 %v2527
    %3938 = vmatpush2.bf16.msra.mxu0 %v2526
    %3939 = vmatprep.mubr.bf16.mxu0 %v3865
    %3940 = vmatmul.mubr.bf16.gmra.mxu0 %v3864
    %v3941 = vpop.f32.mrf.mxu0
    %v3942 = vadd.f32 0.0, %v3941
    %v3943 = vpop.f32.mrf.mxu0
    %v3944 = vadd.f32 0.0, %v3943
    %v3945 = vpop.f32.mrf.mxu0
    %v3946 = vpop.f32.mrf.mxu0
    %3947 = vdwg.mxu0
    %3948 = vmatprep.subr.bf16.mxu0 %v2521
    %3949 = vmatpush1.bf16.msra.mxu0 %v2520
    %3950 = vmatprep.subr.bf16.mxu0 %v2513
    %3951 = vmatpush1.bf16.msra.mxu0 %v2512
    %3952 = vmatprep.subr.bf16.mxu0 %v2505
    %3953 = vmatpush1.bf16.msra.mxu0 %v2504
    %3954 = vmatprep.subr.bf16.mxu0 %v2497
    %3955 = vmatpush1.bf16.msra.mxu0 %v2496
    %3956 = vmatprep.subr.bf16.mxu0 %v2489
    %3957 = vmatpush1.bf16.msra.mxu0 %v2488
    %3958 = vmatprep.subr.bf16.mxu0 %v2481
    %3959 = vmatpush1.bf16.msra.mxu0 %v2480
    %3960 = vmatprep.subr.bf16.mxu0 %v2473
    %3961 = vmatpush1.bf16.msra.mxu0 %v2472
    %3962 = vmatprep.subr.bf16.mxu0 %v2465
    %3963 = vmatpush1.bf16.msra.mxu0 %v2464
    %3964 = vmatprep.subr.bf16.mxu0 %v2585
    %3965 = vmatpush2.bf16.msra.mxu0 %v2584
    %3966 = vmatprep.subr.bf16.mxu0 %v2577
    %3967 = vmatpush2.bf16.msra.mxu0 %v2576
    %3968 = vmatprep.subr.bf16.mxu0 %v2569
    %3969 = vmatpush2.bf16.msra.mxu0 %v2568
    %3970 = vmatprep.subr.bf16.mxu0 %v2561
    %3971 = vmatpush2.bf16.msra.mxu0 %v2560
    %3972 = vmatprep.subr.bf16.mxu0 %v2553
    %3973 = vmatpush2.bf16.msra.mxu0 %v2552
    %3974 = vmatprep.subr.bf16.mxu0 %v2545
    %3975 = vmatpush2.bf16.msra.mxu0 %v2544
    %3976 = vmatprep.subr.bf16.mxu0 %v2537
    %3977 = vmatpush2.bf16.msra.mxu0 %v2536
    %3978 = vmatprep.subr.bf16.mxu0 %v2529
    %3979 = vmatpush2.bf16.msra.mxu0 %v2528
    %3980 = vmatprep.mubr.bf16.mxu0 %v3865
    %3981 = vmatmul.mubr.bf16.gmra.mxu0 %v3864
    %v3982 = vpop.f32.mrf.mxu0
    %v3983 = vadd.f32 0.0, %v3982
    %v3984 = vpop.f32.mrf.mxu0
    %v3985 = vadd.f32 0.0, %v3984
    %v3986 = vpop.f32.mrf.mxu0
    %v3987 = vpop.f32.mrf.mxu0
    %3988 = vdwg.mxu0
    %3989 = vmatprep.subr.bf16.mxu0 %v2523
    %3990 = vmatpush1.bf16.msra.mxu0 %v2522
    %3991 = vmatprep.subr.bf16.mxu0 %v2515
    %3992 = vmatpush1.bf16.msra.mxu0 %v2514
    %3993 = vmatprep.subr.bf16.mxu0 %v2507
    %3994 = vmatpush1.bf16.msra.mxu0 %v2506
    %3995 = vmatprep.subr.bf16.mxu0 %v2499
    %3996 = vmatpush1.bf16.msra.mxu0 %v2498
    %3997 = vmatprep.subr.bf16.mxu0 %v2491
    %3998 = vmatpush1.bf16.msra.mxu0 %v2490
    %3999 = vmatprep.subr.bf16.mxu0 %v2483
    %4000 = vmatpush1.bf16.msra.mxu0 %v2482
    %4001 = vmatprep.subr.bf16.mxu0 %v2475
    %4002 = vmatpush1.bf16.msra.mxu0 %v2474
    %4003 = vmatprep.subr.bf16.mxu0 %v2467
    %4004 = vmatpush1.bf16.msra.mxu0 %v2466
    %4005 = vmatprep.subr.bf16.mxu0 %v2587
    %4006 = vmatpush2.bf16.msra.mxu0 %v2586
    %4007 = vmatprep.subr.bf16.mxu0 %v2579
    %4008 = vmatpush2.bf16.msra.mxu0 %v2578
    %4009 = vmatprep.subr.bf16.mxu0 %v2571
    %4010 = vmatpush2.bf16.msra.mxu0 %v2570
    %4011 = vmatprep.subr.bf16.mxu0 %v2563
    %4012 = vmatpush2.bf16.msra.mxu0 %v2562
    %4013 = vmatprep.subr.bf16.mxu0 %v2555
    %4014 = vmatpush2.bf16.msra.mxu0 %v2554
    %4015 = vmatprep.subr.bf16.mxu0 %v2547
    %4016 = vmatpush2.bf16.msra.mxu0 %v2546
    %4017 = vmatprep.subr.bf16.mxu0 %v2539
    %4018 = vmatpush2.bf16.msra.mxu0 %v2538
    %4019 = vmatprep.subr.bf16.mxu0 %v2531
    %4020 = vmatpush2.bf16.msra.mxu0 %v2530
    %4021 = vmatprep.mubr.bf16.mxu0 %v3865
    %4022 = vmatmul.mubr.bf16.gmra.mxu0 %v3864
    %v4023 = vpop.f32.mrf.mxu0
    %v4024 = vadd.f32 0.0, %v4023
    %v4025 = vpop.f32.mrf.mxu0
    %v4026 = vadd.f32 0.0, %v4025
    %v4027 = vpop.f32.mrf.mxu0
    %v4028 = vpop.f32.mrf.mxu0
    %4029 = vdwg.mxu0
    %v4030 = vld [vmem:[#allocation2 + $0x140] sm:$0xff]
    %v4031 = vld [vmem:[#allocation2 + $0x148] sm:$0xff]
    %v4032 = vld [vmem:[#allocation2 + $0x150] sm:$0xff]
    %v4033 = vld [vmem:[#allocation2 + $0x158] sm:$0xff]
    %v4034 = vadd.f32 %v3901, %v4030
    %v4035 = vadd.f32 %v3903, %v4031
    %v4036 = vadd.f32 %v3942, %v4032
    %v4037 = vadd.f32 %v3944, %v4033
    %v4038 = vld [vmem:[#allocation2 + $0xa0] sm:$0xff]
    %v4039 = vld [vmem:[#allocation2 + $0xa8] sm:$0xff]
    %v4040 = vld [vmem:[#allocation2 + $0xb0] sm:$0xff]
    %v4041 = vld [vmem:[#allocation2 + $0xb8] sm:$0xff]
    %v4042 = vadd.f32 %v3983, %v4038
    %v4043 = vadd.f32 %v3985, %v4039
    %v4044 = vadd.f32 %v4024, %v4040
    %v4045 = vadd.f32 %v4026, %v4041
    %v4046 = vxor.u32 %v4034, 2147483648
    %v4047 = vmul.f32 %v4046, 1.442695
    %v4048 = vpow.pop %v4047
    %v4049 = vadd.f32 %v4048, 1.0
    %v4050 = vrcp.pop %v4049
    %v4051 = vmul.f32 1.0, %v4050
    %v4052 = vxor.u32 %v4035, 2147483648
    %v4053 = vmul.f32 %v4052, 1.442695
    %v4054 = vpow.pop %v4053
    %v4055 = vadd.f32 %v4054, 1.0
    %v4056 = vrcp.pop %v4055
    %v4057 = vmul.f32 1.0, %v4056
    %v4058 = vtanh.pop %v4036
    %v4059 = vxor.u32 %v4037, 2147483648
    %v4060 = vmul.f32 %v4059, 1.442695
    %v4061 = vpow.pop %v4060
    %v4062 = vadd.f32 %v4061, 1.0
    %v4063 = vrcp.pop %v4062
    %v4064 = vmul.f32 1.0, %v4063
    %v4065 = vmul.f32 %v4057, %v3837
    %v4066 = vmul.f32 %v4051, %v4058
    %v4067 = vadd.f32 %v4065, %v4066
    %v4068 = vtanh.pop %v4067
    %v4069 = vmul.f32 %v4064, %v4068
    %v4070 = vxor.u32 %v4042, 2147483648
    %v4071 = vmul.f32 %v4070, 1.442695
    %v4072 = vpow.pop %v4071
    %v4073 = vadd.f32 %v4072, 1.0
    %v4074 = vrcp.pop %v4073
    %v4075 = vmul.f32 1.0, %v4074
    %v4076 = vxor.u32 %v4043, 2147483648
    %v4077 = vmul.f32 %v4076, 1.442695
    %v4078 = vpow.pop %v4077
    %v4079 = vadd.f32 %v4078, 1.0
    %v4080 = vrcp.pop %v4079
    %v4081 = vmul.f32 1.0, %v4080
    %v4082 = vtanh.pop %v4044
    %v4083 = vxor.u32 %v4045, 2147483648
    %v4084 = vmul.f32 %v4083, 1.442695
    %v4085 = vpow.pop %v4084
    %v4086 = vadd.f32 %v4085, 1.0
    %v4087 = vrcp.pop %v4086
    %v4088 = vmul.f32 1.0, %v4087
    %v4089 = vmul.f32 %v4081, %v3861
    %v4090 = vmul.f32 %v4075, %v4082
    %v4091 = vadd.f32 %v4089, %v4090
    %v4092 = vtanh.pop %v4091
    %v4093 = vmul.f32 %v4088, %v4092
    %v4094 = vpack.c.bf16 %v4069, %v4069
    %v4095 = vpack.c.bf16 %v4093, %v4093
    %4096 = vmatprep.subr.bf16.mxu0 %v2517
    %4097 = vmatpush1.bf16.msra.mxu0 %v2516
    %4098 = vmatprep.subr.bf16.mxu0 %v2509
    %4099 = vmatpush1.bf16.msra.mxu0 %v2508
    %4100 = vmatprep.subr.bf16.mxu0 %v2501
    %4101 = vmatpush1.bf16.msra.mxu0 %v2500
    %4102 = vmatprep.subr.bf16.mxu0 %v2493
    %4103 = vmatpush1.bf16.msra.mxu0 %v2492
    %4104 = vmatprep.subr.bf16.mxu0 %v2485
    %4105 = vmatpush1.bf16.msra.mxu0 %v2484
    %4106 = vmatprep.subr.bf16.mxu0 %v2477
    %4107 = vmatpush1.bf16.msra.mxu0 %v2476
    %4108 = vmatprep.subr.bf16.mxu0 %v2469
    %4109 = vmatpush1.bf16.msra.mxu0 %v2468
    %4110 = vmatprep.subr.bf16.mxu0 %v2461
    %4111 = vmatpush1.bf16.msra.mxu0 %v2460
    %4112 = vmatprep.subr.bf16.mxu0 %v2581
    %4113 = vmatpush2.bf16.msra.mxu0 %v2580
    %4114 = vmatprep.subr.bf16.mxu0 %v2573
    %4115 = vmatpush2.bf16.msra.mxu0 %v2572
    %4116 = vmatprep.subr.bf16.mxu0 %v2565
    %4117 = vmatpush2.bf16.msra.mxu0 %v2564
    %4118 = vmatprep.subr.bf16.mxu0 %v2557
    %4119 = vmatpush2.bf16.msra.mxu0 %v2556
    %4120 = vmatprep.subr.bf16.mxu0 %v2549
    %4121 = vmatpush2.bf16.msra.mxu0 %v2548
    %4122 = vmatprep.subr.bf16.mxu0 %v2541
    %4123 = vmatpush2.bf16.msra.mxu0 %v2540
    %4124 = vmatprep.subr.bf16.mxu0 %v2533
    %4125 = vmatpush2.bf16.msra.mxu0 %v2532
    %4126 = vmatprep.subr.bf16.mxu0 %v2525
    %4127 = vmatpush2.bf16.msra.mxu0 %v2524
    %4128 = vmatprep.mubr.bf16.mxu0 %v4095
    %4129 = vmatmul.mubr.bf16.gmra.mxu0 %v4094
    %v4130 = vpop.f32.mrf.mxu0
    %v4131 = vadd.f32 0.0, %v4130
    %v4132 = vpop.f32.mrf.mxu0
    %v4133 = vadd.f32 0.0, %v4132
    %v4134 = vpop.f32.mrf.mxu0
    %v4135 = vpop.f32.mrf.mxu0
    %4136 = vdwg.mxu0
    %4137 = vmatprep.subr.bf16.mxu0 %v2519
    %4138 = vmatpush1.bf16.msra.mxu0 %v2518
    %4139 = vmatprep.subr.bf16.mxu0 %v2511
    %4140 = vmatpush1.bf16.msra.mxu0 %v2510
    %4141 = vmatprep.subr.bf16.mxu0 %v2503
    %4142 = vmatpush1.bf16.msra.mxu0 %v2502
    %4143 = vmatprep.subr.bf16.mxu0 %v2495
    %4144 = vmatpush1.bf16.msra.mxu0 %v2494
    %4145 = vmatprep.subr.bf16.mxu0 %v2487
    %4146 = vmatpush1.bf16.msra.mxu0 %v2486
    %4147 = vmatprep.subr.bf16.mxu0 %v2479
    %4148 = vmatpush1.bf16.msra.mxu0 %v2478
    %4149 = vmatprep.subr.bf16.mxu0 %v2471
    %4150 = vmatpush1.bf16.msra.mxu0 %v2470
    %4151 = vmatprep.subr.bf16.mxu0 %v2463
    %4152 = vmatpush1.bf16.msra.mxu0 %v2462
    %4153 = vmatprep.subr.bf16.mxu0 %v2583
    %4154 = vmatpush2.bf16.msra.mxu0 %v2582
    %4155 = vmatprep.subr.bf16.mxu0 %v2575
    %4156 = vmatpush2.bf16.msra.mxu0 %v2574
    %4157 = vmatprep.subr.bf16.mxu0 %v2567
    %4158 = vmatpush2.bf16.msra.mxu0 %v2566
    %4159 = vmatprep.subr.bf16.mxu0 %v2559
    %4160 = vmatpush2.bf16.msra.mxu0 %v2558
    %4161 = vmatprep.subr.bf16.mxu0 %v2551
    %4162 = vmatpush2.bf16.msra.mxu0 %v2550
    %4163 = vmatprep.subr.bf16.mxu0 %v2543
    %4164 = vmatpush2.bf16.msra.mxu0 %v2542
    %4165 = vmatprep.subr.bf16.mxu0 %v2535
    %4166 = vmatpush2.bf16.msra.mxu0 %v2534
    %4167 = vmatprep.subr.bf16.mxu0 %v2527
    %4168 = vmatpush2.bf16.msra.mxu0 %v2526
    %4169 = vmatprep.mubr.bf16.mxu0 %v4095
    %4170 = vmatmul.mubr.bf16.gmra.mxu0 %v4094
    %v4171 = vpop.f32.mrf.mxu0
    %v4172 = vadd.f32 0.0, %v4171
    %v4173 = vpop.f32.mrf.mxu0
    %v4174 = vadd.f32 0.0, %v4173
    %v4175 = vpop.f32.mrf.mxu0
    %v4176 = vpop.f32.mrf.mxu0
    %4177 = vdwg.mxu0
    %4178 = vmatprep.subr.bf16.mxu0 %v2521
    %4179 = vmatpush1.bf16.msra.mxu0 %v2520
    %4180 = vmatprep.subr.bf16.mxu0 %v2513
    %4181 = vmatpush1.bf16.msra.mxu0 %v2512
    %4182 = vmatprep.subr.bf16.mxu0 %v2505
    %4183 = vmatpush1.bf16.msra.mxu0 %v2504
    %4184 = vmatprep.subr.bf16.mxu0 %v2497
    %4185 = vmatpush1.bf16.msra.mxu0 %v2496
    %4186 = vmatprep.subr.bf16.mxu0 %v2489
    %4187 = vmatpush1.bf16.msra.mxu0 %v2488
    %4188 = vmatprep.subr.bf16.mxu0 %v2481
    %4189 = vmatpush1.bf16.msra.mxu0 %v2480
    %4190 = vmatprep.subr.bf16.mxu0 %v2473
    %4191 = vmatpush1.bf16.msra.mxu0 %v2472
    %4192 = vmatprep.subr.bf16.mxu0 %v2465
    %4193 = vmatpush1.bf16.msra.mxu0 %v2464
    %4194 = vmatprep.subr.bf16.mxu0 %v2585
    %4195 = vmatpush2.bf16.msra.mxu0 %v2584
    %4196 = vmatprep.subr.bf16.mxu0 %v2577
    %4197 = vmatpush2.bf16.msra.mxu0 %v2576
    %4198 = vmatprep.subr.bf16.mxu0 %v2569
    %4199 = vmatpush2.bf16.msra.mxu0 %v2568
    %4200 = vmatprep.subr.bf16.mxu0 %v2561
    %4201 = vmatpush2.bf16.msra.mxu0 %v2560
    %4202 = vmatprep.subr.bf16.mxu0 %v2553
    %4203 = vmatpush2.bf16.msra.mxu0 %v2552
    %4204 = vmatprep.subr.bf16.mxu0 %v2545
    %4205 = vmatpush2.bf16.msra.mxu0 %v2544
    %4206 = vmatprep.subr.bf16.mxu0 %v2537
    %4207 = vmatpush2.bf16.msra.mxu0 %v2536
    %4208 = vmatprep.subr.bf16.mxu0 %v2529
    %4209 = vmatpush2.bf16.msra.mxu0 %v2528
    %4210 = vmatprep.mubr.bf16.mxu0 %v4095
    %4211 = vmatmul.mubr.bf16.gmra.mxu0 %v4094
    %v4212 = vpop.f32.mrf.mxu0
    %v4213 = vadd.f32 0.0, %v4212
    %v4214 = vpop.f32.mrf.mxu0
    %v4215 = vadd.f32 0.0, %v4214
    %v4216 = vpop.f32.mrf.mxu0
    %v4217 = vpop.f32.mrf.mxu0
    %4218 = vdwg.mxu0
    %4219 = vmatprep.subr.bf16.mxu0 %v2523
    %4220 = vmatpush1.bf16.msra.mxu0 %v2522
    %4221 = vmatprep.subr.bf16.mxu0 %v2515
    %4222 = vmatpush1.bf16.msra.mxu0 %v2514
    %4223 = vmatprep.subr.bf16.mxu0 %v2507
    %4224 = vmatpush1.bf16.msra.mxu0 %v2506
    %4225 = vmatprep.subr.bf16.mxu0 %v2499
    %4226 = vmatpush1.bf16.msra.mxu0 %v2498
    %4227 = vmatprep.subr.bf16.mxu0 %v2491
    %4228 = vmatpush1.bf16.msra.mxu0 %v2490
    %4229 = vmatprep.subr.bf16.mxu0 %v2483
    %4230 = vmatpush1.bf16.msra.mxu0 %v2482
    %4231 = vmatprep.subr.bf16.mxu0 %v2475
    %4232 = vmatpush1.bf16.msra.mxu0 %v2474
    %4233 = vmatprep.subr.bf16.mxu0 %v2467
    %4234 = vmatpush1.bf16.msra.mxu0 %v2466
    %4235 = vmatprep.subr.bf16.mxu0 %v2587
    %4236 = vmatpush2.bf16.msra.mxu0 %v2586
    %4237 = vmatprep.subr.bf16.mxu0 %v2579
    %4238 = vmatpush2.bf16.msra.mxu0 %v2578
    %4239 = vmatprep.subr.bf16.mxu0 %v2571
    %4240 = vmatpush2.bf16.msra.mxu0 %v2570
    %4241 = vmatprep.subr.bf16.mxu0 %v2563
    %4242 = vmatpush2.bf16.msra.mxu0 %v2562
    %4243 = vmatprep.subr.bf16.mxu0 %v2555
    %4244 = vmatpush2.bf16.msra.mxu0 %v2554
    %4245 = vmatprep.subr.bf16.mxu0 %v2547
    %4246 = vmatpush2.bf16.msra.mxu0 %v2546
    %4247 = vmatprep.subr.bf16.mxu0 %v2539
    %4248 = vmatpush2.bf16.msra.mxu0 %v2538
    %4249 = vmatprep.subr.bf16.mxu0 %v2531
    %4250 = vmatpush2.bf16.msra.mxu0 %v2530
    %4251 = vmatprep.mubr.bf16.mxu0 %v4095
    %4252 = vmatmul.mubr.bf16.gmra.mxu0 %v4094
    %v4253 = vpop.f32.mrf.mxu0
    %v4254 = vadd.f32 0.0, %v4253
    %v4255 = vpop.f32.mrf.mxu0
    %v4256 = vadd.f32 0.0, %v4255
    %v4257 = vpop.f32.mrf.mxu0
    %v4258 = vpop.f32.mrf.mxu0
    %4259 = vdwg.mxu0
    %v4260 = vld [vmem:[#allocation2 + $0x180] sm:$0xff]
    %v4261 = vld [vmem:[#allocation2 + $0x188] sm:$0xff]
    %v4262 = vld [vmem:[#allocation2 + $0x190] sm:$0xff]
    %v4263 = vld [vmem:[#allocation2 + $0x198] sm:$0xff]
    %v4264 = vadd.f32 %v4131, %v4260
    %v4265 = vadd.f32 %v4133, %v4261
    %v4266 = vadd.f32 %v4172, %v4262
    %v4267 = vadd.f32 %v4174, %v4263
    %v4268 = vld [vmem:[#allocation2 + $0x60] sm:$0xff]
    %v4269 = vld [vmem:[#allocation2 + $0x68] sm:$0xff]
    %v4270 = vld [vmem:[#allocation2 + $0x70] sm:$0xff]
    %v4271 = vld [vmem:[#allocation2 + $0x78] sm:$0xff]
    %v4272 = vadd.f32 %v4213, %v4268
    %v4273 = vadd.f32 %v4215, %v4269
    %v4274 = vadd.f32 %v4254, %v4270
    %v4275 = vadd.f32 %v4256, %v4271
    %v4276 = vxor.u32 %v4264, 2147483648
    %v4277 = vmul.f32 %v4276, 1.442695
    %v4278 = vpow.pop %v4277
    %v4279 = vadd.f32 %v4278, 1.0
    %v4280 = vrcp.pop %v4279
    %v4281 = vmul.f32 1.0, %v4280
    %v4282 = vxor.u32 %v4265, 2147483648
    %v4283 = vmul.f32 %v4282, 1.442695
    %v4284 = vpow.pop %v4283
    %v4285 = vadd.f32 %v4284, 1.0
    %v4286 = vrcp.pop %v4285
    %v4287 = vmul.f32 1.0, %v4286
    %v4288 = vtanh.pop %v4266
    %v4289 = vxor.u32 %v4267, 2147483648
    %v4290 = vmul.f32 %v4289, 1.442695
    %v4291 = vpow.pop %v4290
    %v4292 = vadd.f32 %v4291, 1.0
    %v4293 = vrcp.pop %v4292
    %v4294 = vmul.f32 1.0, %v4293
    %v4295 = vmul.f32 %v4287, %v4067
    %v4296 = vmul.f32 %v4281, %v4288
    %v4297 = vadd.f32 %v4295, %v4296
    %v4298 = vtanh.pop %v4297
    %v4299 = vmul.f32 %v4294, %v4298
    %v4300 = vxor.u32 %v4272, 2147483648
    %v4301 = vmul.f32 %v4300, 1.442695
    %v4302 = vpow.pop %v4301
    %v4303 = vadd.f32 %v4302, 1.0
    %v4304 = vrcp.pop %v4303
    %v4305 = vmul.f32 1.0, %v4304
    %v4306 = vxor.u32 %v4273, 2147483648
    %v4307 = vmul.f32 %v4306, 1.442695
    %v4308 = vpow.pop %v4307
    %v4309 = vadd.f32 %v4308, 1.0
    %v4310 = vrcp.pop %v4309
    %v4311 = vmul.f32 1.0, %v4310
    %v4312 = vtanh.pop %v4274
    %v4313 = vxor.u32 %v4275, 2147483648
    %v4314 = vmul.f32 %v4313, 1.442695
    %v4315 = vpow.pop %v4314
    %v4316 = vadd.f32 %v4315, 1.0
    %v4317 = vrcp.pop %v4316
    %v4318 = vmul.f32 1.0, %v4317
    %v4319 = vmul.f32 %v4311, %v4091
    %v4320 = vmul.f32 %v4305, %v4312
    %v4321 = vadd.f32 %v4319, %v4320
    %v4322 = vtanh.pop %v4321
    %v4323 = vmul.f32 %v4318, %v4322
    %v4324 = vpack.c.bf16 %v4299, %v4299
    %v4325 = vpack.c.bf16 %v4323, %v4323
    %4326 = vmatprep.subr.bf16.mxu0 %v2517
    %4327 = vmatpush1.bf16.msra.mxu0 %v2516
    %4328 = vmatprep.subr.bf16.mxu0 %v2509
    %4329 = vmatpush1.bf16.msra.mxu0 %v2508
    %4330 = vmatprep.subr.bf16.mxu0 %v2501
    %4331 = vmatpush1.bf16.msra.mxu0 %v2500
    %4332 = vmatprep.subr.bf16.mxu0 %v2493
    %4333 = vmatpush1.bf16.msra.mxu0 %v2492
    %4334 = vmatprep.subr.bf16.mxu0 %v2485
    %4335 = vmatpush1.bf16.msra.mxu0 %v2484
    %4336 = vmatprep.subr.bf16.mxu0 %v2477
    %4337 = vmatpush1.bf16.msra.mxu0 %v2476
    %4338 = vmatprep.subr.bf16.mxu0 %v2469
    %4339 = vmatpush1.bf16.msra.mxu0 %v2468
    %4340 = vmatprep.subr.bf16.mxu0 %v2461
    %4341 = vmatpush1.bf16.msra.mxu0 %v2460
    %4342 = vmatprep.subr.bf16.mxu0 %v2581
    %4343 = vmatpush2.bf16.msra.mxu0 %v2580
    %4344 = vmatprep.subr.bf16.mxu0 %v2573
    %4345 = vmatpush2.bf16.msra.mxu0 %v2572
    %4346 = vmatprep.subr.bf16.mxu0 %v2565
    %4347 = vmatpush2.bf16.msra.mxu0 %v2564
    %4348 = vmatprep.subr.bf16.mxu0 %v2557
    %4349 = vmatpush2.bf16.msra.mxu0 %v2556
    %4350 = vmatprep.subr.bf16.mxu0 %v2549
    %4351 = vmatpush2.bf16.msra.mxu0 %v2548
    %4352 = vmatprep.subr.bf16.mxu0 %v2541
    %4353 = vmatpush2.bf16.msra.mxu0 %v2540
    %4354 = vmatprep.subr.bf16.mxu0 %v2533
    %4355 = vmatpush2.bf16.msra.mxu0 %v2532
    %4356 = vmatprep.subr.bf16.mxu0 %v2525
    %4357 = vmatpush2.bf16.msra.mxu0 %v2524
    %4358 = vmatprep.mubr.bf16.mxu0 %v4325
    %4359 = vmatmul.mubr.bf16.gmra.mxu0 %v4324
    %v4360 = vpop.f32.mrf.mxu0
    %v4361 = vadd.f32 0.0, %v4360
    %v4362 = vpop.f32.mrf.mxu0
    %v4363 = vadd.f32 0.0, %v4362
    %v4364 = vpop.f32.mrf.mxu0
    %v4365 = vpop.f32.mrf.mxu0
    %4366 = vdwg.mxu0
    %4367 = vmatprep.subr.bf16.mxu0 %v2519
    %4368 = vmatpush1.bf16.msra.mxu0 %v2518
    %4369 = vmatprep.subr.bf16.mxu0 %v2511
    %4370 = vmatpush1.bf16.msra.mxu0 %v2510
    %4371 = vmatprep.subr.bf16.mxu0 %v2503
    %4372 = vmatpush1.bf16.msra.mxu0 %v2502
    %4373 = vmatprep.subr.bf16.mxu0 %v2495
    %4374 = vmatpush1.bf16.msra.mxu0 %v2494
    %4375 = vmatprep.subr.bf16.mxu0 %v2487
    %4376 = vmatpush1.bf16.msra.mxu0 %v2486
    %4377 = vmatprep.subr.bf16.mxu0 %v2479
    %4378 = vmatpush1.bf16.msra.mxu0 %v2478
    %4379 = vmatprep.subr.bf16.mxu0 %v2471
    %4380 = vmatpush1.bf16.msra.mxu0 %v2470
    %4381 = vmatprep.subr.bf16.mxu0 %v2463
    %4382 = vmatpush1.bf16.msra.mxu0 %v2462
    %4383 = vmatprep.subr.bf16.mxu0 %v2583
    %4384 = vmatpush2.bf16.msra.mxu0 %v2582
    %4385 = vmatprep.subr.bf16.mxu0 %v2575
    %4386 = vmatpush2.bf16.msra.mxu0 %v2574
    %4387 = vmatprep.subr.bf16.mxu0 %v2567
    %4388 = vmatpush2.bf16.msra.mxu0 %v2566
    %4389 = vmatprep.subr.bf16.mxu0 %v2559
    %4390 = vmatpush2.bf16.msra.mxu0 %v2558
    %4391 = vmatprep.subr.bf16.mxu0 %v2551
    %4392 = vmatpush2.bf16.msra.mxu0 %v2550
    %4393 = vmatprep.subr.bf16.mxu0 %v2543
    %4394 = vmatpush2.bf16.msra.mxu0 %v2542
    %4395 = vmatprep.subr.bf16.mxu0 %v2535
    %4396 = vmatpush2.bf16.msra.mxu0 %v2534
    %4397 = vmatprep.subr.bf16.mxu0 %v2527
    %4398 = vmatpush2.bf16.msra.mxu0 %v2526
    %4399 = vmatprep.mubr.bf16.mxu0 %v4325
    %4400 = vmatmul.mubr.bf16.gmra.mxu0 %v4324
    %v4401 = vpop.f32.mrf.mxu0
    %v4402 = vadd.f32 0.0, %v4401
    %v4403 = vpop.f32.mrf.mxu0
    %v4404 = vadd.f32 0.0, %v4403
    %v4405 = vpop.f32.mrf.mxu0
    %v4406 = vpop.f32.mrf.mxu0
    %4407 = vdwg.mxu0
    %4408 = vmatprep.subr.bf16.mxu0 %v2521
    %4409 = vmatpush1.bf16.msra.mxu0 %v2520
    %4410 = vmatprep.subr.bf16.mxu0 %v2513
    %4411 = vmatpush1.bf16.msra.mxu0 %v2512
    %4412 = vmatprep.subr.bf16.mxu0 %v2505
    %4413 = vmatpush1.bf16.msra.mxu0 %v2504
    %4414 = vmatprep.subr.bf16.mxu0 %v2497
    %4415 = vmatpush1.bf16.msra.mxu0 %v2496
    %4416 = vmatprep.subr.bf16.mxu0 %v2489
    %4417 = vmatpush1.bf16.msra.mxu0 %v2488
    %4418 = vmatprep.subr.bf16.mxu0 %v2481
    %4419 = vmatpush1.bf16.msra.mxu0 %v2480
    %4420 = vmatprep.subr.bf16.mxu0 %v2473
    %4421 = vmatpush1.bf16.msra.mxu0 %v2472
    %4422 = vmatprep.subr.bf16.mxu0 %v2465
    %4423 = vmatpush1.bf16.msra.mxu0 %v2464
    %4424 = vmatprep.subr.bf16.mxu0 %v2585
    %4425 = vmatpush2.bf16.msra.mxu0 %v2584
    %4426 = vmatprep.subr.bf16.mxu0 %v2577
    %4427 = vmatpush2.bf16.msra.mxu0 %v2576
    %4428 = vmatprep.subr.bf16.mxu0 %v2569
    %4429 = vmatpush2.bf16.msra.mxu0 %v2568
    %4430 = vmatprep.subr.bf16.mxu0 %v2561
    %4431 = vmatpush2.bf16.msra.mxu0 %v2560
    %4432 = vmatprep.subr.bf16.mxu0 %v2553
    %4433 = vmatpush2.bf16.msra.mxu0 %v2552
    %4434 = vmatprep.subr.bf16.mxu0 %v2545
    %4435 = vmatpush2.bf16.msra.mxu0 %v2544
    %4436 = vmatprep.subr.bf16.mxu0 %v2537
    %4437 = vmatpush2.bf16.msra.mxu0 %v2536
    %4438 = vmatprep.subr.bf16.mxu0 %v2529
    %4439 = vmatpush2.bf16.msra.mxu0 %v2528
    %4440 = vmatprep.mubr.bf16.mxu0 %v4325
    %4441 = vmatmul.mubr.bf16.gmra.mxu0 %v4324
    %v4442 = vpop.f32.mrf.mxu0
    %v4443 = vadd.f32 0.0, %v4442
    %v4444 = vpop.f32.mrf.mxu0
    %v4445 = vadd.f32 0.0, %v4444
    %v4446 = vpop.f32.mrf.mxu0
    %v4447 = vpop.f32.mrf.mxu0
    %4448 = vdwg.mxu0
    %4449 = vmatprep.subr.bf16.mxu0 %v2523
    %4450 = vmatpush1.bf16.msra.mxu0 %v2522
    %4451 = vmatprep.subr.bf16.mxu0 %v2515
    %4452 = vmatpush1.bf16.msra.mxu0 %v2514
    %4453 = vmatprep.subr.bf16.mxu0 %v2507
    %4454 = vmatpush1.bf16.msra.mxu0 %v2506
    %4455 = vmatprep.subr.bf16.mxu0 %v2499
    %4456 = vmatpush1.bf16.msra.mxu0 %v2498
    %4457 = vmatprep.subr.bf16.mxu0 %v2491
    %4458 = vmatpush1.bf16.msra.mxu0 %v2490
    %4459 = vmatprep.subr.bf16.mxu0 %v2483
    %4460 = vmatpush1.bf16.msra.mxu0 %v2482
    %4461 = vmatprep.subr.bf16.mxu0 %v2475
    %4462 = vmatpush1.bf16.msra.mxu0 %v2474
    %4463 = vmatprep.subr.bf16.mxu0 %v2467
    %4464 = vmatpush1.bf16.msra.mxu0 %v2466
    %4465 = vmatprep.subr.bf16.mxu0 %v2587
    %4466 = vmatpush2.bf16.msra.mxu0 %v2586
    %4467 = vmatprep.subr.bf16.mxu0 %v2579
    %4468 = vmatpush2.bf16.msra.mxu0 %v2578
    %4469 = vmatprep.subr.bf16.mxu0 %v2571
    %4470 = vmatpush2.bf16.msra.mxu0 %v2570
    %4471 = vmatprep.subr.bf16.mxu0 %v2563
    %4472 = vmatpush2.bf16.msra.mxu0 %v2562
    %4473 = vmatprep.subr.bf16.mxu0 %v2555
    %4474 = vmatpush2.bf16.msra.mxu0 %v2554
    %4475 = vmatprep.subr.bf16.mxu0 %v2547
    %4476 = vmatpush2.bf16.msra.mxu0 %v2546
    %4477 = vmatprep.subr.bf16.mxu0 %v2539
    %4478 = vmatpush2.bf16.msra.mxu0 %v2538
    %4479 = vmatprep.subr.bf16.mxu0 %v2531
    %4480 = vmatpush2.bf16.msra.mxu0 %v2530
    %4481 = vmatprep.mubr.bf16.mxu0 %v4325
    %4482 = vmatmul.mubr.bf16.gmra.mxu0 %v4324
    %v4483 = vpop.f32.mrf.mxu0
    %v4484 = vadd.f32 0.0, %v4483
    %v4485 = vpop.f32.mrf.mxu0
    %v4486 = vadd.f32 0.0, %v4485
    %v4487 = vpop.f32.mrf.mxu0
    %v4488 = vpop.f32.mrf.mxu0
    %4489 = vdwg.mxu0
    %v4490 = vld [vmem:[#allocation2 + $0x1c0] sm:$0xff]
    %v4491 = vld [vmem:[#allocation2 + $0x1c8] sm:$0xff]
    %v4492 = vld [vmem:[#allocation2 + $0x1d0] sm:$0xff]
    %v4493 = vld [vmem:[#allocation2 + $0x1d8] sm:$0xff]
    %v4494 = vadd.f32 %v4361, %v4490
    %v4495 = vadd.f32 %v4363, %v4491
    %v4496 = vadd.f32 %v4402, %v4492
    %v4497 = vadd.f32 %v4404, %v4493
    %v4498 = vld [vmem:[#allocation2 + $0x20] sm:$0xff]
    %v4499 = vld [vmem:[#allocation2 + $0x28] sm:$0xff]
    %v4500 = vld [vmem:[#allocation2 + $0x30] sm:$0xff]
    %v4501 = vld [vmem:[#allocation2 + $0x38] sm:$0xff]
    %v4502 = vadd.f32 %v4443, %v4498
    %v4503 = vadd.f32 %v4445, %v4499
    %v4504 = vadd.f32 %v4484, %v4500
    %v4505 = vadd.f32 %v4486, %v4501
    %v4506 = vxor.u32 %v4494, 2147483648
    %v4507 = vmul.f32 %v4506, 1.442695
    %v4508 = vpow.pop %v4507
    %v4509 = vadd.f32 %v4508, 1.0
    %v4510 = vrcp.pop %v4509
    %v4511 = vmul.f32 1.0, %v4510
    %v4512 = vxor.u32 %v4495, 2147483648
    %v4513 = vmul.f32 %v4512, 1.442695
    %v4514 = vpow.pop %v4513
    %v4515 = vadd.f32 %v4514, 1.0
    %v4516 = vrcp.pop %v4515
    %v4517 = vmul.f32 1.0, %v4516
    %v4518 = vtanh.pop %v4496
    %v4519 = vxor.u32 %v4497, 2147483648
    %v4520 = vmul.f32 %v4519, 1.442695
    %v4521 = vpow.pop %v4520
    %v4522 = vadd.f32 %v4521, 1.0
    %v4523 = vrcp.pop %v4522
    %v4524 = vmul.f32 1.0, %v4523
    %v4525 = vmul.f32 %v4517, %v4297
    %v4526 = vmul.f32 %v4511, %v4518
    %v4527 = vadd.f32 %v4525, %v4526
    %v4528 = vtanh.pop %v4527
    %v4529 = vmul.f32 %v4524, %v4528
    %v4530 = vxor.u32 %v4502, 2147483648
    %v4531 = vmul.f32 %v4530, 1.442695
    %v4532 = vpow.pop %v4531
    %v4533 = vadd.f32 %v4532, 1.0
    %v4534 = vrcp.pop %v4533
    %v4535 = vmul.f32 1.0, %v4534
    %v4536 = vxor.u32 %v4503, 2147483648
    %v4537 = vmul.f32 %v4536, 1.442695
    %v4538 = vpow.pop %v4537
    %v4539 = vadd.f32 %v4538, 1.0
    %v4540 = vrcp.pop %v4539
    %v4541 = vmul.f32 1.0, %v4540
    %v4542 = vtanh.pop %v4504
    %v4543 = vxor.u32 %v4505, 2147483648
    %v4544 = vmul.f32 %v4543, 1.442695
    %v4545 = vpow.pop %v4544
    %v4546 = vadd.f32 %v4545, 1.0
    %v4547 = vrcp.pop %v4546
    %v4548 = vmul.f32 1.0, %v4547
    %v4549 = vmul.f32 %v4541, %v4321
    %v4550 = vmul.f32 %v4535, %v4542
    %v4551 = vadd.f32 %v4549, %v4550
    %v4552 = vtanh.pop %v4551
    %v4553 = vmul.f32 %v4548, %v4552
    %v4554 = vpack.c.bf16 %v3149, %v2919
    %v4555 = vpack.c.bf16 %v4323, %v4553
    %v4556 = vpack.c.bf16 %v3609, %v3379
    %v4557 = vpack.c.bf16 %v3863, %v4093
    %v4558 = vpack.c.bf16 %v4069, %v3839
    %v4559 = vpack.c.bf16 %v3403, %v3633
    %v4560 = vpack.c.bf16 %v4529, %v4299
    %v4561 = vpack.c.bf16 %v2943, %v3173
    %v4562 = vld [vmem:[#allocation11] sm:$0xff]
    %v4563 = vld [vmem:[#allocation11 + $0x8] sm:$0xff]
    %v4564 = vld [vmem:[#allocation11 + $0x10] sm:$0xff]
    %v4565 = vld [vmem:[#allocation11 + $0x18] sm:$0xff]
    %v4566 = vld [vmem:[#allocation11 + $0x20] sm:$0xff]
    %v4567 = vld [vmem:[#allocation11 + $0x28] sm:$0xff]
    %v4568 = vld [vmem:[#allocation11 + $0x30] sm:$0xff]
    %v4569 = vld [vmem:[#allocation11 + $0x38] sm:$0xff]
    %v4570 = vld [vmem:[#allocation11 + $0x40] sm:$0xff]
    %v4571 = vld [vmem:[#allocation11 + $0x48] sm:$0xff]
    %v4572 = vld [vmem:[#allocation11 + $0x50] sm:$0xff]
    %v4573 = vld [vmem:[#allocation11 + $0x58] sm:$0xff]
    %v4574 = vld [vmem:[#allocation11 + $0x60] sm:$0xff]
    %v4575 = vld [vmem:[#allocation11 + $0x68] sm:$0xff]
    %v4576 = vld [vmem:[#allocation11 + $0x70] sm:$0xff]
    %v4577 = vld [vmem:[#allocation11 + $0x78] sm:$0xff]
    %v4578 = vld [vmem:[#allocation11 + $0x80] sm:$0xff]
    %v4579 = vld [vmem:[#allocation11 + $0x88] sm:$0xff]
    %v4580 = vld [vmem:[#allocation11 + $0x90] sm:$0xff]
    %v4581 = vld [vmem:[#allocation11 + $0x98] sm:$0xff]
    %v4582 = vld [vmem:[#allocation11 + $0xa0] sm:$0xff]
    %v4583 = vld [vmem:[#allocation11 + $0xa8] sm:$0xff]
    %v4584 = vld [vmem:[#allocation11 + $0xb0] sm:$0xff]
    %v4585 = vld [vmem:[#allocation11 + $0xb8] sm:$0xff]
    %v4586 = vld [vmem:[#allocation11 + $0xc0] sm:$0xff]
    %v4587 = vld [vmem:[#allocation11 + $0xc8] sm:$0xff]
    %v4588 = vld [vmem:[#allocation11 + $0xd0] sm:$0xff]
    %v4589 = vld [vmem:[#allocation11 + $0xd8] sm:$0xff]
    %v4590 = vld [vmem:[#allocation11 + $0xe0] sm:$0xff]
    %v4591 = vld [vmem:[#allocation11 + $0xe8] sm:$0xff]
    %v4592 = vld [vmem:[#allocation11 + $0xf0] sm:$0xff]
    %v4593 = vld [vmem:[#allocation11 + $0xf8] sm:$0xff]
    %v4594 = vld [vmem:[#allocation11 + $0x100] sm:$0xff]
    %v4595 = vld [vmem:[#allocation11 + $0x108] sm:$0xff]
    %v4596 = vld [vmem:[#allocation11 + $0x110] sm:$0xff]
    %v4597 = vld [vmem:[#allocation11 + $0x118] sm:$0xff]
    %v4598 = vld [vmem:[#allocation11 + $0x120] sm:$0xff]
    %v4599 = vld [vmem:[#allocation11 + $0x128] sm:$0xff]
    %v4600 = vld [vmem:[#allocation11 + $0x130] sm:$0xff]
    %v4601 = vld [vmem:[#allocation11 + $0x138] sm:$0xff]
    %v4602 = vld [vmem:[#allocation11 + $0x140] sm:$0xff]
    %v4603 = vld [vmem:[#allocation11 + $0x148] sm:$0xff]
    %v4604 = vld [vmem:[#allocation11 + $0x150] sm:$0xff]
    %v4605 = vld [vmem:[#allocation11 + $0x158] sm:$0xff]
    %v4606 = vld [vmem:[#allocation11 + $0x160] sm:$0xff]
    %v4607 = vld [vmem:[#allocation11 + $0x168] sm:$0xff]
    %v4608 = vld [vmem:[#allocation11 + $0x170] sm:$0xff]
    %v4609 = vld [vmem:[#allocation11 + $0x178] sm:$0xff]
    %v4610 = vld [vmem:[#allocation11 + $0x180] sm:$0xff]
    %v4611 = vld [vmem:[#allocation11 + $0x188] sm:$0xff]
    %v4612 = vld [vmem:[#allocation11 + $0x190] sm:$0xff]
    %v4613 = vld [vmem:[#allocation11 + $0x198] sm:$0xff]
    %v4614 = vld [vmem:[#allocation11 + $0x1a0] sm:$0xff]
    %v4615 = vld [vmem:[#allocation11 + $0x1a8] sm:$0xff]
    %v4616 = vld [vmem:[#allocation11 + $0x1b0] sm:$0xff]
    %v4617 = vld [vmem:[#allocation11 + $0x1b8] sm:$0xff]
    %v4618 = vld [vmem:[#allocation11 + $0x1c0] sm:$0xff]
    %v4619 = vld [vmem:[#allocation11 + $0x1c8] sm:$0xff]
    %v4620 = vld [vmem:[#allocation11 + $0x1d0] sm:$0xff]
    %v4621 = vld [vmem:[#allocation11 + $0x1d8] sm:$0xff]
    %v4622 = vld [vmem:[#allocation11 + $0x1e0] sm:$0xff]
    %v4623 = vld [vmem:[#allocation11 + $0x1e8] sm:$0xff]
    %v4624 = vld [vmem:[#allocation11 + $0x1f0] sm:$0xff]
    %v4625 = vld [vmem:[#allocation11 + $0x1f8] sm:$0xff]
    %v4626 = vld [vmem:[#allocation11 + $0x200] sm:$0xff]
    %v4627 = vld [vmem:[#allocation11 + $0x208] sm:$0xff]
    %v4628 = vld [vmem:[#allocation11 + $0x210] sm:$0xff]
    %v4629 = vld [vmem:[#allocation11 + $0x218] sm:$0xff]
    %v4630 = vld [vmem:[#allocation11 + $0x220] sm:$0xff]
    %v4631 = vld [vmem:[#allocation11 + $0x228] sm:$0xff]
    %v4632 = vld [vmem:[#allocation11 + $0x230] sm:$0xff]
    %v4633 = vld [vmem:[#allocation11 + $0x238] sm:$0xff]
    %v4634 = vld [vmem:[#allocation11 + $0x240] sm:$0xff]
    %v4635 = vld [vmem:[#allocation11 + $0x248] sm:$0xff]
    %v4636 = vld [vmem:[#allocation11 + $0x250] sm:$0xff]
    %v4637 = vld [vmem:[#allocation11 + $0x258] sm:$0xff]
    %v4638 = vld [vmem:[#allocation11 + $0x260] sm:$0xff]
    %v4639 = vld [vmem:[#allocation11 + $0x268] sm:$0xff]
    %v4640 = vld [vmem:[#allocation11 + $0x270] sm:$0xff]
    %v4641 = vld [vmem:[#allocation11 + $0x278] sm:$0xff]
    %v4642 = vld [vmem:[#allocation11 + $0x280] sm:$0xff]
    %v4643 = vld [vmem:[#allocation11 + $0x288] sm:$0xff]
    %v4644 = vld [vmem:[#allocation11 + $0x290] sm:$0xff]
    %v4645 = vld [vmem:[#allocation11 + $0x298] sm:$0xff]
    %v4646 = vld [vmem:[#allocation11 + $0x2a0] sm:$0xff]
    %v4647 = vld [vmem:[#allocation11 + $0x2a8] sm:$0xff]
    %v4648 = vld [vmem:[#allocation11 + $0x2b0] sm:$0xff]
    %v4649 = vld [vmem:[#allocation11 + $0x2b8] sm:$0xff]
    %v4650 = vld [vmem:[#allocation11 + $0x2c0] sm:$0xff]
    %v4651 = vld [vmem:[#allocation11 + $0x2c8] sm:$0xff]
    %v4652 = vld [vmem:[#allocation11 + $0x2d0] sm:$0xff]
    %v4653 = vld [vmem:[#allocation11 + $0x2d8] sm:$0xff]
    %v4654 = vld [vmem:[#allocation11 + $0x2e0] sm:$0xff]
    %v4655 = vld [vmem:[#allocation11 + $0x2e8] sm:$0xff]
    %v4656 = vld [vmem:[#allocation11 + $0x2f0] sm:$0xff]
    %v4657 = vld [vmem:[#allocation11 + $0x2f8] sm:$0xff]
    %v4658 = vld [vmem:[#allocation11 + $0x300] sm:$0xff]
    %v4659 = vld [vmem:[#allocation11 + $0x308] sm:$0xff]
    %v4660 = vld [vmem:[#allocation11 + $0x310] sm:$0xff]
    %v4661 = vld [vmem:[#allocation11 + $0x318] sm:$0xff]
    %v4662 = vld [vmem:[#allocation11 + $0x320] sm:$0xff]
    %v4663 = vld [vmem:[#allocation11 + $0x328] sm:$0xff]
    %v4664 = vld [vmem:[#allocation11 + $0x330] sm:$0xff]
    %v4665 = vld [vmem:[#allocation11 + $0x338] sm:$0xff]
    %v4666 = vld [vmem:[#allocation11 + $0x340] sm:$0xff]
    %v4667 = vld [vmem:[#allocation11 + $0x348] sm:$0xff]
    %v4668 = vld [vmem:[#allocation11 + $0x350] sm:$0xff]
    %v4669 = vld [vmem:[#allocation11 + $0x358] sm:$0xff]
    %v4670 = vld [vmem:[#allocation11 + $0x360] sm:$0xff]
    %v4671 = vld [vmem:[#allocation11 + $0x368] sm:$0xff]
    %v4672 = vld [vmem:[#allocation11 + $0x370] sm:$0xff]
    %v4673 = vld [vmem:[#allocation11 + $0x378] sm:$0xff]
    %v4674 = vld [vmem:[#allocation11 + $0x380] sm:$0xff]
    %v4675 = vld [vmem:[#allocation11 + $0x388] sm:$0xff]
    %v4676 = vld [vmem:[#allocation11 + $0x390] sm:$0xff]
    %v4677 = vld [vmem:[#allocation11 + $0x398] sm:$0xff]
    %v4678 = vld [vmem:[#allocation11 + $0x3a0] sm:$0xff]
    %v4679 = vld [vmem:[#allocation11 + $0x3a8] sm:$0xff]
    %v4680 = vld [vmem:[#allocation11 + $0x3b0] sm:$0xff]
    %v4681 = vld [vmem:[#allocation11 + $0x3b8] sm:$0xff]
    %v4682 = vld [vmem:[#allocation11 + $0x3c0] sm:$0xff]
    %v4683 = vld [vmem:[#allocation11 + $0x3c8] sm:$0xff]
    %v4684 = vld [vmem:[#allocation11 + $0x3d0] sm:$0xff]
    %v4685 = vld [vmem:[#allocation11 + $0x3d8] sm:$0xff]
    %v4686 = vld [vmem:[#allocation11 + $0x3e0] sm:$0xff]
    %v4687 = vld [vmem:[#allocation11 + $0x3e8] sm:$0xff]
    %v4688 = vld [vmem:[#allocation11 + $0x3f0] sm:$0xff]
    %v4689 = vld [vmem:[#allocation11 + $0x3f8] sm:$0xff]
    %v4690 = vld [vmem:[#allocation14] sm:$0xff]
    %v4692 = vlaneseq
    %v4693 = vshrl.u32 %v4692, 7
    %v4694 = vsub.s32 0, %v4693
    %v4695 = vrot.slane %v4690, %v4694
    %v4696 = vlaneseq
    %v4697 = vshrl.u32 %v4696, 7
    %v4698 = vsub.s32 1, %v4697
    %v4699 = vrot.slane %v4690, %v4698
    %v4700 = vlaneseq
    %v4701 = vshrl.u32 %v4700, 7
    %v4702 = vsub.s32 2, %v4701
    %v4703 = vrot.slane %v4690, %v4702
    %v4704 = vlaneseq
    %v4705 = vshrl.u32 %v4704, 7
    %v4706 = vsub.s32 3, %v4705
    %v4707 = vrot.slane %v4690, %v4706
    %v4708 = vlaneseq
    %v4709 = vshrl.u32 %v4708, 7
    %v4710 = vsub.s32 4, %v4709
    %v4711 = vrot.slane %v4690, %v4710
    %v4712 = vlaneseq
    %v4713 = vshrl.u32 %v4712, 7
    %v4714 = vsub.s32 5, %v4713
    %v4715 = vrot.slane %v4690, %v4714
    %v4716 = vlaneseq
    %v4717 = vshrl.u32 %v4716, 7
    %v4718 = vsub.s32 6, %v4717
    %v4719 = vrot.slane %v4690, %v4718
    %v4720 = vlaneseq
    %v4721 = vshrl.u32 %v4720, 7
    %v4722 = vsub.s32 7, %v4721
    %v4723 = vrot.slane %v4690, %v4722
    %v4860 = vunpack.c.l.b16 %v4562
    %v4861 = vunpack.c.h.b16 %v4562
    %v4862 = vunpack.c.l.b16 %v4563
    %v4863 = vunpack.c.h.b16 %v4563
    %v4864 = vunpack.c.l.b16 %v4564
    %v4865 = vunpack.c.h.b16 %v4564
    %v4866 = vunpack.c.l.b16 %v4565
    %v4867 = vunpack.c.h.b16 %v4565
    %v4868 = vunpack.c.l.b16 %v4566
    %v4869 = vunpack.c.h.b16 %v4566
    %v4870 = vunpack.c.l.b16 %v4567
    %v4871 = vunpack.c.h.b16 %v4567
    %v4872 = vunpack.c.l.b16 %v4568
    %v4873 = vunpack.c.h.b16 %v4568
    %v4874 = vunpack.c.l.b16 %v4569
    %v4875 = vunpack.c.h.b16 %v4569
    %v4876 = vunpack.c.l.b16 %v4570
    %v4877 = vunpack.c.h.b16 %v4570
    %v4878 = vunpack.c.l.b16 %v4571
    %v4879 = vunpack.c.h.b16 %v4571
    %v4880 = vunpack.c.l.b16 %v4572
    %v4881 = vunpack.c.h.b16 %v4572
    %v4882 = vunpack.c.l.b16 %v4573
    %v4883 = vunpack.c.h.b16 %v4573
    %v4884 = vunpack.c.l.b16 %v4574
    %v4885 = vunpack.c.h.b16 %v4574
    %v4886 = vunpack.c.l.b16 %v4575
    %v4887 = vunpack.c.h.b16 %v4575
    %v4888 = vunpack.c.l.b16 %v4576
    %v4889 = vunpack.c.h.b16 %v4576
    %v4890 = vunpack.c.l.b16 %v4577
    %v4891 = vunpack.c.h.b16 %v4577
    %v4892 = vunpack.c.l.b16 %v4578
    %v4893 = vunpack.c.h.b16 %v4578
    %v4894 = vunpack.c.l.b16 %v4579
    %v4895 = vunpack.c.h.b16 %v4579
    %v4896 = vunpack.c.l.b16 %v4580
    %v4897 = vunpack.c.h.b16 %v4580
    %v4898 = vunpack.c.l.b16 %v4581
    %v4899 = vunpack.c.h.b16 %v4581
    %v4900 = vunpack.c.l.b16 %v4582
    %v4901 = vunpack.c.h.b16 %v4582
    %v4902 = vunpack.c.l.b16 %v4583
    %v4903 = vunpack.c.h.b16 %v4583
    %v4904 = vunpack.c.l.b16 %v4584
    %v4905 = vunpack.c.h.b16 %v4584
    %v4906 = vunpack.c.l.b16 %v4585
    %v4907 = vunpack.c.h.b16 %v4585
    %v4908 = vunpack.c.l.b16 %v4586
    %v4909 = vunpack.c.h.b16 %v4586
    %v4910 = vunpack.c.l.b16 %v4587
    %v4911 = vunpack.c.h.b16 %v4587
    %v4912 = vunpack.c.l.b16 %v4588
    %v4913 = vunpack.c.h.b16 %v4588
    %v4914 = vunpack.c.l.b16 %v4589
    %v4915 = vunpack.c.h.b16 %v4589
    %v4916 = vunpack.c.l.b16 %v4590
    %v4917 = vunpack.c.h.b16 %v4590
    %v4918 = vunpack.c.l.b16 %v4591
    %v4919 = vunpack.c.h.b16 %v4591
    %v4920 = vunpack.c.l.b16 %v4592
    %v4921 = vunpack.c.h.b16 %v4592
    %v4922 = vunpack.c.l.b16 %v4593
    %v4923 = vunpack.c.h.b16 %v4593
    %v4924 = vunpack.c.l.b16 %v4594
    %v4925 = vunpack.c.h.b16 %v4594
    %v4926 = vunpack.c.l.b16 %v4595
    %v4927 = vunpack.c.h.b16 %v4595
    %v4928 = vunpack.c.l.b16 %v4596
    %v4929 = vunpack.c.h.b16 %v4596
    %v4930 = vunpack.c.l.b16 %v4597
    %v4931 = vunpack.c.h.b16 %v4597
    %v4932 = vunpack.c.l.b16 %v4598
    %v4933 = vunpack.c.h.b16 %v4598
    %v4934 = vunpack.c.l.b16 %v4599
    %v4935 = vunpack.c.h.b16 %v4599
    %v4936 = vunpack.c.l.b16 %v4600
    %v4937 = vunpack.c.h.b16 %v4600
    %v4938 = vunpack.c.l.b16 %v4601
    %v4939 = vunpack.c.h.b16 %v4601
    %v4940 = vunpack.c.l.b16 %v4602
    %v4941 = vunpack.c.h.b16 %v4602
    %v4942 = vunpack.c.l.b16 %v4603
    %v4943 = vunpack.c.h.b16 %v4603
    %v4944 = vunpack.c.l.b16 %v4604
    %v4945 = vunpack.c.h.b16 %v4604
    %v4946 = vunpack.c.l.b16 %v4605
    %v4947 = vunpack.c.h.b16 %v4605
    %v4948 = vunpack.c.l.b16 %v4606
    %v4949 = vunpack.c.h.b16 %v4606
    %v4950 = vunpack.c.l.b16 %v4607
    %v4951 = vunpack.c.h.b16 %v4607
    %v4952 = vunpack.c.l.b16 %v4608
    %v4953 = vunpack.c.h.b16 %v4608
    %v4954 = vunpack.c.l.b16 %v4609
    %v4955 = vunpack.c.h.b16 %v4609
    %v4956 = vunpack.c.l.b16 %v4610
    %v4957 = vunpack.c.h.b16 %v4610
    %v4958 = vunpack.c.l.b16 %v4611
    %v4959 = vunpack.c.h.b16 %v4611
    %v4960 = vunpack.c.l.b16 %v4612
    %v4961 = vunpack.c.h.b16 %v4612
    %v4962 = vunpack.c.l.b16 %v4613
    %v4963 = vunpack.c.h.b16 %v4613
    %v4964 = vunpack.c.l.b16 %v4614
    %v4965 = vunpack.c.h.b16 %v4614
    %v4966 = vunpack.c.l.b16 %v4615
    %v4967 = vunpack.c.h.b16 %v4615
    %v4968 = vunpack.c.l.b16 %v4616
    %v4969 = vunpack.c.h.b16 %v4616
    %v4970 = vunpack.c.l.b16 %v4617
    %v4971 = vunpack.c.h.b16 %v4617
    %v4972 = vunpack.c.l.b16 %v4618
    %v4973 = vunpack.c.h.b16 %v4618
    %v4974 = vunpack.c.l.b16 %v4619
    %v4975 = vunpack.c.h.b16 %v4619
    %v4976 = vunpack.c.l.b16 %v4620
    %v4977 = vunpack.c.h.b16 %v4620
    %v4978 = vunpack.c.l.b16 %v4621
    %v4979 = vunpack.c.h.b16 %v4621
    %v4980 = vunpack.c.l.b16 %v4622
    %v4981 = vunpack.c.h.b16 %v4622
    %v4982 = vunpack.c.l.b16 %v4623
    %v4983 = vunpack.c.h.b16 %v4623
    %v4984 = vunpack.c.l.b16 %v4624
    %v4985 = vunpack.c.h.b16 %v4624
    %v4986 = vunpack.c.l.b16 %v4625
    %v4987 = vunpack.c.h.b16 %v4625
    %v4988 = vunpack.c.l.b16 %v4626
    %v4989 = vunpack.c.h.b16 %v4626
    %v4990 = vunpack.c.l.b16 %v4627
    %v4991 = vunpack.c.h.b16 %v4627
    %v4992 = vunpack.c.l.b16 %v4628
    %v4993 = vunpack.c.h.b16 %v4628
    %v4994 = vunpack.c.l.b16 %v4629
    %v4995 = vunpack.c.h.b16 %v4629
    %v4996 = vunpack.c.l.b16 %v4630
    %v4997 = vunpack.c.h.b16 %v4630
    %v4998 = vunpack.c.l.b16 %v4631
    %v4999 = vunpack.c.h.b16 %v4631
    %v5000 = vunpack.c.l.b16 %v4632
    %v5001 = vunpack.c.h.b16 %v4632
    %v5002 = vunpack.c.l.b16 %v4633
    %v5003 = vunpack.c.h.b16 %v4633
    %v5004 = vunpack.c.l.b16 %v4634
    %v5005 = vunpack.c.h.b16 %v4634
    %v5006 = vunpack.c.l.b16 %v4635
    %v5007 = vunpack.c.h.b16 %v4635
    %v5008 = vunpack.c.l.b16 %v4636
    %v5009 = vunpack.c.h.b16 %v4636
    %v5010 = vunpack.c.l.b16 %v4637
    %v5011 = vunpack.c.h.b16 %v4637
    %v5012 = vunpack.c.l.b16 %v4638
    %v5013 = vunpack.c.h.b16 %v4638
    %v5014 = vunpack.c.l.b16 %v4639
    %v5015 = vunpack.c.h.b16 %v4639
    %v5016 = vunpack.c.l.b16 %v4640
    %v5017 = vunpack.c.h.b16 %v4640
    %v5018 = vunpack.c.l.b16 %v4641
    %v5019 = vunpack.c.h.b16 %v4641
    %v5020 = vunpack.c.l.b16 %v4642
    %v5021 = vunpack.c.h.b16 %v4642
    %v5022 = vunpack.c.l.b16 %v4643
    %v5023 = vunpack.c.h.b16 %v4643
    %v5024 = vunpack.c.l.b16 %v4644
    %v5025 = vunpack.c.h.b16 %v4644
    %v5026 = vunpack.c.l.b16 %v4645
    %v5027 = vunpack.c.h.b16 %v4645
    %v5028 = vunpack.c.l.b16 %v4646
    %v5029 = vunpack.c.h.b16 %v4646
    %v5030 = vunpack.c.l.b16 %v4647
    %v5031 = vunpack.c.h.b16 %v4647
    %v5032 = vunpack.c.l.b16 %v4648
    %v5033 = vunpack.c.h.b16 %v4648
    %v5034 = vunpack.c.l.b16 %v4649
    %v5035 = vunpack.c.h.b16 %v4649
    %v5036 = vunpack.c.l.b16 %v4650
    %v5037 = vunpack.c.h.b16 %v4650
    %v5038 = vunpack.c.l.b16 %v4651
    %v5039 = vunpack.c.h.b16 %v4651
    %v5040 = vunpack.c.l.b16 %v4652
    %v5041 = vunpack.c.h.b16 %v4652
    %v5042 = vunpack.c.l.b16 %v4653
    %v5043 = vunpack.c.h.b16 %v4653
    %v5044 = vunpack.c.l.b16 %v4654
    %v5045 = vunpack.c.h.b16 %v4654
    %v5046 = vunpack.c.l.b16 %v4655
    %v5047 = vunpack.c.h.b16 %v4655
    %v5048 = vunpack.c.l.b16 %v4656
    %v5049 = vunpack.c.h.b16 %v4656
    %v5050 = vunpack.c.l.b16 %v4657
    %v5051 = vunpack.c.h.b16 %v4657
    %v5052 = vunpack.c.l.b16 %v4658
    %v5053 = vunpack.c.h.b16 %v4658
    %v5054 = vunpack.c.l.b16 %v4659
    %v5055 = vunpack.c.h.b16 %v4659
    %v5056 = vunpack.c.l.b16 %v4660
    %v5057 = vunpack.c.h.b16 %v4660
    %v5058 = vunpack.c.l.b16 %v4661
    %v5059 = vunpack.c.h.b16 %v4661
    %v5060 = vunpack.c.l.b16 %v4662
    %v5061 = vunpack.c.h.b16 %v4662
    %v5062 = vunpack.c.l.b16 %v4663
    %v5063 = vunpack.c.h.b16 %v4663
    %v5064 = vunpack.c.l.b16 %v4664
    %v5065 = vunpack.c.h.b16 %v4664
    %v5066 = vunpack.c.l.b16 %v4665
    %v5067 = vunpack.c.h.b16 %v4665
    %v5068 = vunpack.c.l.b16 %v4666
    %v5069 = vunpack.c.h.b16 %v4666
    %v5070 = vunpack.c.l.b16 %v4667
    %v5071 = vunpack.c.h.b16 %v4667
    %v5072 = vunpack.c.l.b16 %v4668
    %v5073 = vunpack.c.h.b16 %v4668
    %v5074 = vunpack.c.l.b16 %v4669
    %v5075 = vunpack.c.h.b16 %v4669
    %v5076 = vunpack.c.l.b16 %v4670
    %v5077 = vunpack.c.h.b16 %v4670
    %v5078 = vunpack.c.l.b16 %v4671
    %v5079 = vunpack.c.h.b16 %v4671
    %v5080 = vunpack.c.l.b16 %v4672
    %v5081 = vunpack.c.h.b16 %v4672
    %v5082 = vunpack.c.l.b16 %v4673
    %v5083 = vunpack.c.h.b16 %v4673
    %v5084 = vunpack.c.l.b16 %v4674
    %v5085 = vunpack.c.h.b16 %v4674
    %v5086 = vunpack.c.l.b16 %v4675
    %v5087 = vunpack.c.h.b16 %v4675
    %v5088 = vunpack.c.l.b16 %v4676
    %v5089 = vunpack.c.h.b16 %v4676
    %v5090 = vunpack.c.l.b16 %v4677
    %v5091 = vunpack.c.h.b16 %v4677
    %v5092 = vunpack.c.l.b16 %v4678
    %v5093 = vunpack.c.h.b16 %v4678
    %v5094 = vunpack.c.l.b16 %v4679
    %v5095 = vunpack.c.h.b16 %v4679
    %v5096 = vunpack.c.l.b16 %v4680
    %v5097 = vunpack.c.h.b16 %v4680
    %v5098 = vunpack.c.l.b16 %v4681
    %v5099 = vunpack.c.h.b16 %v4681
    %v5100 = vunpack.c.l.b16 %v4682
    %v5101 = vunpack.c.h.b16 %v4682
    %v5102 = vunpack.c.l.b16 %v4683
    %v5103 = vunpack.c.h.b16 %v4683
    %v5104 = vunpack.c.l.b16 %v4684
    %v5105 = vunpack.c.h.b16 %v4684
    %v5106 = vunpack.c.l.b16 %v4685
    %v5107 = vunpack.c.h.b16 %v4685
    %v5108 = vunpack.c.l.b16 %v4686
    %v5109 = vunpack.c.h.b16 %v4686
    %v5110 = vunpack.c.l.b16 %v4687
    %v5111 = vunpack.c.h.b16 %v4687
    %v5112 = vunpack.c.l.b16 %v4688
    %v5113 = vunpack.c.h.b16 %v4688
    %v5114 = vunpack.c.l.b16 %v4689
    %v5115 = vunpack.c.h.b16 %v4689
    %v5116 = vpack.c.b16 %v4868, %v4860
    %v5117 = vpack.c.b16 %v4869, %v4861
    %v5118 = vpack.c.b16 %v4870, %v4862
    %v5119 = vpack.c.b16 %v4871, %v4863
    %v5120 = vpack.c.b16 %v4872, %v4864
    %v5121 = vpack.c.b16 %v4873, %v4865
    %v5122 = vpack.c.b16 %v4874, %v4866
    %v5123 = vpack.c.b16 %v4875, %v4867
    %v5124 = vpack.c.b16 %v4884, %v4876
    %v5125 = vpack.c.b16 %v4885, %v4877
    %v5126 = vpack.c.b16 %v4886, %v4878
    %v5127 = vpack.c.b16 %v4887, %v4879
    %v5128 = vpack.c.b16 %v4888, %v4880
    %v5129 = vpack.c.b16 %v4889, %v4881
    %v5130 = vpack.c.b16 %v4890, %v4882
    %v5131 = vpack.c.b16 %v4891, %v4883
    %v5132 = vpack.c.b16 %v4900, %v4892
    %v5133 = vpack.c.b16 %v4901, %v4893
    %v5134 = vpack.c.b16 %v4902, %v4894
    %v5135 = vpack.c.b16 %v4903, %v4895
    %v5136 = vpack.c.b16 %v4904, %v4896
    %v5137 = vpack.c.b16 %v4905, %v4897
    %v5138 = vpack.c.b16 %v4906, %v4898
    %v5139 = vpack.c.b16 %v4907, %v4899
    %v5140 = vpack.c.b16 %v4916, %v4908
    %v5141 = vpack.c.b16 %v4917, %v4909
    %v5142 = vpack.c.b16 %v4918, %v4910
    %v5143 = vpack.c.b16 %v4919, %v4911
    %v5144 = vpack.c.b16 %v4920, %v4912
    %v5145 = vpack.c.b16 %v4921, %v4913
    %v5146 = vpack.c.b16 %v4922, %v4914
    %v5147 = vpack.c.b16 %v4923, %v4915
    %v5148 = vpack.c.b16 %v4932, %v4924
    %v5149 = vpack.c.b16 %v4933, %v4925
    %v5150 = vpack.c.b16 %v4934, %v4926
    %v5151 = vpack.c.b16 %v4935, %v4927
    %v5152 = vpack.c.b16 %v4936, %v4928
    %v5153 = vpack.c.b16 %v4937, %v4929
    %v5154 = vpack.c.b16 %v4938, %v4930
    %v5155 = vpack.c.b16 %v4939, %v4931
    %v5156 = vpack.c.b16 %v4948, %v4940
    %v5157 = vpack.c.b16 %v4949, %v4941
    %v5158 = vpack.c.b16 %v4950, %v4942
    %v5159 = vpack.c.b16 %v4951, %v4943
    %v5160 = vpack.c.b16 %v4952, %v4944
    %v5161 = vpack.c.b16 %v4953, %v4945
    %v5162 = vpack.c.b16 %v4954, %v4946
    %v5163 = vpack.c.b16 %v4955, %v4947
    %v5164 = vpack.c.b16 %v4964, %v4956
    %v5165 = vpack.c.b16 %v4965, %v4957
    %v5166 = vpack.c.b16 %v4966, %v4958
    %v5167 = vpack.c.b16 %v4967, %v4959
    %v5168 = vpack.c.b16 %v4968, %v4960
    %v5169 = vpack.c.b16 %v4969, %v4961
    %v5170 = vpack.c.b16 %v4970, %v4962
    %v5171 = vpack.c.b16 %v4971, %v4963
    %v5172 = vpack.c.b16 %v4980, %v4972
    %v5173 = vpack.c.b16 %v4981, %v4973
    %v5174 = vpack.c.b16 %v4982, %v4974
    %v5175 = vpack.c.b16 %v4983, %v4975
    %v5176 = vpack.c.b16 %v4984, %v4976
    %v5177 = vpack.c.b16 %v4985, %v4977
    %v5178 = vpack.c.b16 %v4986, %v4978
    %v5179 = vpack.c.b16 %v4987, %v4979
    %v5180 = vpack.c.b16 %v4996, %v4988
    %v5181 = vpack.c.b16 %v4997, %v4989
    %v5182 = vpack.c.b16 %v4998, %v4990
    %v5183 = vpack.c.b16 %v4999, %v4991
    %v5184 = vpack.c.b16 %v5000, %v4992
    %v5185 = vpack.c.b16 %v5001, %v4993
    %v5186 = vpack.c.b16 %v5002, %v4994
    %v5187 = vpack.c.b16 %v5003, %v4995
    %v5188 = vpack.c.b16 %v5012, %v5004
    %v5189 = vpack.c.b16 %v5013, %v5005
    %v5190 = vpack.c.b16 %v5014, %v5006
    %v5191 = vpack.c.b16 %v5015, %v5007
    %v5192 = vpack.c.b16 %v5016, %v5008
    %v5193 = vpack.c.b16 %v5017, %v5009
    %v5194 = vpack.c.b16 %v5018, %v5010
    %v5195 = vpack.c.b16 %v5019, %v5011
    %v5196 = vpack.c.b16 %v5028, %v5020
    %v5197 = vpack.c.b16 %v5029, %v5021
    %v5198 = vpack.c.b16 %v5030, %v5022
    %v5199 = vpack.c.b16 %v5031, %v5023
    %v5200 = vpack.c.b16 %v5032, %v5024
    %v5201 = vpack.c.b16 %v5033, %v5025
    %v5202 = vpack.c.b16 %v5034, %v5026
    %v5203 = vpack.c.b16 %v5035, %v5027
    %v5204 = vpack.c.b16 %v5044, %v5036
    %v5205 = vpack.c.b16 %v5045, %v5037
    %v5206 = vpack.c.b16 %v5046, %v5038
    %v5207 = vpack.c.b16 %v5047, %v5039
    %v5208 = vpack.c.b16 %v5048, %v5040
    %v5209 = vpack.c.b16 %v5049, %v5041
    %v5210 = vpack.c.b16 %v5050, %v5042
    %v5211 = vpack.c.b16 %v5051, %v5043
    %v5212 = vpack.c.b16 %v5060, %v5052
    %v5213 = vpack.c.b16 %v5061, %v5053
    %v5214 = vpack.c.b16 %v5062, %v5054
    %v5215 = vpack.c.b16 %v5063, %v5055
    %v5216 = vpack.c.b16 %v5064, %v5056
    %v5217 = vpack.c.b16 %v5065, %v5057
    %v5218 = vpack.c.b16 %v5066, %v5058
    %v5219 = vpack.c.b16 %v5067, %v5059
    %v5220 = vpack.c.b16 %v5076, %v5068
    %v5221 = vpack.c.b16 %v5077, %v5069
    %v5222 = vpack.c.b16 %v5078, %v5070
    %v5223 = vpack.c.b16 %v5079, %v5071
    %v5224 = vpack.c.b16 %v5080, %v5072
    %v5225 = vpack.c.b16 %v5081, %v5073
    %v5226 = vpack.c.b16 %v5082, %v5074
    %v5227 = vpack.c.b16 %v5083, %v5075
    %v5228 = vpack.c.b16 %v5092, %v5084
    %v5229 = vpack.c.b16 %v5093, %v5085
    %v5230 = vpack.c.b16 %v5094, %v5086
    %v5231 = vpack.c.b16 %v5095, %v5087
    %v5232 = vpack.c.b16 %v5096, %v5088
    %v5233 = vpack.c.b16 %v5097, %v5089
    %v5234 = vpack.c.b16 %v5098, %v5090
    %v5235 = vpack.c.b16 %v5099, %v5091
    %v5236 = vpack.c.b16 %v5108, %v5100
    %v5237 = vpack.c.b16 %v5109, %v5101
    %v5238 = vpack.c.b16 %v5110, %v5102
    %v5239 = vpack.c.b16 %v5111, %v5103
    %v5240 = vpack.c.b16 %v5112, %v5104
    %v5241 = vpack.c.b16 %v5113, %v5105
    %v5242 = vpack.c.b16 %v5114, %v5106
    %v5243 = vpack.c.b16 %v5115, %v5107
    %5372 = vmatprep.subr.bf16.mxu0 %v5173
    %5373 = vmatpush1.bf16.msra.mxu0 %v5172
    %5374 = vmatprep.subr.bf16.mxu0 %v5165
    %5375 = vmatpush1.bf16.msra.mxu0 %v5164
    %5376 = vmatprep.subr.bf16.mxu0 %v5157
    %5377 = vmatpush1.bf16.msra.mxu0 %v5156
    %5378 = vmatprep.subr.bf16.mxu0 %v5149
    %5379 = vmatpush1.bf16.msra.mxu0 %v5148
    %5380 = vmatprep.subr.bf16.mxu0 %v5141
    %5381 = vmatpush1.bf16.msra.mxu0 %v5140
    %5382 = vmatprep.subr.bf16.mxu0 %v5133
    %5383 = vmatpush1.bf16.msra.mxu0 %v5132
    %5384 = vmatprep.subr.bf16.mxu0 %v5125
    %5385 = vmatpush1.bf16.msra.mxu0 %v5124
    %5386 = vmatprep.subr.bf16.mxu0 %v5117
    %5387 = vmatpush1.bf16.msra.mxu0 %v5116
    %5388 = vmatprep.subr.bf16.mxu0 %v5237
    %5389 = vmatpush2.bf16.msra.mxu0 %v5236
    %5390 = vmatprep.subr.bf16.mxu0 %v5229
    %5391 = vmatpush2.bf16.msra.mxu0 %v5228
    %5392 = vmatprep.subr.bf16.mxu0 %v5221
    %5393 = vmatpush2.bf16.msra.mxu0 %v5220
    %5394 = vmatprep.subr.bf16.mxu0 %v5213
    %5395 = vmatpush2.bf16.msra.mxu0 %v5212
    %5396 = vmatprep.subr.bf16.mxu0 %v5205
    %5397 = vmatpush2.bf16.msra.mxu0 %v5204
    %5398 = vmatprep.subr.bf16.mxu0 %v5197
    %5399 = vmatpush2.bf16.msra.mxu0 %v5196
    %5400 = vmatprep.subr.bf16.mxu0 %v5189
    %5401 = vmatpush2.bf16.msra.mxu0 %v5188
    %5402 = vmatprep.subr.bf16.mxu0 %v5181
    %5403 = vmatpush2.bf16.msra.mxu0 %v5180
    %5404 = vmatprep.mubr.bf16.mxu0 %v4555
    %5405 = vmatmul.mubr.bf16.gmra.mxu0 %v4554
    %v5406 = vpop.f32.mrf.mxu0
    %v5407 = vadd.f32 %v4695, %v5406
    %v5408 = vpop.f32.mrf.mxu0
    %v5409 = vadd.f32 %v4699, %v5408
    %v5410 = vpop.f32.mrf.mxu0
    %v5411 = vadd.f32 %v4695, %v5410
    %v5412 = vpop.f32.mrf.mxu0
    %v5413 = vadd.f32 %v4699, %v5412
    %5414 = vmatprep.mubr.bf16.mxu0 %v4557
    %5415 = vmatmul.mubr.bf16.gmra.mxu0 %v4556
    %v5416 = vpop.f32.mrf.mxu0
    %v5417 = vadd.f32 %v4695, %v5416
    %v5418 = vpop.f32.mrf.mxu0
    %v5419 = vadd.f32 %v4699, %v5418
    %v5420 = vpop.f32.mrf.mxu0
    %v5421 = vadd.f32 %v4695, %v5420
    %v5422 = vpop.f32.mrf.mxu0
    %v5423 = vadd.f32 %v4699, %v5422
    %5424 = vmatprep.mubr.bf16.mxu0 %v4559
    %5425 = vmatmul.mubr.bf16.gmra.mxu0 %v4558
    %v5426 = vpop.f32.mrf.mxu0
    %v5427 = vadd.f32 %v4695, %v5426
    %v5428 = vpop.f32.mrf.mxu0
    %v5429 = vadd.f32 %v4699, %v5428
    %v5430 = vpop.f32.mrf.mxu0
    %v5431 = vadd.f32 %v4695, %v5430
    %v5432 = vpop.f32.mrf.mxu0
    %v5433 = vadd.f32 %v4699, %v5432
    %5434 = vmatprep.mubr.bf16.mxu0 %v4561
    %5435 = vmatmul.mubr.bf16.gmra.mxu0 %v4560
    %v5436 = vpop.f32.mrf.mxu0
    %v5437 = vadd.f32 %v4695, %v5436
    %v5438 = vpop.f32.mrf.mxu0
    %v5439 = vadd.f32 %v4699, %v5438
    %v5440 = vpop.f32.mrf.mxu0
    %v5441 = vadd.f32 %v4695, %v5440
    %v5442 = vpop.f32.mrf.mxu0
    %v5443 = vadd.f32 %v4699, %v5442
    %5444 = vdwg.mxu0
    %5445 = vmatprep.subr.bf16.mxu0 %v5175
    %5446 = vmatpush1.bf16.msra.mxu0 %v5174
    %5447 = vmatprep.subr.bf16.mxu0 %v5167
    %5448 = vmatpush1.bf16.msra.mxu0 %v5166
    %5449 = vmatprep.subr.bf16.mxu0 %v5159
    %5450 = vmatpush1.bf16.msra.mxu0 %v5158
    %5451 = vmatprep.subr.bf16.mxu0 %v5151
    %5452 = vmatpush1.bf16.msra.mxu0 %v5150
    %5453 = vmatprep.subr.bf16.mxu0 %v5143
    %5454 = vmatpush1.bf16.msra.mxu0 %v5142
    %5455 = vmatprep.subr.bf16.mxu0 %v5135
    %5456 = vmatpush1.bf16.msra.mxu0 %v5134
    %5457 = vmatprep.subr.bf16.mxu0 %v5127
    %5458 = vmatpush1.bf16.msra.mxu0 %v5126
    %5459 = vmatprep.subr.bf16.mxu0 %v5119
    %5460 = vmatpush1.bf16.msra.mxu0 %v5118
    %5461 = vmatprep.subr.bf16.mxu0 %v5239
    %5462 = vmatpush2.bf16.msra.mxu0 %v5238
    %5463 = vmatprep.subr.bf16.mxu0 %v5231
    %5464 = vmatpush2.bf16.msra.mxu0 %v5230
    %5465 = vmatprep.subr.bf16.mxu0 %v5223
    %5466 = vmatpush2.bf16.msra.mxu0 %v5222
    %5467 = vmatprep.subr.bf16.mxu0 %v5215
    %5468 = vmatpush2.bf16.msra.mxu0 %v5214
    %5469 = vmatprep.subr.bf16.mxu0 %v5207
    %5470 = vmatpush2.bf16.msra.mxu0 %v5206
    %5471 = vmatprep.subr.bf16.mxu0 %v5199
    %5472 = vmatpush2.bf16.msra.mxu0 %v5198
    %5473 = vmatprep.subr.bf16.mxu0 %v5191
    %5474 = vmatpush2.bf16.msra.mxu0 %v5190
    %5475 = vmatprep.subr.bf16.mxu0 %v5183
    %5476 = vmatpush2.bf16.msra.mxu0 %v5182
    %5477 = vmatprep.mubr.bf16.mxu0 %v4555
    %5478 = vmatmul.mubr.bf16.gmra.mxu0 %v4554
    %v5479 = vpop.f32.mrf.mxu0
    %v5480 = vadd.f32 %v4703, %v5479
    %v5481 = vpop.f32.mrf.mxu0
    %v5482 = vadd.f32 %v4707, %v5481
    %v5483 = vpop.f32.mrf.mxu0
    %v5484 = vadd.f32 %v4703, %v5483
    %v5485 = vpop.f32.mrf.mxu0
    %v5486 = vadd.f32 %v4707, %v5485
    %5487 = vmatprep.mubr.bf16.mxu0 %v4557
    %5488 = vmatmul.mubr.bf16.gmra.mxu0 %v4556
    %v5489 = vpop.f32.mrf.mxu0
    %v5490 = vadd.f32 %v4703, %v5489
    %v5491 = vpop.f32.mrf.mxu0
    %v5492 = vadd.f32 %v4707, %v5491
    %v5493 = vpop.f32.mrf.mxu0
    %v5494 = vadd.f32 %v4703, %v5493
    %v5495 = vpop.f32.mrf.mxu0
    %v5496 = vadd.f32 %v4707, %v5495
    %5497 = vmatprep.mubr.bf16.mxu0 %v4559
    %5498 = vmatmul.mubr.bf16.gmra.mxu0 %v4558
    %v5499 = vpop.f32.mrf.mxu0
    %v5500 = vadd.f32 %v4703, %v5499
    %v5501 = vpop.f32.mrf.mxu0
    %v5502 = vadd.f32 %v4707, %v5501
    %v5503 = vpop.f32.mrf.mxu0
    %v5504 = vadd.f32 %v4703, %v5503
    %v5505 = vpop.f32.mrf.mxu0
    %v5506 = vadd.f32 %v4707, %v5505
    %5507 = vmatprep.mubr.bf16.mxu0 %v4561
    %5508 = vmatmul.mubr.bf16.gmra.mxu0 %v4560
    %v5509 = vpop.f32.mrf.mxu0
    %v5510 = vadd.f32 %v4703, %v5509
    %v5511 = vpop.f32.mrf.mxu0
    %v5512 = vadd.f32 %v4707, %v5511
    %v5513 = vpop.f32.mrf.mxu0
    %v5514 = vadd.f32 %v4703, %v5513
    %v5515 = vpop.f32.mrf.mxu0
    %v5516 = vadd.f32 %v4707, %v5515
    %5517 = vdwg.mxu0
    %5518 = vmatprep.subr.bf16.mxu0 %v5177
    %5519 = vmatpush1.bf16.msra.mxu0 %v5176
    %5520 = vmatprep.subr.bf16.mxu0 %v5169
    %5521 = vmatpush1.bf16.msra.mxu0 %v5168
    %5522 = vmatprep.subr.bf16.mxu0 %v5161
    %5523 = vmatpush1.bf16.msra.mxu0 %v5160
    %5524 = vmatprep.subr.bf16.mxu0 %v5153
    %5525 = vmatpush1.bf16.msra.mxu0 %v5152
    %5526 = vmatprep.subr.bf16.mxu0 %v5145
    %5527 = vmatpush1.bf16.msra.mxu0 %v5144
    %5528 = vmatprep.subr.bf16.mxu0 %v5137
    %5529 = vmatpush1.bf16.msra.mxu0 %v5136
    %5530 = vmatprep.subr.bf16.mxu0 %v5129
    %5531 = vmatpush1.bf16.msra.mxu0 %v5128
    %5532 = vmatprep.subr.bf16.mxu0 %v5121
    %5533 = vmatpush1.bf16.msra.mxu0 %v5120
    %5534 = vmatprep.subr.bf16.mxu0 %v5241
    %5535 = vmatpush2.bf16.msra.mxu0 %v5240
    %5536 = vmatprep.subr.bf16.mxu0 %v5233
    %5537 = vmatpush2.bf16.msra.mxu0 %v5232
    %5538 = vmatprep.subr.bf16.mxu0 %v5225
    %5539 = vmatpush2.bf16.msra.mxu0 %v5224
    %5540 = vmatprep.subr.bf16.mxu0 %v5217
    %5541 = vmatpush2.bf16.msra.mxu0 %v5216
    %5542 = vmatprep.subr.bf16.mxu0 %v5209
    %5543 = vmatpush2.bf16.msra.mxu0 %v5208
    %5544 = vmatprep.subr.bf16.mxu0 %v5201
    %5545 = vmatpush2.bf16.msra.mxu0 %v5200
    %5546 = vmatprep.subr.bf16.mxu0 %v5193
    %5547 = vmatpush2.bf16.msra.mxu0 %v5192
    %5548 = vmatprep.subr.bf16.mxu0 %v5185
    %5549 = vmatpush2.bf16.msra.mxu0 %v5184
    %5550 = vmatprep.mubr.bf16.mxu0 %v4555
    %5551 = vmatmul.mubr.bf16.gmra.mxu0 %v4554
    %v5552 = vpop.f32.mrf.mxu0
    %v5553 = vadd.f32 %v4711, %v5552
    %v5554 = vpop.f32.mrf.mxu0
    %v5555 = vadd.f32 %v4715, %v5554
    %v5556 = vpop.f32.mrf.mxu0
    %v5557 = vadd.f32 %v4711, %v5556
    %v5558 = vpop.f32.mrf.mxu0
    %v5559 = vadd.f32 %v4715, %v5558
    %5560 = vmatprep.mubr.bf16.mxu0 %v4557
    %5561 = vmatmul.mubr.bf16.gmra.mxu0 %v4556
    %v5562 = vpop.f32.mrf.mxu0
    %v5563 = vadd.f32 %v4711, %v5562
    %v5564 = vpop.f32.mrf.mxu0
    %v5565 = vadd.f32 %v4715, %v5564
    %v5566 = vpop.f32.mrf.mxu0
    %v5567 = vadd.f32 %v4711, %v5566
    %v5568 = vpop.f32.mrf.mxu0
    %v5569 = vadd.f32 %v4715, %v5568
    %5570 = vmatprep.mubr.bf16.mxu0 %v4559
    %5571 = vmatmul.mubr.bf16.gmra.mxu0 %v4558
    %v5572 = vpop.f32.mrf.mxu0
    %v5573 = vadd.f32 %v4711, %v5572
    %v5574 = vpop.f32.mrf.mxu0
    %v5575 = vadd.f32 %v4715, %v5574
    %v5576 = vpop.f32.mrf.mxu0
    %v5577 = vadd.f32 %v4711, %v5576
    %v5578 = vpop.f32.mrf.mxu0
    %v5579 = vadd.f32 %v4715, %v5578
    %5580 = vmatprep.mubr.bf16.mxu0 %v4561
    %5581 = vmatmul.mubr.bf16.gmra.mxu0 %v4560
    %v5582 = vpop.f32.mrf.mxu0
    %v5583 = vadd.f32 %v4711, %v5582
    %v5584 = vpop.f32.mrf.mxu0
    %v5585 = vadd.f32 %v4715, %v5584
    %v5586 = vpop.f32.mrf.mxu0
    %v5587 = vadd.f32 %v4711, %v5586
    %v5588 = vpop.f32.mrf.mxu0
    %v5589 = vadd.f32 %v4715, %v5588
    %5590 = vdwg.mxu0
    %5591 = vmatprep.subr.bf16.mxu0 %v5179
    %5592 = vmatpush1.bf16.msra.mxu0 %v5178
    %5593 = vmatprep.subr.bf16.mxu0 %v5171
    %5594 = vmatpush1.bf16.msra.mxu0 %v5170
    %5595 = vmatprep.subr.bf16.mxu0 %v5163
    %5596 = vmatpush1.bf16.msra.mxu0 %v5162
    %5597 = vmatprep.subr.bf16.mxu0 %v5155
    %5598 = vmatpush1.bf16.msra.mxu0 %v5154
    %5599 = vmatprep.subr.bf16.mxu0 %v5147
    %5600 = vmatpush1.bf16.msra.mxu0 %v5146
    %5601 = vmatprep.subr.bf16.mxu0 %v5139
    %5602 = vmatpush1.bf16.msra.mxu0 %v5138
    %5603 = vmatprep.subr.bf16.mxu0 %v5131
    %5604 = vmatpush1.bf16.msra.mxu0 %v5130
    %5605 = vmatprep.subr.bf16.mxu0 %v5123
    %5606 = vmatpush1.bf16.msra.mxu0 %v5122
    %5607 = vmatprep.subr.bf16.mxu0 %v5243
    %5608 = vmatpush2.bf16.msra.mxu0 %v5242
    %5609 = vmatprep.subr.bf16.mxu0 %v5235
    %5610 = vmatpush2.bf16.msra.mxu0 %v5234
    %5611 = vmatprep.subr.bf16.mxu0 %v5227
    %5612 = vmatpush2.bf16.msra.mxu0 %v5226
    %5613 = vmatprep.subr.bf16.mxu0 %v5219
    %5614 = vmatpush2.bf16.msra.mxu0 %v5218
    %5615 = vmatprep.subr.bf16.mxu0 %v5211
    %5616 = vmatpush2.bf16.msra.mxu0 %v5210
    %5617 = vmatprep.subr.bf16.mxu0 %v5203
    %5618 = vmatpush2.bf16.msra.mxu0 %v5202
    %5619 = vmatprep.subr.bf16.mxu0 %v5195
    %5620 = vmatpush2.bf16.msra.mxu0 %v5194
    %5621 = vmatprep.subr.bf16.mxu0 %v5187
    %5622 = vmatpush2.bf16.msra.mxu0 %v5186
    %5623 = vmatprep.mubr.bf16.mxu0 %v4555
    %5624 = vmatmul.mubr.bf16.gmra.mxu0 %v4554
    %v5625 = vpop.f32.mrf.mxu0
    %v5626 = vadd.f32 %v4719, %v5625
    %v5627 = vpop.f32.mrf.mxu0
    %v5628 = vadd.f32 %v4723, %v5627
    %v5629 = vpop.f32.mrf.mxu0
    %v5630 = vadd.f32 %v4719, %v5629
    %v5631 = vpop.f32.mrf.mxu0
    %v5632 = vadd.f32 %v4723, %v5631
    %5633 = vmatprep.mubr.bf16.mxu0 %v4557
    %5634 = vmatmul.mubr.bf16.gmra.mxu0 %v4556
    %v5635 = vpop.f32.mrf.mxu0
    %v5636 = vadd.f32 %v4719, %v5635
    %v5637 = vpop.f32.mrf.mxu0
    %v5638 = vadd.f32 %v4723, %v5637
    %v5639 = vpop.f32.mrf.mxu0
    %v5640 = vadd.f32 %v4719, %v5639
    %v5641 = vpop.f32.mrf.mxu0
    %v5642 = vadd.f32 %v4723, %v5641
    %5643 = vmatprep.mubr.bf16.mxu0 %v4559
    %5644 = vmatmul.mubr.bf16.gmra.mxu0 %v4558
    %v5645 = vpop.f32.mrf.mxu0
    %v5646 = vadd.f32 %v4719, %v5645
    %v5647 = vpop.f32.mrf.mxu0
    %v5648 = vadd.f32 %v4723, %v5647
    %v5649 = vpop.f32.mrf.mxu0
    %v5650 = vadd.f32 %v4719, %v5649
    %v5651 = vpop.f32.mrf.mxu0
    %v5652 = vadd.f32 %v4723, %v5651
    %5653 = vmatprep.mubr.bf16.mxu0 %v4561
    %5654 = vmatmul.mubr.bf16.gmra.mxu0 %v4560
    %v5655 = vpop.f32.mrf.mxu0
    %v5656 = vadd.f32 %v4719, %v5655
    %v5657 = vpop.f32.mrf.mxu0
    %v5658 = vadd.f32 %v4723, %v5657
    %v5659 = vpop.f32.mrf.mxu0
    %v5660 = vadd.f32 %v4719, %v5659
    %v5661 = vpop.f32.mrf.mxu0
    %v5662 = vadd.f32 %v4723, %v5661
    %5663 = vdwg.mxu0
    %5664 = vst [vmem:[#allocation2] sm:$0xff] %v5407
    %5665 = vst [vmem:[#allocation2 + $0x8] sm:$0xff] %v5409
    %5666 = vst [vmem:[#allocation2 + $0x10] sm:$0xff] %v5480
    %5667 = vst [vmem:[#allocation2 + $0x18] sm:$0xff] %v5482
    %5668 = vst [vmem:[#allocation2 + $0x20] sm:$0xff] %v5553
    %5669 = vst [vmem:[#allocation2 + $0x28] sm:$0xff] %v5555
    %5670 = vst [vmem:[#allocation2 + $0x30] sm:$0xff] %v5626
    %5671 = vst [vmem:[#allocation2 + $0x38] sm:$0xff] %v5628
    %5672 = vst [vmem:[#allocation2 + $0x40] sm:$0xff] %v5411
    %5673 = vst [vmem:[#allocation2 + $0x48] sm:$0xff] %v5413
    %5674 = vst [vmem:[#allocation2 + $0x50] sm:$0xff] %v5484
    %5675 = vst [vmem:[#allocation2 + $0x58] sm:$0xff] %v5486
    %5676 = vst [vmem:[#allocation2 + $0x60] sm:$0xff] %v5557
    %5677 = vst [vmem:[#allocation2 + $0x68] sm:$0xff] %v5559
    %5678 = vst [vmem:[#allocation2 + $0x70] sm:$0xff] %v5630
    %5679 = vst [vmem:[#allocation2 + $0x78] sm:$0xff] %v5632
    %5680 = vst [vmem:[#allocation2 + $0x80] sm:$0xff] %v5417
    %5681 = vst [vmem:[#allocation2 + $0x88] sm:$0xff] %v5419
    %5682 = vst [vmem:[#allocation2 + $0x90] sm:$0xff] %v5490
    %5683 = vst [vmem:[#allocation2 + $0x98] sm:$0xff] %v5492
    %5684 = vst [vmem:[#allocation2 + $0xa0] sm:$0xff] %v5563
    %5685 = vst [vmem:[#allocation2 + $0xa8] sm:$0xff] %v5565
    %5686 = vst [vmem:[#allocation2 + $0xb0] sm:$0xff] %v5636
    %5687 = vst [vmem:[#allocation2 + $0xb8] sm:$0xff] %v5638
    %5688 = vst [vmem:[#allocation2 + $0xc0] sm:$0xff] %v5421
    %5689 = vst [vmem:[#allocation2 + $0xc8] sm:$0xff] %v5423
    %5690 = vst [vmem:[#allocation2 + $0xd0] sm:$0xff] %v5494
    %5691 = vst [vmem:[#allocation2 + $0xd8] sm:$0xff] %v5496
    %5692 = vst [vmem:[#allocation2 + $0xe0] sm:$0xff] %v5567
    %5693 = vst [vmem:[#allocation2 + $0xe8] sm:$0xff] %v5569
    %5694 = vst [vmem:[#allocation2 + $0xf0] sm:$0xff] %v5640
    %5695 = vst [vmem:[#allocation2 + $0xf8] sm:$0xff] %v5642
    %5696 = vst [vmem:[#allocation2 + $0x100] sm:$0xff] %v5427
    %5697 = vst [vmem:[#allocation2 + $0x108] sm:$0xff] %v5429
    %5698 = vst [vmem:[#allocation2 + $0x110] sm:$0xff] %v5500
    %5699 = vst [vmem:[#allocation2 + $0x118] sm:$0xff] %v5502
    %5700 = vst [vmem:[#allocation2 + $0x120] sm:$0xff] %v5573
    %5701 = vst [vmem:[#allocation2 + $0x128] sm:$0xff] %v5575
    %5702 = vst [vmem:[#allocation2 + $0x130] sm:$0xff] %v5646
    %5703 = vst [vmem:[#allocation2 + $0x138] sm:$0xff] %v5648
    %5704 = vst [vmem:[#allocation2 + $0x140] sm:$0xff] %v5431
    %5705 = vst [vmem:[#allocation2 + $0x148] sm:$0xff] %v5433
    %5706 = vst [vmem:[#allocation2 + $0x150] sm:$0xff] %v5504
    %5707 = vst [vmem:[#allocation2 + $0x158] sm:$0xff] %v5506
    %5708 = vst [vmem:[#allocation2 + $0x160] sm:$0xff] %v5577
    %5709 = vst [vmem:[#allocation2 + $0x168] sm:$0xff] %v5579
    %5710 = vst [vmem:[#allocation2 + $0x170] sm:$0xff] %v5650
    %5711 = vst [vmem:[#allocation2 + $0x178] sm:$0xff] %v5652
    %5712 = vst [vmem:[#allocation2 + $0x180] sm:$0xff] %v5437
    %5713 = vst [vmem:[#allocation2 + $0x188] sm:$0xff] %v5439
    %5714 = vst [vmem:[#allocation2 + $0x190] sm:$0xff] %v5510
    %5715 = vst [vmem:[#allocation2 + $0x198] sm:$0xff] %v5512
    %5716 = vst [vmem:[#allocation2 + $0x1a0] sm:$0xff] %v5583
    %5717 = vst [vmem:[#allocation2 + $0x1a8] sm:$0xff] %v5585
    %5718 = vst [vmem:[#allocation2 + $0x1b0] sm:$0xff] %v5656
    %5719 = vst [vmem:[#allocation2 + $0x1b8] sm:$0xff] %v5658
    %5720 = vst [vmem:[#allocation2 + $0x1c0] sm:$0xff] %v5441
    %5721 = vst [vmem:[#allocation2 + $0x1c8] sm:$0xff] %v5443
    %5722 = vst [vmem:[#allocation2 + $0x1d0] sm:$0xff] %v5514
    %5723 = vst [vmem:[#allocation2 + $0x1d8] sm:$0xff] %v5516
    %5724 = vst [vmem:[#allocation2 + $0x1e0] sm:$0xff] %v5587
    %5725 = vst [vmem:[#allocation2 + $0x1e8] sm:$0xff] %v5589
    %5726 = vst [vmem:[#allocation2 + $0x1f0] sm:$0xff] %v5660
    %5727 = vst [vmem:[#allocation2 + $0x1f8] sm:$0xff] %v5662
    %v5728 = vld [vmem:[#allocation12] sm:$0xff]
    %v5729 = vld [vmem:[#allocation12 + $0x8] sm:$0xff]
    %v5730 = vld [vmem:[#allocation12 + $0x10] sm:$0xff]
    %v5731 = vld [vmem:[#allocation12 + $0x18] sm:$0xff]
    %v5732 = vld [vmem:[#allocation12 + $0x20] sm:$0xff]
    %v5733 = vld [vmem:[#allocation12 + $0x28] sm:$0xff]
    %v5734 = vld [vmem:[#allocation12 + $0x30] sm:$0xff]
    %v5735 = vld [vmem:[#allocation12 + $0x38] sm:$0xff]
    %v5736 = vld [vmem:[#allocation12 + $0x40] sm:$0xff]
    %v5737 = vld [vmem:[#allocation12 + $0x48] sm:$0xff]
    %v5738 = vld [vmem:[#allocation12 + $0x50] sm:$0xff]
    %v5739 = vld [vmem:[#allocation12 + $0x58] sm:$0xff]
    %v5740 = vld [vmem:[#allocation12 + $0x60] sm:$0xff]
    %v5741 = vld [vmem:[#allocation12 + $0x68] sm:$0xff]
    %v5742 = vld [vmem:[#allocation12 + $0x70] sm:$0xff]
    %v5743 = vld [vmem:[#allocation12 + $0x78] sm:$0xff]
    %v5744 = vld [vmem:[#allocation12 + $0x80] sm:$0xff]
    %v5745 = vld [vmem:[#allocation12 + $0x88] sm:$0xff]
    %v5746 = vld [vmem:[#allocation12 + $0x90] sm:$0xff]
    %v5747 = vld [vmem:[#allocation12 + $0x98] sm:$0xff]
    %v5748 = vld [vmem:[#allocation12 + $0xa0] sm:$0xff]
    %v5749 = vld [vmem:[#allocation12 + $0xa8] sm:$0xff]
    %v5750 = vld [vmem:[#allocation12 + $0xb0] sm:$0xff]
    %v5751 = vld [vmem:[#allocation12 + $0xb8] sm:$0xff]
    %v5752 = vld [vmem:[#allocation12 + $0xc0] sm:$0xff]
    %v5753 = vld [vmem:[#allocation12 + $0xc8] sm:$0xff]
    %v5754 = vld [vmem:[#allocation12 + $0xd0] sm:$0xff]
    %v5755 = vld [vmem:[#allocation12 + $0xd8] sm:$0xff]
    %v5756 = vld [vmem:[#allocation12 + $0xe0] sm:$0xff]
    %v5757 = vld [vmem:[#allocation12 + $0xe8] sm:$0xff]
    %v5758 = vld [vmem:[#allocation12 + $0xf0] sm:$0xff]
    %v5759 = vld [vmem:[#allocation12 + $0xf8] sm:$0xff]
    %v5760 = vld [vmem:[#allocation12 + $0x100] sm:$0xff]
    %v5761 = vld [vmem:[#allocation12 + $0x108] sm:$0xff]
    %v5762 = vld [vmem:[#allocation12 + $0x110] sm:$0xff]
    %v5763 = vld [vmem:[#allocation12 + $0x118] sm:$0xff]
    %v5764 = vld [vmem:[#allocation12 + $0x120] sm:$0xff]
    %v5765 = vld [vmem:[#allocation12 + $0x128] sm:$0xff]
    %v5766 = vld [vmem:[#allocation12 + $0x130] sm:$0xff]
    %v5767 = vld [vmem:[#allocation12 + $0x138] sm:$0xff]
    %v5768 = vld [vmem:[#allocation12 + $0x140] sm:$0xff]
    %v5769 = vld [vmem:[#allocation12 + $0x148] sm:$0xff]
    %v5770 = vld [vmem:[#allocation12 + $0x150] sm:$0xff]
    %v5771 = vld [vmem:[#allocation12 + $0x158] sm:$0xff]
    %v5772 = vld [vmem:[#allocation12 + $0x160] sm:$0xff]
    %v5773 = vld [vmem:[#allocation12 + $0x168] sm:$0xff]
    %v5774 = vld [vmem:[#allocation12 + $0x170] sm:$0xff]
    %v5775 = vld [vmem:[#allocation12 + $0x178] sm:$0xff]
    %v5776 = vld [vmem:[#allocation12 + $0x180] sm:$0xff]
    %v5777 = vld [vmem:[#allocation12 + $0x188] sm:$0xff]
    %v5778 = vld [vmem:[#allocation12 + $0x190] sm:$0xff]
    %v5779 = vld [vmem:[#allocation12 + $0x198] sm:$0xff]
    %v5780 = vld [vmem:[#allocation12 + $0x1a0] sm:$0xff]
    %v5781 = vld [vmem:[#allocation12 + $0x1a8] sm:$0xff]
    %v5782 = vld [vmem:[#allocation12 + $0x1b0] sm:$0xff]
    %v5783 = vld [vmem:[#allocation12 + $0x1b8] sm:$0xff]
    %v5784 = vld [vmem:[#allocation12 + $0x1c0] sm:$0xff]
    %v5785 = vld [vmem:[#allocation12 + $0x1c8] sm:$0xff]
    %v5786 = vld [vmem:[#allocation12 + $0x1d0] sm:$0xff]
    %v5787 = vld [vmem:[#allocation12 + $0x1d8] sm:$0xff]
    %v5788 = vld [vmem:[#allocation12 + $0x1e0] sm:$0xff]
    %v5789 = vld [vmem:[#allocation12 + $0x1e8] sm:$0xff]
    %v5790 = vld [vmem:[#allocation12 + $0x1f0] sm:$0xff]
    %v5791 = vld [vmem:[#allocation12 + $0x1f8] sm:$0xff]
    %v5792 = vld [vmem:[#allocation12 + $0x200] sm:$0xff]
    %v5793 = vld [vmem:[#allocation12 + $0x208] sm:$0xff]
    %v5794 = vld [vmem:[#allocation12 + $0x210] sm:$0xff]
    %v5795 = vld [vmem:[#allocation12 + $0x218] sm:$0xff]
    %v5796 = vld [vmem:[#allocation12 + $0x220] sm:$0xff]
    %v5797 = vld [vmem:[#allocation12 + $0x228] sm:$0xff]
    %v5798 = vld [vmem:[#allocation12 + $0x230] sm:$0xff]
    %v5799 = vld [vmem:[#allocation12 + $0x238] sm:$0xff]
    %v5800 = vld [vmem:[#allocation12 + $0x240] sm:$0xff]
    %v5801 = vld [vmem:[#allocation12 + $0x248] sm:$0xff]
    %v5802 = vld [vmem:[#allocation12 + $0x250] sm:$0xff]
    %v5803 = vld [vmem:[#allocation12 + $0x258] sm:$0xff]
    %v5804 = vld [vmem:[#allocation12 + $0x260] sm:$0xff]
    %v5805 = vld [vmem:[#allocation12 + $0x268] sm:$0xff]
    %v5806 = vld [vmem:[#allocation12 + $0x270] sm:$0xff]
    %v5807 = vld [vmem:[#allocation12 + $0x278] sm:$0xff]
    %v5808 = vld [vmem:[#allocation12 + $0x280] sm:$0xff]
    %v5809 = vld [vmem:[#allocation12 + $0x288] sm:$0xff]
    %v5810 = vld [vmem:[#allocation12 + $0x290] sm:$0xff]
    %v5811 = vld [vmem:[#allocation12 + $0x298] sm:$0xff]
    %v5812 = vld [vmem:[#allocation12 + $0x2a0] sm:$0xff]
    %v5813 = vld [vmem:[#allocation12 + $0x2a8] sm:$0xff]
    %v5814 = vld [vmem:[#allocation12 + $0x2b0] sm:$0xff]
    %v5815 = vld [vmem:[#allocation12 + $0x2b8] sm:$0xff]
    %v5816 = vld [vmem:[#allocation12 + $0x2c0] sm:$0xff]
    %v5817 = vld [vmem:[#allocation12 + $0x2c8] sm:$0xff]
    %v5818 = vld [vmem:[#allocation12 + $0x2d0] sm:$0xff]
    %v5819 = vld [vmem:[#allocation12 + $0x2d8] sm:$0xff]
    %v5820 = vld [vmem:[#allocation12 + $0x2e0] sm:$0xff]
    %v5821 = vld [vmem:[#allocation12 + $0x2e8] sm:$0xff]
    %v5822 = vld [vmem:[#allocation12 + $0x2f0] sm:$0xff]
    %v5823 = vld [vmem:[#allocation12 + $0x2f8] sm:$0xff]
    %v5824 = vld [vmem:[#allocation12 + $0x300] sm:$0xff]
    %v5825 = vld [vmem:[#allocation12 + $0x308] sm:$0xff]
    %v5826 = vld [vmem:[#allocation12 + $0x310] sm:$0xff]
    %v5827 = vld [vmem:[#allocation12 + $0x318] sm:$0xff]
    %v5828 = vld [vmem:[#allocation12 + $0x320] sm:$0xff]
    %v5829 = vld [vmem:[#allocation12 + $0x328] sm:$0xff]
    %v5830 = vld [vmem:[#allocation12 + $0x330] sm:$0xff]
    %v5831 = vld [vmem:[#allocation12 + $0x338] sm:$0xff]
    %v5832 = vld [vmem:[#allocation12 + $0x340] sm:$0xff]
    %v5833 = vld [vmem:[#allocation12 + $0x348] sm:$0xff]
    %v5834 = vld [vmem:[#allocation12 + $0x350] sm:$0xff]
    %v5835 = vld [vmem:[#allocation12 + $0x358] sm:$0xff]
    %v5836 = vld [vmem:[#allocation12 + $0x360] sm:$0xff]
    %v5837 = vld [vmem:[#allocation12 + $0x368] sm:$0xff]
    %v5838 = vld [vmem:[#allocation12 + $0x370] sm:$0xff]
    %v5839 = vld [vmem:[#allocation12 + $0x378] sm:$0xff]
    %v5840 = vld [vmem:[#allocation12 + $0x380] sm:$0xff]
    %v5841 = vld [vmem:[#allocation12 + $0x388] sm:$0xff]
    %v5842 = vld [vmem:[#allocation12 + $0x390] sm:$0xff]
    %v5843 = vld [vmem:[#allocation12 + $0x398] sm:$0xff]
    %v5844 = vld [vmem:[#allocation12 + $0x3a0] sm:$0xff]
    %v5845 = vld [vmem:[#allocation12 + $0x3a8] sm:$0xff]
    %v5846 = vld [vmem:[#allocation12 + $0x3b0] sm:$0xff]
    %v5847 = vld [vmem:[#allocation12 + $0x3b8] sm:$0xff]
    %v5848 = vld [vmem:[#allocation12 + $0x3c0] sm:$0xff]
    %v5849 = vld [vmem:[#allocation12 + $0x3c8] sm:$0xff]
    %v5850 = vld [vmem:[#allocation12 + $0x3d0] sm:$0xff]
    %v5851 = vld [vmem:[#allocation12 + $0x3d8] sm:$0xff]
    %v5852 = vld [vmem:[#allocation12 + $0x3e0] sm:$0xff]
    %v5853 = vld [vmem:[#allocation12 + $0x3e8] sm:$0xff]
    %v5854 = vld [vmem:[#allocation12 + $0x3f0] sm:$0xff]
    %v5855 = vld [vmem:[#allocation12 + $0x3f8] sm:$0xff]
    %v5984 = vunpack.c.l.b16 %v5728
    %v5985 = vunpack.c.h.b16 %v5728
    %v5986 = vunpack.c.l.b16 %v5729
    %v5987 = vunpack.c.h.b16 %v5729
    %v5988 = vunpack.c.l.b16 %v5730
    %v5989 = vunpack.c.h.b16 %v5730
    %v5990 = vunpack.c.l.b16 %v5731
    %v5991 = vunpack.c.h.b16 %v5731
    %v5992 = vunpack.c.l.b16 %v5732
    %v5993 = vunpack.c.h.b16 %v5732
    %v5994 = vunpack.c.l.b16 %v5733
    %v5995 = vunpack.c.h.b16 %v5733
    %v5996 = vunpack.c.l.b16 %v5734
    %v5997 = vunpack.c.h.b16 %v5734
    %v5998 = vunpack.c.l.b16 %v5735
    %v5999 = vunpack.c.h.b16 %v5735
    %v6000 = vunpack.c.l.b16 %v5736
    %v6001 = vunpack.c.h.b16 %v5736
    %v6002 = vunpack.c.l.b16 %v5737
    %v6003 = vunpack.c.h.b16 %v5737
    %v6004 = vunpack.c.l.b16 %v5738
    %v6005 = vunpack.c.h.b16 %v5738
    %v6006 = vunpack.c.l.b16 %v5739
    %v6007 = vunpack.c.h.b16 %v5739
    %v6008 = vunpack.c.l.b16 %v5740
    %v6009 = vunpack.c.h.b16 %v5740
    %v6010 = vunpack.c.l.b16 %v5741
    %v6011 = vunpack.c.h.b16 %v5741
    %v6012 = vunpack.c.l.b16 %v5742
    %v6013 = vunpack.c.h.b16 %v5742
    %v6014 = vunpack.c.l.b16 %v5743
    %v6015 = vunpack.c.h.b16 %v5743
    %v6016 = vunpack.c.l.b16 %v5744
    %v6017 = vunpack.c.h.b16 %v5744
    %v6018 = vunpack.c.l.b16 %v5745
    %v6019 = vunpack.c.h.b16 %v5745
    %v6020 = vunpack.c.l.b16 %v5746
    %v6021 = vunpack.c.h.b16 %v5746
    %v6022 = vunpack.c.l.b16 %v5747
    %v6023 = vunpack.c.h.b16 %v5747
    %v6024 = vunpack.c.l.b16 %v5748
    %v6025 = vunpack.c.h.b16 %v5748
    %v6026 = vunpack.c.l.b16 %v5749
    %v6027 = vunpack.c.h.b16 %v5749
    %v6028 = vunpack.c.l.b16 %v5750
    %v6029 = vunpack.c.h.b16 %v5750
    %v6030 = vunpack.c.l.b16 %v5751
    %v6031 = vunpack.c.h.b16 %v5751
    %v6032 = vunpack.c.l.b16 %v5752
    %v6033 = vunpack.c.h.b16 %v5752
    %v6034 = vunpack.c.l.b16 %v5753
    %v6035 = vunpack.c.h.b16 %v5753
    %v6036 = vunpack.c.l.b16 %v5754
    %v6037 = vunpack.c.h.b16 %v5754
    %v6038 = vunpack.c.l.b16 %v5755
    %v6039 = vunpack.c.h.b16 %v5755
    %v6040 = vunpack.c.l.b16 %v5756
    %v6041 = vunpack.c.h.b16 %v5756
    %v6042 = vunpack.c.l.b16 %v5757
    %v6043 = vunpack.c.h.b16 %v5757
    %v6044 = vunpack.c.l.b16 %v5758
    %v6045 = vunpack.c.h.b16 %v5758
    %v6046 = vunpack.c.l.b16 %v5759
    %v6047 = vunpack.c.h.b16 %v5759
    %v6048 = vunpack.c.l.b16 %v5760
    %v6049 = vunpack.c.h.b16 %v5760
    %v6050 = vunpack.c.l.b16 %v5761
    %v6051 = vunpack.c.h.b16 %v5761
    %v6052 = vunpack.c.l.b16 %v5762
    %v6053 = vunpack.c.h.b16 %v5762
    %v6054 = vunpack.c.l.b16 %v5763
    %v6055 = vunpack.c.h.b16 %v5763
    %v6056 = vunpack.c.l.b16 %v5764
    %v6057 = vunpack.c.h.b16 %v5764
    %v6058 = vunpack.c.l.b16 %v5765
    %v6059 = vunpack.c.h.b16 %v5765
    %v6060 = vunpack.c.l.b16 %v5766
    %v6061 = vunpack.c.h.b16 %v5766
    %v6062 = vunpack.c.l.b16 %v5767
    %v6063 = vunpack.c.h.b16 %v5767
    %v6064 = vunpack.c.l.b16 %v5768
    %v6065 = vunpack.c.h.b16 %v5768
    %v6066 = vunpack.c.l.b16 %v5769
    %v6067 = vunpack.c.h.b16 %v5769
    %v6068 = vunpack.c.l.b16 %v5770
    %v6069 = vunpack.c.h.b16 %v5770
    %v6070 = vunpack.c.l.b16 %v5771
    %v6071 = vunpack.c.h.b16 %v5771
    %v6072 = vunpack.c.l.b16 %v5772
    %v6073 = vunpack.c.h.b16 %v5772
    %v6074 = vunpack.c.l.b16 %v5773
    %v6075 = vunpack.c.h.b16 %v5773
    %v6076 = vunpack.c.l.b16 %v5774
    %v6077 = vunpack.c.h.b16 %v5774
    %v6078 = vunpack.c.l.b16 %v5775
    %v6079 = vunpack.c.h.b16 %v5775
    %v6080 = vunpack.c.l.b16 %v5776
    %v6081 = vunpack.c.h.b16 %v5776
    %v6082 = vunpack.c.l.b16 %v5777
    %v6083 = vunpack.c.h.b16 %v5777
    %v6084 = vunpack.c.l.b16 %v5778
    %v6085 = vunpack.c.h.b16 %v5778
    %v6086 = vunpack.c.l.b16 %v5779
    %v6087 = vunpack.c.h.b16 %v5779
    %v6088 = vunpack.c.l.b16 %v5780
    %v6089 = vunpack.c.h.b16 %v5780
    %v6090 = vunpack.c.l.b16 %v5781
    %v6091 = vunpack.c.h.b16 %v5781
    %v6092 = vunpack.c.l.b16 %v5782
    %v6093 = vunpack.c.h.b16 %v5782
    %v6094 = vunpack.c.l.b16 %v5783
    %v6095 = vunpack.c.h.b16 %v5783
    %v6096 = vunpack.c.l.b16 %v5784
    %v6097 = vunpack.c.h.b16 %v5784
    %v6098 = vunpack.c.l.b16 %v5785
    %v6099 = vunpack.c.h.b16 %v5785
    %v6100 = vunpack.c.l.b16 %v5786
    %v6101 = vunpack.c.h.b16 %v5786
    %v6102 = vunpack.c.l.b16 %v5787
    %v6103 = vunpack.c.h.b16 %v5787
    %v6104 = vunpack.c.l.b16 %v5788
    %v6105 = vunpack.c.h.b16 %v5788
    %v6106 = vunpack.c.l.b16 %v5789
    %v6107 = vunpack.c.h.b16 %v5789
    %v6108 = vunpack.c.l.b16 %v5790
    %v6109 = vunpack.c.h.b16 %v5790
    %v6110 = vunpack.c.l.b16 %v5791
    %v6111 = vunpack.c.h.b16 %v5791
    %v6112 = vunpack.c.l.b16 %v5792
    %v6113 = vunpack.c.h.b16 %v5792
    %v6114 = vunpack.c.l.b16 %v5793
    %v6115 = vunpack.c.h.b16 %v5793
    %v6116 = vunpack.c.l.b16 %v5794
    %v6117 = vunpack.c.h.b16 %v5794
    %v6118 = vunpack.c.l.b16 %v5795
    %v6119 = vunpack.c.h.b16 %v5795
    %v6120 = vunpack.c.l.b16 %v5796
    %v6121 = vunpack.c.h.b16 %v5796
    %v6122 = vunpack.c.l.b16 %v5797
    %v6123 = vunpack.c.h.b16 %v5797
    %v6124 = vunpack.c.l.b16 %v5798
    %v6125 = vunpack.c.h.b16 %v5798
    %v6126 = vunpack.c.l.b16 %v5799
    %v6127 = vunpack.c.h.b16 %v5799
    %v6128 = vunpack.c.l.b16 %v5800
    %v6129 = vunpack.c.h.b16 %v5800
    %v6130 = vunpack.c.l.b16 %v5801
    %v6131 = vunpack.c.h.b16 %v5801
    %v6132 = vunpack.c.l.b16 %v5802
    %v6133 = vunpack.c.h.b16 %v5802
    %v6134 = vunpack.c.l.b16 %v5803
    %v6135 = vunpack.c.h.b16 %v5803
    %v6136 = vunpack.c.l.b16 %v5804
    %v6137 = vunpack.c.h.b16 %v5804
    %v6138 = vunpack.c.l.b16 %v5805
    %v6139 = vunpack.c.h.b16 %v5805
    %v6140 = vunpack.c.l.b16 %v5806
    %v6141 = vunpack.c.h.b16 %v5806
    %v6142 = vunpack.c.l.b16 %v5807
    %v6143 = vunpack.c.h.b16 %v5807
    %v6144 = vunpack.c.l.b16 %v5808
    %v6145 = vunpack.c.h.b16 %v5808
    %v6146 = vunpack.c.l.b16 %v5809
    %v6147 = vunpack.c.h.b16 %v5809
    %v6148 = vunpack.c.l.b16 %v5810
    %v6149 = vunpack.c.h.b16 %v5810
    %v6150 = vunpack.c.l.b16 %v5811
    %v6151 = vunpack.c.h.b16 %v5811
    %v6152 = vunpack.c.l.b16 %v5812
    %v6153 = vunpack.c.h.b16 %v5812
    %v6154 = vunpack.c.l.b16 %v5813
    %v6155 = vunpack.c.h.b16 %v5813
    %v6156 = vunpack.c.l.b16 %v5814
    %v6157 = vunpack.c.h.b16 %v5814
    %v6158 = vunpack.c.l.b16 %v5815
    %v6159 = vunpack.c.h.b16 %v5815
    %v6160 = vunpack.c.l.b16 %v5816
    %v6161 = vunpack.c.h.b16 %v5816
    %v6162 = vunpack.c.l.b16 %v5817
    %v6163 = vunpack.c.h.b16 %v5817
    %v6164 = vunpack.c.l.b16 %v5818
    %v6165 = vunpack.c.h.b16 %v5818
    %v6166 = vunpack.c.l.b16 %v5819
    %v6167 = vunpack.c.h.b16 %v5819
    %v6168 = vunpack.c.l.b16 %v5820
    %v6169 = vunpack.c.h.b16 %v5820
    %v6170 = vunpack.c.l.b16 %v5821
    %v6171 = vunpack.c.h.b16 %v5821
    %v6172 = vunpack.c.l.b16 %v5822
    %v6173 = vunpack.c.h.b16 %v5822
    %v6174 = vunpack.c.l.b16 %v5823
    %v6175 = vunpack.c.h.b16 %v5823
    %v6176 = vunpack.c.l.b16 %v5824
    %v6177 = vunpack.c.h.b16 %v5824
    %v6178 = vunpack.c.l.b16 %v5825
    %v6179 = vunpack.c.h.b16 %v5825
    %v6180 = vunpack.c.l.b16 %v5826
    %v6181 = vunpack.c.h.b16 %v5826
    %v6182 = vunpack.c.l.b16 %v5827
    %v6183 = vunpack.c.h.b16 %v5827
    %v6184 = vunpack.c.l.b16 %v5828
    %v6185 = vunpack.c.h.b16 %v5828
    %v6186 = vunpack.c.l.b16 %v5829
    %v6187 = vunpack.c.h.b16 %v5829
    %v6188 = vunpack.c.l.b16 %v5830
    %v6189 = vunpack.c.h.b16 %v5830
    %v6190 = vunpack.c.l.b16 %v5831
    %v6191 = vunpack.c.h.b16 %v5831
    %v6192 = vunpack.c.l.b16 %v5832
    %v6193 = vunpack.c.h.b16 %v5832
    %v6194 = vunpack.c.l.b16 %v5833
    %v6195 = vunpack.c.h.b16 %v5833
    %v6196 = vunpack.c.l.b16 %v5834
    %v6197 = vunpack.c.h.b16 %v5834
    %v6198 = vunpack.c.l.b16 %v5835
    %v6199 = vunpack.c.h.b16 %v5835
    %v6200 = vunpack.c.l.b16 %v5836
    %v6201 = vunpack.c.h.b16 %v5836
    %v6202 = vunpack.c.l.b16 %v5837
    %v6203 = vunpack.c.h.b16 %v5837
    %v6204 = vunpack.c.l.b16 %v5838
    %v6205 = vunpack.c.h.b16 %v5838
    %v6206 = vunpack.c.l.b16 %v5839
    %v6207 = vunpack.c.h.b16 %v5839
    %v6208 = vunpack.c.l.b16 %v5840
    %v6209 = vunpack.c.h.b16 %v5840
    %v6210 = vunpack.c.l.b16 %v5841
    %v6211 = vunpack.c.h.b16 %v5841
    %v6212 = vunpack.c.l.b16 %v5842
    %v6213 = vunpack.c.h.b16 %v5842
    %v6214 = vunpack.c.l.b16 %v5843
    %v6215 = vunpack.c.h.b16 %v5843
    %v6216 = vunpack.c.l.b16 %v5844
    %v6217 = vunpack.c.h.b16 %v5844
    %v6218 = vunpack.c.l.b16 %v5845
    %v6219 = vunpack.c.h.b16 %v5845
    %v6220 = vunpack.c.l.b16 %v5846
    %v6221 = vunpack.c.h.b16 %v5846
    %v6222 = vunpack.c.l.b16 %v5847
    %v6223 = vunpack.c.h.b16 %v5847
    %v6224 = vunpack.c.l.b16 %v5848
    %v6225 = vunpack.c.h.b16 %v5848
    %v6226 = vunpack.c.l.b16 %v5849
    %v6227 = vunpack.c.h.b16 %v5849
    %v6228 = vunpack.c.l.b16 %v5850
    %v6229 = vunpack.c.h.b16 %v5850
    %v6230 = vunpack.c.l.b16 %v5851
    %v6231 = vunpack.c.h.b16 %v5851
    %v6232 = vunpack.c.l.b16 %v5852
    %v6233 = vunpack.c.h.b16 %v5852
    %v6234 = vunpack.c.l.b16 %v5853
    %v6235 = vunpack.c.h.b16 %v5853
    %v6236 = vunpack.c.l.b16 %v5854
    %v6237 = vunpack.c.h.b16 %v5854
    %v6238 = vunpack.c.l.b16 %v5855
    %v6239 = vunpack.c.h.b16 %v5855
    %v6240 = vpack.c.b16 %v5992, %v5984
    %v6241 = vpack.c.b16 %v5993, %v5985
    %v6242 = vpack.c.b16 %v5994, %v5986
    %v6243 = vpack.c.b16 %v5995, %v5987
    %v6244 = vpack.c.b16 %v5996, %v5988
    %v6245 = vpack.c.b16 %v5997, %v5989
    %v6246 = vpack.c.b16 %v5998, %v5990
    %v6247 = vpack.c.b16 %v5999, %v5991
    %v6248 = vpack.c.b16 %v6008, %v6000
    %v6249 = vpack.c.b16 %v6009, %v6001
    %v6250 = vpack.c.b16 %v6010, %v6002
    %v6251 = vpack.c.b16 %v6011, %v6003
    %v6252 = vpack.c.b16 %v6012, %v6004
    %v6253 = vpack.c.b16 %v6013, %v6005
    %v6254 = vpack.c.b16 %v6014, %v6006
    %v6255 = vpack.c.b16 %v6015, %v6007
    %v6256 = vpack.c.b16 %v6024, %v6016
    %v6257 = vpack.c.b16 %v6025, %v6017
    %v6258 = vpack.c.b16 %v6026, %v6018
    %v6259 = vpack.c.b16 %v6027, %v6019
    %v6260 = vpack.c.b16 %v6028, %v6020
    %v6261 = vpack.c.b16 %v6029, %v6021
    %v6262 = vpack.c.b16 %v6030, %v6022
    %v6263 = vpack.c.b16 %v6031, %v6023
    %v6264 = vpack.c.b16 %v6040, %v6032
    %v6265 = vpack.c.b16 %v6041, %v6033
    %v6266 = vpack.c.b16 %v6042, %v6034
    %v6267 = vpack.c.b16 %v6043, %v6035
    %v6268 = vpack.c.b16 %v6044, %v6036
    %v6269 = vpack.c.b16 %v6045, %v6037
    %v6270 = vpack.c.b16 %v6046, %v6038
    %v6271 = vpack.c.b16 %v6047, %v6039
    %v6272 = vpack.c.b16 %v6056, %v6048
    %v6273 = vpack.c.b16 %v6057, %v6049
    %v6274 = vpack.c.b16 %v6058, %v6050
    %v6275 = vpack.c.b16 %v6059, %v6051
    %v6276 = vpack.c.b16 %v6060, %v6052
    %v6277 = vpack.c.b16 %v6061, %v6053
    %v6278 = vpack.c.b16 %v6062, %v6054
    %v6279 = vpack.c.b16 %v6063, %v6055
    %v6280 = vpack.c.b16 %v6072, %v6064
    %v6281 = vpack.c.b16 %v6073, %v6065
    %v6282 = vpack.c.b16 %v6074, %v6066
    %v6283 = vpack.c.b16 %v6075, %v6067
    %v6284 = vpack.c.b16 %v6076, %v6068
    %v6285 = vpack.c.b16 %v6077, %v6069
    %v6286 = vpack.c.b16 %v6078, %v6070
    %v6287 = vpack.c.b16 %v6079, %v6071
    %v6288 = vpack.c.b16 %v6088, %v6080
    %v6289 = vpack.c.b16 %v6089, %v6081
    %v6290 = vpack.c.b16 %v6090, %v6082
    %v6291 = vpack.c.b16 %v6091, %v6083
    %v6292 = vpack.c.b16 %v6092, %v6084
    %v6293 = vpack.c.b16 %v6093, %v6085
    %v6294 = vpack.c.b16 %v6094, %v6086
    %v6295 = vpack.c.b16 %v6095, %v6087
    %v6296 = vpack.c.b16 %v6104, %v6096
    %v6297 = vpack.c.b16 %v6105, %v6097
    %v6298 = vpack.c.b16 %v6106, %v6098
    %v6299 = vpack.c.b16 %v6107, %v6099
    %v6300 = vpack.c.b16 %v6108, %v6100
    %v6301 = vpack.c.b16 %v6109, %v6101
    %v6302 = vpack.c.b16 %v6110, %v6102
    %v6303 = vpack.c.b16 %v6111, %v6103
    %v6304 = vpack.c.b16 %v6120, %v6112
    %v6305 = vpack.c.b16 %v6121, %v6113
    %v6306 = vpack.c.b16 %v6122, %v6114
    %v6307 = vpack.c.b16 %v6123, %v6115
    %v6308 = vpack.c.b16 %v6124, %v6116
    %v6309 = vpack.c.b16 %v6125, %v6117
    %v6310 = vpack.c.b16 %v6126, %v6118
    %v6311 = vpack.c.b16 %v6127, %v6119
    %v6312 = vpack.c.b16 %v6136, %v6128
    %v6313 = vpack.c.b16 %v6137, %v6129
    %v6314 = vpack.c.b16 %v6138, %v6130
    %v6315 = vpack.c.b16 %v6139, %v6131
    %v6316 = vpack.c.b16 %v6140, %v6132
    %v6317 = vpack.c.b16 %v6141, %v6133
    %v6318 = vpack.c.b16 %v6142, %v6134
    %v6319 = vpack.c.b16 %v6143, %v6135
    %v6320 = vpack.c.b16 %v6152, %v6144
    %v6321 = vpack.c.b16 %v6153, %v6145
    %v6322 = vpack.c.b16 %v6154, %v6146
    %v6323 = vpack.c.b16 %v6155, %v6147
    %v6324 = vpack.c.b16 %v6156, %v6148
    %v6325 = vpack.c.b16 %v6157, %v6149
    %v6326 = vpack.c.b16 %v6158, %v6150
    %v6327 = vpack.c.b16 %v6159, %v6151
    %v6328 = vpack.c.b16 %v6168, %v6160
    %v6329 = vpack.c.b16 %v6169, %v6161
    %v6330 = vpack.c.b16 %v6170, %v6162
    %v6331 = vpack.c.b16 %v6171, %v6163
    %v6332 = vpack.c.b16 %v6172, %v6164
    %v6333 = vpack.c.b16 %v6173, %v6165
    %v6334 = vpack.c.b16 %v6174, %v6166
    %v6335 = vpack.c.b16 %v6175, %v6167
    %v6336 = vpack.c.b16 %v6184, %v6176
    %v6337 = vpack.c.b16 %v6185, %v6177
    %v6338 = vpack.c.b16 %v6186, %v6178
    %v6339 = vpack.c.b16 %v6187, %v6179
    %v6340 = vpack.c.b16 %v6188, %v6180
    %v6341 = vpack.c.b16 %v6189, %v6181
    %v6342 = vpack.c.b16 %v6190, %v6182
    %v6343 = vpack.c.b16 %v6191, %v6183
    %v6344 = vpack.c.b16 %v6200, %v6192
    %v6345 = vpack.c.b16 %v6201, %v6193
    %v6346 = vpack.c.b16 %v6202, %v6194
    %v6347 = vpack.c.b16 %v6203, %v6195
    %v6348 = vpack.c.b16 %v6204, %v6196
    %v6349 = vpack.c.b16 %v6205, %v6197
    %v6350 = vpack.c.b16 %v6206, %v6198
    %v6351 = vpack.c.b16 %v6207, %v6199
    %v6352 = vpack.c.b16 %v6216, %v6208
    %v6353 = vpack.c.b16 %v6217, %v6209
    %v6354 = vpack.c.b16 %v6218, %v6210
    %v6355 = vpack.c.b16 %v6219, %v6211
    %v6356 = vpack.c.b16 %v6220, %v6212
    %v6357 = vpack.c.b16 %v6221, %v6213
    %v6358 = vpack.c.b16 %v6222, %v6214
    %v6359 = vpack.c.b16 %v6223, %v6215
    %v6360 = vpack.c.b16 %v6232, %v6224
    %v6361 = vpack.c.b16 %v6233, %v6225
    %v6362 = vpack.c.b16 %v6234, %v6226
    %v6363 = vpack.c.b16 %v6235, %v6227
    %v6364 = vpack.c.b16 %v6236, %v6228
    %v6365 = vpack.c.b16 %v6237, %v6229
    %v6366 = vpack.c.b16 %v6238, %v6230
    %v6367 = vpack.c.b16 %v6239, %v6231
    %6496 = vmatprep.subr.bf16.mxu0 %v6297
    %6497 = vmatpush1.bf16.msra.mxu0 %v6296
    %6498 = vmatprep.subr.bf16.mxu0 %v6289
    %6499 = vmatpush1.bf16.msra.mxu0 %v6288
    %6500 = vmatprep.subr.bf16.mxu0 %v6281
    %6501 = vmatpush1.bf16.msra.mxu0 %v6280
    %6502 = vmatprep.subr.bf16.mxu0 %v6273
    %6503 = vmatpush1.bf16.msra.mxu0 %v6272
    %6504 = vmatprep.subr.bf16.mxu0 %v6265
    %6505 = vmatpush1.bf16.msra.mxu0 %v6264
    %6506 = vmatprep.subr.bf16.mxu0 %v6257
    %6507 = vmatpush1.bf16.msra.mxu0 %v6256
    %6508 = vmatprep.subr.bf16.mxu0 %v6249
    %6509 = vmatpush1.bf16.msra.mxu0 %v6248
    %6510 = vmatprep.subr.bf16.mxu0 %v6241
    %6511 = vmatpush1.bf16.msra.mxu0 %v6240
    %6512 = vmatprep.subr.bf16.mxu0 %v6361
    %6513 = vmatpush2.bf16.msra.mxu0 %v6360
    %6514 = vmatprep.subr.bf16.mxu0 %v6353
    %6515 = vmatpush2.bf16.msra.mxu0 %v6352
    %6516 = vmatprep.subr.bf16.mxu0 %v6345
    %6517 = vmatpush2.bf16.msra.mxu0 %v6344
    %6518 = vmatprep.subr.bf16.mxu0 %v6337
    %6519 = vmatpush2.bf16.msra.mxu0 %v6336
    %6520 = vmatprep.subr.bf16.mxu0 %v6329
    %6521 = vmatpush2.bf16.msra.mxu0 %v6328
    %6522 = vmatprep.subr.bf16.mxu0 %v6321
    %6523 = vmatpush2.bf16.msra.mxu0 %v6320
    %6524 = vmatprep.subr.bf16.mxu0 %v6313
    %6525 = vmatpush2.bf16.msra.mxu0 %v6312
    %6526 = vmatprep.subr.bf16.mxu0 %v6305
    %6527 = vmatpush2.bf16.msra.mxu0 %v6304
    %6528 = vmatprep.mubr.bf16.mxu0 %v1947
    %6529 = vmatmul.mubr.bf16.gmra.mxu0 %v1947
    %v6530 = vpop.f32.mrf.mxu0
    %v6531 = vadd.f32 0.0, %v6530
    %v6532 = vpop.f32.mrf.mxu0
    %v6533 = vadd.f32 0.0, %v6532
    %v6534 = vpop.f32.mrf.mxu0
    %v6535 = vpop.f32.mrf.mxu0
    %6536 = vdwg.mxu0
    %6537 = vmatprep.subr.bf16.mxu0 %v6299
    %6538 = vmatpush1.bf16.msra.mxu0 %v6298
    %6539 = vmatprep.subr.bf16.mxu0 %v6291
    %6540 = vmatpush1.bf16.msra.mxu0 %v6290
    %6541 = vmatprep.subr.bf16.mxu0 %v6283
    %6542 = vmatpush1.bf16.msra.mxu0 %v6282
    %6543 = vmatprep.subr.bf16.mxu0 %v6275
    %6544 = vmatpush1.bf16.msra.mxu0 %v6274
    %6545 = vmatprep.subr.bf16.mxu0 %v6267
    %6546 = vmatpush1.bf16.msra.mxu0 %v6266
    %6547 = vmatprep.subr.bf16.mxu0 %v6259
    %6548 = vmatpush1.bf16.msra.mxu0 %v6258
    %6549 = vmatprep.subr.bf16.mxu0 %v6251
    %6550 = vmatpush1.bf16.msra.mxu0 %v6250
    %6551 = vmatprep.subr.bf16.mxu0 %v6243
    %6552 = vmatpush1.bf16.msra.mxu0 %v6242
    %6553 = vmatprep.subr.bf16.mxu0 %v6363
    %6554 = vmatpush2.bf16.msra.mxu0 %v6362
    %6555 = vmatprep.subr.bf16.mxu0 %v6355
    %6556 = vmatpush2.bf16.msra.mxu0 %v6354
    %6557 = vmatprep.subr.bf16.mxu0 %v6347
    %6558 = vmatpush2.bf16.msra.mxu0 %v6346
    %6559 = vmatprep.subr.bf16.mxu0 %v6339
    %6560 = vmatpush2.bf16.msra.mxu0 %v6338
    %6561 = vmatprep.subr.bf16.mxu0 %v6331
    %6562 = vmatpush2.bf16.msra.mxu0 %v6330
    %6563 = vmatprep.subr.bf16.mxu0 %v6323
    %6564 = vmatpush2.bf16.msra.mxu0 %v6322
    %6565 = vmatprep.subr.bf16.mxu0 %v6315
    %6566 = vmatpush2.bf16.msra.mxu0 %v6314
    %6567 = vmatprep.subr.bf16.mxu0 %v6307
    %6568 = vmatpush2.bf16.msra.mxu0 %v6306
    %6569 = vmatprep.mubr.bf16.mxu0 %v1947
    %6570 = vmatmul.mubr.bf16.gmra.mxu0 %v1947
    %v6571 = vpop.f32.mrf.mxu0
    %v6572 = vadd.f32 0.0, %v6571
    %v6573 = vpop.f32.mrf.mxu0
    %v6574 = vadd.f32 0.0, %v6573
    %v6575 = vpop.f32.mrf.mxu0
    %v6576 = vpop.f32.mrf.mxu0
    %6577 = vdwg.mxu0
    %6578 = vmatprep.subr.bf16.mxu0 %v6301
    %6579 = vmatpush1.bf16.msra.mxu0 %v6300
    %6580 = vmatprep.subr.bf16.mxu0 %v6293
    %6581 = vmatpush1.bf16.msra.mxu0 %v6292
    %6582 = vmatprep.subr.bf16.mxu0 %v6285
    %6583 = vmatpush1.bf16.msra.mxu0 %v6284
    %6584 = vmatprep.subr.bf16.mxu0 %v6277
    %6585 = vmatpush1.bf16.msra.mxu0 %v6276
    %6586 = vmatprep.subr.bf16.mxu0 %v6269
    %6587 = vmatpush1.bf16.msra.mxu0 %v6268
    %6588 = vmatprep.subr.bf16.mxu0 %v6261
    %6589 = vmatpush1.bf16.msra.mxu0 %v6260
    %6590 = vmatprep.subr.bf16.mxu0 %v6253
    %6591 = vmatpush1.bf16.msra.mxu0 %v6252
    %6592 = vmatprep.subr.bf16.mxu0 %v6245
    %6593 = vmatpush1.bf16.msra.mxu0 %v6244
    %6594 = vmatprep.subr.bf16.mxu0 %v6365
    %6595 = vmatpush2.bf16.msra.mxu0 %v6364
    %6596 = vmatprep.subr.bf16.mxu0 %v6357
    %6597 = vmatpush2.bf16.msra.mxu0 %v6356
    %6598 = vmatprep.subr.bf16.mxu0 %v6349
    %6599 = vmatpush2.bf16.msra.mxu0 %v6348
    %6600 = vmatprep.subr.bf16.mxu0 %v6341
    %6601 = vmatpush2.bf16.msra.mxu0 %v6340
    %6602 = vmatprep.subr.bf16.mxu0 %v6333
    %6603 = vmatpush2.bf16.msra.mxu0 %v6332
    %6604 = vmatprep.subr.bf16.mxu0 %v6325
    %6605 = vmatpush2.bf16.msra.mxu0 %v6324
    %6606 = vmatprep.subr.bf16.mxu0 %v6317
    %6607 = vmatpush2.bf16.msra.mxu0 %v6316
    %6608 = vmatprep.subr.bf16.mxu0 %v6309
    %6609 = vmatpush2.bf16.msra.mxu0 %v6308
    %6610 = vmatprep.mubr.bf16.mxu0 %v1947
    %6611 = vmatmul.mubr.bf16.gmra.mxu0 %v1947
    %v6612 = vpop.f32.mrf.mxu0
    %v6613 = vadd.f32 0.0, %v6612
    %v6614 = vpop.f32.mrf.mxu0
    %v6615 = vadd.f32 0.0, %v6614
    %v6616 = vpop.f32.mrf.mxu0
    %v6617 = vpop.f32.mrf.mxu0
    %6618 = vdwg.mxu0
    %6619 = vmatprep.subr.bf16.mxu0 %v6303
    %6620 = vmatpush1.bf16.msra.mxu0 %v6302
    %6621 = vmatprep.subr.bf16.mxu0 %v6295
    %6622 = vmatpush1.bf16.msra.mxu0 %v6294
    %6623 = vmatprep.subr.bf16.mxu0 %v6287
    %6624 = vmatpush1.bf16.msra.mxu0 %v6286
    %6625 = vmatprep.subr.bf16.mxu0 %v6279
    %6626 = vmatpush1.bf16.msra.mxu0 %v6278
    %6627 = vmatprep.subr.bf16.mxu0 %v6271
    %6628 = vmatpush1.bf16.msra.mxu0 %v6270
    %6629 = vmatprep.subr.bf16.mxu0 %v6263
    %6630 = vmatpush1.bf16.msra.mxu0 %v6262
    %6631 = vmatprep.subr.bf16.mxu0 %v6255
    %6632 = vmatpush1.bf16.msra.mxu0 %v6254
    %6633 = vmatprep.subr.bf16.mxu0 %v6247
    %6634 = vmatpush1.bf16.msra.mxu0 %v6246
    %6635 = vmatprep.subr.bf16.mxu0 %v6367
    %6636 = vmatpush2.bf16.msra.mxu0 %v6366
    %6637 = vmatprep.subr.bf16.mxu0 %v6359
    %6638 = vmatpush2.bf16.msra.mxu0 %v6358
    %6639 = vmatprep.subr.bf16.mxu0 %v6351
    %6640 = vmatpush2.bf16.msra.mxu0 %v6350
    %6641 = vmatprep.subr.bf16.mxu0 %v6343
    %6642 = vmatpush2.bf16.msra.mxu0 %v6342
    %6643 = vmatprep.subr.bf16.mxu0 %v6335
    %6644 = vmatpush2.bf16.msra.mxu0 %v6334
    %6645 = vmatprep.subr.bf16.mxu0 %v6327
    %6646 = vmatpush2.bf16.msra.mxu0 %v6326
    %6647 = vmatprep.subr.bf16.mxu0 %v6319
    %6648 = vmatpush2.bf16.msra.mxu0 %v6318
    %6649 = vmatprep.subr.bf16.mxu0 %v6311
    %6650 = vmatpush2.bf16.msra.mxu0 %v6310
    %6651 = vmatprep.mubr.bf16.mxu0 %v1947
    %6652 = vmatmul.mubr.bf16.gmra.mxu0 %v1947
    %v6653 = vpop.f32.mrf.mxu0
    %v6654 = vadd.f32 0.0, %v6653
    %v6655 = vpop.f32.mrf.mxu0
    %v6656 = vadd.f32 0.0, %v6655
    %v6657 = vpop.f32.mrf.mxu0
    %v6658 = vpop.f32.mrf.mxu0
    %6659 = vdwg.mxu0
    %v6660 = vld [vmem:[#allocation2] sm:$0xff]
    %v6661 = vld [vmem:[#allocation2 + $0x8] sm:$0xff]
    %v6662 = vld [vmem:[#allocation2 + $0x10] sm:$0xff]
    %v6663 = vld [vmem:[#allocation2 + $0x18] sm:$0xff]
    %v6664 = vadd.f32 %v6531, %v6660
    %v6665 = vadd.f32 %v6533, %v6661
    %v6666 = vadd.f32 %v6572, %v6662
    %v6667 = vadd.f32 %v6574, %v6663
    %v6668 = vld [vmem:[#allocation2 + $0x1e0] sm:$0xff]
    %v6669 = vld [vmem:[#allocation2 + $0x1e8] sm:$0xff]
    %v6670 = vld [vmem:[#allocation2 + $0x1f0] sm:$0xff]
    %v6671 = vld [vmem:[#allocation2 + $0x1f8] sm:$0xff]
    %v6672 = vadd.f32 %v6613, %v6668
    %v6673 = vadd.f32 %v6615, %v6669
    %v6674 = vadd.f32 %v6654, %v6670
    %v6675 = vadd.f32 %v6656, %v6671
    %v6676 = vxor.u32 %v6664, 2147483648
    %v6677 = vmul.f32 %v6676, 1.442695
    %v6678 = vpow.pop %v6677
    %v6679 = vadd.f32 %v6678, 1.0
    %v6680 = vrcp.pop %v6679
    %v6681 = vmul.f32 1.0, %v6680
    %v6682 = vxor.u32 %v6665, 2147483648
    %v6683 = vmul.f32 %v6682, 1.442695
    %v6684 = vpow.pop %v6683
    %v6685 = vadd.f32 %v6684, 1.0
    %v6686 = vrcp.pop %v6685
    %v6687 = vmul.f32 1.0, %v6686
    %v6688 = vtanh.pop %v6666
    %v6689 = vxor.u32 %v6667, 2147483648
    %v6690 = vmul.f32 %v6689, 1.442695
    %v6691 = vpow.pop %v6690
    %v6692 = vadd.f32 %v6691, 1.0
    %v6693 = vrcp.pop %v6692
    %v6694 = vmul.f32 1.0, %v6693
    %v6695 = vmul.f32 %v6687, 0.0
    %v6696 = vmul.f32 %v6681, %v6688
    %v6697 = vadd.f32 %v6695, %v6696
    %v6698 = vtanh.pop %v6697
    %v6699 = vmul.f32 %v6694, %v6698
    %v6700 = vxor.u32 %v6672, 2147483648
    %v6701 = vmul.f32 %v6700, 1.442695
    %v6702 = vpow.pop %v6701
    %v6703 = vadd.f32 %v6702, 1.0
    %v6704 = vrcp.pop %v6703
    %v6705 = vmul.f32 1.0, %v6704
    %v6706 = vxor.u32 %v6673, 2147483648
    %v6707 = vmul.f32 %v6706, 1.442695
    %v6708 = vpow.pop %v6707
    %v6709 = vadd.f32 %v6708, 1.0
    %v6710 = vrcp.pop %v6709
    %v6711 = vmul.f32 1.0, %v6710
    %v6712 = vtanh.pop %v6674
    %v6713 = vxor.u32 %v6675, 2147483648
    %v6714 = vmul.f32 %v6713, 1.442695
    %v6715 = vpow.pop %v6714
    %v6716 = vadd.f32 %v6715, 1.0
    %v6717 = vrcp.pop %v6716
    %v6718 = vmul.f32 1.0, %v6717
    %v6719 = vmul.f32 %v6711, 0.0
    %v6720 = vmul.f32 %v6705, %v6712
    %v6721 = vadd.f32 %v6719, %v6720
    %v6722 = vtanh.pop %v6721
    %v6723 = vmul.f32 %v6718, %v6722
    %v6724 = vpack.c.bf16 %v6699, %v6699
    %v6725 = vpack.c.bf16 %v6723, %v6723
    %6726 = vmatprep.subr.bf16.mxu0 %v6297
    %6727 = vmatpush1.bf16.msra.mxu0 %v6296
    %6728 = vmatprep.subr.bf16.mxu0 %v6289
    %6729 = vmatpush1.bf16.msra.mxu0 %v6288
    %6730 = vmatprep.subr.bf16.mxu0 %v6281
    %6731 = vmatpush1.bf16.msra.mxu0 %v6280
    %6732 = vmatprep.subr.bf16.mxu0 %v6273
    %6733 = vmatpush1.bf16.msra.mxu0 %v6272
    %6734 = vmatprep.subr.bf16.mxu0 %v6265
    %6735 = vmatpush1.bf16.msra.mxu0 %v6264
    %6736 = vmatprep.subr.bf16.mxu0 %v6257
    %6737 = vmatpush1.bf16.msra.mxu0 %v6256
    %6738 = vmatprep.subr.bf16.mxu0 %v6249
    %6739 = vmatpush1.bf16.msra.mxu0 %v6248
    %6740 = vmatprep.subr.bf16.mxu0 %v6241
    %6741 = vmatpush1.bf16.msra.mxu0 %v6240
    %6742 = vmatprep.subr.bf16.mxu0 %v6361
    %6743 = vmatpush2.bf16.msra.mxu0 %v6360
    %6744 = vmatprep.subr.bf16.mxu0 %v6353
    %6745 = vmatpush2.bf16.msra.mxu0 %v6352
    %6746 = vmatprep.subr.bf16.mxu0 %v6345
    %6747 = vmatpush2.bf16.msra.mxu0 %v6344
    %6748 = vmatprep.subr.bf16.mxu0 %v6337
    %6749 = vmatpush2.bf16.msra.mxu0 %v6336
    %6750 = vmatprep.subr.bf16.mxu0 %v6329
    %6751 = vmatpush2.bf16.msra.mxu0 %v6328
    %6752 = vmatprep.subr.bf16.mxu0 %v6321
    %6753 = vmatpush2.bf16.msra.mxu0 %v6320
    %6754 = vmatprep.subr.bf16.mxu0 %v6313
    %6755 = vmatpush2.bf16.msra.mxu0 %v6312
    %6756 = vmatprep.subr.bf16.mxu0 %v6305
    %6757 = vmatpush2.bf16.msra.mxu0 %v6304
    %6758 = vmatprep.mubr.bf16.mxu0 %v6725
    %6759 = vmatmul.mubr.bf16.gmra.mxu0 %v6724
    %v6760 = vpop.f32.mrf.mxu0
    %v6761 = vadd.f32 0.0, %v6760
    %v6762 = vpop.f32.mrf.mxu0
    %v6763 = vadd.f32 0.0, %v6762
    %v6764 = vpop.f32.mrf.mxu0
    %v6765 = vpop.f32.mrf.mxu0
    %6766 = vdwg.mxu0
    %6767 = vmatprep.subr.bf16.mxu0 %v6299
    %6768 = vmatpush1.bf16.msra.mxu0 %v6298
    %6769 = vmatprep.subr.bf16.mxu0 %v6291
    %6770 = vmatpush1.bf16.msra.mxu0 %v6290
    %6771 = vmatprep.subr.bf16.mxu0 %v6283
    %6772 = vmatpush1.bf16.msra.mxu0 %v6282
    %6773 = vmatprep.subr.bf16.mxu0 %v6275
    %6774 = vmatpush1.bf16.msra.mxu0 %v6274
    %6775 = vmatprep.subr.bf16.mxu0 %v6267
    %6776 = vmatpush1.bf16.msra.mxu0 %v6266
    %6777 = vmatprep.subr.bf16.mxu0 %v6259
    %6778 = vmatpush1.bf16.msra.mxu0 %v6258
    %6779 = vmatprep.subr.bf16.mxu0 %v6251
    %6780 = vmatpush1.bf16.msra.mxu0 %v6250
    %6781 = vmatprep.subr.bf16.mxu0 %v6243
    %6782 = vmatpush1.bf16.msra.mxu0 %v6242
    %6783 = vmatprep.subr.bf16.mxu0 %v6363
    %6784 = vmatpush2.bf16.msra.mxu0 %v6362
    %6785 = vmatprep.subr.bf16.mxu0 %v6355
    %6786 = vmatpush2.bf16.msra.mxu0 %v6354
    %6787 = vmatprep.subr.bf16.mxu0 %v6347
    %6788 = vmatpush2.bf16.msra.mxu0 %v6346
    %6789 = vmatprep.subr.bf16.mxu0 %v6339
    %6790 = vmatpush2.bf16.msra.mxu0 %v6338
    %6791 = vmatprep.subr.bf16.mxu0 %v6331
    %6792 = vmatpush2.bf16.msra.mxu0 %v6330
    %6793 = vmatprep.subr.bf16.mxu0 %v6323
    %6794 = vmatpush2.bf16.msra.mxu0 %v6322
    %6795 = vmatprep.subr.bf16.mxu0 %v6315
    %6796 = vmatpush2.bf16.msra.mxu0 %v6314
    %6797 = vmatprep.subr.bf16.mxu0 %v6307
    %6798 = vmatpush2.bf16.msra.mxu0 %v6306
    %6799 = vmatprep.mubr.bf16.mxu0 %v6725
    %6800 = vmatmul.mubr.bf16.gmra.mxu0 %v6724
    %v6801 = vpop.f32.mrf.mxu0
    %v6802 = vadd.f32 0.0, %v6801
    %v6803 = vpop.f32.mrf.mxu0
    %v6804 = vadd.f32 0.0, %v6803
    %v6805 = vpop.f32.mrf.mxu0
    %v6806 = vpop.f32.mrf.mxu0
    %6807 = vdwg.mxu0
    %6808 = vmatprep.subr.bf16.mxu0 %v6301
    %6809 = vmatpush1.bf16.msra.mxu0 %v6300
    %6810 = vmatprep.subr.bf16.mxu0 %v6293
    %6811 = vmatpush1.bf16.msra.mxu0 %v6292
    %6812 = vmatprep.subr.bf16.mxu0 %v6285
    %6813 = vmatpush1.bf16.msra.mxu0 %v6284
    %6814 = vmatprep.subr.bf16.mxu0 %v6277
    %6815 = vmatpush1.bf16.msra.mxu0 %v6276
    %6816 = vmatprep.subr.bf16.mxu0 %v6269
    %6817 = vmatpush1.bf16.msra.mxu0 %v6268
    %6818 = vmatprep.subr.bf16.mxu0 %v6261
    %6819 = vmatpush1.bf16.msra.mxu0 %v6260
    %6820 = vmatprep.subr.bf16.mxu0 %v6253
    %6821 = vmatpush1.bf16.msra.mxu0 %v6252
    %6822 = vmatprep.subr.bf16.mxu0 %v6245
    %6823 = vmatpush1.bf16.msra.mxu0 %v6244
    %6824 = vmatprep.subr.bf16.mxu0 %v6365
    %6825 = vmatpush2.bf16.msra.mxu0 %v6364
    %6826 = vmatprep.subr.bf16.mxu0 %v6357
    %6827 = vmatpush2.bf16.msra.mxu0 %v6356
    %6828 = vmatprep.subr.bf16.mxu0 %v6349
    %6829 = vmatpush2.bf16.msra.mxu0 %v6348
    %6830 = vmatprep.subr.bf16.mxu0 %v6341
    %6831 = vmatpush2.bf16.msra.mxu0 %v6340
    %6832 = vmatprep.subr.bf16.mxu0 %v6333
    %6833 = vmatpush2.bf16.msra.mxu0 %v6332
    %6834 = vmatprep.subr.bf16.mxu0 %v6325
    %6835 = vmatpush2.bf16.msra.mxu0 %v6324
    %6836 = vmatprep.subr.bf16.mxu0 %v6317
    %6837 = vmatpush2.bf16.msra.mxu0 %v6316
    %6838 = vmatprep.subr.bf16.mxu0 %v6309
    %6839 = vmatpush2.bf16.msra.mxu0 %v6308
    %6840 = vmatprep.mubr.bf16.mxu0 %v6725
    %6841 = vmatmul.mubr.bf16.gmra.mxu0 %v6724
    %v6842 = vpop.f32.mrf.mxu0
    %v6843 = vadd.f32 0.0, %v6842
    %v6844 = vpop.f32.mrf.mxu0
    %v6845 = vadd.f32 0.0, %v6844
    %v6846 = vpop.f32.mrf.mxu0
    %v6847 = vpop.f32.mrf.mxu0
    %6848 = vdwg.mxu0
    %6849 = vmatprep.subr.bf16.mxu0 %v6303
    %6850 = vmatpush1.bf16.msra.mxu0 %v6302
    %6851 = vmatprep.subr.bf16.mxu0 %v6295
    %6852 = vmatpush1.bf16.msra.mxu0 %v6294
    %6853 = vmatprep.subr.bf16.mxu0 %v6287
    %6854 = vmatpush1.bf16.msra.mxu0 %v6286
    %6855 = vmatprep.subr.bf16.mxu0 %v6279
    %6856 = vmatpush1.bf16.msra.mxu0 %v6278
    %6857 = vmatprep.subr.bf16.mxu0 %v6271
    %6858 = vmatpush1.bf16.msra.mxu0 %v6270
    %6859 = vmatprep.subr.bf16.mxu0 %v6263
    %6860 = vmatpush1.bf16.msra.mxu0 %v6262
    %6861 = vmatprep.subr.bf16.mxu0 %v6255
    %6862 = vmatpush1.bf16.msra.mxu0 %v6254
    %6863 = vmatprep.subr.bf16.mxu0 %v6247
    %6864 = vmatpush1.bf16.msra.mxu0 %v6246
    %6865 = vmatprep.subr.bf16.mxu0 %v6367
    %6866 = vmatpush2.bf16.msra.mxu0 %v6366
    %6867 = vmatprep.subr.bf16.mxu0 %v6359
    %6868 = vmatpush2.bf16.msra.mxu0 %v6358
    %6869 = vmatprep.subr.bf16.mxu0 %v6351
    %6870 = vmatpush2.bf16.msra.mxu0 %v6350
    %6871 = vmatprep.subr.bf16.mxu0 %v6343
    %6872 = vmatpush2.bf16.msra.mxu0 %v6342
    %6873 = vmatprep.subr.bf16.mxu0 %v6335
    %6874 = vmatpush2.bf16.msra.mxu0 %v6334
    %6875 = vmatprep.subr.bf16.mxu0 %v6327
    %6876 = vmatpush2.bf16.msra.mxu0 %v6326
    %6877 = vmatprep.subr.bf16.mxu0 %v6319
    %6878 = vmatpush2.bf16.msra.mxu0 %v6318
    %6879 = vmatprep.subr.bf16.mxu0 %v6311
    %6880 = vmatpush2.bf16.msra.mxu0 %v6310
    %6881 = vmatprep.mubr.bf16.mxu0 %v6725
    %6882 = vmatmul.mubr.bf16.gmra.mxu0 %v6724
    %v6883 = vpop.f32.mrf.mxu0
    %v6884 = vadd.f32 0.0, %v6883
    %v6885 = vpop.f32.mrf.mxu0
    %v6886 = vadd.f32 0.0, %v6885
    %v6887 = vpop.f32.mrf.mxu0
    %v6888 = vpop.f32.mrf.mxu0
    %6889 = vdwg.mxu0
    %v6890 = vld [vmem:[#allocation2 + $0x40] sm:$0xff]
    %v6891 = vld [vmem:[#allocation2 + $0x48] sm:$0xff]
    %v6892 = vld [vmem:[#allocation2 + $0x50] sm:$0xff]
    %v6893 = vld [vmem:[#allocation2 + $0x58] sm:$0xff]
    %v6894 = vadd.f32 %v6761, %v6890
    %v6895 = vadd.f32 %v6763, %v6891
    %v6896 = vadd.f32 %v6802, %v6892
    %v6897 = vadd.f32 %v6804, %v6893
    %v6898 = vld [vmem:[#allocation2 + $0x1a0] sm:$0xff]
    %v6899 = vld [vmem:[#allocation2 + $0x1a8] sm:$0xff]
    %v6900 = vld [vmem:[#allocation2 + $0x1b0] sm:$0xff]
    %v6901 = vld [vmem:[#allocation2 + $0x1b8] sm:$0xff]
    %v6902 = vadd.f32 %v6843, %v6898
    %v6903 = vadd.f32 %v6845, %v6899
    %v6904 = vadd.f32 %v6884, %v6900
    %v6905 = vadd.f32 %v6886, %v6901
    %v6906 = vxor.u32 %v6894, 2147483648
    %v6907 = vmul.f32 %v6906, 1.442695
    %v6908 = vpow.pop %v6907
    %v6909 = vadd.f32 %v6908, 1.0
    %v6910 = vrcp.pop %v6909
    %v6911 = vmul.f32 1.0, %v6910
    %v6912 = vxor.u32 %v6895, 2147483648
    %v6913 = vmul.f32 %v6912, 1.442695
    %v6914 = vpow.pop %v6913
    %v6915 = vadd.f32 %v6914, 1.0
    %v6916 = vrcp.pop %v6915
    %v6917 = vmul.f32 1.0, %v6916
    %v6918 = vtanh.pop %v6896
    %v6919 = vxor.u32 %v6897, 2147483648
    %v6920 = vmul.f32 %v6919, 1.442695
    %v6921 = vpow.pop %v6920
    %v6922 = vadd.f32 %v6921, 1.0
    %v6923 = vrcp.pop %v6922
    %v6924 = vmul.f32 1.0, %v6923
    %v6925 = vmul.f32 %v6917, %v6697
    %v6926 = vmul.f32 %v6911, %v6918
    %v6927 = vadd.f32 %v6925, %v6926
    %v6928 = vtanh.pop %v6927
    %v6929 = vmul.f32 %v6924, %v6928
    %v6930 = vxor.u32 %v6902, 2147483648
    %v6931 = vmul.f32 %v6930, 1.442695
    %v6932 = vpow.pop %v6931
    %v6933 = vadd.f32 %v6932, 1.0
    %v6934 = vrcp.pop %v6933
    %v6935 = vmul.f32 1.0, %v6934
    %v6936 = vxor.u32 %v6903, 2147483648
    %v6937 = vmul.f32 %v6936, 1.442695
    %v6938 = vpow.pop %v6937
    %v6939 = vadd.f32 %v6938, 1.0
    %v6940 = vrcp.pop %v6939
    %v6941 = vmul.f32 1.0, %v6940
    %v6942 = vtanh.pop %v6904
    %v6943 = vxor.u32 %v6905, 2147483648
    %v6944 = vmul.f32 %v6943, 1.442695
    %v6945 = vpow.pop %v6944
    %v6946 = vadd.f32 %v6945, 1.0
    %v6947 = vrcp.pop %v6946
    %v6948 = vmul.f32 1.0, %v6947
    %v6949 = vmul.f32 %v6941, %v6721
    %v6950 = vmul.f32 %v6935, %v6942
    %v6951 = vadd.f32 %v6949, %v6950
    %v6952 = vtanh.pop %v6951
    %v6953 = vmul.f32 %v6948, %v6952
    %v6954 = vpack.c.bf16 %v6929, %v6929
    %v6955 = vpack.c.bf16 %v6953, %v6953
    %6956 = vmatprep.subr.bf16.mxu0 %v6297
    %6957 = vmatpush1.bf16.msra.mxu0 %v6296
    %6958 = vmatprep.subr.bf16.mxu0 %v6289
    %6959 = vmatpush1.bf16.msra.mxu0 %v6288
    %6960 = vmatprep.subr.bf16.mxu0 %v6281
    %6961 = vmatpush1.bf16.msra.mxu0 %v6280
    %6962 = vmatprep.subr.bf16.mxu0 %v6273
    %6963 = vmatpush1.bf16.msra.mxu0 %v6272
    %6964 = vmatprep.subr.bf16.mxu0 %v6265
    %6965 = vmatpush1.bf16.msra.mxu0 %v6264
    %6966 = vmatprep.subr.bf16.mxu0 %v6257
    %6967 = vmatpush1.bf16.msra.mxu0 %v6256
    %6968 = vmatprep.subr.bf16.mxu0 %v6249
    %6969 = vmatpush1.bf16.msra.mxu0 %v6248
    %6970 = vmatprep.subr.bf16.mxu0 %v6241
    %6971 = vmatpush1.bf16.msra.mxu0 %v6240
    %6972 = vmatprep.subr.bf16.mxu0 %v6361
    %6973 = vmatpush2.bf16.msra.mxu0 %v6360
    %6974 = vmatprep.subr.bf16.mxu0 %v6353
    %6975 = vmatpush2.bf16.msra.mxu0 %v6352
    %6976 = vmatprep.subr.bf16.mxu0 %v6345
    %6977 = vmatpush2.bf16.msra.mxu0 %v6344
    %6978 = vmatprep.subr.bf16.mxu0 %v6337
    %6979 = vmatpush2.bf16.msra.mxu0 %v6336
    %6980 = vmatprep.subr.bf16.mxu0 %v6329
    %6981 = vmatpush2.bf16.msra.mxu0 %v6328
    %6982 = vmatprep.subr.bf16.mxu0 %v6321
    %6983 = vmatpush2.bf16.msra.mxu0 %v6320
    %6984 = vmatprep.subr.bf16.mxu0 %v6313
    %6985 = vmatpush2.bf16.msra.mxu0 %v6312
    %6986 = vmatprep.subr.bf16.mxu0 %v6305
    %6987 = vmatpush2.bf16.msra.mxu0 %v6304
    %6988 = vmatprep.mubr.bf16.mxu0 %v6955
    %6989 = vmatmul.mubr.bf16.gmra.mxu0 %v6954
    %v6990 = vpop.f32.mrf.mxu0
    %v6991 = vadd.f32 0.0, %v6990
    %v6992 = vpop.f32.mrf.mxu0
    %v6993 = vadd.f32 0.0, %v6992
    %v6994 = vpop.f32.mrf.mxu0
    %v6995 = vpop.f32.mrf.mxu0
    %6996 = vdwg.mxu0
    %6997 = vmatprep.subr.bf16.mxu0 %v6299
    %6998 = vmatpush1.bf16.msra.mxu0 %v6298
    %6999 = vmatprep.subr.bf16.mxu0 %v6291
    %7000 = vmatpush1.bf16.msra.mxu0 %v6290
    %7001 = vmatprep.subr.bf16.mxu0 %v6283
    %7002 = vmatpush1.bf16.msra.mxu0 %v6282
    %7003 = vmatprep.subr.bf16.mxu0 %v6275
    %7004 = vmatpush1.bf16.msra.mxu0 %v6274
    %7005 = vmatprep.subr.bf16.mxu0 %v6267
    %7006 = vmatpush1.bf16.msra.mxu0 %v6266
    %7007 = vmatprep.subr.bf16.mxu0 %v6259
    %7008 = vmatpush1.bf16.msra.mxu0 %v6258
    %7009 = vmatprep.subr.bf16.mxu0 %v6251
    %7010 = vmatpush1.bf16.msra.mxu0 %v6250
    %7011 = vmatprep.subr.bf16.mxu0 %v6243
    %7012 = vmatpush1.bf16.msra.mxu0 %v6242
    %7013 = vmatprep.subr.bf16.mxu0 %v6363
    %7014 = vmatpush2.bf16.msra.mxu0 %v6362
    %7015 = vmatprep.subr.bf16.mxu0 %v6355
    %7016 = vmatpush2.bf16.msra.mxu0 %v6354
    %7017 = vmatprep.subr.bf16.mxu0 %v6347
    %7018 = vmatpush2.bf16.msra.mxu0 %v6346
    %7019 = vmatprep.subr.bf16.mxu0 %v6339
    %7020 = vmatpush2.bf16.msra.mxu0 %v6338
    %7021 = vmatprep.subr.bf16.mxu0 %v6331
    %7022 = vmatpush2.bf16.msra.mxu0 %v6330
    %7023 = vmatprep.subr.bf16.mxu0 %v6323
    %7024 = vmatpush2.bf16.msra.mxu0 %v6322
    %7025 = vmatprep.subr.bf16.mxu0 %v6315
    %7026 = vmatpush2.bf16.msra.mxu0 %v6314
    %7027 = vmatprep.subr.bf16.mxu0 %v6307
    %7028 = vmatpush2.bf16.msra.mxu0 %v6306
    %7029 = vmatprep.mubr.bf16.mxu0 %v6955
    %7030 = vmatmul.mubr.bf16.gmra.mxu0 %v6954
    %v7031 = vpop.f32.mrf.mxu0
    %v7032 = vadd.f32 0.0, %v7031
    %v7033 = vpop.f32.mrf.mxu0
    %v7034 = vadd.f32 0.0, %v7033
    %v7035 = vpop.f32.mrf.mxu0
    %v7036 = vpop.f32.mrf.mxu0
    %7037 = vdwg.mxu0
    %7038 = vmatprep.subr.bf16.mxu0 %v6301
    %7039 = vmatpush1.bf16.msra.mxu0 %v6300
    %7040 = vmatprep.subr.bf16.mxu0 %v6293
    %7041 = vmatpush1.bf16.msra.mxu0 %v6292
    %7042 = vmatprep.subr.bf16.mxu0 %v6285
    %7043 = vmatpush1.bf16.msra.mxu0 %v6284
    %7044 = vmatprep.subr.bf16.mxu0 %v6277
    %7045 = vmatpush1.bf16.msra.mxu0 %v6276
    %7046 = vmatprep.subr.bf16.mxu0 %v6269
    %7047 = vmatpush1.bf16.msra.mxu0 %v6268
    %7048 = vmatprep.subr.bf16.mxu0 %v6261
    %7049 = vmatpush1.bf16.msra.mxu0 %v6260
    %7050 = vmatprep.subr.bf16.mxu0 %v6253
    %7051 = vmatpush1.bf16.msra.mxu0 %v6252
    %7052 = vmatprep.subr.bf16.mxu0 %v6245
    %7053 = vmatpush1.bf16.msra.mxu0 %v6244
    %7054 = vmatprep.subr.bf16.mxu0 %v6365
    %7055 = vmatpush2.bf16.msra.mxu0 %v6364
    %7056 = vmatprep.subr.bf16.mxu0 %v6357
    %7057 = vmatpush2.bf16.msra.mxu0 %v6356
    %7058 = vmatprep.subr.bf16.mxu0 %v6349
    %7059 = vmatpush2.bf16.msra.mxu0 %v6348
    %7060 = vmatprep.subr.bf16.mxu0 %v6341
    %7061 = vmatpush2.bf16.msra.mxu0 %v6340
    %7062 = vmatprep.subr.bf16.mxu0 %v6333
    %7063 = vmatpush2.bf16.msra.mxu0 %v6332
    %7064 = vmatprep.subr.bf16.mxu0 %v6325
    %7065 = vmatpush2.bf16.msra.mxu0 %v6324
    %7066 = vmatprep.subr.bf16.mxu0 %v6317
    %7067 = vmatpush2.bf16.msra.mxu0 %v6316
    %7068 = vmatprep.subr.bf16.mxu0 %v6309
    %7069 = vmatpush2.bf16.msra.mxu0 %v6308
    %7070 = vmatprep.mubr.bf16.mxu0 %v6955
    %7071 = vmatmul.mubr.bf16.gmra.mxu0 %v6954
    %v7072 = vpop.f32.mrf.mxu0
    %v7073 = vadd.f32 0.0, %v7072
    %v7074 = vpop.f32.mrf.mxu0
    %v7075 = vadd.f32 0.0, %v7074
    %v7076 = vpop.f32.mrf.mxu0
    %v7077 = vpop.f32.mrf.mxu0
    %7078 = vdwg.mxu0
    %7079 = vmatprep.subr.bf16.mxu0 %v6303
    %7080 = vmatpush1.bf16.msra.mxu0 %v6302
    %7081 = vmatprep.subr.bf16.mxu0 %v6295
    %7082 = vmatpush1.bf16.msra.mxu0 %v6294
    %7083 = vmatprep.subr.bf16.mxu0 %v6287
    %7084 = vmatpush1.bf16.msra.mxu0 %v6286
    %7085 = vmatprep.subr.bf16.mxu0 %v6279
    %7086 = vmatpush1.bf16.msra.mxu0 %v6278
    %7087 = vmatprep.subr.bf16.mxu0 %v6271
    %7088 = vmatpush1.bf16.msra.mxu0 %v6270
    %7089 = vmatprep.subr.bf16.mxu0 %v6263
    %7090 = vmatpush1.bf16.msra.mxu0 %v6262
    %7091 = vmatprep.subr.bf16.mxu0 %v6255
    %7092 = vmatpush1.bf16.msra.mxu0 %v6254
    %7093 = vmatprep.subr.bf16.mxu0 %v6247
    %7094 = vmatpush1.bf16.msra.mxu0 %v6246
    %7095 = vmatprep.subr.bf16.mxu0 %v6367
    %7096 = vmatpush2.bf16.msra.mxu0 %v6366
    %7097 = vmatprep.subr.bf16.mxu0 %v6359
    %7098 = vmatpush2.bf16.msra.mxu0 %v6358
    %7099 = vmatprep.subr.bf16.mxu0 %v6351
    %7100 = vmatpush2.bf16.msra.mxu0 %v6350
    %7101 = vmatprep.subr.bf16.mxu0 %v6343
    %7102 = vmatpush2.bf16.msra.mxu0 %v6342
    %7103 = vmatprep.subr.bf16.mxu0 %v6335
    %7104 = vmatpush2.bf16.msra.mxu0 %v6334
    %7105 = vmatprep.subr.bf16.mxu0 %v6327
    %7106 = vmatpush2.bf16.msra.mxu0 %v6326
    %7107 = vmatprep.subr.bf16.mxu0 %v6319
    %7108 = vmatpush2.bf16.msra.mxu0 %v6318
    %7109 = vmatprep.subr.bf16.mxu0 %v6311
    %7110 = vmatpush2.bf16.msra.mxu0 %v6310
    %7111 = vmatprep.mubr.bf16.mxu0 %v6955
    %7112 = vmatmul.mubr.bf16.gmra.mxu0 %v6954
    %v7113 = vpop.f32.mrf.mxu0
    %v7114 = vadd.f32 0.0, %v7113
    %v7115 = vpop.f32.mrf.mxu0
    %v7116 = vadd.f32 0.0, %v7115
    %v7117 = vpop.f32.mrf.mxu0
    %v7118 = vpop.f32.mrf.mxu0
    %7119 = vdwg.mxu0
    %v7120 = vld [vmem:[#allocation2 + $0x80] sm:$0xff]
    %v7121 = vld [vmem:[#allocation2 + $0x88] sm:$0xff]
    %v7122 = vld [vmem:[#allocation2 + $0x90] sm:$0xff]
    %v7123 = vld [vmem:[#allocation2 + $0x98] sm:$0xff]
    %v7124 = vadd.f32 %v6991, %v7120
    %v7125 = vadd.f32 %v6993, %v7121
    %v7126 = vadd.f32 %v7032, %v7122
    %v7127 = vadd.f32 %v7034, %v7123
    %v7128 = vld [vmem:[#allocation2 + $0x160] sm:$0xff]
    %v7129 = vld [vmem:[#allocation2 + $0x168] sm:$0xff]
    %v7130 = vld [vmem:[#allocation2 + $0x170] sm:$0xff]
    %v7131 = vld [vmem:[#allocation2 + $0x178] sm:$0xff]
    %v7132 = vadd.f32 %v7073, %v7128
    %v7133 = vadd.f32 %v7075, %v7129
    %v7134 = vadd.f32 %v7114, %v7130
    %v7135 = vadd.f32 %v7116, %v7131
    %v7136 = vxor.u32 %v7124, 2147483648
    %v7137 = vmul.f32 %v7136, 1.442695
    %v7138 = vpow.pop %v7137
    %v7139 = vadd.f32 %v7138, 1.0
    %v7140 = vrcp.pop %v7139
    %v7141 = vmul.f32 1.0, %v7140
    %v7142 = vxor.u32 %v7125, 2147483648
    %v7143 = vmul.f32 %v7142, 1.442695
    %v7144 = vpow.pop %v7143
    %v7145 = vadd.f32 %v7144, 1.0
    %v7146 = vrcp.pop %v7145
    %v7147 = vmul.f32 1.0, %v7146
    %v7148 = vtanh.pop %v7126
    %v7149 = vxor.u32 %v7127, 2147483648
    %v7150 = vmul.f32 %v7149, 1.442695
    %v7151 = vpow.pop %v7150
    %v7152 = vadd.f32 %v7151, 1.0
    %v7153 = vrcp.pop %v7152
    %v7154 = vmul.f32 1.0, %v7153
    %v7155 = vmul.f32 %v7147, %v6927
    %v7156 = vmul.f32 %v7141, %v7148
    %v7157 = vadd.f32 %v7155, %v7156
    %v7158 = vtanh.pop %v7157
    %v7159 = vmul.f32 %v7154, %v7158
    %v7160 = vxor.u32 %v7132, 2147483648
    %v7161 = vmul.f32 %v7160, 1.442695
    %v7162 = vpow.pop %v7161
    %v7163 = vadd.f32 %v7162, 1.0
    %v7164 = vrcp.pop %v7163
    %v7165 = vmul.f32 1.0, %v7164
    %v7166 = vxor.u32 %v7133, 2147483648
    %v7167 = vmul.f32 %v7166, 1.442695
    %v7168 = vpow.pop %v7167
    %v7169 = vadd.f32 %v7168, 1.0
    %v7170 = vrcp.pop %v7169
    %v7171 = vmul.f32 1.0, %v7170
    %v7172 = vtanh.pop %v7134
    %v7173 = vxor.u32 %v7135, 2147483648
    %v7174 = vmul.f32 %v7173, 1.442695
    %v7175 = vpow.pop %v7174
    %v7176 = vadd.f32 %v7175, 1.0
    %v7177 = vrcp.pop %v7176
    %v7178 = vmul.f32 1.0, %v7177
    %v7179 = vmul.f32 %v7171, %v6951
    %v7180 = vmul.f32 %v7165, %v7172
    %v7181 = vadd.f32 %v7179, %v7180
    %v7182 = vtanh.pop %v7181
    %v7183 = vmul.f32 %v7178, %v7182
    %v7184 = vpack.c.bf16 %v7159, %v7159
    %v7185 = vpack.c.bf16 %v7183, %v7183
    %7186 = vmatprep.subr.bf16.mxu0 %v6297
    %7187 = vmatpush1.bf16.msra.mxu0 %v6296
    %7188 = vmatprep.subr.bf16.mxu0 %v6289
    %7189 = vmatpush1.bf16.msra.mxu0 %v6288
    %7190 = vmatprep.subr.bf16.mxu0 %v6281
    %7191 = vmatpush1.bf16.msra.mxu0 %v6280
    %7192 = vmatprep.subr.bf16.mxu0 %v6273
    %7193 = vmatpush1.bf16.msra.mxu0 %v6272
    %7194 = vmatprep.subr.bf16.mxu0 %v6265
    %7195 = vmatpush1.bf16.msra.mxu0 %v6264
    %7196 = vmatprep.subr.bf16.mxu0 %v6257
    %7197 = vmatpush1.bf16.msra.mxu0 %v6256
    %7198 = vmatprep.subr.bf16.mxu0 %v6249
    %7199 = vmatpush1.bf16.msra.mxu0 %v6248
    %7200 = vmatprep.subr.bf16.mxu0 %v6241
    %7201 = vmatpush1.bf16.msra.mxu0 %v6240
    %7202 = vmatprep.subr.bf16.mxu0 %v6361
    %7203 = vmatpush2.bf16.msra.mxu0 %v6360
    %7204 = vmatprep.subr.bf16.mxu0 %v6353
    %7205 = vmatpush2.bf16.msra.mxu0 %v6352
    %7206 = vmatprep.subr.bf16.mxu0 %v6345
    %7207 = vmatpush2.bf16.msra.mxu0 %v6344
    %7208 = vmatprep.subr.bf16.mxu0 %v6337
    %7209 = vmatpush2.bf16.msra.mxu0 %v6336
    %7210 = vmatprep.subr.bf16.mxu0 %v6329
    %7211 = vmatpush2.bf16.msra.mxu0 %v6328
    %7212 = vmatprep.subr.bf16.mxu0 %v6321
    %7213 = vmatpush2.bf16.msra.mxu0 %v6320
    %7214 = vmatprep.subr.bf16.mxu0 %v6313
    %7215 = vmatpush2.bf16.msra.mxu0 %v6312
    %7216 = vmatprep.subr.bf16.mxu0 %v6305
    %7217 = vmatpush2.bf16.msra.mxu0 %v6304
    %7218 = vmatprep.mubr.bf16.mxu0 %v7185
    %7219 = vmatmul.mubr.bf16.gmra.mxu0 %v7184
    %v7220 = vpop.f32.mrf.mxu0
    %v7221 = vadd.f32 0.0, %v7220
    %v7222 = vpop.f32.mrf.mxu0
    %v7223 = vadd.f32 0.0, %v7222
    %v7224 = vpop.f32.mrf.mxu0
    %v7225 = vpop.f32.mrf.mxu0
    %7226 = vdwg.mxu0
    %7227 = vmatprep.subr.bf16.mxu0 %v6299
    %7228 = vmatpush1.bf16.msra.mxu0 %v6298
    %7229 = vmatprep.subr.bf16.mxu0 %v6291
    %7230 = vmatpush1.bf16.msra.mxu0 %v6290
    %7231 = vmatprep.subr.bf16.mxu0 %v6283
    %7232 = vmatpush1.bf16.msra.mxu0 %v6282
    %7233 = vmatprep.subr.bf16.mxu0 %v6275
    %7234 = vmatpush1.bf16.msra.mxu0 %v6274
    %7235 = vmatprep.subr.bf16.mxu0 %v6267
    %7236 = vmatpush1.bf16.msra.mxu0 %v6266
    %7237 = vmatprep.subr.bf16.mxu0 %v6259
    %7238 = vmatpush1.bf16.msra.mxu0 %v6258
    %7239 = vmatprep.subr.bf16.mxu0 %v6251
    %7240 = vmatpush1.bf16.msra.mxu0 %v6250
    %7241 = vmatprep.subr.bf16.mxu0 %v6243
    %7242 = vmatpush1.bf16.msra.mxu0 %v6242
    %7243 = vmatprep.subr.bf16.mxu0 %v6363
    %7244 = vmatpush2.bf16.msra.mxu0 %v6362
    %7245 = vmatprep.subr.bf16.mxu0 %v6355
    %7246 = vmatpush2.bf16.msra.mxu0 %v6354
    %7247 = vmatprep.subr.bf16.mxu0 %v6347
    %7248 = vmatpush2.bf16.msra.mxu0 %v6346
    %7249 = vmatprep.subr.bf16.mxu0 %v6339
    %7250 = vmatpush2.bf16.msra.mxu0 %v6338
    %7251 = vmatprep.subr.bf16.mxu0 %v6331
    %7252 = vmatpush2.bf16.msra.mxu0 %v6330
    %7253 = vmatprep.subr.bf16.mxu0 %v6323
    %7254 = vmatpush2.bf16.msra.mxu0 %v6322
    %7255 = vmatprep.subr.bf16.mxu0 %v6315
    %7256 = vmatpush2.bf16.msra.mxu0 %v6314
    %7257 = vmatprep.subr.bf16.mxu0 %v6307
    %7258 = vmatpush2.bf16.msra.mxu0 %v6306
    %7259 = vmatprep.mubr.bf16.mxu0 %v7185
    %7260 = vmatmul.mubr.bf16.gmra.mxu0 %v7184
    %v7261 = vpop.f32.mrf.mxu0
    %v7262 = vadd.f32 0.0, %v7261
    %v7263 = vpop.f32.mrf.mxu0
    %v7264 = vadd.f32 0.0, %v7263
    %v7265 = vpop.f32.mrf.mxu0
    %v7266 = vpop.f32.mrf.mxu0
    %7267 = vdwg.mxu0
    %7268 = vmatprep.subr.bf16.mxu0 %v6301
    %7269 = vmatpush1.bf16.msra.mxu0 %v6300
    %7270 = vmatprep.subr.bf16.mxu0 %v6293
    %7271 = vmatpush1.bf16.msra.mxu0 %v6292
    %7272 = vmatprep.subr.bf16.mxu0 %v6285
    %7273 = vmatpush1.bf16.msra.mxu0 %v6284
    %7274 = vmatprep.subr.bf16.mxu0 %v6277
    %7275 = vmatpush1.bf16.msra.mxu0 %v6276
    %7276 = vmatprep.subr.bf16.mxu0 %v6269
    %7277 = vmatpush1.bf16.msra.mxu0 %v6268
    %7278 = vmatprep.subr.bf16.mxu0 %v6261
    %7279 = vmatpush1.bf16.msra.mxu0 %v6260
    %7280 = vmatprep.subr.bf16.mxu0 %v6253
    %7281 = vmatpush1.bf16.msra.mxu0 %v6252
    %7282 = vmatprep.subr.bf16.mxu0 %v6245
    %7283 = vmatpush1.bf16.msra.mxu0 %v6244
    %7284 = vmatprep.subr.bf16.mxu0 %v6365
    %7285 = vmatpush2.bf16.msra.mxu0 %v6364
    %7286 = vmatprep.subr.bf16.mxu0 %v6357
    %7287 = vmatpush2.bf16.msra.mxu0 %v6356
    %7288 = vmatprep.subr.bf16.mxu0 %v6349
    %7289 = vmatpush2.bf16.msra.mxu0 %v6348
    %7290 = vmatprep.subr.bf16.mxu0 %v6341
    %7291 = vmatpush2.bf16.msra.mxu0 %v6340
    %7292 = vmatprep.subr.bf16.mxu0 %v6333
    %7293 = vmatpush2.bf16.msra.mxu0 %v6332
    %7294 = vmatprep.subr.bf16.mxu0 %v6325
    %7295 = vmatpush2.bf16.msra.mxu0 %v6324
    %7296 = vmatprep.subr.bf16.mxu0 %v6317
    %7297 = vmatpush2.bf16.msra.mxu0 %v6316
    %7298 = vmatprep.subr.bf16.mxu0 %v6309
    %7299 = vmatpush2.bf16.msra.mxu0 %v6308
    %7300 = vmatprep.mubr.bf16.mxu0 %v7185
    %7301 = vmatmul.mubr.bf16.gmra.mxu0 %v7184
    %v7302 = vpop.f32.mrf.mxu0
    %v7303 = vadd.f32 0.0, %v7302
    %v7304 = vpop.f32.mrf.mxu0
    %v7305 = vadd.f32 0.0, %v7304
    %v7306 = vpop.f32.mrf.mxu0
    %v7307 = vpop.f32.mrf.mxu0
    %7308 = vdwg.mxu0
    %7309 = vmatprep.subr.bf16.mxu0 %v6303
    %7310 = vmatpush1.bf16.msra.mxu0 %v6302
    %7311 = vmatprep.subr.bf16.mxu0 %v6295
    %7312 = vmatpush1.bf16.msra.mxu0 %v6294
    %7313 = vmatprep.subr.bf16.mxu0 %v6287
    %7314 = vmatpush1.bf16.msra.mxu0 %v6286
    %7315 = vmatprep.subr.bf16.mxu0 %v6279
    %7316 = vmatpush1.bf16.msra.mxu0 %v6278
    %7317 = vmatprep.subr.bf16.mxu0 %v6271
    %7318 = vmatpush1.bf16.msra.mxu0 %v6270
    %7319 = vmatprep.subr.bf16.mxu0 %v6263
    %7320 = vmatpush1.bf16.msra.mxu0 %v6262
    %7321 = vmatprep.subr.bf16.mxu0 %v6255
    %7322 = vmatpush1.bf16.msra.mxu0 %v6254
    %7323 = vmatprep.subr.bf16.mxu0 %v6247
    %7324 = vmatpush1.bf16.msra.mxu0 %v6246
    %7325 = vmatprep.subr.bf16.mxu0 %v6367
    %7326 = vmatpush2.bf16.msra.mxu0 %v6366
    %7327 = vmatprep.subr.bf16.mxu0 %v6359
    %7328 = vmatpush2.bf16.msra.mxu0 %v6358
    %7329 = vmatprep.subr.bf16.mxu0 %v6351
    %7330 = vmatpush2.bf16.msra.mxu0 %v6350
    %7331 = vmatprep.subr.bf16.mxu0 %v6343
    %7332 = vmatpush2.bf16.msra.mxu0 %v6342
    %7333 = vmatprep.subr.bf16.mxu0 %v6335
    %7334 = vmatpush2.bf16.msra.mxu0 %v6334
    %7335 = vmatprep.subr.bf16.mxu0 %v6327
    %7336 = vmatpush2.bf16.msra.mxu0 %v6326
    %7337 = vmatprep.subr.bf16.mxu0 %v6319
    %7338 = vmatpush2.bf16.msra.mxu0 %v6318
    %7339 = vmatprep.subr.bf16.mxu0 %v6311
    %7340 = vmatpush2.bf16.msra.mxu0 %v6310
    %7341 = vmatprep.mubr.bf16.mxu0 %v7185
    %7342 = vmatmul.mubr.bf16.gmra.mxu0 %v7184
    %v7343 = vpop.f32.mrf.mxu0
    %v7344 = vadd.f32 0.0, %v7343
    %v7345 = vpop.f32.mrf.mxu0
    %v7346 = vadd.f32 0.0, %v7345
    %v7347 = vpop.f32.mrf.mxu0
    %v7348 = vpop.f32.mrf.mxu0
    %7349 = vdwg.mxu0
    %v7350 = vld [vmem:[#allocation2 + $0xc0] sm:$0xff]
    %v7351 = vld [vmem:[#allocation2 + $0xc8] sm:$0xff]
    %v7352 = vld [vmem:[#allocation2 + $0xd0] sm:$0xff]
    %v7353 = vld [vmem:[#allocation2 + $0xd8] sm:$0xff]
    %v7354 = vadd.f32 %v7221, %v7350
    %v7355 = vadd.f32 %v7223, %v7351
    %v7356 = vadd.f32 %v7262, %v7352
    %v7357 = vadd.f32 %v7264, %v7353
    %v7358 = vld [vmem:[#allocation2 + $0x120] sm:$0xff]
    %v7359 = vld [vmem:[#allocation2 + $0x128] sm:$0xff]
    %v7360 = vld [vmem:[#allocation2 + $0x130] sm:$0xff]
    %v7361 = vld [vmem:[#allocation2 + $0x138] sm:$0xff]
    %v7362 = vadd.f32 %v7303, %v7358
    %v7363 = vadd.f32 %v7305, %v7359
    %v7364 = vadd.f32 %v7344, %v7360
    %v7365 = vadd.f32 %v7346, %v7361
    %v7366 = vxor.u32 %v7354, 2147483648
    %v7367 = vmul.f32 %v7366, 1.442695
    %v7368 = vpow.pop %v7367
    %v7369 = vadd.f32 %v7368, 1.0
    %v7370 = vrcp.pop %v7369
    %v7371 = vmul.f32 1.0, %v7370
    %v7372 = vxor.u32 %v7355, 2147483648
    %v7373 = vmul.f32 %v7372, 1.442695
    %v7374 = vpow.pop %v7373
    %v7375 = vadd.f32 %v7374, 1.0
    %v7376 = vrcp.pop %v7375
    %v7377 = vmul.f32 1.0, %v7376
    %v7378 = vtanh.pop %v7356
    %v7379 = vxor.u32 %v7357, 2147483648
    %v7380 = vmul.f32 %v7379, 1.442695
    %v7381 = vpow.pop %v7380
    %v7382 = vadd.f32 %v7381, 1.0
    %v7383 = vrcp.pop %v7382
    %v7384 = vmul.f32 1.0, %v7383
    %v7385 = vmul.f32 %v7377, %v7157
    %v7386 = vmul.f32 %v7371, %v7378
    %v7387 = vadd.f32 %v7385, %v7386
    %v7388 = vtanh.pop %v7387
    %v7389 = vmul.f32 %v7384, %v7388
    %v7390 = vxor.u32 %v7362, 2147483648
    %v7391 = vmul.f32 %v7390, 1.442695
    %v7392 = vpow.pop %v7391
    %v7393 = vadd.f32 %v7392, 1.0
    %v7394 = vrcp.pop %v7393
    %v7395 = vmul.f32 1.0, %v7394
    %v7396 = vxor.u32 %v7363, 2147483648
    %v7397 = vmul.f32 %v7396, 1.442695
    %v7398 = vpow.pop %v7397
    %v7399 = vadd.f32 %v7398, 1.0
    %v7400 = vrcp.pop %v7399
    %v7401 = vmul.f32 1.0, %v7400
    %v7402 = vtanh.pop %v7364
    %v7403 = vxor.u32 %v7365, 2147483648
    %v7404 = vmul.f32 %v7403, 1.442695
    %v7405 = vpow.pop %v7404
    %v7406 = vadd.f32 %v7405, 1.0
    %v7407 = vrcp.pop %v7406
    %v7408 = vmul.f32 1.0, %v7407
    %v7409 = vmul.f32 %v7401, %v7181
    %v7410 = vmul.f32 %v7395, %v7402
    %v7411 = vadd.f32 %v7409, %v7410
    %v7412 = vtanh.pop %v7411
    %v7413 = vmul.f32 %v7408, %v7412
    %v7414 = vpack.c.bf16 %v7389, %v7389
    %v7415 = vpack.c.bf16 %v7413, %v7413
    %7416 = vmatprep.subr.bf16.mxu0 %v6297
    %7417 = vmatpush1.bf16.msra.mxu0 %v6296
    %7418 = vmatprep.subr.bf16.mxu0 %v6289
    %7419 = vmatpush1.bf16.msra.mxu0 %v6288
    %7420 = vmatprep.subr.bf16.mxu0 %v6281
    %7421 = vmatpush1.bf16.msra.mxu0 %v6280
    %7422 = vmatprep.subr.bf16.mxu0 %v6273
    %7423 = vmatpush1.bf16.msra.mxu0 %v6272
    %7424 = vmatprep.subr.bf16.mxu0 %v6265
    %7425 = vmatpush1.bf16.msra.mxu0 %v6264
    %7426 = vmatprep.subr.bf16.mxu0 %v6257
    %7427 = vmatpush1.bf16.msra.mxu0 %v6256
    %7428 = vmatprep.subr.bf16.mxu0 %v6249
    %7429 = vmatpush1.bf16.msra.mxu0 %v6248
    %7430 = vmatprep.subr.bf16.mxu0 %v6241
    %7431 = vmatpush1.bf16.msra.mxu0 %v6240
    %7432 = vmatprep.subr.bf16.mxu0 %v6361
    %7433 = vmatpush2.bf16.msra.mxu0 %v6360
    %7434 = vmatprep.subr.bf16.mxu0 %v6353
    %7435 = vmatpush2.bf16.msra.mxu0 %v6352
    %7436 = vmatprep.subr.bf16.mxu0 %v6345
    %7437 = vmatpush2.bf16.msra.mxu0 %v6344
    %7438 = vmatprep.subr.bf16.mxu0 %v6337
    %7439 = vmatpush2.bf16.msra.mxu0 %v6336
    %7440 = vmatprep.subr.bf16.mxu0 %v6329
    %7441 = vmatpush2.bf16.msra.mxu0 %v6328
    %7442 = vmatprep.subr.bf16.mxu0 %v6321
    %7443 = vmatpush2.bf16.msra.mxu0 %v6320
    %7444 = vmatprep.subr.bf16.mxu0 %v6313
    %7445 = vmatpush2.bf16.msra.mxu0 %v6312
    %7446 = vmatprep.subr.bf16.mxu0 %v6305
    %7447 = vmatpush2.bf16.msra.mxu0 %v6304
    %7448 = vmatprep.mubr.bf16.mxu0 %v7415
    %7449 = vmatmul.mubr.bf16.gmra.mxu0 %v7414
    %v7450 = vpop.f32.mrf.mxu0
    %v7451 = vadd.f32 0.0, %v7450
    %v7452 = vpop.f32.mrf.mxu0
    %v7453 = vadd.f32 0.0, %v7452
    %v7454 = vpop.f32.mrf.mxu0
    %v7455 = vpop.f32.mrf.mxu0
    %7456 = vdwg.mxu0
    %7457 = vmatprep.subr.bf16.mxu0 %v6299
    %7458 = vmatpush1.bf16.msra.mxu0 %v6298
    %7459 = vmatprep.subr.bf16.mxu0 %v6291
    %7460 = vmatpush1.bf16.msra.mxu0 %v6290
    %7461 = vmatprep.subr.bf16.mxu0 %v6283
    %7462 = vmatpush1.bf16.msra.mxu0 %v6282
    %7463 = vmatprep.subr.bf16.mxu0 %v6275
    %7464 = vmatpush1.bf16.msra.mxu0 %v6274
    %7465 = vmatprep.subr.bf16.mxu0 %v6267
    %7466 = vmatpush1.bf16.msra.mxu0 %v6266
    %7467 = vmatprep.subr.bf16.mxu0 %v6259
    %7468 = vmatpush1.bf16.msra.mxu0 %v6258
    %7469 = vmatprep.subr.bf16.mxu0 %v6251
    %7470 = vmatpush1.bf16.msra.mxu0 %v6250
    %7471 = vmatprep.subr.bf16.mxu0 %v6243
    %7472 = vmatpush1.bf16.msra.mxu0 %v6242
    %7473 = vmatprep.subr.bf16.mxu0 %v6363
    %7474 = vmatpush2.bf16.msra.mxu0 %v6362
    %7475 = vmatprep.subr.bf16.mxu0 %v6355
    %7476 = vmatpush2.bf16.msra.mxu0 %v6354
    %7477 = vmatprep.subr.bf16.mxu0 %v6347
    %7478 = vmatpush2.bf16.msra.mxu0 %v6346
    %7479 = vmatprep.subr.bf16.mxu0 %v6339
    %7480 = vmatpush2.bf16.msra.mxu0 %v6338
    %7481 = vmatprep.subr.bf16.mxu0 %v6331
    %7482 = vmatpush2.bf16.msra.mxu0 %v6330
    %7483 = vmatprep.subr.bf16.mxu0 %v6323
    %7484 = vmatpush2.bf16.msra.mxu0 %v6322
    %7485 = vmatprep.subr.bf16.mxu0 %v6315
    %7486 = vmatpush2.bf16.msra.mxu0 %v6314
    %7487 = vmatprep.subr.bf16.mxu0 %v6307
    %7488 = vmatpush2.bf16.msra.mxu0 %v6306
    %7489 = vmatprep.mubr.bf16.mxu0 %v7415
    %7490 = vmatmul.mubr.bf16.gmra.mxu0 %v7414
    %v7491 = vpop.f32.mrf.mxu0
    %v7492 = vadd.f32 0.0, %v7491
    %v7493 = vpop.f32.mrf.mxu0
    %v7494 = vadd.f32 0.0, %v7493
    %v7495 = vpop.f32.mrf.mxu0
    %v7496 = vpop.f32.mrf.mxu0
    %7497 = vdwg.mxu0
    %7498 = vmatprep.subr.bf16.mxu0 %v6301
    %7499 = vmatpush1.bf16.msra.mxu0 %v6300
    %7500 = vmatprep.subr.bf16.mxu0 %v6293
    %7501 = vmatpush1.bf16.msra.mxu0 %v6292
    %7502 = vmatprep.subr.bf16.mxu0 %v6285
    %7503 = vmatpush1.bf16.msra.mxu0 %v6284
    %7504 = vmatprep.subr.bf16.mxu0 %v6277
    %7505 = vmatpush1.bf16.msra.mxu0 %v6276
    %7506 = vmatprep.subr.bf16.mxu0 %v6269
    %7507 = vmatpush1.bf16.msra.mxu0 %v6268
    %7508 = vmatprep.subr.bf16.mxu0 %v6261
    %7509 = vmatpush1.bf16.msra.mxu0 %v6260
    %7510 = vmatprep.subr.bf16.mxu0 %v6253
    %7511 = vmatpush1.bf16.msra.mxu0 %v6252
    %7512 = vmatprep.subr.bf16.mxu0 %v6245
    %7513 = vmatpush1.bf16.msra.mxu0 %v6244
    %7514 = vmatprep.subr.bf16.mxu0 %v6365
    %7515 = vmatpush2.bf16.msra.mxu0 %v6364
    %7516 = vmatprep.subr.bf16.mxu0 %v6357
    %7517 = vmatpush2.bf16.msra.mxu0 %v6356
    %7518 = vmatprep.subr.bf16.mxu0 %v6349
    %7519 = vmatpush2.bf16.msra.mxu0 %v6348
    %7520 = vmatprep.subr.bf16.mxu0 %v6341
    %7521 = vmatpush2.bf16.msra.mxu0 %v6340
    %7522 = vmatprep.subr.bf16.mxu0 %v6333
    %7523 = vmatpush2.bf16.msra.mxu0 %v6332
    %7524 = vmatprep.subr.bf16.mxu0 %v6325
    %7525 = vmatpush2.bf16.msra.mxu0 %v6324
    %7526 = vmatprep.subr.bf16.mxu0 %v6317
    %7527 = vmatpush2.bf16.msra.mxu0 %v6316
    %7528 = vmatprep.subr.bf16.mxu0 %v6309
    %7529 = vmatpush2.bf16.msra.mxu0 %v6308
    %7530 = vmatprep.mubr.bf16.mxu0 %v7415
    %7531 = vmatmul.mubr.bf16.gmra.mxu0 %v7414
    %v7532 = vpop.f32.mrf.mxu0
    %v7533 = vadd.f32 0.0, %v7532
    %v7534 = vpop.f32.mrf.mxu0
    %v7535 = vadd.f32 0.0, %v7534
    %v7536 = vpop.f32.mrf.mxu0
    %v7537 = vpop.f32.mrf.mxu0
    %7538 = vdwg.mxu0
    %7539 = vmatprep.subr.bf16.mxu0 %v6303
    %7540 = vmatpush1.bf16.msra.mxu0 %v6302
    %7541 = vmatprep.subr.bf16.mxu0 %v6295
    %7542 = vmatpush1.bf16.msra.mxu0 %v6294
    %7543 = vmatprep.subr.bf16.mxu0 %v6287
    %7544 = vmatpush1.bf16.msra.mxu0 %v6286
    %7545 = vmatprep.subr.bf16.mxu0 %v6279
    %7546 = vmatpush1.bf16.msra.mxu0 %v6278
    %7547 = vmatprep.subr.bf16.mxu0 %v6271
    %7548 = vmatpush1.bf16.msra.mxu0 %v6270
    %7549 = vmatprep.subr.bf16.mxu0 %v6263
    %7550 = vmatpush1.bf16.msra.mxu0 %v6262
    %7551 = vmatprep.subr.bf16.mxu0 %v6255
    %7552 = vmatpush1.bf16.msra.mxu0 %v6254
    %7553 = vmatprep.subr.bf16.mxu0 %v6247
    %7554 = vmatpush1.bf16.msra.mxu0 %v6246
    %7555 = vmatprep.subr.bf16.mxu0 %v6367
    %7556 = vmatpush2.bf16.msra.mxu0 %v6366
    %7557 = vmatprep.subr.bf16.mxu0 %v6359
    %7558 = vmatpush2.bf16.msra.mxu0 %v6358
    %7559 = vmatprep.subr.bf16.mxu0 %v6351
    %7560 = vmatpush2.bf16.msra.mxu0 %v6350
    %7561 = vmatprep.subr.bf16.mxu0 %v6343
    %7562 = vmatpush2.bf16.msra.mxu0 %v6342
    %7563 = vmatprep.subr.bf16.mxu0 %v6335
    %7564 = vmatpush2.bf16.msra.mxu0 %v6334
    %7565 = vmatprep.subr.bf16.mxu0 %v6327
    %7566 = vmatpush2.bf16.msra.mxu0 %v6326
    %7567 = vmatprep.subr.bf16.mxu0 %v6319
    %7568 = vmatpush2.bf16.msra.mxu0 %v6318
    %7569 = vmatprep.subr.bf16.mxu0 %v6311
    %7570 = vmatpush2.bf16.msra.mxu0 %v6310
    %7571 = vmatprep.mubr.bf16.mxu0 %v7415
    %7572 = vmatmul.mubr.bf16.gmra.mxu0 %v7414
    %v7573 = vpop.f32.mrf.mxu0
    %v7574 = vadd.f32 0.0, %v7573
    %v7575 = vpop.f32.mrf.mxu0
    %v7576 = vadd.f32 0.0, %v7575
    %v7577 = vpop.f32.mrf.mxu0
    %v7578 = vpop.f32.mrf.mxu0
    %7579 = vdwg.mxu0
    %v7580 = vld [vmem:[#allocation2 + $0x100] sm:$0xff]
    %v7581 = vld [vmem:[#allocation2 + $0x108] sm:$0xff]
    %v7582 = vld [vmem:[#allocation2 + $0x110] sm:$0xff]
    %v7583 = vld [vmem:[#allocation2 + $0x118] sm:$0xff]
    %v7584 = vadd.f32 %v7451, %v7580
    %v7585 = vadd.f32 %v7453, %v7581
    %v7586 = vadd.f32 %v7492, %v7582
    %v7587 = vadd.f32 %v7494, %v7583
    %v7588 = vld [vmem:[#allocation2 + $0xe0] sm:$0xff]
    %v7589 = vld [vmem:[#allocation2 + $0xe8] sm:$0xff]
    %v7590 = vld [vmem:[#allocation2 + $0xf0] sm:$0xff]
    %v7591 = vld [vmem:[#allocation2 + $0xf8] sm:$0xff]
    %v7592 = vadd.f32 %v7533, %v7588
    %v7593 = vadd.f32 %v7535, %v7589
    %v7594 = vadd.f32 %v7574, %v7590
    %v7595 = vadd.f32 %v7576, %v7591
    %v7596 = vxor.u32 %v7584, 2147483648
    %v7597 = vmul.f32 %v7596, 1.442695
    %v7598 = vpow.pop %v7597
    %v7599 = vadd.f32 %v7598, 1.0
    %v7600 = vrcp.pop %v7599
    %v7601 = vmul.f32 1.0, %v7600
    %v7602 = vxor.u32 %v7585, 2147483648
    %v7603 = vmul.f32 %v7602, 1.442695
    %v7604 = vpow.pop %v7603
    %v7605 = vadd.f32 %v7604, 1.0
    %v7606 = vrcp.pop %v7605
    %v7607 = vmul.f32 1.0, %v7606
    %v7608 = vtanh.pop %v7586
    %v7609 = vxor.u32 %v7587, 2147483648
    %v7610 = vmul.f32 %v7609, 1.442695
    %v7611 = vpow.pop %v7610
    %v7612 = vadd.f32 %v7611, 1.0
    %v7613 = vrcp.pop %v7612
    %v7614 = vmul.f32 1.0, %v7613
    %v7615 = vmul.f32 %v7607, %v7387
    %v7616 = vmul.f32 %v7601, %v7608
    %v7617 = vadd.f32 %v7615, %v7616
    %v7618 = vtanh.pop %v7617
    %v7619 = vmul.f32 %v7614, %v7618
    %v7620 = vxor.u32 %v7592, 2147483648
    %v7621 = vmul.f32 %v7620, 1.442695
    %v7622 = vpow.pop %v7621
    %v7623 = vadd.f32 %v7622, 1.0
    %v7624 = vrcp.pop %v7623
    %v7625 = vmul.f32 1.0, %v7624
    %v7626 = vxor.u32 %v7593, 2147483648
    %v7627 = vmul.f32 %v7626, 1.442695
    %v7628 = vpow.pop %v7627
    %v7629 = vadd.f32 %v7628, 1.0
    %v7630 = vrcp.pop %v7629
    %v7631 = vmul.f32 1.0, %v7630
    %v7632 = vtanh.pop %v7594
    %v7633 = vxor.u32 %v7595, 2147483648
    %v7634 = vmul.f32 %v7633, 1.442695
    %v7635 = vpow.pop %v7634
    %v7636 = vadd.f32 %v7635, 1.0
    %v7637 = vrcp.pop %v7636
    %v7638 = vmul.f32 1.0, %v7637
    %v7639 = vmul.f32 %v7631, %v7411
    %v7640 = vmul.f32 %v7625, %v7632
    %v7641 = vadd.f32 %v7639, %v7640
    %v7642 = vtanh.pop %v7641
    %v7643 = vmul.f32 %v7638, %v7642
    %v7644 = vpack.c.bf16 %v7619, %v7619
    %v7645 = vpack.c.bf16 %v7643, %v7643
    %7646 = vmatprep.subr.bf16.mxu0 %v6297
    %7647 = vmatpush1.bf16.msra.mxu0 %v6296
    %7648 = vmatprep.subr.bf16.mxu0 %v6289
    %7649 = vmatpush1.bf16.msra.mxu0 %v6288
    %7650 = vmatprep.subr.bf16.mxu0 %v6281
    %7651 = vmatpush1.bf16.msra.mxu0 %v6280
    %7652 = vmatprep.subr.bf16.mxu0 %v6273
    %7653 = vmatpush1.bf16.msra.mxu0 %v6272
    %7654 = vmatprep.subr.bf16.mxu0 %v6265
    %7655 = vmatpush1.bf16.msra.mxu0 %v6264
    %7656 = vmatprep.subr.bf16.mxu0 %v6257
    %7657 = vmatpush1.bf16.msra.mxu0 %v6256
    %7658 = vmatprep.subr.bf16.mxu0 %v6249
    %7659 = vmatpush1.bf16.msra.mxu0 %v6248
    %7660 = vmatprep.subr.bf16.mxu0 %v6241
    %7661 = vmatpush1.bf16.msra.mxu0 %v6240
    %7662 = vmatprep.subr.bf16.mxu0 %v6361
    %7663 = vmatpush2.bf16.msra.mxu0 %v6360
    %7664 = vmatprep.subr.bf16.mxu0 %v6353
    %7665 = vmatpush2.bf16.msra.mxu0 %v6352
    %7666 = vmatprep.subr.bf16.mxu0 %v6345
    %7667 = vmatpush2.bf16.msra.mxu0 %v6344
    %7668 = vmatprep.subr.bf16.mxu0 %v6337
    %7669 = vmatpush2.bf16.msra.mxu0 %v6336
    %7670 = vmatprep.subr.bf16.mxu0 %v6329
    %7671 = vmatpush2.bf16.msra.mxu0 %v6328
    %7672 = vmatprep.subr.bf16.mxu0 %v6321
    %7673 = vmatpush2.bf16.msra.mxu0 %v6320
    %7674 = vmatprep.subr.bf16.mxu0 %v6313
    %7675 = vmatpush2.bf16.msra.mxu0 %v6312
    %7676 = vmatprep.subr.bf16.mxu0 %v6305
    %7677 = vmatpush2.bf16.msra.mxu0 %v6304
    %7678 = vmatprep.mubr.bf16.mxu0 %v7645
    %7679 = vmatmul.mubr.bf16.gmra.mxu0 %v7644
    %v7680 = vpop.f32.mrf.mxu0
    %v7681 = vadd.f32 0.0, %v7680
    %v7682 = vpop.f32.mrf.mxu0
    %v7683 = vadd.f32 0.0, %v7682
    %v7684 = vpop.f32.mrf.mxu0
    %v7685 = vpop.f32.mrf.mxu0
    %7686 = vdwg.mxu0
    %7687 = vmatprep.subr.bf16.mxu0 %v6299
    %7688 = vmatpush1.bf16.msra.mxu0 %v6298
    %7689 = vmatprep.subr.bf16.mxu0 %v6291
    %7690 = vmatpush1.bf16.msra.mxu0 %v6290
    %7691 = vmatprep.subr.bf16.mxu0 %v6283
    %7692 = vmatpush1.bf16.msra.mxu0 %v6282
    %7693 = vmatprep.subr.bf16.mxu0 %v6275
    %7694 = vmatpush1.bf16.msra.mxu0 %v6274
    %7695 = vmatprep.subr.bf16.mxu0 %v6267
    %7696 = vmatpush1.bf16.msra.mxu0 %v6266
    %7697 = vmatprep.subr.bf16.mxu0 %v6259
    %7698 = vmatpush1.bf16.msra.mxu0 %v6258
    %7699 = vmatprep.subr.bf16.mxu0 %v6251
    %7700 = vmatpush1.bf16.msra.mxu0 %v6250
    %7701 = vmatprep.subr.bf16.mxu0 %v6243
    %7702 = vmatpush1.bf16.msra.mxu0 %v6242
    %7703 = vmatprep.subr.bf16.mxu0 %v6363
    %7704 = vmatpush2.bf16.msra.mxu0 %v6362
    %7705 = vmatprep.subr.bf16.mxu0 %v6355
    %7706 = vmatpush2.bf16.msra.mxu0 %v6354
    %7707 = vmatprep.subr.bf16.mxu0 %v6347
    %7708 = vmatpush2.bf16.msra.mxu0 %v6346
    %7709 = vmatprep.subr.bf16.mxu0 %v6339
    %7710 = vmatpush2.bf16.msra.mxu0 %v6338
    %7711 = vmatprep.subr.bf16.mxu0 %v6331
    %7712 = vmatpush2.bf16.msra.mxu0 %v6330
    %7713 = vmatprep.subr.bf16.mxu0 %v6323
    %7714 = vmatpush2.bf16.msra.mxu0 %v6322
    %7715 = vmatprep.subr.bf16.mxu0 %v6315
    %7716 = vmatpush2.bf16.msra.mxu0 %v6314
    %7717 = vmatprep.subr.bf16.mxu0 %v6307
    %7718 = vmatpush2.bf16.msra.mxu0 %v6306
    %7719 = vmatprep.mubr.bf16.mxu0 %v7645
    %7720 = vmatmul.mubr.bf16.gmra.mxu0 %v7644
    %v7721 = vpop.f32.mrf.mxu0
    %v7722 = vadd.f32 0.0, %v7721
    %v7723 = vpop.f32.mrf.mxu0
    %v7724 = vadd.f32 0.0, %v7723
    %v7725 = vpop.f32.mrf.mxu0
    %v7726 = vpop.f32.mrf.mxu0
    %7727 = vdwg.mxu0
    %7728 = vmatprep.subr.bf16.mxu0 %v6301
    %7729 = vmatpush1.bf16.msra.mxu0 %v6300
    %7730 = vmatprep.subr.bf16.mxu0 %v6293
    %7731 = vmatpush1.bf16.msra.mxu0 %v6292
    %7732 = vmatprep.subr.bf16.mxu0 %v6285
    %7733 = vmatpush1.bf16.msra.mxu0 %v6284
    %7734 = vmatprep.subr.bf16.mxu0 %v6277
    %7735 = vmatpush1.bf16.msra.mxu0 %v6276
    %7736 = vmatprep.subr.bf16.mxu0 %v6269
    %7737 = vmatpush1.bf16.msra.mxu0 %v6268
    %7738 = vmatprep.subr.bf16.mxu0 %v6261
    %7739 = vmatpush1.bf16.msra.mxu0 %v6260
    %7740 = vmatprep.subr.bf16.mxu0 %v6253
    %7741 = vmatpush1.bf16.msra.mxu0 %v6252
    %7742 = vmatprep.subr.bf16.mxu0 %v6245
    %7743 = vmatpush1.bf16.msra.mxu0 %v6244
    %7744 = vmatprep.subr.bf16.mxu0 %v6365
    %7745 = vmatpush2.bf16.msra.mxu0 %v6364
    %7746 = vmatprep.subr.bf16.mxu0 %v6357
    %7747 = vmatpush2.bf16.msra.mxu0 %v6356
    %7748 = vmatprep.subr.bf16.mxu0 %v6349
    %7749 = vmatpush2.bf16.msra.mxu0 %v6348
    %7750 = vmatprep.subr.bf16.mxu0 %v6341
    %7751 = vmatpush2.bf16.msra.mxu0 %v6340
    %7752 = vmatprep.subr.bf16.mxu0 %v6333
    %7753 = vmatpush2.bf16.msra.mxu0 %v6332
    %7754 = vmatprep.subr.bf16.mxu0 %v6325
    %7755 = vmatpush2.bf16.msra.mxu0 %v6324
    %7756 = vmatprep.subr.bf16.mxu0 %v6317
    %7757 = vmatpush2.bf16.msra.mxu0 %v6316
    %7758 = vmatprep.subr.bf16.mxu0 %v6309
    %7759 = vmatpush2.bf16.msra.mxu0 %v6308
    %7760 = vmatprep.mubr.bf16.mxu0 %v7645
    %7761 = vmatmul.mubr.bf16.gmra.mxu0 %v7644
    %v7762 = vpop.f32.mrf.mxu0
    %v7763 = vadd.f32 0.0, %v7762
    %v7764 = vpop.f32.mrf.mxu0
    %v7765 = vadd.f32 0.0, %v7764
    %v7766 = vpop.f32.mrf.mxu0
    %v7767 = vpop.f32.mrf.mxu0
    %7768 = vdwg.mxu0
    %7769 = vmatprep.subr.bf16.mxu0 %v6303
    %7770 = vmatpush1.bf16.msra.mxu0 %v6302
    %7771 = vmatprep.subr.bf16.mxu0 %v6295
    %7772 = vmatpush1.bf16.msra.mxu0 %v6294
    %7773 = vmatprep.subr.bf16.mxu0 %v6287
    %7774 = vmatpush1.bf16.msra.mxu0 %v6286
    %7775 = vmatprep.subr.bf16.mxu0 %v6279
    %7776 = vmatpush1.bf16.msra.mxu0 %v6278
    %7777 = vmatprep.subr.bf16.mxu0 %v6271
    %7778 = vmatpush1.bf16.msra.mxu0 %v6270
    %7779 = vmatprep.subr.bf16.mxu0 %v6263
    %7780 = vmatpush1.bf16.msra.mxu0 %v6262
    %7781 = vmatprep.subr.bf16.mxu0 %v6255
    %7782 = vmatpush1.bf16.msra.mxu0 %v6254
    %7783 = vmatprep.subr.bf16.mxu0 %v6247
    %7784 = vmatpush1.bf16.msra.mxu0 %v6246
    %7785 = vmatprep.subr.bf16.mxu0 %v6367
    %7786 = vmatpush2.bf16.msra.mxu0 %v6366
    %7787 = vmatprep.subr.bf16.mxu0 %v6359
    %7788 = vmatpush2.bf16.msra.mxu0 %v6358
    %7789 = vmatprep.subr.bf16.mxu0 %v6351
    %7790 = vmatpush2.bf16.msra.mxu0 %v6350
    %7791 = vmatprep.subr.bf16.mxu0 %v6343
    %7792 = vmatpush2.bf16.msra.mxu0 %v6342
    %7793 = vmatprep.subr.bf16.mxu0 %v6335
    %7794 = vmatpush2.bf16.msra.mxu0 %v6334
    %7795 = vmatprep.subr.bf16.mxu0 %v6327
    %7796 = vmatpush2.bf16.msra.mxu0 %v6326
    %7797 = vmatprep.subr.bf16.mxu0 %v6319
    %7798 = vmatpush2.bf16.msra.mxu0 %v6318
    %7799 = vmatprep.subr.bf16.mxu0 %v6311
    %7800 = vmatpush2.bf16.msra.mxu0 %v6310
    %7801 = vmatprep.mubr.bf16.mxu0 %v7645
    %7802 = vmatmul.mubr.bf16.gmra.mxu0 %v7644
    %v7803 = vpop.f32.mrf.mxu0
    %v7804 = vadd.f32 0.0, %v7803
    %v7805 = vpop.f32.mrf.mxu0
    %v7806 = vadd.f32 0.0, %v7805
    %v7807 = vpop.f32.mrf.mxu0
    %v7808 = vpop.f32.mrf.mxu0
    %7809 = vdwg.mxu0
    %v7810 = vld [vmem:[#allocation2 + $0x140] sm:$0xff]
    %v7811 = vld [vmem:[#allocation2 + $0x148] sm:$0xff]
    %v7812 = vld [vmem:[#allocation2 + $0x150] sm:$0xff]
    %v7813 = vld [vmem:[#allocation2 + $0x158] sm:$0xff]
    %v7814 = vadd.f32 %v7681, %v7810
    %v7815 = vadd.f32 %v7683, %v7811
    %v7816 = vadd.f32 %v7722, %v7812
    %v7817 = vadd.f32 %v7724, %v7813
    %v7818 = vld [vmem:[#allocation2 + $0xa0] sm:$0xff]
    %v7819 = vld [vmem:[#allocation2 + $0xa8] sm:$0xff]
    %v7820 = vld [vmem:[#allocation2 + $0xb0] sm:$0xff]
    %v7821 = vld [vmem:[#allocation2 + $0xb8] sm:$0xff]
    %v7822 = vadd.f32 %v7763, %v7818
    %v7823 = vadd.f32 %v7765, %v7819
    %v7824 = vadd.f32 %v7804, %v7820
    %v7825 = vadd.f32 %v7806, %v7821
    %v7826 = vxor.u32 %v7814, 2147483648
    %v7827 = vmul.f32 %v7826, 1.442695
    %v7828 = vpow.pop %v7827
    %v7829 = vadd.f32 %v7828, 1.0
    %v7830 = vrcp.pop %v7829
    %v7831 = vmul.f32 1.0, %v7830
    %v7832 = vxor.u32 %v7815, 2147483648
    %v7833 = vmul.f32 %v7832, 1.442695
    %v7834 = vpow.pop %v7833
    %v7835 = vadd.f32 %v7834, 1.0
    %v7836 = vrcp.pop %v7835
    %v7837 = vmul.f32 1.0, %v7836
    %v7838 = vtanh.pop %v7816
    %v7839 = vxor.u32 %v7817, 2147483648
    %v7840 = vmul.f32 %v7839, 1.442695
    %v7841 = vpow.pop %v7840
    %v7842 = vadd.f32 %v7841, 1.0
    %v7843 = vrcp.pop %v7842
    %v7844 = vmul.f32 1.0, %v7843
    %v7845 = vmul.f32 %v7837, %v7617
    %v7846 = vmul.f32 %v7831, %v7838
    %v7847 = vadd.f32 %v7845, %v7846
    %v7848 = vtanh.pop %v7847
    %v7849 = vmul.f32 %v7844, %v7848
    %v7850 = vxor.u32 %v7822, 2147483648
    %v7851 = vmul.f32 %v7850, 1.442695
    %v7852 = vpow.pop %v7851
    %v7853 = vadd.f32 %v7852, 1.0
    %v7854 = vrcp.pop %v7853
    %v7855 = vmul.f32 1.0, %v7854
    %v7856 = vxor.u32 %v7823, 2147483648
    %v7857 = vmul.f32 %v7856, 1.442695
    %v7858 = vpow.pop %v7857
    %v7859 = vadd.f32 %v7858, 1.0
    %v7860 = vrcp.pop %v7859
    %v7861 = vmul.f32 1.0, %v7860
    %v7862 = vtanh.pop %v7824
    %v7863 = vxor.u32 %v7825, 2147483648
    %v7864 = vmul.f32 %v7863, 1.442695
    %v7865 = vpow.pop %v7864
    %v7866 = vadd.f32 %v7865, 1.0
    %v7867 = vrcp.pop %v7866
    %v7868 = vmul.f32 1.0, %v7867
    %v7869 = vmul.f32 %v7861, %v7641
    %v7870 = vmul.f32 %v7855, %v7862
    %v7871 = vadd.f32 %v7869, %v7870
    %v7872 = vtanh.pop %v7871
    %v7873 = vmul.f32 %v7868, %v7872
    %v7874 = vpack.c.bf16 %v7849, %v7849
    %v7875 = vpack.c.bf16 %v7873, %v7873
    %7876 = vmatprep.subr.bf16.mxu0 %v6297
    %7877 = vmatpush1.bf16.msra.mxu0 %v6296
    %7878 = vmatprep.subr.bf16.mxu0 %v6289
    %7879 = vmatpush1.bf16.msra.mxu0 %v6288
    %7880 = vmatprep.subr.bf16.mxu0 %v6281
    %7881 = vmatpush1.bf16.msra.mxu0 %v6280
    %7882 = vmatprep.subr.bf16.mxu0 %v6273
    %7883 = vmatpush1.bf16.msra.mxu0 %v6272
    %7884 = vmatprep.subr.bf16.mxu0 %v6265
    %7885 = vmatpush1.bf16.msra.mxu0 %v6264
    %7886 = vmatprep.subr.bf16.mxu0 %v6257
    %7887 = vmatpush1.bf16.msra.mxu0 %v6256
    %7888 = vmatprep.subr.bf16.mxu0 %v6249
    %7889 = vmatpush1.bf16.msra.mxu0 %v6248
    %7890 = vmatprep.subr.bf16.mxu0 %v6241
    %7891 = vmatpush1.bf16.msra.mxu0 %v6240
    %7892 = vmatprep.subr.bf16.mxu0 %v6361
    %7893 = vmatpush2.bf16.msra.mxu0 %v6360
    %7894 = vmatprep.subr.bf16.mxu0 %v6353
    %7895 = vmatpush2.bf16.msra.mxu0 %v6352
    %7896 = vmatprep.subr.bf16.mxu0 %v6345
    %7897 = vmatpush2.bf16.msra.mxu0 %v6344
    %7898 = vmatprep.subr.bf16.mxu0 %v6337
    %7899 = vmatpush2.bf16.msra.mxu0 %v6336
    %7900 = vmatprep.subr.bf16.mxu0 %v6329
    %7901 = vmatpush2.bf16.msra.mxu0 %v6328
    %7902 = vmatprep.subr.bf16.mxu0 %v6321
    %7903 = vmatpush2.bf16.msra.mxu0 %v6320
    %7904 = vmatprep.subr.bf16.mxu0 %v6313
    %7905 = vmatpush2.bf16.msra.mxu0 %v6312
    %7906 = vmatprep.subr.bf16.mxu0 %v6305
    %7907 = vmatpush2.bf16.msra.mxu0 %v6304
    %7908 = vmatprep.mubr.bf16.mxu0 %v7875
    %7909 = vmatmul.mubr.bf16.gmra.mxu0 %v7874
    %v7910 = vpop.f32.mrf.mxu0
    %v7911 = vadd.f32 0.0, %v7910
    %v7912 = vpop.f32.mrf.mxu0
    %v7913 = vadd.f32 0.0, %v7912
    %v7914 = vpop.f32.mrf.mxu0
    %v7915 = vpop.f32.mrf.mxu0
    %7916 = vdwg.mxu0
    %7917 = vmatprep.subr.bf16.mxu0 %v6299
    %7918 = vmatpush1.bf16.msra.mxu0 %v6298
    %7919 = vmatprep.subr.bf16.mxu0 %v6291
    %7920 = vmatpush1.bf16.msra.mxu0 %v6290
    %7921 = vmatprep.subr.bf16.mxu0 %v6283
    %7922 = vmatpush1.bf16.msra.mxu0 %v6282
    %7923 = vmatprep.subr.bf16.mxu0 %v6275
    %7924 = vmatpush1.bf16.msra.mxu0 %v6274
    %7925 = vmatprep.subr.bf16.mxu0 %v6267
    %7926 = vmatpush1.bf16.msra.mxu0 %v6266
    %7927 = vmatprep.subr.bf16.mxu0 %v6259
    %7928 = vmatpush1.bf16.msra.mxu0 %v6258
    %7929 = vmatprep.subr.bf16.mxu0 %v6251
    %7930 = vmatpush1.bf16.msra.mxu0 %v6250
    %7931 = vmatprep.subr.bf16.mxu0 %v6243
    %7932 = vmatpush1.bf16.msra.mxu0 %v6242
    %7933 = vmatprep.subr.bf16.mxu0 %v6363
    %7934 = vmatpush2.bf16.msra.mxu0 %v6362
    %7935 = vmatprep.subr.bf16.mxu0 %v6355
    %7936 = vmatpush2.bf16.msra.mxu0 %v6354
    %7937 = vmatprep.subr.bf16.mxu0 %v6347
    %7938 = vmatpush2.bf16.msra.mxu0 %v6346
    %7939 = vmatprep.subr.bf16.mxu0 %v6339
    %7940 = vmatpush2.bf16.msra.mxu0 %v6338
    %7941 = vmatprep.subr.bf16.mxu0 %v6331
    %7942 = vmatpush2.bf16.msra.mxu0 %v6330
    %7943 = vmatprep.subr.bf16.mxu0 %v6323
    %7944 = vmatpush2.bf16.msra.mxu0 %v6322
    %7945 = vmatprep.subr.bf16.mxu0 %v6315
    %7946 = vmatpush2.bf16.msra.mxu0 %v6314
    %7947 = vmatprep.subr.bf16.mxu0 %v6307
    %7948 = vmatpush2.bf16.msra.mxu0 %v6306
    %7949 = vmatprep.mubr.bf16.mxu0 %v7875
    %7950 = vmatmul.mubr.bf16.gmra.mxu0 %v7874
    %v7951 = vpop.f32.mrf.mxu0
    %v7952 = vadd.f32 0.0, %v7951
    %v7953 = vpop.f32.mrf.mxu0
    %v7954 = vadd.f32 0.0, %v7953
    %v7955 = vpop.f32.mrf.mxu0
    %v7956 = vpop.f32.mrf.mxu0
    %7957 = vdwg.mxu0
    %7958 = vmatprep.subr.bf16.mxu0 %v6301
    %7959 = vmatpush1.bf16.msra.mxu0 %v6300
    %7960 = vmatprep.subr.bf16.mxu0 %v6293
    %7961 = vmatpush1.bf16.msra.mxu0 %v6292
    %7962 = vmatprep.subr.bf16.mxu0 %v6285
    %7963 = vmatpush1.bf16.msra.mxu0 %v6284
    %7964 = vmatprep.subr.bf16.mxu0 %v6277
    %7965 = vmatpush1.bf16.msra.mxu0 %v6276
    %7966 = vmatprep.subr.bf16.mxu0 %v6269
    %7967 = vmatpush1.bf16.msra.mxu0 %v6268
    %7968 = vmatprep.subr.bf16.mxu0 %v6261
    %7969 = vmatpush1.bf16.msra.mxu0 %v6260
    %7970 = vmatprep.subr.bf16.mxu0 %v6253
    %7971 = vmatpush1.bf16.msra.mxu0 %v6252
    %7972 = vmatprep.subr.bf16.mxu0 %v6245
    %7973 = vmatpush1.bf16.msra.mxu0 %v6244
    %7974 = vmatprep.subr.bf16.mxu0 %v6365
    %7975 = vmatpush2.bf16.msra.mxu0 %v6364
    %7976 = vmatprep.subr.bf16.mxu0 %v6357
    %7977 = vmatpush2.bf16.msra.mxu0 %v6356
    %7978 = vmatprep.subr.bf16.mxu0 %v6349
    %7979 = vmatpush2.bf16.msra.mxu0 %v6348
    %7980 = vmatprep.subr.bf16.mxu0 %v6341
    %7981 = vmatpush2.bf16.msra.mxu0 %v6340
    %7982 = vmatprep.subr.bf16.mxu0 %v6333
    %7983 = vmatpush2.bf16.msra.mxu0 %v6332
    %7984 = vmatprep.subr.bf16.mxu0 %v6325
    %7985 = vmatpush2.bf16.msra.mxu0 %v6324
    %7986 = vmatprep.subr.bf16.mxu0 %v6317
    %7987 = vmatpush2.bf16.msra.mxu0 %v6316
    %7988 = vmatprep.subr.bf16.mxu0 %v6309
    %7989 = vmatpush2.bf16.msra.mxu0 %v6308
    %7990 = vmatprep.mubr.bf16.mxu0 %v7875
    %7991 = vmatmul.mubr.bf16.gmra.mxu0 %v7874
    %v7992 = vpop.f32.mrf.mxu0
    %v7993 = vadd.f32 0.0, %v7992
    %v7994 = vpop.f32.mrf.mxu0
    %v7995 = vadd.f32 0.0, %v7994
    %v7996 = vpop.f32.mrf.mxu0
    %v7997 = vpop.f32.mrf.mxu0
    %7998 = vdwg.mxu0
    %7999 = vmatprep.subr.bf16.mxu0 %v6303
    %8000 = vmatpush1.bf16.msra.mxu0 %v6302
    %8001 = vmatprep.subr.bf16.mxu0 %v6295
    %8002 = vmatpush1.bf16.msra.mxu0 %v6294
    %8003 = vmatprep.subr.bf16.mxu0 %v6287
    %8004 = vmatpush1.bf16.msra.mxu0 %v6286
    %8005 = vmatprep.subr.bf16.mxu0 %v6279
    %8006 = vmatpush1.bf16.msra.mxu0 %v6278
    %8007 = vmatprep.subr.bf16.mxu0 %v6271
    %8008 = vmatpush1.bf16.msra.mxu0 %v6270
    %8009 = vmatprep.subr.bf16.mxu0 %v6263
    %8010 = vmatpush1.bf16.msra.mxu0 %v6262
    %8011 = vmatprep.subr.bf16.mxu0 %v6255
    %8012 = vmatpush1.bf16.msra.mxu0 %v6254
    %8013 = vmatprep.subr.bf16.mxu0 %v6247
    %8014 = vmatpush1.bf16.msra.mxu0 %v6246
    %8015 = vmatprep.subr.bf16.mxu0 %v6367
    %8016 = vmatpush2.bf16.msra.mxu0 %v6366
    %8017 = vmatprep.subr.bf16.mxu0 %v6359
    %8018 = vmatpush2.bf16.msra.mxu0 %v6358
    %8019 = vmatprep.subr.bf16.mxu0 %v6351
    %8020 = vmatpush2.bf16.msra.mxu0 %v6350
    %8021 = vmatprep.subr.bf16.mxu0 %v6343
    %8022 = vmatpush2.bf16.msra.mxu0 %v6342
    %8023 = vmatprep.subr.bf16.mxu0 %v6335
    %8024 = vmatpush2.bf16.msra.mxu0 %v6334
    %8025 = vmatprep.subr.bf16.mxu0 %v6327
    %8026 = vmatpush2.bf16.msra.mxu0 %v6326
    %8027 = vmatprep.subr.bf16.mxu0 %v6319
    %8028 = vmatpush2.bf16.msra.mxu0 %v6318
    %8029 = vmatprep.subr.bf16.mxu0 %v6311
    %8030 = vmatpush2.bf16.msra.mxu0 %v6310
    %8031 = vmatprep.mubr.bf16.mxu0 %v7875
    %8032 = vmatmul.mubr.bf16.gmra.mxu0 %v7874
    %v8033 = vpop.f32.mrf.mxu0
    %v8034 = vadd.f32 0.0, %v8033
    %v8035 = vpop.f32.mrf.mxu0
    %v8036 = vadd.f32 0.0, %v8035
    %v8037 = vpop.f32.mrf.mxu0
    %v8038 = vpop.f32.mrf.mxu0
    %8039 = vdwg.mxu0
    %v8040 = vld [vmem:[#allocation2 + $0x180] sm:$0xff]
    %v8041 = vld [vmem:[#allocation2 + $0x188] sm:$0xff]
    %v8042 = vld [vmem:[#allocation2 + $0x190] sm:$0xff]
    %v8043 = vld [vmem:[#allocation2 + $0x198] sm:$0xff]
    %v8044 = vadd.f32 %v7911, %v8040
    %v8045 = vadd.f32 %v7913, %v8041
    %v8046 = vadd.f32 %v7952, %v8042
    %v8047 = vadd.f32 %v7954, %v8043
    %v8048 = vld [vmem:[#allocation2 + $0x60] sm:$0xff]
    %v8049 = vld [vmem:[#allocation2 + $0x68] sm:$0xff]
    %v8050 = vld [vmem:[#allocation2 + $0x70] sm:$0xff]
    %v8051 = vld [vmem:[#allocation2 + $0x78] sm:$0xff]
    %v8052 = vadd.f32 %v7993, %v8048
    %v8053 = vadd.f32 %v7995, %v8049
    %v8054 = vadd.f32 %v8034, %v8050
    %v8055 = vadd.f32 %v8036, %v8051
    %v8056 = vxor.u32 %v8044, 2147483648
    %v8057 = vmul.f32 %v8056, 1.442695
    %v8058 = vpow.pop %v8057
    %v8059 = vadd.f32 %v8058, 1.0
    %v8060 = vrcp.pop %v8059
    %v8061 = vmul.f32 1.0, %v8060
    %v8062 = vxor.u32 %v8045, 2147483648
    %v8063 = vmul.f32 %v8062, 1.442695
    %v8064 = vpow.pop %v8063
    %v8065 = vadd.f32 %v8064, 1.0
    %v8066 = vrcp.pop %v8065
    %v8067 = vmul.f32 1.0, %v8066
    %v8068 = vtanh.pop %v8046
    %v8069 = vxor.u32 %v8047, 2147483648
    %v8070 = vmul.f32 %v8069, 1.442695
    %v8071 = vpow.pop %v8070
    %v8072 = vadd.f32 %v8071, 1.0
    %v8073 = vrcp.pop %v8072
    %v8074 = vmul.f32 1.0, %v8073
    %v8075 = vmul.f32 %v8067, %v7847
    %v8076 = vmul.f32 %v8061, %v8068
    %v8077 = vadd.f32 %v8075, %v8076
    %v8078 = vtanh.pop %v8077
    %v8079 = vmul.f32 %v8074, %v8078
    %v8080 = vxor.u32 %v8052, 2147483648
    %v8081 = vmul.f32 %v8080, 1.442695
    %v8082 = vpow.pop %v8081
    %v8083 = vadd.f32 %v8082, 1.0
    %v8084 = vrcp.pop %v8083
    %v8085 = vmul.f32 1.0, %v8084
    %v8086 = vxor.u32 %v8053, 2147483648
    %v8087 = vmul.f32 %v8086, 1.442695
    %v8088 = vpow.pop %v8087
    %v8089 = vadd.f32 %v8088, 1.0
    %v8090 = vrcp.pop %v8089
    %v8091 = vmul.f32 1.0, %v8090
    %v8092 = vtanh.pop %v8054
    %v8093 = vxor.u32 %v8055, 2147483648
    %v8094 = vmul.f32 %v8093, 1.442695
    %v8095 = vpow.pop %v8094
    %v8096 = vadd.f32 %v8095, 1.0
    %v8097 = vrcp.pop %v8096
    %v8098 = vmul.f32 1.0, %v8097
    %v8099 = vmul.f32 %v8091, %v7871
    %v8100 = vmul.f32 %v8085, %v8092
    %v8101 = vadd.f32 %v8099, %v8100
    %v8102 = vtanh.pop %v8101
    %v8103 = vmul.f32 %v8098, %v8102
    %v8104 = vpack.c.bf16 %v8079, %v8079
    %v8105 = vpack.c.bf16 %v8103, %v8103
    %8106 = vmatprep.subr.bf16.mxu0 %v6297
    %8107 = vmatpush1.bf16.msra.mxu0 %v6296
    %8108 = vmatprep.subr.bf16.mxu0 %v6289
    %8109 = vmatpush1.bf16.msra.mxu0 %v6288
    %8110 = vmatprep.subr.bf16.mxu0 %v6281
    %8111 = vmatpush1.bf16.msra.mxu0 %v6280
    %8112 = vmatprep.subr.bf16.mxu0 %v6273
    %8113 = vmatpush1.bf16.msra.mxu0 %v6272
    %8114 = vmatprep.subr.bf16.mxu0 %v6265
    %8115 = vmatpush1.bf16.msra.mxu0 %v6264
    %8116 = vmatprep.subr.bf16.mxu0 %v6257
    %8117 = vmatpush1.bf16.msra.mxu0 %v6256
    %8118 = vmatprep.subr.bf16.mxu0 %v6249
    %8119 = vmatpush1.bf16.msra.mxu0 %v6248
    %8120 = vmatprep.subr.bf16.mxu0 %v6241
    %8121 = vmatpush1.bf16.msra.mxu0 %v6240
    %8122 = vmatprep.subr.bf16.mxu0 %v6361
    %8123 = vmatpush2.bf16.msra.mxu0 %v6360
    %8124 = vmatprep.subr.bf16.mxu0 %v6353
    %8125 = vmatpush2.bf16.msra.mxu0 %v6352
    %8126 = vmatprep.subr.bf16.mxu0 %v6345
    %8127 = vmatpush2.bf16.msra.mxu0 %v6344
    %8128 = vmatprep.subr.bf16.mxu0 %v6337
    %8129 = vmatpush2.bf16.msra.mxu0 %v6336
    %8130 = vmatprep.subr.bf16.mxu0 %v6329
    %8131 = vmatpush2.bf16.msra.mxu0 %v6328
    %8132 = vmatprep.subr.bf16.mxu0 %v6321
    %8133 = vmatpush2.bf16.msra.mxu0 %v6320
    %8134 = vmatprep.subr.bf16.mxu0 %v6313
    %8135 = vmatpush2.bf16.msra.mxu0 %v6312
    %8136 = vmatprep.subr.bf16.mxu0 %v6305
    %8137 = vmatpush2.bf16.msra.mxu0 %v6304
    %8138 = vmatprep.mubr.bf16.mxu0 %v8105
    %8139 = vmatmul.mubr.bf16.gmra.mxu0 %v8104
    %v8140 = vpop.f32.mrf.mxu0
    %v8141 = vadd.f32 0.0, %v8140
    %v8142 = vpop.f32.mrf.mxu0
    %v8143 = vadd.f32 0.0, %v8142
    %v8144 = vpop.f32.mrf.mxu0
    %v8145 = vpop.f32.mrf.mxu0
    %8146 = vdwg.mxu0
    %8147 = vmatprep.subr.bf16.mxu0 %v6299
    %8148 = vmatpush1.bf16.msra.mxu0 %v6298
    %8149 = vmatprep.subr.bf16.mxu0 %v6291
    %8150 = vmatpush1.bf16.msra.mxu0 %v6290
    %8151 = vmatprep.subr.bf16.mxu0 %v6283
    %8152 = vmatpush1.bf16.msra.mxu0 %v6282
    %8153 = vmatprep.subr.bf16.mxu0 %v6275
    %8154 = vmatpush1.bf16.msra.mxu0 %v6274
    %8155 = vmatprep.subr.bf16.mxu0 %v6267
    %8156 = vmatpush1.bf16.msra.mxu0 %v6266
    %8157 = vmatprep.subr.bf16.mxu0 %v6259
    %8158 = vmatpush1.bf16.msra.mxu0 %v6258
    %8159 = vmatprep.subr.bf16.mxu0 %v6251
    %8160 = vmatpush1.bf16.msra.mxu0 %v6250
    %8161 = vmatprep.subr.bf16.mxu0 %v6243
    %8162 = vmatpush1.bf16.msra.mxu0 %v6242
    %8163 = vmatprep.subr.bf16.mxu0 %v6363
    %8164 = vmatpush2.bf16.msra.mxu0 %v6362
    %8165 = vmatprep.subr.bf16.mxu0 %v6355
    %8166 = vmatpush2.bf16.msra.mxu0 %v6354
    %8167 = vmatprep.subr.bf16.mxu0 %v6347
    %8168 = vmatpush2.bf16.msra.mxu0 %v6346
    %8169 = vmatprep.subr.bf16.mxu0 %v6339
    %8170 = vmatpush2.bf16.msra.mxu0 %v6338
    %8171 = vmatprep.subr.bf16.mxu0 %v6331
    %8172 = vmatpush2.bf16.msra.mxu0 %v6330
    %8173 = vmatprep.subr.bf16.mxu0 %v6323
    %8174 = vmatpush2.bf16.msra.mxu0 %v6322
    %8175 = vmatprep.subr.bf16.mxu0 %v6315
    %8176 = vmatpush2.bf16.msra.mxu0 %v6314
    %8177 = vmatprep.subr.bf16.mxu0 %v6307
    %8178 = vmatpush2.bf16.msra.mxu0 %v6306
    %8179 = vmatprep.mubr.bf16.mxu0 %v8105
    %8180 = vmatmul.mubr.bf16.gmra.mxu0 %v8104
    %v8181 = vpop.f32.mrf.mxu0
    %v8182 = vadd.f32 0.0, %v8181
    %v8183 = vpop.f32.mrf.mxu0
    %v8184 = vadd.f32 0.0, %v8183
    %v8185 = vpop.f32.mrf.mxu0
    %v8186 = vpop.f32.mrf.mxu0
    %8187 = vdwg.mxu0
    %8188 = vmatprep.subr.bf16.mxu0 %v6301
    %8189 = vmatpush1.bf16.msra.mxu0 %v6300
    %8190 = vmatprep.subr.bf16.mxu0 %v6293
    %8191 = vmatpush1.bf16.msra.mxu0 %v6292
    %8192 = vmatprep.subr.bf16.mxu0 %v6285
    %8193 = vmatpush1.bf16.msra.mxu0 %v6284
    %8194 = vmatprep.subr.bf16.mxu0 %v6277
    %8195 = vmatpush1.bf16.msra.mxu0 %v6276
    %8196 = vmatprep.subr.bf16.mxu0 %v6269
    %8197 = vmatpush1.bf16.msra.mxu0 %v6268
    %8198 = vmatprep.subr.bf16.mxu0 %v6261
    %8199 = vmatpush1.bf16.msra.mxu0 %v6260
    %8200 = vmatprep.subr.bf16.mxu0 %v6253
    %8201 = vmatpush1.bf16.msra.mxu0 %v6252
    %8202 = vmatprep.subr.bf16.mxu0 %v6245
    %8203 = vmatpush1.bf16.msra.mxu0 %v6244
    %8204 = vmatprep.subr.bf16.mxu0 %v6365
    %8205 = vmatpush2.bf16.msra.mxu0 %v6364
    %8206 = vmatprep.subr.bf16.mxu0 %v6357
    %8207 = vmatpush2.bf16.msra.mxu0 %v6356
    %8208 = vmatprep.subr.bf16.mxu0 %v6349
    %8209 = vmatpush2.bf16.msra.mxu0 %v6348
    %8210 = vmatprep.subr.bf16.mxu0 %v6341
    %8211 = vmatpush2.bf16.msra.mxu0 %v6340
    %8212 = vmatprep.subr.bf16.mxu0 %v6333
    %8213 = vmatpush2.bf16.msra.mxu0 %v6332
    %8214 = vmatprep.subr.bf16.mxu0 %v6325
    %8215 = vmatpush2.bf16.msra.mxu0 %v6324
    %8216 = vmatprep.subr.bf16.mxu0 %v6317
    %8217 = vmatpush2.bf16.msra.mxu0 %v6316
    %8218 = vmatprep.subr.bf16.mxu0 %v6309
    %8219 = vmatpush2.bf16.msra.mxu0 %v6308
    %8220 = vmatprep.mubr.bf16.mxu0 %v8105
    %8221 = vmatmul.mubr.bf16.gmra.mxu0 %v8104
    %v8222 = vpop.f32.mrf.mxu0
    %v8223 = vadd.f32 0.0, %v8222
    %v8224 = vpop.f32.mrf.mxu0
    %v8225 = vadd.f32 0.0, %v8224
    %v8226 = vpop.f32.mrf.mxu0
    %v8227 = vpop.f32.mrf.mxu0
    %8228 = vdwg.mxu0
    %8229 = vmatprep.subr.bf16.mxu0 %v6303
    %8230 = vmatpush1.bf16.msra.mxu0 %v6302
    %8231 = vmatprep.subr.bf16.mxu0 %v6295
    %8232 = vmatpush1.bf16.msra.mxu0 %v6294
    %8233 = vmatprep.subr.bf16.mxu0 %v6287
    %8234 = vmatpush1.bf16.msra.mxu0 %v6286
    %8235 = vmatprep.subr.bf16.mxu0 %v6279
    %8236 = vmatpush1.bf16.msra.mxu0 %v6278
    %8237 = vmatprep.subr.bf16.mxu0 %v6271
    %8238 = vmatpush1.bf16.msra.mxu0 %v6270
    %8239 = vmatprep.subr.bf16.mxu0 %v6263
    %8240 = vmatpush1.bf16.msra.mxu0 %v6262
    %8241 = vmatprep.subr.bf16.mxu0 %v6255
    %8242 = vmatpush1.bf16.msra.mxu0 %v6254
    %8243 = vmatprep.subr.bf16.mxu0 %v6247
    %8244 = vmatpush1.bf16.msra.mxu0 %v6246
    %8245 = vmatprep.subr.bf16.mxu0 %v6367
    %8246 = vmatpush2.bf16.msra.mxu0 %v6366
    %8247 = vmatprep.subr.bf16.mxu0 %v6359
    %8248 = vmatpush2.bf16.msra.mxu0 %v6358
    %8249 = vmatprep.subr.bf16.mxu0 %v6351
    %8250 = vmatpush2.bf16.msra.mxu0 %v6350
    %8251 = vmatprep.subr.bf16.mxu0 %v6343
    %8252 = vmatpush2.bf16.msra.mxu0 %v6342
    %8253 = vmatprep.subr.bf16.mxu0 %v6335
    %8254 = vmatpush2.bf16.msra.mxu0 %v6334
    %8255 = vmatprep.subr.bf16.mxu0 %v6327
    %8256 = vmatpush2.bf16.msra.mxu0 %v6326
    %8257 = vmatprep.subr.bf16.mxu0 %v6319
    %8258 = vmatpush2.bf16.msra.mxu0 %v6318
    %8259 = vmatprep.subr.bf16.mxu0 %v6311
    %8260 = vmatpush2.bf16.msra.mxu0 %v6310
    %8261 = vmatprep.mubr.bf16.mxu0 %v8105
    %8262 = vmatmul.mubr.bf16.gmra.mxu0 %v8104
    %v8263 = vpop.f32.mrf.mxu0
    %v8264 = vadd.f32 0.0, %v8263
    %v8265 = vpop.f32.mrf.mxu0
    %v8266 = vadd.f32 0.0, %v8265
    %v8267 = vpop.f32.mrf.mxu0
    %v8268 = vpop.f32.mrf.mxu0
    %8269 = vdwg.mxu0
    %v8270 = vld [vmem:[#allocation2 + $0x1c0] sm:$0xff]
    %v8271 = vld [vmem:[#allocation2 + $0x1c8] sm:$0xff]
    %v8272 = vld [vmem:[#allocation2 + $0x1d0] sm:$0xff]
    %v8273 = vld [vmem:[#allocation2 + $0x1d8] sm:$0xff]
    %v8274 = vadd.f32 %v8141, %v8270
    %v8275 = vadd.f32 %v8143, %v8271
    %v8276 = vadd.f32 %v8182, %v8272
    %v8277 = vadd.f32 %v8184, %v8273
    %v8278 = vld [vmem:[#allocation2 + $0x20] sm:$0xff]
    %v8279 = vld [vmem:[#allocation2 + $0x28] sm:$0xff]
    %v8280 = vld [vmem:[#allocation2 + $0x30] sm:$0xff]
    %v8281 = vld [vmem:[#allocation2 + $0x38] sm:$0xff]
    %v8282 = vadd.f32 %v8223, %v8278
    %v8283 = vadd.f32 %v8225, %v8279
    %v8284 = vadd.f32 %v8264, %v8280
    %v8285 = vadd.f32 %v8266, %v8281
    %v8286 = vxor.u32 %v8274, 2147483648
    %v8287 = vmul.f32 %v8286, 1.442695
    %v8288 = vpow.pop %v8287
    %v8289 = vadd.f32 %v8288, 1.0
    %v8290 = vrcp.pop %v8289
    %v8291 = vmul.f32 1.0, %v8290
    %v8292 = vxor.u32 %v8275, 2147483648
    %v8293 = vmul.f32 %v8292, 1.442695
    %v8294 = vpow.pop %v8293
    %v8295 = vadd.f32 %v8294, 1.0
    %v8296 = vrcp.pop %v8295
    %v8297 = vmul.f32 1.0, %v8296
    %v8298 = vtanh.pop %v8276
    %v8299 = vxor.u32 %v8277, 2147483648
    %v8300 = vmul.f32 %v8299, 1.442695
    %v8301 = vpow.pop %v8300
    %v8302 = vadd.f32 %v8301, 1.0
    %v8303 = vrcp.pop %v8302
    %v8304 = vmul.f32 1.0, %v8303
    %v8305 = vmul.f32 %v8297, %v8077
    %v8306 = vmul.f32 %v8291, %v8298
    %v8307 = vadd.f32 %v8305, %v8306
    %v8308 = vtanh.pop %v8307
    %v8309 = vmul.f32 %v8304, %v8308
    %v8310 = vxor.u32 %v8282, 2147483648
    %v8311 = vmul.f32 %v8310, 1.442695
    %v8312 = vpow.pop %v8311
    %v8313 = vadd.f32 %v8312, 1.0
    %v8314 = vrcp.pop %v8313
    %v8315 = vmul.f32 1.0, %v8314
    %v8316 = vxor.u32 %v8283, 2147483648
    %v8317 = vmul.f32 %v8316, 1.442695
    %v8318 = vpow.pop %v8317
    %v8319 = vadd.f32 %v8318, 1.0
    %v8320 = vrcp.pop %v8319
    %v8321 = vmul.f32 1.0, %v8320
    %v8322 = vtanh.pop %v8284
    %v8323 = vxor.u32 %v8285, 2147483648
    %v8324 = vmul.f32 %v8323, 1.442695
    %v8325 = vpow.pop %v8324
    %v8326 = vadd.f32 %v8325, 1.0
    %v8327 = vrcp.pop %v8326
    %v8328 = vmul.f32 1.0, %v8327
    %v8329 = vmul.f32 %v8321, %v8101
    %v8330 = vmul.f32 %v8315, %v8322
    %v8331 = vadd.f32 %v8329, %v8330
    %v8332 = vtanh.pop %v8331
    %v8333 = vmul.f32 %v8328, %v8332
    %v8335 = vrot.slane %v8309, 2
    %v8338 = vrot.slane %v8333, 2
    %v8340 = vpack.c.bf16 %v8309, %v8309
    %v8341 = vpack.c.bf16 %v8333, %v8333
    %v8342 = vpack.c.bf16 %v8335, %v8335
    %v8343 = vpack.c.bf16 %v8338, %v8338
    %v8344 = vld [vmem:[#allocation15] sm:$0xf]
    %v8345 = vld [vmem:[#allocation15 + $0x4] sm:$0xf]
    %v8346 = vld [vmem:[#allocation15 + $0x8] sm:$0xf]
    %v8347 = vld [vmem:[#allocation15 + $0xc] sm:$0xf]
    %v8348 = vld [vmem:[#allocation15 + $0x10] sm:$0xf]
    %v8349 = vld [vmem:[#allocation15 + $0x14] sm:$0xf]
    %v8350 = vld [vmem:[#allocation15 + $0x18] sm:$0xf]
    %v8351 = vld [vmem:[#allocation15 + $0x1c] sm:$0xf]
    %v8352 = vld [vmem:[#allocation15 + $0x20] sm:$0xf]
    %v8353 = vld [vmem:[#allocation15 + $0x24] sm:$0xf]
    %v8354 = vld [vmem:[#allocation15 + $0x28] sm:$0xf]
    %v8355 = vld [vmem:[#allocation15 + $0x2c] sm:$0xf]
    %v8356 = vld [vmem:[#allocation15 + $0x30] sm:$0xf]
    %v8357 = vld [vmem:[#allocation15 + $0x34] sm:$0xf]
    %v8358 = vld [vmem:[#allocation15 + $0x38] sm:$0xf]
    %v8359 = vld [vmem:[#allocation15 + $0x3c] sm:$0xf]
    %v8360 = vld [vmem:[#allocation15 + $0x40] sm:$0xf]
    %v8361 = vld [vmem:[#allocation15 + $0x44] sm:$0xf]
    %v8362 = vld [vmem:[#allocation15 + $0x48] sm:$0xf]
    %v8363 = vld [vmem:[#allocation15 + $0x4c] sm:$0xf]
    %v8364 = vld [vmem:[#allocation15 + $0x50] sm:$0xf]
    %v8365 = vld [vmem:[#allocation15 + $0x54] sm:$0xf]
    %v8366 = vld [vmem:[#allocation15 + $0x58] sm:$0xf]
    %v8367 = vld [vmem:[#allocation15 + $0x5c] sm:$0xf]
    %v8368 = vld [vmem:[#allocation15 + $0x60] sm:$0xf]
    %v8369 = vld [vmem:[#allocation15 + $0x64] sm:$0xf]
    %v8370 = vld [vmem:[#allocation15 + $0x68] sm:$0xf]
    %v8371 = vld [vmem:[#allocation15 + $0x6c] sm:$0xf]
    %v8372 = vld [vmem:[#allocation15 + $0x70] sm:$0xf]
    %v8373 = vld [vmem:[#allocation15 + $0x74] sm:$0xf]
    %v8374 = vld [vmem:[#allocation15 + $0x78] sm:$0xf]
    %v8375 = vld [vmem:[#allocation15 + $0x7c] sm:$0xf]
    %v8376 = vld [vmem:[#allocation15 + $0x80] sm:$0xf]
    %v8377 = vld [vmem:[#allocation15 + $0x84] sm:$0xf]
    %v8378 = vld [vmem:[#allocation15 + $0x88] sm:$0xf]
    %v8379 = vld [vmem:[#allocation15 + $0x8c] sm:$0xf]
    %v8380 = vld [vmem:[#allocation15 + $0x90] sm:$0xf]
    %v8381 = vld [vmem:[#allocation15 + $0x94] sm:$0xf]
    %v8382 = vld [vmem:[#allocation15 + $0x98] sm:$0xf]
    %v8383 = vld [vmem:[#allocation15 + $0x9c] sm:$0xf]
    %v8384 = vld [vmem:[#allocation15 + $0xa0] sm:$0xf]
    %v8385 = vld [vmem:[#allocation15 + $0xa4] sm:$0xf]
    %v8386 = vld [vmem:[#allocation15 + $0xa8] sm:$0xf]
    %v8387 = vld [vmem:[#allocation15 + $0xac] sm:$0xf]
    %v8388 = vld [vmem:[#allocation15 + $0xb0] sm:$0xf]
    %v8389 = vld [vmem:[#allocation15 + $0xb4] sm:$0xf]
    %v8390 = vld [vmem:[#allocation15 + $0xb8] sm:$0xf]
    %v8391 = vld [vmem:[#allocation15 + $0xbc] sm:$0xf]
    %v8392 = vld [vmem:[#allocation15 + $0xc0] sm:$0xf]
    %v8393 = vld [vmem:[#allocation15 + $0xc4] sm:$0xf]
    %v8394 = vld [vmem:[#allocation15 + $0xc8] sm:$0xf]
    %v8395 = vld [vmem:[#allocation15 + $0xcc] sm:$0xf]
    %v8396 = vld [vmem:[#allocation15 + $0xd0] sm:$0xf]
    %v8397 = vld [vmem:[#allocation15 + $0xd4] sm:$0xf]
    %v8398 = vld [vmem:[#allocation15 + $0xd8] sm:$0xf]
    %v8399 = vld [vmem:[#allocation15 + $0xdc] sm:$0xf]
    %v8400 = vld [vmem:[#allocation15 + $0xe0] sm:$0xf]
    %v8401 = vld [vmem:[#allocation15 + $0xe4] sm:$0xf]
    %v8402 = vld [vmem:[#allocation15 + $0xe8] sm:$0xf]
    %v8403 = vld [vmem:[#allocation15 + $0xec] sm:$0xf]
    %v8404 = vld [vmem:[#allocation15 + $0xf0] sm:$0xf]
    %v8405 = vld [vmem:[#allocation15 + $0xf4] sm:$0xf]
    %v8406 = vld [vmem:[#allocation15 + $0xf8] sm:$0xf]
    %v8407 = vld [vmem:[#allocation15 + $0xfc] sm:$0xf]
    %v8408 = vld [vmem:[#allocation17] sm:$0x1]
    %v8410 = vlaneseq
    %v8411 = vshrl.u32 %v8410, 7
    %v8412 = vsub.s32 0, %v8411
    %v8413 = vrot.slane %v8408, %v8412
    %v8479 = vunpack.c.l.b16 %v8344
    %v8480 = vunpack.c.l.b16 %v8345
    %v8481 = vunpack.c.l.b16 %v8346
    %v8482 = vunpack.c.l.b16 %v8347
    %v8483 = vunpack.c.l.b16 %v8348
    %v8484 = vunpack.c.l.b16 %v8349
    %v8485 = vunpack.c.l.b16 %v8350
    %v8486 = vunpack.c.l.b16 %v8351
    %v8487 = vunpack.c.l.b16 %v8352
    %v8488 = vunpack.c.l.b16 %v8353
    %v8489 = vunpack.c.l.b16 %v8354
    %v8490 = vunpack.c.l.b16 %v8355
    %v8491 = vunpack.c.l.b16 %v8356
    %v8492 = vunpack.c.l.b16 %v8357
    %v8493 = vunpack.c.l.b16 %v8358
    %v8494 = vunpack.c.l.b16 %v8359
    %v8495 = vunpack.c.l.b16 %v8360
    %v8496 = vunpack.c.l.b16 %v8361
    %v8497 = vunpack.c.l.b16 %v8362
    %v8498 = vunpack.c.l.b16 %v8363
    %v8499 = vunpack.c.l.b16 %v8364
    %v8500 = vunpack.c.l.b16 %v8365
    %v8501 = vunpack.c.l.b16 %v8366
    %v8502 = vunpack.c.l.b16 %v8367
    %v8503 = vunpack.c.l.b16 %v8368
    %v8504 = vunpack.c.l.b16 %v8369
    %v8505 = vunpack.c.l.b16 %v8370
    %v8506 = vunpack.c.l.b16 %v8371
    %v8507 = vunpack.c.l.b16 %v8372
    %v8508 = vunpack.c.l.b16 %v8373
    %v8509 = vunpack.c.l.b16 %v8374
    %v8510 = vunpack.c.l.b16 %v8375
    %v8511 = vunpack.c.l.b16 %v8376
    %v8512 = vunpack.c.l.b16 %v8377
    %v8513 = vunpack.c.l.b16 %v8378
    %v8514 = vunpack.c.l.b16 %v8379
    %v8515 = vunpack.c.l.b16 %v8380
    %v8516 = vunpack.c.l.b16 %v8381
    %v8517 = vunpack.c.l.b16 %v8382
    %v8518 = vunpack.c.l.b16 %v8383
    %v8519 = vunpack.c.l.b16 %v8384
    %v8520 = vunpack.c.l.b16 %v8385
    %v8521 = vunpack.c.l.b16 %v8386
    %v8522 = vunpack.c.l.b16 %v8387
    %v8523 = vunpack.c.l.b16 %v8388
    %v8524 = vunpack.c.l.b16 %v8389
    %v8525 = vunpack.c.l.b16 %v8390
    %v8526 = vunpack.c.l.b16 %v8391
    %v8527 = vunpack.c.l.b16 %v8392
    %v8528 = vunpack.c.l.b16 %v8393
    %v8529 = vunpack.c.l.b16 %v8394
    %v8530 = vunpack.c.l.b16 %v8395
    %v8531 = vunpack.c.l.b16 %v8396
    %v8532 = vunpack.c.l.b16 %v8397
    %v8533 = vunpack.c.l.b16 %v8398
    %v8534 = vunpack.c.l.b16 %v8399
    %v8535 = vunpack.c.l.b16 %v8400
    %v8536 = vunpack.c.l.b16 %v8401
    %v8537 = vunpack.c.l.b16 %v8402
    %v8538 = vunpack.c.l.b16 %v8403
    %v8539 = vunpack.c.l.b16 %v8404
    %v8540 = vunpack.c.l.b16 %v8405
    %v8541 = vunpack.c.l.b16 %v8406
    %v8542 = vunpack.c.l.b16 %v8407
    %v8543 = vpack.c.b16 %v8480, %v8479
    %v8544 = vpack.c.b16 %v8482, %v8481
    %v8545 = vpack.c.b16 %v8484, %v8483
    %v8546 = vpack.c.b16 %v8486, %v8485
    %v8547 = vpack.c.b16 %v8488, %v8487
    %v8548 = vpack.c.b16 %v8490, %v8489
    %v8549 = vpack.c.b16 %v8492, %v8491
    %v8550 = vpack.c.b16 %v8494, %v8493
    %v8551 = vpack.c.b16 %v8496, %v8495
    %v8552 = vpack.c.b16 %v8498, %v8497
    %v8553 = vpack.c.b16 %v8500, %v8499
    %v8554 = vpack.c.b16 %v8502, %v8501
    %v8555 = vpack.c.b16 %v8504, %v8503
    %v8556 = vpack.c.b16 %v8506, %v8505
    %v8557 = vpack.c.b16 %v8508, %v8507
    %v8558 = vpack.c.b16 %v8510, %v8509
    %v8559 = vpack.c.b16 %v8512, %v8511
    %v8560 = vpack.c.b16 %v8514, %v8513
    %v8561 = vpack.c.b16 %v8516, %v8515
    %v8562 = vpack.c.b16 %v8518, %v8517
    %v8563 = vpack.c.b16 %v8520, %v8519
    %v8564 = vpack.c.b16 %v8522, %v8521
    %v8565 = vpack.c.b16 %v8524, %v8523
    %v8566 = vpack.c.b16 %v8526, %v8525
    %v8567 = vpack.c.b16 %v8528, %v8527
    %v8568 = vpack.c.b16 %v8530, %v8529
    %v8569 = vpack.c.b16 %v8532, %v8531
    %v8570 = vpack.c.b16 %v8534, %v8533
    %v8571 = vpack.c.b16 %v8536, %v8535
    %v8572 = vpack.c.b16 %v8538, %v8537
    %v8573 = vpack.c.b16 %v8540, %v8539
    %v8574 = vpack.c.b16 %v8542, %v8541
    %8607 = vmatprep.subr.bf16.mxu0 0
    %8608 = vmatpush1.bf16.msra.mxu0 %v8550
    %8609 = vmatprep.subr.bf16.mxu0 0
    %8610 = vmatpush1.bf16.msra.mxu0 %v8549
    %8611 = vmatprep.subr.bf16.mxu0 0
    %8612 = vmatpush1.bf16.msra.mxu0 %v8548
    %8613 = vmatprep.subr.bf16.mxu0 0
    %8614 = vmatpush1.bf16.msra.mxu0 %v8547
    %8615 = vmatprep.subr.bf16.mxu0 0
    %8616 = vmatpush1.bf16.msra.mxu0 %v8546
    %8617 = vmatprep.subr.bf16.mxu0 0
    %8618 = vmatpush1.bf16.msra.mxu0 %v8545
    %8619 = vmatprep.subr.bf16.mxu0 0
    %8620 = vmatpush1.bf16.msra.mxu0 %v8544
    %8621 = vmatprep.subr.bf16.mxu0 0
    %8622 = vmatpush1.bf16.msra.mxu0 %v8543
    %8623 = vmatprep.subr.bf16.mxu0 0
    %8624 = vmatpush2.bf16.msra.mxu0 %v8558
    %8625 = vmatprep.subr.bf16.mxu0 0
    %8626 = vmatpush2.bf16.msra.mxu0 %v8557
    %8627 = vmatprep.subr.bf16.mxu0 0
    %8628 = vmatpush2.bf16.msra.mxu0 %v8556
    %8629 = vmatprep.subr.bf16.mxu0 0
    %8630 = vmatpush2.bf16.msra.mxu0 %v8555
    %8631 = vmatprep.subr.bf16.mxu0 0
    %8632 = vmatpush2.bf16.msra.mxu0 %v8554
    %8633 = vmatprep.subr.bf16.mxu0 0
    %8634 = vmatpush2.bf16.msra.mxu0 %v8553
    %8635 = vmatprep.subr.bf16.mxu0 0
    %8636 = vmatpush2.bf16.msra.mxu0 %v8552
    %8637 = vmatprep.subr.bf16.mxu0 0
    %8638 = vmatpush2.bf16.msra.mxu0 %v8551
    %8639 = vmatprep.mubr.bf16.mxu0 %v8341
    %8640 = vmatmul.mubr.bf16.gmra.mxu0 %v8340
    %v8641 = vpop.f32.mrf.mxu0
    %v8642 = vadd.f32 %v8413, %v8641
    %v8643 = vpop.f32.mrf.mxu0
    %v8644 = vpop.f32.mrf.mxu0
    %v8645 = vpop.f32.mrf.mxu0
    %8646 = vdwg.mxu0
    %8647 = vmatprep.subr.bf16.mxu0 0
    %8648 = vmatpush1.bf16.msra.mxu0 %v8566
    %8649 = vmatprep.subr.bf16.mxu0 0
    %8650 = vmatpush1.bf16.msra.mxu0 %v8565
    %8651 = vmatprep.subr.bf16.mxu0 0
    %8652 = vmatpush1.bf16.msra.mxu0 %v8564
    %8653 = vmatprep.subr.bf16.mxu0 0
    %8654 = vmatpush1.bf16.msra.mxu0 %v8563
    %8655 = vmatprep.subr.bf16.mxu0 0
    %8656 = vmatpush1.bf16.msra.mxu0 %v8562
    %8657 = vmatprep.subr.bf16.mxu0 0
    %8658 = vmatpush1.bf16.msra.mxu0 %v8561
    %8659 = vmatprep.subr.bf16.mxu0 0
    %8660 = vmatpush1.bf16.msra.mxu0 %v8560
    %8661 = vmatprep.subr.bf16.mxu0 0
    %8662 = vmatpush1.bf16.msra.mxu0 %v8559
    %8663 = vmatprep.subr.bf16.mxu0 0
    %8664 = vmatpush2.bf16.msra.mxu0 %v8574
    %8665 = vmatprep.subr.bf16.mxu0 0
    %8666 = vmatpush2.bf16.msra.mxu0 %v8573
    %8667 = vmatprep.subr.bf16.mxu0 0
    %8668 = vmatpush2.bf16.msra.mxu0 %v8572
    %8669 = vmatprep.subr.bf16.mxu0 0
    %8670 = vmatpush2.bf16.msra.mxu0 %v8571
    %8671 = vmatprep.subr.bf16.mxu0 0
    %8672 = vmatpush2.bf16.msra.mxu0 %v8570
    %8673 = vmatprep.subr.bf16.mxu0 0
    %8674 = vmatpush2.bf16.msra.mxu0 %v8569
    %8675 = vmatprep.subr.bf16.mxu0 0
    %8676 = vmatpush2.bf16.msra.mxu0 %v8568
    %8677 = vmatprep.subr.bf16.mxu0 0
    %8678 = vmatpush2.bf16.msra.mxu0 %v8567
    %8679 = vmatprep.mubr.bf16.mxu0 %v8343
    %8680 = vmatmul.mubr.bf16.gmra.mxu0 %v8342
    %v8681 = vpop.f32.mrf.mxu0
    %v8682 = vadd.f32 %v8642, %v8681
    %v8683 = vpop.f32.mrf.mxu0
    %v8684 = vpop.f32.mrf.mxu0
    %v8685 = vpop.f32.mrf.mxu0
    %8686 = vdwg.mxu0
    %v8687 = vmax.f32 %v8682, 0.0
    %v8688 = vpack.c.bf16 %v8687, %v8687
    %v8689 = vld [vmem:[%s10] sm:$0xf]
    %v8690 = vld [vmem:[%s10 + $0x4] sm:$0xf]
    %v8691 = vld [vmem:[%s10 + $0x8] sm:$0xf]
    %v8692 = vld [vmem:[%s10 + $0xc] sm:$0xf]
    %v8693 = vld [vmem:[%s10 + $0x10] sm:$0xf]
    %v8694 = vld [vmem:[%s10 + $0x14] sm:$0xf]
    %v8695 = vld [vmem:[%s10 + $0x18] sm:$0xf]
    %v8696 = vld [vmem:[%s10 + $0x1c] sm:$0xf]
    %v8697 = vld [vmem:[%s10 + $0x20] sm:$0xf]
    %v8698 = vld [vmem:[%s10 + $0x24] sm:$0xf]
    %v8699 = vld [vmem:[%s10 + $0x28] sm:$0xf]
    %v8700 = vld [vmem:[%s10 + $0x2c] sm:$0xf]
    %v8701 = vld [vmem:[%s10 + $0x30] sm:$0xf]
    %v8702 = vld [vmem:[%s10 + $0x34] sm:$0xf]
    %v8703 = vld [vmem:[%s10 + $0x38] sm:$0xf]
    %v8704 = vld [vmem:[%s10 + $0x3c] sm:$0xf]
    %v8705 = vld [vmem:[#allocation18] sm:$0x1]
    %v8707 = vlaneseq
    %v8708 = vshrl.u32 %v8707, 7
    %v8709 = vsub.s32 0, %v8708
    %v8710 = vrot.slane %v8705, %v8709
    %v8728 = vunpack.c.l.b16 %v8689
    %v8729 = vunpack.c.l.b16 %v8690
    %v8730 = vunpack.c.l.b16 %v8691
    %v8731 = vunpack.c.l.b16 %v8692
    %v8732 = vunpack.c.l.b16 %v8693
    %v8733 = vunpack.c.l.b16 %v8694
    %v8734 = vunpack.c.l.b16 %v8695
    %v8735 = vunpack.c.l.b16 %v8696
    %v8736 = vunpack.c.l.b16 %v8697
    %v8737 = vunpack.c.l.b16 %v8698
    %v8738 = vunpack.c.l.b16 %v8699
    %v8739 = vunpack.c.l.b16 %v8700
    %v8740 = vunpack.c.l.b16 %v8701
    %v8741 = vunpack.c.l.b16 %v8702
    %v8742 = vunpack.c.l.b16 %v8703
    %v8743 = vunpack.c.l.b16 %v8704
    %v8744 = vpack.c.b16 %v8729, %v8728
    %v8745 = vpack.c.b16 %v8731, %v8730
    %v8746 = vpack.c.b16 %v8733, %v8732
    %v8747 = vpack.c.b16 %v8735, %v8734
    %v8748 = vpack.c.b16 %v8737, %v8736
    %v8749 = vpack.c.b16 %v8739, %v8738
    %v8750 = vpack.c.b16 %v8741, %v8740
    %v8751 = vpack.c.b16 %v8743, %v8742
    %8760 = vmatprep.subr.bf16.mxu0 0
    %8761 = vmatpush1.bf16.msra.mxu0 %v8751
    %8762 = vmatprep.subr.bf16.mxu0 0
    %8763 = vmatpush1.bf16.msra.mxu0 %v8750
    %8764 = vmatprep.subr.bf16.mxu0 0
    %8765 = vmatpush1.bf16.msra.mxu0 %v8749
    %8766 = vmatprep.subr.bf16.mxu0 0
    %8767 = vmatpush1.bf16.msra.mxu0 %v8748
    %8768 = vmatprep.subr.bf16.mxu0 0
    %8769 = vmatpush1.bf16.msra.mxu0 %v8747
    %8770 = vmatprep.subr.bf16.mxu0 0
    %8771 = vmatpush1.bf16.msra.mxu0 %v8746
    %8772 = vmatprep.subr.bf16.mxu0 0
    %8773 = vmatpush1.bf16.msra.mxu0 %v8745
    %8774 = vmatprep.subr.bf16.mxu0 0
    %8775 = vmatpush1.bf16.msra.mxu0 %v8744
    %8776 = vmatprep.subr.bf16.mxu0 0
    %8777 = vmatpush2.bf16.msra.mxu0 0
    %8778 = vmatprep.subr.bf16.mxu0 0
    %8779 = vmatpush2.bf16.msra.mxu0 0
    %8780 = vmatprep.subr.bf16.mxu0 0
    %8781 = vmatpush2.bf16.msra.mxu0 0
    %8782 = vmatprep.subr.bf16.mxu0 0
    %8783 = vmatpush2.bf16.msra.mxu0 0
    %8784 = vmatprep.subr.bf16.mxu0 0
    %8785 = vmatpush2.bf16.msra.mxu0 0
    %8786 = vmatprep.subr.bf16.mxu0 0
    %8787 = vmatpush2.bf16.msra.mxu0 0
    %8788 = vmatprep.subr.bf16.mxu0 0
    %8789 = vmatpush2.bf16.msra.mxu0 0
    %8790 = vmatprep.subr.bf16.mxu0 0
    %8791 = vmatpush2.bf16.msra.mxu0 0
    %8792 = vmatprep.mubr.bf16.mxu0 0
    %8793 = vmatmul.mubr.bf16.gmra.mxu0 %v8688
    %v8794 = vpop.f32.mrf.mxu0
    %v8795 = vadd.f32 %v8710, %v8794
    %v8796 = vpop.f32.mrf.mxu0
    %v8797 = vpop.f32.mrf.mxu0
    %v8798 = vpop.f32.mrf.mxu0
    %8799 = vdwg.mxu0
    %v8800 = vmax.f32 %v8795, 0.0
    %v8801 = vpack.c.bf16 %v8800, %v8800
    %v8802 = vld [vmem:[%s12] sm:$0xf]
    %v8803 = vld [vmem:[%s12 + $0x4] sm:$0xf]
    %v8804 = vld [vmem:[%s12 + $0x8] sm:$0xf]
    %v8805 = vld [vmem:[%s12 + $0xc] sm:$0xf]
    %v8806 = vld [vmem:[%s12 + $0x10] sm:$0xf]
    %v8807 = vld [vmem:[%s12 + $0x14] sm:$0xf]
    %v8808 = vld [vmem:[%s12 + $0x18] sm:$0xf]
    %v8809 = vld [vmem:[%s12 + $0x1c] sm:$0xf]
    %v8810 = vld [vmem:[%s12 + $0x20] sm:$0xf]
    %v8811 = vld [vmem:[%s12 + $0x24] sm:$0xf]
    %v8812 = vld [vmem:[%s12 + $0x28] sm:$0xf]
    %v8813 = vld [vmem:[%s12 + $0x2c] sm:$0xf]
    %v8814 = vld [vmem:[%s12 + $0x30] sm:$0xf]
    %v8815 = vld [vmem:[%s12 + $0x34] sm:$0xf]
    %v8816 = vld [vmem:[%s12 + $0x38] sm:$0xf]
    %v8817 = vld [vmem:[%s12 + $0x3c] sm:$0xf]
    %v8818 = vld [vmem:[#allocation20] sm:$0x1]
    %v8820 = vlaneseq
    %v8821 = vshrl.u32 %v8820, 7
    %v8822 = vsub.s32 0, %v8821
    %v8823 = vrot.slane %v8818, %v8822
    %v8841 = vunpack.c.l.b16 %v8802
    %v8842 = vunpack.c.l.b16 %v8803
    %v8843 = vunpack.c.l.b16 %v8804
    %v8844 = vunpack.c.l.b16 %v8805
    %v8845 = vunpack.c.l.b16 %v8806
    %v8846 = vunpack.c.l.b16 %v8807
    %v8847 = vunpack.c.l.b16 %v8808
    %v8848 = vunpack.c.l.b16 %v8809
    %v8849 = vunpack.c.l.b16 %v8810
    %v8850 = vunpack.c.l.b16 %v8811
    %v8851 = vunpack.c.l.b16 %v8812
    %v8852 = vunpack.c.l.b16 %v8813
    %v8853 = vunpack.c.l.b16 %v8814
    %v8854 = vunpack.c.l.b16 %v8815
    %v8855 = vunpack.c.l.b16 %v8816
    %v8856 = vunpack.c.l.b16 %v8817
    %v8857 = vpack.c.b16 %v8842, %v8841
    %v8858 = vpack.c.b16 %v8844, %v8843
    %v8859 = vpack.c.b16 %v8846, %v8845
    %v8860 = vpack.c.b16 %v8848, %v8847
    %v8861 = vpack.c.b16 %v8850, %v8849
    %v8862 = vpack.c.b16 %v8852, %v8851
    %v8863 = vpack.c.b16 %v8854, %v8853
    %v8864 = vpack.c.b16 %v8856, %v8855
    %8873 = vmatprep.subr.bf16.mxu0 0
    %8874 = vmatpush1.bf16.msra.mxu0 %v8864
    %8875 = vmatprep.subr.bf16.mxu0 0
    %8876 = vmatpush1.bf16.msra.mxu0 %v8863
    %8877 = vmatprep.subr.bf16.mxu0 0
    %8878 = vmatpush1.bf16.msra.mxu0 %v8862
    %8879 = vmatprep.subr.bf16.mxu0 0
    %8880 = vmatpush1.bf16.msra.mxu0 %v8861
    %8881 = vmatprep.subr.bf16.mxu0 0
    %8882 = vmatpush1.bf16.msra.mxu0 %v8860
    %8883 = vmatprep.subr.bf16.mxu0 0
    %8884 = vmatpush1.bf16.msra.mxu0 %v8859
    %8885 = vmatprep.subr.bf16.mxu0 0
    %8886 = vmatpush1.bf16.msra.mxu0 %v8858
    %8887 = vmatprep.subr.bf16.mxu0 0
    %8888 = vmatpush1.bf16.msra.mxu0 %v8857
    %8889 = vmatprep.subr.bf16.mxu0 0
    %8890 = vmatpush2.bf16.msra.mxu0 0
    %8891 = vmatprep.subr.bf16.mxu0 0
    %8892 = vmatpush2.bf16.msra.mxu0 0
    %8893 = vmatprep.subr.bf16.mxu0 0
    %8894 = vmatpush2.bf16.msra.mxu0 0
    %8895 = vmatprep.subr.bf16.mxu0 0
    %8896 = vmatpush2.bf16.msra.mxu0 0
    %8897 = vmatprep.subr.bf16.mxu0 0
    %8898 = vmatpush2.bf16.msra.mxu0 0
    %8899 = vmatprep.subr.bf16.mxu0 0
    %8900 = vmatpush2.bf16.msra.mxu0 0
    %8901 = vmatprep.subr.bf16.mxu0 0
    %8902 = vmatpush2.bf16.msra.mxu0 0
    %8903 = vmatprep.subr.bf16.mxu0 0
    %8904 = vmatpush2.bf16.msra.mxu0 0
    %8905 = vmatprep.mubr.bf16.mxu0 0
    %8906 = vmatmul.mubr.bf16.gmra.mxu0 %v8801
    %v8907 = vpop.f32.mrf.mxu0
    %v8908 = vadd.f32 %v8823, %v8907
    %v8909 = vpop.f32.mrf.mxu0
    %v8910 = vpop.f32.mrf.mxu0
    %v8911 = vpop.f32.mrf.mxu0
    %8912 = vdwg.mxu0
    %vm8913 = vcmp.lt.s32.totalorder %v197, 3
    %v8914 = vsel %vm8913, %v8908, -1e+30
    %vm8915 = vcmask 1041408
    %v8916 = vsel %vm8915, %v8914, -inf
    %8917 = vmax.xlane.f32.xlu0 %v8916
    %v8918 = vpop.xlane.xlu0 %8917
    %v8919 = vsub.f32 %v8914, %v8918
    %v8920 = vmul.f32 %v8919, 1.442695
    %v8921 = vpow.pop %v8920
    %v8922 = vsel %vm8915, %v8921, 0.0
    %8923 = vadd.xlane.f32.xlu0 %v8922
    %v8924 = vpop.xlane.xlu0 %8923
    %v8925 = vlog2.pop %v8924
    %v8926 = vmul.f32 %v8925, 0.6931472
    %v8927 = vsub.f32 %v8919, %v8926
    %8928 = vst [vmem:[#allocation21] sm:$0x3] %v8927
    // Predicated region
    $region102: #{model_forward.1} parent=1 // pred_check
      _
    $region103: #{model_forward.1} parent=1 // pred_check_branch
      %8930 = sbr.rel (0) target = $region105
    $region104: #{model_forward.1} parent=1 // pred_region
      %s8932 = ssub.s32 32, 32
      %8933 = vsyncadd [#allocation5], %s8932
      %s8935 = sshll.u32 [#allocation21], 4
      %s8936 = int_to_ptr.vmem [resolvable:$true] %s8935
      %8938 = dma.vmem_to_hbm [thread:$0]  %s8936, 32, %s14, [#allocation5]
    $region105: #{model_forward.1} parent=1 // pred_fallthru
      _
    // Predicated region
    $region106: #{model_forward.1} parent=1 // pred_check
      _
    $region107: #{model_forward.1} parent=1 // pred_check_branch
      %8940 = sbr.rel (0) target = $region109
    $region108: #{model_forward.1} parent=1 // pred_region
      %8941 = dma.done [#allocation5], 32
    $region109: #{model_forward.1} parent=1 // pred_fallthru
      _
    %8942 = vsyncpa [#allocation4], 1
    %8943 = vsyncpa [#allocation7], 1
    %8944 = vsyncpa [#allocation10], 1
    %8945 = vsyncpa [#allocation13], 1
    %8946 = vsyncpa [#allocation16], 1
    %8947 = vsyncpa [#allocation19], 1
    %8948 = vsyncpa [#allocation5], 1

</llo_original>
